<compile_context>
chip_gen: v6e
topology: v6e:2x2x1
jax: 0.10.0
libtpu: 0.0.40
codegen_flags: <defaults>
</compile_context>

<pallas_src>
import jax
import jax.numpy as jnp
from jax.experimental import pallas as pl
from jax.experimental.pallas import tpu as pltpu

EPS = 1e-5  # BatchNorm default


def _round_up(v, m):
    return (v + m - 1) // m * m


def _bn_act(v, gamma_row, beta_row, count, activate):
    """Train-mode BatchNorm (biased variance, single pass) + optional SiLU.

    v: (M, C) f32; gamma_row/beta_row: (1, C); count: number of samples in stats.
    """
    inv_cnt = 1.0 / float(count)
    mean = jnp.sum(v, axis=0, keepdims=True) * inv_cnt
    msq = jnp.sum(v * v, axis=0, keepdims=True) * inv_cnt
    var = jnp.maximum(msq - mean * mean, 0.0)
    scale = jax.lax.rsqrt(var + EPS) * gamma_row
    y = v * scale + (beta_row - mean * scale)
    if activate:
        y = y * jax.nn.sigmoid(y)  # SiLU
    return y


# ---------------------------------------------------------------------------
# Fused kernel: one dense block (+ optional trailing TransitionUp deconv)
# ---------------------------------------------------------------------------
def dense_block(x, layers, trans=None):
    """x: (N,H,W,C0) f32 NHWC.  Returns NHWC block output, or the transition's
    upsampled (N,2H,2W,St) output when `trans` is fused in."""
    N, H, W, C0 = x.shape
    growth = layers[0]['conv']['w'].shape[-1]
    L = len(layers)
    C_total = C0 + L * growth
    M = N * H * W
    P = max(ly['dilation'] for ly in layers)  # halo needed for the 3x3 convs
    Pw = _round_up(max(P, 1), 8)              # sublane-aligned interior start in W
    Hp, Wp = H + 2 * P, W + Pw + P

    # ---- flatten parameters into the kernel input list + static metadata ----
    inputs = [x]
    meta = []
    cmid_max = 0
    halo_c = 0                                # widest feat-halo any 3x3 conv reads
    c = C0
    for ly in layers:
        has_bn = 'bottleneck' in ly
        cmid = 0
        if has_bn:
            p = ly['bottleneck']
            cin, cmid = p['w'].shape[2], p['w'].shape[3]
            cmid_max = max(cmid_max, cmid)
            inputs += [p['w'].reshape(cin, cmid),
                       p['gamma'].reshape(1, cmid), p['beta'].reshape(1, cmid)]
        else:
            halo_c = max(halo_c, c)           # this layer's 3x3 conv reads [0, c)
        p = ly['conv']
        inputs += [p['w'], p['gamma'].reshape(1, growth), p['beta'].reshape(1, growth)]
        meta.append(dict(has_bn=has_bn, d=ly['dilation'], cmid=cmid))
        c += growth

    # later_plain[l] == True  <=>  some layer l' >= l has NO bottleneck, i.e. the
    # channels written before layer l must also exist in the haloed scratch.
    later_plain = [False] * (L + 1)
    for l in range(L - 1, -1, -1):
        later_plain[l] = later_plain[l + 1] or (not meta[l]['has_bn'])

    if trans is not None:
        St = trans['w'].shape[-1]
        # (2,2,C_total,St) -> (C_total, 4*St); tap k = kh*2+kw -> cols [k*St,(k+1)*St)
        w4 = jnp.transpose(trans['w'], (2, 0, 1, 3)).reshape(C_total, 4 * St)
        g4 = jnp.tile(trans['gamma'].reshape(1, St), (1, 4))
        b4 = jnp.tile(trans['beta'].reshape(1, St), (1, 4))
        # fold matrix: column j sums the 4 same-channel tap columns (j mod St)
        idx = jnp.arange(4 * St)
        fold = (idx[:, None] % St == idx[None, :] % St).astype(jnp.float32)
        inputs += [w4, g4, b4, fold]
        out_shape = jax.ShapeDtypeStruct((M, 4 * St), jnp.float32)
    else:
        out_shape = jax.ShapeDtypeStruct((M, C_total), jnp.float32)

    n_in = len(inputs)
    has_halo = halo_c > 0
    has_mid = cmid_max > 0

    def kernel(*refs):
        in_refs = refs[:n_in]
        out_ref = refs[n_in]
        s = n_in + 1
        flat_ref = refs[s]; s += 1                 # (M, C_total) concat feature map
        halo_ref = None
        mid_ref = None
        if has_halo:
            halo_ref = refs[s]; s += 1             # zero-haloed feat (plain layers)
        if has_mid:
            mid_ref = refs[s]; s += 1              # zero-haloed bottleneck output

        x_ref = in_refs[0]
        flat_ref[:, :C0] = x_ref[...].reshape(M, C0)
        if has_halo:
            # Zero once: the halo every 3x3 conv in this block reads stays zero.
            halo_ref[...] = jnp.zeros_like(halo_ref)
            if later_plain[0]:
                halo_ref[:, P:P + H, Pw:Pw + W, :C0] = x_ref[...]
        if has_mid:
            mid_ref[...] = jnp.zeros_like(mid_ref)

        r = 1
        c_cur = C0
        for l, m in enumerate(meta):
            d = m['d']
            if m['has_bn']:
                w1, g1, b1 = in_refs[r], in_refs[r + 1], in_refs[r + 2]
                r += 3
                h = jnp.dot(flat_ref[:, :c_cur], w1[...],
                            preferred_element_type=jnp.float32)
                h = _bn_act(h, g1[...], b1[...], M, activate=True)
                mid_ref[:, P:P + H, Pw:Pw + W, :m['cmid']] = h.reshape(
                    N, H, W, m['cmid'])
                src, cin_conv, act_last = mid_ref, m['cmid'], False
            else:
                src, cin_conv, act_last = halo_ref, c_cur, True

            w3, g3, b3 = in_refs[r], in_refs[r + 1], in_refs[r + 2]
            r += 3
            # 3x3 dilated "same" conv as 9 accumulating MXU dots on the padded
            # VMEM-resident feature map (im2col would add concat relayouts for
            # no MXU benefit at these channel counts).
            acc = None
            for kh in range(3):
                h0 = P - d + kh * d
                for kw in range(3):
                    w0 = Pw - d + kw * d
                    win = src[:, h0:h0 + H, w0:w0 + W, :cin_conv]
                    part = jnp.dot(win.reshape(M, cin_conv), w3[kh, kw],
                                   preferred_element_type=jnp.float32)
                    acc = part if acc is None else acc + part
            y = _bn_act(acc, g3[...], b3[...], M, activate=act_last)
            flat_ref[:, c_cur:c_cur + growth] = y
            if has_halo and later_plain[l + 1]:
                halo_ref[:, P:P + H, Pw:Pw + W, c_cur:c_cur + growth] = y.reshape(
                    N, H, W, growth)
            c_cur += growth

        if trans is not None:
            wt, gt, bt, fref = (in_refs[r], in_refs[r + 1],
                                in_refs[r + 2], in_refs[r + 3])
            t = jnp.dot(flat_ref[...], wt[...],
                        preferred_element_type=jnp.float32)       # (M, 4*St)
            # Joint (all-4-taps) train-mode BN: fold per-column sums across taps
            # with a tiny matmul (keeps everything full-width, no lane shuffles).
            inv_cnt = 1.0 / (4.0 * M)
            sm = jnp.sum(t, axis=0, keepdims=True)
            ss = jnp.sum(t * t, axis=0, keepdims=True)
            mean = jnp.dot(sm, fref[...], preferred_element_type=jnp.float32) * inv_cnt
            msq = jnp.dot(ss, fref[...], preferred_element_type=jnp.float32) * inv_cnt
            var = jnp.maximum(msq - mean * mean, 0.0)
            scale = jax.lax.rsqrt(var + EPS) * gt[...]
            yb = t * scale + (bt[...] - mean * scale)
            out_ref[...] = yb * jax.nn.sigmoid(yb)  # SiLU; single full store
        else:
            out_ref[...] = flat_ref[...]

    scratch_shapes = [pltpu.VMEM((M, C_total), jnp.float32)]
    if has_halo:
        scratch_shapes.append(pltpu.VMEM((N, Hp, Wp, halo_c), jnp.float32))
    if has_mid:
        scratch_shapes.append(pltpu.VMEM((N, Hp, Wp, cmid_max), jnp.float32))

    out = pl.pallas_call(
        kernel,
        out_shape=out_shape,
        in_specs=[pl.BlockSpec(memory_space=pltpu.MemorySpace.VMEM)] * n_in,
        out_specs=pl.BlockSpec(memory_space=pltpu.MemorySpace.VMEM),
        scratch_shapes=scratch_shapes,
        compiler_params=pltpu.CompilerParams(vmem_limit_bytes=32 * 1024 * 1024),
    )(*inputs)

    if trans is None:
        return out.reshape(N, H, W, C_total)
    St = trans['w'].shape[-1]
    # Scatter the 4 deconv taps onto the stride-2 upsampled grid (small XLA glue).
    out = out.reshape(N, H, W, 2, 2, St).transpose(0, 1, 3, 2, 4, 5)
    return out.reshape(N, 2 * H, 2 * W, St)


# ---------------------------------------------------------------------------
# Deterministic parameter construction (mirrors DenseNetTranspose.__init__)
# ---------------------------------------------------------------------------
def build_params(key, input_size, growth_rate, block_cfg, reduction=0.5, bn_size=4,
                 mul_dilate=1, with_cc=(), with_dilate=(), last_transit=False):
    def conv_params(k, shape):
        k1, k2, k3 = jax.random.split(k, 3)
        return dict(
            w=0.1 * jax.random.normal(k1, shape, jnp.float32),
            gamma=1.0 + 0.1 * jax.random.normal(k2, (shape[-1],), jnp.float32),
            beta=0.1 * jax.random.normal(k3, (shape[-1],), jnp.float32),
        )

    modules = []
    sizes = input_size
    for i, num_layers in enumerate(block_cfg):
        blk_cc = i in with_cc
        blk_mul = mul_dilate if i in with_dilate else 0
        num_input = sizes + (2 if blk_cc else 0)
        layers = []
        for l in range(num_layers):
            key, ka, kb = jax.random.split(key, 3)
            cin = num_input + l * growth_rate
            layer = dict(with_cc=(blk_cc and l == 0), dilation=l * blk_mul + 1)
            conv_in = cin
            if cin >= (bn_size + 1) * growth_rate:
                cmid = bn_size * growth_rate
                layer['bottleneck'] = conv_params(ka, (1, 1, cin, cmid))
                conv_in = cmid
            layer['conv'] = conv_params(kb, (3, 3, conv_in, growth_rate))
            layers.append(layer)
        modules.append(dict(type='block', layers=layers))
        sizes += num_layers * growth_rate + (2 if blk_cc else 0)
        if i < len(block_cfg) - 1 or last_transit:
            key, kt = jax.random.split(key)
            strans = int(sizes * (1.0 - reduction))
            modules.append(dict(type='transition', **conv_params(kt, (2, 2, sizes, strans))))
            sizes = strans
    return modules, sizes


# ---------------------------------------------------------------------------
# Forward: one fused Pallas call per (block [+ transition]); layout glue in JAX
# ---------------------------------------------------------------------------
def densenet_transpose_forward(x_nchw, modules):
    x = jnp.transpose(x_nchw, (0, 2, 3, 1)).astype(jnp.float32)  # NCHW -> NHWC
    i = 0
    while i < len(modules):
        blk = modules[i]
        trans = None
        if i + 1 < len(modules) and modules[i + 1]['type'] == 'transition':
            trans = modules[i + 1]
            i += 2
        else:
            i += 1
        layers = blk['layers']
        if layers and layers[0]['with_cc']:
            n, h, w, _ = x.shape
            cx = jnp.broadcast_to(jnp.linspace(-1., 1., h).reshape(1, h, 1, 1),
                                  (n, h, w, 1)).astype(jnp.float32)
            cy = jnp.broadcast_to(jnp.linspace(-1., 1., w).reshape(1, 1, w, 1),
                                  (n, h, w, 1)).astype(jnp.float32)
            x = jnp.concatenate([cx, cy, x], axis=-1)
        x = dense_block(x, layers, trans)
    return jnp.transpose(x, (0, 3, 1, 2))  # NHWC -> NCHW


if __name__ == "__main__":
    key = jax.random.PRNGKey(0)
    kx, kp = jax.random.split(key)

    # DenseNetTranspose(input_size=24, growth_rate=4, block_cfg=[2, 2]) defaults:
    # reduction=0.5, bn_size=4, deconv=True, with_cc=[], with_dilate=[], 2d layers.
    N, C, H, W = 2, 24, 8, 8
    x = jax.random.normal(kx, (N, C, H, W), jnp.float32)

    modules, c_out = build_params(kp, input_size=C, growth_rate=4, block_cfg=(2, 2),
                                  reduction=0.5, bn_size=4, mul_dilate=1,
                                  with_cc=(), with_dilate=(), last_transit=False)

    y = densenet_transpose_forward(x, modules)
    y = jax.block_until_ready(y)

    # one transition-up in the middle => spatial doubled once; c_out = 24 here
    assert y.shape == (N, c_out, 2 * H, 2 * W), y.shape
    assert bool(jnp.all(jnp.isfinite(y)))
    print("KERNEL_OK")
</pallas_src>

<mosaic_0001>
module attributes {stable_mosaic.version = 11 : i64} {
  func.func @kernel(%arg0: memref<2x8x8x24xf32, #tpu.memory_space<vmem>>, %arg1: memref<24x16xf32, #tpu.memory_space<vmem>>, %arg2: memref<1x16xf32, #tpu.memory_space<vmem>>, %arg3: memref<1x16xf32, #tpu.memory_space<vmem>>, %arg4: memref<3x3x16x4xf32, #tpu.memory_space<vmem>>, %arg5: memref<1x4xf32, #tpu.memory_space<vmem>>, %arg6: memref<1x4xf32, #tpu.memory_space<vmem>>, %arg7: memref<28x16xf32, #tpu.memory_space<vmem>>, %arg8: memref<1x16xf32, #tpu.memory_space<vmem>>, %arg9: memref<1x16xf32, #tpu.memory_space<vmem>>, %arg10: memref<3x3x16x4xf32, #tpu.memory_space<vmem>>, %arg11: memref<1x4xf32, #tpu.memory_space<vmem>>, %arg12: memref<1x4xf32, #tpu.memory_space<vmem>>, %arg13: memref<32x64xf32, #tpu.memory_space<vmem>>, %arg14: memref<1x64xf32, #tpu.memory_space<vmem>>, %arg15: memref<1x64xf32, #tpu.memory_space<vmem>>, %arg16: memref<64x64xf32, #tpu.memory_space<vmem>>, %arg17: memref<128x64xf32, #tpu.memory_space<vmem>>, %arg18: memref<128x32xf32, #tpu.memory_space<vmem>>, %arg19: memref<2x10x17x16xf32, #tpu.memory_space<vmem>>) attributes {dimension_semantics = [], scalar_prefetch = 0 : i64, scratch_operands = 2 : i64, tpu.core_type = #tpu.core_type<tc>} {
    %c0 = arith.constant 0 : index
    %c0_0 = arith.constant 0 : index
    %c0_1 = arith.constant 0 : index
    %c0_2 = arith.constant 0 : index
    %0 = vector.load %arg0[%c0, %c0_0, %c0_1, %c0_2] : memref<2x8x8x24xf32, #tpu.memory_space<vmem>>, vector<2x8x8x24xf32>
    %1 = vector.shape_cast %0 : vector<2x8x8x24xf32> to vector<128x24xf32>
    %c0_3 = arith.constant 0 : index
    %c0_4 = arith.constant 0 : index
    %2 = vector.load %arg18[%c0_3, %c0_4] : memref<128x32xf32, #tpu.memory_space<vmem>>, vector<128x24xf32>
    tpu.vector_store %arg18[%c0_3, %c0_4], %1 {strides = array<i32>} : memref<128x32xf32, #tpu.memory_space<vmem>>, vector<128x24xf32>,
    %cst = arith.constant 0.000000e+00 : f32
    %3 = vector.broadcast %cst : f32 to vector<2x10x17x16xf32>
    %c0_5 = arith.constant 0 : index
    %c0_6 = arith.constant 0 : index
    %c0_7 = arith.constant 0 : index
    %c0_8 = arith.constant 0 : index
    %4 = vector.load %arg19[%c0_5, %c0_6, %c0_7, %c0_8] : memref<2x10x17x16xf32, #tpu.memory_space<vmem>>, vector<2x10x17x16xf32>
    tpu.vector_store %arg19[%c0_5, %c0_6, %c0_7, %c0_8], %3 {strides = array<i32>} : memref<2x10x17x16xf32, #tpu.memory_space<vmem>>, vector<2x10x17x16xf32>,
    %c0_9 = arith.constant 0 : index
    %c0_10 = arith.constant 0 : index
    %5 = vector.load %arg18[%c0_9, %c0_10] : memref<128x32xf32, #tpu.memory_space<vmem>>, vector<128x24xf32>
    %c0_11 = arith.constant 0 : index
    %c0_12 = arith.constant 0 : index
    %6 = vector.load %arg1[%c0_11, %c0_12] : memref<24x16xf32, #tpu.memory_space<vmem>>, vector<24x16xf32>
    %cst_13 = arith.constant dense<0.000000e+00> : vector<128x16xf32>
    %7 = tpu.matmul %5, %6, %cst_13 {dimension_numbers = #tpu.dot_dimension_numbers<[1], [0], [0], [1], [0, 0, 1, 1], [], []>} : vector<128x24xf32>, vector<24x16xf32>, vector<128x16xf32> -> vector<128x16xf32>
    %c0_14 = arith.constant 0 : index
    %c0_15 = arith.constant 0 : index
    %8 = vector.load %arg2[%c0_14, %c0_15] : memref<1x16xf32, #tpu.memory_space<vmem>>, vector<1x16xf32>
    %c0_16 = arith.constant 0 : index
    %c0_17 = arith.constant 0 : index
    %9 = vector.load %arg3[%c0_16, %c0_17] : memref<1x16xf32, #tpu.memory_space<vmem>>, vector<1x16xf32>
    %cst_18 = arith.constant dense<0.000000e+00> : vector<16xf32>
    %10 = vector.multi_reduction <add>, %7, %cst_18 [0] : vector<128x16xf32> to vector<16xf32>
    %11 = vector.shape_cast %10 : vector<16xf32> to vector<1x16xf32>
    %cst_19 = arith.constant 7.812500e-03 : f32
    %12 = vector.broadcast %cst_19 : f32 to vector<1x16xf32>
    %13 = arith.mulf %11, %12 : vector<1x16xf32>
    %14 = arith.mulf %7, %7 : vector<128x16xf32>
    %cst_20 = arith.constant dense<0.000000e+00> : vector<16xf32>
    %15 = vector.multi_reduction <add>, %14, %cst_20 [0] : vector<128x16xf32> to vector<16xf32>
    %16 = vector.shape_cast %15 : vector<16xf32> to vector<1x16xf32>
    %cst_21 = arith.constant 7.812500e-03 : f32
    %17 = vector.broadcast %cst_21 : f32 to vector<1x16xf32>
    %18 = arith.mulf %16, %17 : vector<1x16xf32>
    %19 = arith.mulf %13, %13 : vector<1x16xf32>
    %20 = arith.subf %18, %19 : vector<1x16xf32>
    %cst_22 = arith.constant 0.000000e+00 : f32
    %21 = vector.broadcast %cst_22 : f32 to vector<1x16xf32>
    %22 = arith.maximumf %20, %21 : vector<1x16xf32>
    %cst_23 = arith.constant 9.99999974E-6 : f32
    %23 = vector.broadcast %cst_23 : f32 to vector<1x16xf32>
    %24 = arith.addf %22, %23 : vector<1x16xf32>
    %25 = math.rsqrt %24 : vector<1x16xf32>
    %26 = arith.mulf %25, %8 : vector<1x16xf32>
    %27 = vector.broadcast %26 : vector<1x16xf32> to vector<128x16xf32>
    %28 = arith.mulf %7, %27 : vector<128x16xf32>
    %29 = arith.mulf %13, %26 : vector<1x16xf32>
    %30 = arith.subf %9, %29 : vector<1x16xf32>
    %31 = vector.broadcast %30 : vector<1x16xf32> to vector<128x16xf32>
    %32 = arith.addf %28, %31 : vector<128x16xf32>
    %33 = arith.negf %32 : vector<128x16xf32>
    %34 = math.exp %33 : vector<128x16xf32>
    %cst_24 = arith.constant 1.000000e+00 : f32
    %35 = vector.broadcast %cst_24 : f32 to vector<128x16xf32>
    %36 = arith.addf %35, %34 : vector<128x16xf32>
    %37 = arith.divf %35, %36 : vector<128x16xf32>
    %38 = arith.mulf %32, %37 : vector<128x16xf32>
    %39 = vector.shape_cast %38 : vector<128x16xf32> to vector<2x8x8x16xf32>
    %c0_25 = arith.constant 0 : index
    %c1 = arith.constant 1 : index
    %c8 = arith.constant 8 : index
    %c0_26 = arith.constant 0 : index
    %40 = vector.load %arg19[%c0_25, %c1, %c8, %c0_26] : memref<2x10x17x16xf32, #tpu.memory_space<vmem>>, vector<2x8x8x16xf32>
    tpu.vector_store %arg19[%c0_25, %c1, %c8, %c0_26], %39 {strides = array<i32>} : memref<2x10x17x16xf32, #tpu.memory_space<vmem>>, vector<2x8x8x16xf32>,
    %c0_27 = arith.constant 0 : index
    %c0_28 = arith.constant 0 : index
    %c7 = arith.constant 7 : index
    %c0_29 = arith.constant 0 : index
    %41 = vector.load %arg19[%c0_27, %c0_28, %c7, %c0_29] : memref<2x10x17x16xf32, #tpu.memory_space<vmem>>, vector<2x8x8x16xf32>
    %42 = vector.shape_cast %41 : vector<2x8x8x16xf32> to vector<128x16xf32>
    %c0_30 = arith.constant 0 : index
    %c0_31 = arith.constant 0 : index
    %c0_32 = arith.constant 0 : index
    %c0_33 = arith.constant 0 : index
    %43 = vector.load %arg4[%c0_30, %c0_31, %c0_32, %c0_33] : memref<3x3x16x4xf32, #tpu.memory_space<vmem>>, vector<1x1x16x4xf32>
    %44 = vector.shape_cast %43 : vector<1x1x16x4xf32> to vector<16x4xf32>
    %cst_34 = arith.constant dense<0.000000e+00> : vector<128x4xf32>
    %45 = tpu.matmul %42, %44, %cst_34 {dimension_numbers = #tpu.dot_dimension_numbers<[1], [0], [0], [1], [0, 0, 1, 1], [], []>} : vector<128x16xf32>, vector<16x4xf32>, vector<128x4xf32> -> vector<128x4xf32>
    %c0_35 = arith.constant 0 : index
    %c0_36 = arith.constant 0 : index
    %c8_37 = arith.constant 8 : index
    %c0_38 = arith.constant 0 : index
    %46 = vector.load %arg19[%c0_35, %c0_36, %c8_37, %c0_38] : memref<2x10x17x16xf32, #tpu.memory_space<vmem>>, vector<2x8x8x16xf32>
    %47 = vector.shape_cast %46 : vector<2x8x8x16xf32> to vector<128x16xf32>
    %c0_39 = arith.constant 0 : index
    %c1_40 = arith.constant 1 : index
    %c0_41 = arith.constant 0 : index
    %c0_42 = arith.constant 0 : index
    %48 = vector.load %arg4[%c0_39, %c1_40, %c0_41, %c0_42] : memref<3x3x16x4xf32, #tpu.memory_space<vmem>>, vector<1x1x16x4xf32>
    %49 = vector.shape_cast %48 : vector<1x1x16x4xf32> to vector<16x4xf32>
    %cst_43 = arith.constant dense<0.000000e+00> : vector<128x4xf32>
    %50 = tpu.matmul %47, %49, %cst_43 {dimension_numbers = #tpu.dot_dimension_numbers<[1], [0], [0], [1], [0, 0, 1, 1], [], []>} : vector<128x16xf32>, vector<16x4xf32>, vector<128x4xf32> -> vector<128x4xf32>
    %51 = arith.addf %45, %50 : vector<128x4xf32>
    %c0_44 = arith.constant 0 : index
    %c0_45 = arith.constant 0 : index
    %c9 = arith.constant 9 : index
    %c0_46 = arith.constant 0 : index
    %52 = vector.load %arg19[%c0_44, %c0_45, %c9, %c0_46] : memref<2x10x17x16xf32, #tpu.memory_space<vmem>>, vector<2x8x8x16xf32>
    %53 = vector.shape_cast %52 : vector<2x8x8x16xf32> to vector<128x16xf32>
    %c0_47 = arith.constant 0 : index
    %c2 = arith.constant 2 : index
    %c0_48 = arith.constant 0 : index
    %c0_49 = arith.constant 0 : index
    %54 = vector.load %arg4[%c0_47, %c2, %c0_48, %c0_49] : memref<3x3x16x4xf32, #tpu.memory_space<vmem>>, vector<1x1x16x4xf32>
    %55 = vector.shape_cast %54 : vector<1x1x16x4xf32> to vector<16x4xf32>
    %cst_50 = arith.constant dense<0.000000e+00> : vector<128x4xf32>
    %56 = tpu.matmul %53, %55, %cst_50 {dimension_numbers = #tpu.dot_dimension_numbers<[1], [0], [0], [1], [0, 0, 1, 1], [], []>} : vector<128x16xf32>, vector<16x4xf32>, vector<128x4xf32> -> vector<128x4xf32>
    %57 = arith.addf %51, %56 : vector<128x4xf32>
    %c0_51 = arith.constant 0 : index
    %c1_52 = arith.constant 1 : index
    %c7_53 = arith.constant 7 : index
    %c0_54 = arith.constant 0 : index
    %58 = vector.load %arg19[%c0_51, %c1_52, %c7_53, %c0_54] : memref<2x10x17x16xf32, #tpu.memory_space<vmem>>, vector<2x8x8x16xf32>
    %59 = vector.shape_cast %58 : vector<2x8x8x16xf32> to vector<128x16xf32>
    %c1_55 = arith.constant 1 : index
    %c0_56 = arith.constant 0 : index
    %c0_57 = arith.constant 0 : index
    %c0_58 = arith.constant 0 : index
    %60 = vector.load %arg4[%c1_55, %c0_56, %c0_57, %c0_58] : memref<3x3x16x4xf32, #tpu.memory_space<vmem>>, vector<1x1x16x4xf32>
    %61 = vector.shape_cast %60 : vector<1x1x16x4xf32> to vector<16x4xf32>
    %cst_59 = arith.constant dense<0.000000e+00> : vector<128x4xf32>
    %62 = tpu.matmul %59, %61, %cst_59 {dimension_numbers = #tpu.dot_dimension_numbers<[1], [0], [0], [1], [0, 0, 1, 1], [], []>} : vector<128x16xf32>, vector<16x4xf32>, vector<128x4xf32> -> vector<128x4xf32>
    %63 = arith.addf %57, %62 : vector<128x4xf32>
    %c0_60 = arith.constant 0 : index
    %c1_61 = arith.constant 1 : index
    %c8_62 = arith.constant 8 : index
    %c0_63 = arith.constant 0 : index
    %64 = vector.load %arg19[%c0_60, %c1_61, %c8_62, %c0_63] : memref<2x10x17x16xf32, #tpu.memory_space<vmem>>, vector<2x8x8x16xf32>
    %65 = vector.shape_cast %64 : vector<2x8x8x16xf32> to vector<128x16xf32>
    %c1_64 = arith.constant 1 : index
    %c1_65 = arith.constant 1 : index
    %c0_66 = arith.constant 0 : index
    %c0_67 = arith.constant 0 : index
    %66 = vector.load %arg4[%c1_64, %c1_65, %c0_66, %c0_67] : memref<3x3x16x4xf32, #tpu.memory_space<vmem>>, vector<1x1x16x4xf32>
    %67 = vector.shape_cast %66 : vector<1x1x16x4xf32> to vector<16x4xf32>
    %cst_68 = arith.constant dense<0.000000e+00> : vector<128x4xf32>
    %68 = tpu.matmul %65, %67, %cst_68 {dimension_numbers = #tpu.dot_dimension_numbers<[1], [0], [0], [1], [0, 0, 1, 1], [], []>} : vector<128x16xf32>, vector<16x4xf32>, vector<128x4xf32> -> vector<128x4xf32>
    %69 = arith.addf %63, %68 : vector<128x4xf32>
    %c0_69 = arith.constant 0 : index
    %c1_70 = arith.constant 1 : index
    %c9_71 = arith.constant 9 : index
    %c0_72 = arith.constant 0 : index
    %70 = vector.load %arg19[%c0_69, %c1_70, %c9_71, %c0_72] : memref<2x10x17x16xf32, #tpu.memory_space<vmem>>, vector<2x8x8x16xf32>
    %71 = vector.shape_cast %70 : vector<2x8x8x16xf32> to vector<128x16xf32>
    %c1_73 = arith.constant 1 : index
    %c2_74 = arith.constant 2 : index
    %c0_75 = arith.constant 0 : index
    %c0_76 = arith.constant 0 : index
    %72 = vector.load %arg4[%c1_73, %c2_74, %c0_75, %c0_76] : memref<3x3x16x4xf32, #tpu.memory_space<vmem>>, vector<1x1x16x4xf32>
    %73 = vector.shape_cast %72 : vector<1x1x16x4xf32> to vector<16x4xf32>
    %cst_77 = arith.constant dense<0.000000e+00> : vector<128x4xf32>
    %74 = tpu.matmul %71, %73, %cst_77 {dimension_numbers = #tpu.dot_dimension_numbers<[1], [0], [0], [1], [0, 0, 1, 1], [], []>} : vector<128x16xf32>, vector<16x4xf32>, vector<128x4xf32> -> vector<128x4xf32>
    %75 = arith.addf %69, %74 : vector<128x4xf32>
    %c0_78 = arith.constant 0 : index
    %c2_79 = arith.constant 2 : index
    %c7_80 = arith.constant 7 : index
    %c0_81 = arith.constant 0 : index
    %76 = vector.load %arg19[%c0_78, %c2_79, %c7_80, %c0_81] : memref<2x10x17x16xf32, #tpu.memory_space<vmem>>, vector<2x8x8x16xf32>
    %77 = vector.shape_cast %76 : vector<2x8x8x16xf32> to vector<128x16xf32>
    %c2_82 = arith.constant 2 : index
    %c0_83 = arith.constant 0 : index
    %c0_84 = arith.constant 0 : index
    %c0_85 = arith.constant 0 : index
    %78 = vector.load %arg4[%c2_82, %c0_83, %c0_84, %c0_85] : memref<3x3x16x4xf32, #tpu.memory_space<vmem>>, vector<1x1x16x4xf32>
    %79 = vector.shape_cast %78 : vector<1x1x16x4xf32> to vector<16x4xf32>
    %cst_86 = arith.constant dense<0.000000e+00> : vector<128x4xf32>
    %80 = tpu.matmul %77, %79, %cst_86 {dimension_numbers = #tpu.dot_dimension_numbers<[1], [0], [0], [1], [0, 0, 1, 1], [], []>} : vector<128x16xf32>, vector<16x4xf32>, vector<128x4xf32> -> vector<128x4xf32>
    %81 = arith.addf %75, %80 : vector<128x4xf32>
    %c0_87 = arith.constant 0 : index
    %c2_88 = arith.constant 2 : index
    %c8_89 = arith.constant 8 : index
    %c0_90 = arith.constant 0 : index
    %82 = vector.load %arg19[%c0_87, %c2_88, %c8_89, %c0_90] : memref<2x10x17x16xf32, #tpu.memory_space<vmem>>, vector<2x8x8x16xf32>
    %83 = vector.shape_cast %82 : vector<2x8x8x16xf32> to vector<128x16xf32>
    %c2_91 = arith.constant 2 : index
    %c1_92 = arith.constant 1 : index
    %c0_93 = arith.constant 0 : index
    %c0_94 = arith.constant 0 : index
    %84 = vector.load %arg4[%c2_91, %c1_92, %c0_93, %c0_94] : memref<3x3x16x4xf32, #tpu.memory_space<vmem>>, vector<1x1x16x4xf32>
    %85 = vector.shape_cast %84 : vector<1x1x16x4xf32> to vector<16x4xf32>
    %cst_95 = arith.constant dense<0.000000e+00> : vector<128x4xf32>
    %86 = tpu.matmul %83, %85, %cst_95 {dimension_numbers = #tpu.dot_dimension_numbers<[1], [0], [0], [1], [0, 0, 1, 1], [], []>} : vector<128x16xf32>, vector<16x4xf32>, vector<128x4xf32> -> vector<128x4xf32>
    %87 = arith.addf %81, %86 : vector<128x4xf32>
    %c0_96 = arith.constant 0 : index
    %c2_97 = arith.constant 2 : index
    %c9_98 = arith.constant 9 : index
    %c0_99 = arith.constant 0 : index
    %88 = vector.load %arg19[%c0_96, %c2_97, %c9_98, %c0_99] : memref<2x10x17x16xf32, #tpu.memory_space<vmem>>, vector<2x8x8x16xf32>
    %89 = vector.shape_cast %88 : vector<2x8x8x16xf32> to vector<128x16xf32>
    %c2_100 = arith.constant 2 : index
    %c2_101 = arith.constant 2 : index
    %c0_102 = arith.constant 0 : index
    %c0_103 = arith.constant 0 : index
    %90 = vector.load %arg4[%c2_100, %c2_101, %c0_102, %c0_103] : memref<3x3x16x4xf32, #tpu.memory_space<vmem>>, vector<1x1x16x4xf32>
    %91 = vector.shape_cast %90 : vector<1x1x16x4xf32> to vector<16x4xf32>
    %cst_104 = arith.constant dense<0.000000e+00> : vector<128x4xf32>
    %92 = tpu.matmul %89, %91, %cst_104 {dimension_numbers = #tpu.dot_dimension_numbers<[1], [0], [0], [1], [0, 0, 1, 1], [], []>} : vector<128x16xf32>, vector<16x4xf32>, vector<128x4xf32> -> vector<128x4xf32>
    %93 = arith.addf %87, %92 : vector<128x4xf32>
    %c0_105 = arith.constant 0 : index
    %c0_106 = arith.constant 0 : index
    %94 = vector.load %arg5[%c0_105, %c0_106] : memref<1x4xf32, #tpu.memory_space<vmem>>, vector<1x4xf32>
    %c0_107 = arith.constant 0 : index
    %c0_108 = arith.constant 0 : index
    %95 = vector.load %arg6[%c0_107, %c0_108] : memref<1x4xf32, #tpu.memory_space<vmem>>, vector<1x4xf32>
    %cst_109 = arith.constant dense<0.000000e+00> : vector<4xf32>
    %96 = vector.multi_reduction <add>, %93, %cst_109 [0] : vector<128x4xf32> to vector<4xf32>
    %97 = vector.shape_cast %96 : vector<4xf32> to vector<1x4xf32>
    %cst_110 = arith.constant 7.812500e-03 : f32
    %98 = vector.broadcast %cst_110 : f32 to vector<1x4xf32>
    %99 = arith.mulf %97, %98 : vector<1x4xf32>
    %100 = arith.mulf %93, %93 : vector<128x4xf32>
    %cst_111 = arith.constant dense<0.000000e+00> : vector<4xf32>
    %101 = vector.multi_reduction <add>, %100, %cst_111 [0] : vector<128x4xf32> to vector<4xf32>
    %102 = vector.shape_cast %101 : vector<4xf32> to vector<1x4xf32>
    %cst_112 = arith.constant 7.812500e-03 : f32
    %103 = vector.broadcast %cst_112 : f32 to vector<1x4xf32>
    %104 = arith.mulf %102, %103 : vector<1x4xf32>
    %105 = arith.mulf %99, %99 : vector<1x4xf32>
    %106 = arith.subf %104, %105 : vector<1x4xf32>
    %cst_113 = arith.constant 0.000000e+00 : f32
    %107 = vector.broadcast %cst_113 : f32 to vector<1x4xf32>
    %108 = arith.maximumf %106, %107 : vector<1x4xf32>
    %cst_114 = arith.constant 9.99999974E-6 : f32
    %109 = vector.broadcast %cst_114 : f32 to vector<1x4xf32>
    %110 = arith.addf %108, %109 : vector<1x4xf32>
    %111 = math.rsqrt %110 : vector<1x4xf32>
    %112 = arith.mulf %111, %94 : vector<1x4xf32>
    %113 = vector.broadcast %112 : vector<1x4xf32> to vector<128x4xf32>
    %114 = arith.mulf %93, %113 : vector<128x4xf32>
    %115 = arith.mulf %99, %112 : vector<1x4xf32>
    %116 = arith.subf %95, %115 : vector<1x4xf32>
    %117 = vector.broadcast %116 : vector<1x4xf32> to vector<128x4xf32>
    %118 = arith.addf %114, %117 : vector<128x4xf32>
    %c0_115 = arith.constant 0 : index
    %c24 = arith.constant 24 : index
    %119 = vector.load %arg18[%c0_115, %c24] : memref<128x32xf32, #tpu.memory_space<vmem>>, vector<128x4xf32>
    tpu.vector_store %arg18[%c0_115, %c24], %118 {strides = array<i32>} : memref<128x32xf32, #tpu.memory_space<vmem>>, vector<128x4xf32>,
    %c0_116 = arith.constant 0 : index
    %c0_117 = arith.constant 0 : index
    %120 = vector.load %arg18[%c0_116, %c0_117] : memref<128x32xf32, #tpu.memory_space<vmem>>, vector<128x28xf32>
    %c0_118 = arith.constant 0 : index
    %c0_119 = arith.constant 0 : index
    %121 = vector.load %arg7[%c0_118, %c0_119] : memref<28x16xf32, #tpu.memory_space<vmem>>, vector<28x16xf32>
    %cst_120 = arith.constant dense<0.000000e+00> : vector<128x16xf32>
    %122 = tpu.matmul %120, %121, %cst_120 {dimension_numbers = #tpu.dot_dimension_numbers<[1], [0], [0], [1], [0, 0, 1, 1], [], []>} : vector<128x28xf32>, vector<28x16xf32>, vector<128x16xf32> -> vector<128x16xf32>
    %c0_121 = arith.constant 0 : index
    %c0_122 = arith.constant 0 : index
    %123 = vector.load %arg8[%c0_121, %c0_122] : memref<1x16xf32, #tpu.memory_space<vmem>>, vector<1x16xf32>
    %c0_123 = arith.constant 0 : index
    %c0_124 = arith.constant 0 : index
    %124 = vector.load %arg9[%c0_123, %c0_124] : memref<1x16xf32, #tpu.memory_space<vmem>>, vector<1x16xf32>
    %cst_125 = arith.constant dense<0.000000e+00> : vector<16xf32>
    %125 = vector.multi_reduction <add>, %122, %cst_125 [0] : vector<128x16xf32> to vector<16xf32>
    %126 = vector.shape_cast %125 : vector<16xf32> to vector<1x16xf32>
    %cst_126 = arith.constant 7.812500e-03 : f32
    %127 = vector.broadcast %cst_126 : f32 to vector<1x16xf32>
    %128 = arith.mulf %126, %127 : vector<1x16xf32>
    %129 = arith.mulf %122, %122 : vector<128x16xf32>
    %cst_127 = arith.constant dense<0.000000e+00> : vector<16xf32>
    %130 = vector.multi_reduction <add>, %129, %cst_127 [0] : vector<128x16xf32> to vector<16xf32>
    %131 = vector.shape_cast %130 : vector<16xf32> to vector<1x16xf32>
    %cst_128 = arith.constant 7.812500e-03 : f32
    %132 = vector.broadcast %cst_128 : f32 to vector<1x16xf32>
    %133 = arith.mulf %131, %132 : vector<1x16xf32>
    %134 = arith.mulf %128, %128 : vector<1x16xf32>
    %135 = arith.subf %133, %134 : vector<1x16xf32>
    %cst_129 = arith.constant 0.000000e+00 : f32
    %136 = vector.broadcast %cst_129 : f32 to vector<1x16xf32>
    %137 = arith.maximumf %135, %136 : vector<1x16xf32>
    %cst_130 = arith.constant 9.99999974E-6 : f32
    %138 = vector.broadcast %cst_130 : f32 to vector<1x16xf32>
    %139 = arith.addf %137, %138 : vector<1x16xf32>
    %140 = math.rsqrt %139 : vector<1x16xf32>
    %141 = arith.mulf %140, %123 : vector<1x16xf32>
    %142 = vector.broadcast %141 : vector<1x16xf32> to vector<128x16xf32>
    %143 = arith.mulf %122, %142 : vector<128x16xf32>
    %144 = arith.mulf %128, %141 : vector<1x16xf32>
    %145 = arith.subf %124, %144 : vector<1x16xf32>
    %146 = vector.broadcast %145 : vector<1x16xf32> to vector<128x16xf32>
    %147 = arith.addf %143, %146 : vector<128x16xf32>
    %148 = arith.negf %147 : vector<128x16xf32>
    %149 = math.exp %148 : vector<128x16xf32>
    %cst_131 = arith.constant 1.000000e+00 : f32
    %150 = vector.broadcast %cst_131 : f32 to vector<128x16xf32>
    %151 = arith.addf %150, %149 : vector<128x16xf32>
    %152 = arith.divf %150, %151 : vector<128x16xf32>
    %153 = arith.mulf %147, %152 : vector<128x16xf32>
    %154 = vector.shape_cast %153 : vector<128x16xf32> to vector<2x8x8x16xf32>
    %c0_132 = arith.constant 0 : index
    %c1_133 = arith.constant 1 : index
    %c8_134 = arith.constant 8 : index
    %c0_135 = arith.constant 0 : index
    %155 = vector.load %arg19[%c0_132, %c1_133, %c8_134, %c0_135] : memref<2x10x17x16xf32, #tpu.memory_space<vmem>>, vector<2x8x8x16xf32>
    tpu.vector_store %arg19[%c0_132, %c1_133, %c8_134, %c0_135], %154 {strides = array<i32>} : memref<2x10x17x16xf32, #tpu.memory_space<vmem>>, vector<2x8x8x16xf32>,
    %c0_136 = arith.constant 0 : index
    %c0_137 = arith.constant 0 : index
    %c7_138 = arith.constant 7 : index
    %c0_139 = arith.constant 0 : index
    %156 = vector.load %arg19[%c0_136, %c0_137, %c7_138, %c0_139] : memref<2x10x17x16xf32, #tpu.memory_space<vmem>>, vector<2x8x8x16xf32>
    %157 = vector.shape_cast %156 : vector<2x8x8x16xf32> to vector<128x16xf32>
    %c0_140 = arith.constant 0 : index
    %c0_141 = arith.constant 0 : index
    %c0_142 = arith.constant 0 : index
    %c0_143 = arith.constant 0 : index
    %158 = vector.load %arg10[%c0_140, %c0_141, %c0_142, %c0_143] : memref<3x3x16x4xf32, #tpu.memory_space<vmem>>, vector<1x1x16x4xf32>
    %159 = vector.shape_cast %158 : vector<1x1x16x4xf32> to vector<16x4xf32>
    %cst_144 = arith.constant dense<0.000000e+00> : vector<128x4xf32>
    %160 = tpu.matmul %157, %159, %cst_144 {dimension_numbers = #tpu.dot_dimension_numbers<[1], [0], [0], [1], [0, 0, 1, 1], [], []>} : vector<128x16xf32>, vector<16x4xf32>, vector<128x4xf32> -> vector<128x4xf32>
    %c0_145 = arith.constant 0 : index
    %c0_146 = arith.constant 0 : index
    %c8_147 = arith.constant 8 : index
    %c0_148 = arith.constant 0 : index
    %161 = vector.load %arg19[%c0_145, %c0_146, %c8_147, %c0_148] : memref<2x10x17x16xf32, #tpu.memory_space<vmem>>, vector<2x8x8x16xf32>
    %162 = vector.shape_cast %161 : vector<2x8x8x16xf32> to vector<128x16xf32>
    %c0_149 = arith.constant 0 : index
    %c1_150 = arith.constant 1 : index
    %c0_151 = arith.constant 0 : index
    %c0_152 = arith.constant 0 : index
    %163 = vector.load %arg10[%c0_149, %c1_150, %c0_151, %c0_152] : memref<3x3x16x4xf32, #tpu.memory_space<vmem>>, vector<1x1x16x4xf32>
    %164 = vector.shape_cast %163 : vector<1x1x16x4xf32> to vector<16x4xf32>
    %cst_153 = arith.constant dense<0.000000e+00> : vector<128x4xf32>
    %165 = tpu.matmul %162, %164, %cst_153 {dimension_numbers = #tpu.dot_dimension_numbers<[1], [0], [0], [1], [0, 0, 1, 1], [], []>} : vector<128x16xf32>, vector<16x4xf32>, vector<128x4xf32> -> vector<128x4xf32>
    %166 = arith.addf %160, %165 : vector<128x4xf32>
    %c0_154 = arith.constant 0 : index
    %c0_155 = arith.constant 0 : index
    %c9_156 = arith.constant 9 : index
    %c0_157 = arith.constant 0 : index
    %167 = vector.load %arg19[%c0_154, %c0_155, %c9_156, %c0_157] : memref<2x10x17x16xf32, #tpu.memory_space<vmem>>, vector<2x8x8x16xf32>
    %168 = vector.shape_cast %167 : vector<2x8x8x16xf32> to vector<128x16xf32>
    %c0_158 = arith.constant 0 : index
    %c2_159 = arith.constant 2 : index
    %c0_160 = arith.constant 0 : index
    %c0_161 = arith.constant 0 : index
    %169 = vector.load %arg10[%c0_158, %c2_159, %c0_160, %c0_161] : memref<3x3x16x4xf32, #tpu.memory_space<vmem>>, vector<1x1x16x4xf32>
    %170 = vector.shape_cast %169 : vector<1x1x16x4xf32> to vector<16x4xf32>
    %cst_162 = arith.constant dense<0.000000e+00> : vector<128x4xf32>
    %171 = tpu.matmul %168, %170, %cst_162 {dimension_numbers = #tpu.dot_dimension_numbers<[1], [0], [0], [1], [0, 0, 1, 1], [], []>} : vector<128x16xf32>, vector<16x4xf32>, vector<128x4xf32> -> vector<128x4xf32>
    %172 = arith.addf %166, %171 : vector<128x4xf32>
    %c0_163 = arith.constant 0 : index
    %c1_164 = arith.constant 1 : index
    %c7_165 = arith.constant 7 : index
    %c0_166 = arith.constant 0 : index
    %173 = vector.load %arg19[%c0_163, %c1_164, %c7_165, %c0_166] : memref<2x10x17x16xf32, #tpu.memory_space<vmem>>, vector<2x8x8x16xf32>
    %174 = vector.shape_cast %173 : vector<2x8x8x16xf32> to vector<128x16xf32>
    %c1_167 = arith.constant 1 : index
    %c0_168 = arith.constant 0 : index
    %c0_169 = arith.constant 0 : index
    %c0_170 = arith.constant 0 : index
    %175 = vector.load %arg10[%c1_167, %c0_168, %c0_169, %c0_170] : memref<3x3x16x4xf32, #tpu.memory_space<vmem>>, vector<1x1x16x4xf32>
    %176 = vector.shape_cast %175 : vector<1x1x16x4xf32> to vector<16x4xf32>
    %cst_171 = arith.constant dense<0.000000e+00> : vector<128x4xf32>
    %177 = tpu.matmul %174, %176, %cst_171 {dimension_numbers = #tpu.dot_dimension_numbers<[1], [0], [0], [1], [0, 0, 1, 1], [], []>} : vector<128x16xf32>, vector<16x4xf32>, vector<128x4xf32> -> vector<128x4xf32>
    %178 = arith.addf %172, %177 : vector<128x4xf32>
    %c0_172 = arith.constant 0 : index
    %c1_173 = arith.constant 1 : index
    %c8_174 = arith.constant 8 : index
    %c0_175 = arith.constant 0 : index
    %179 = vector.load %arg19[%c0_172, %c1_173, %c8_174, %c0_175] : memref<2x10x17x16xf32, #tpu.memory_space<vmem>>, vector<2x8x8x16xf32>
    %180 = vector.shape_cast %179 : vector<2x8x8x16xf32> to vector<128x16xf32>
    %c1_176 = arith.constant 1 : index
    %c1_177 = arith.constant 1 : index
    %c0_178 = arith.constant 0 : index
    %c0_179 = arith.constant 0 : index
    %181 = vector.load %arg10[%c1_176, %c1_177, %c0_178, %c0_179] : memref<3x3x16x4xf32, #tpu.memory_space<vmem>>, vector<1x1x16x4xf32>
    %182 = vector.shape_cast %181 : vector<1x1x16x4xf32> to vector<16x4xf32>
    %cst_180 = arith.constant dense<0.000000e+00> : vector<128x4xf32>
    %183 = tpu.matmul %180, %182, %cst_180 {dimension_numbers = #tpu.dot_dimension_numbers<[1], [0], [0], [1], [0, 0, 1, 1], [], []>} : vector<128x16xf32>, vector<16x4xf32>, vector<128x4xf32> -> vector<128x4xf32>
    %184 = arith.addf %178, %183 : vector<128x4xf32>
    %c0_181 = arith.constant 0 : index
    %c1_182 = arith.constant 1 : index
    %c9_183 = arith.constant 9 : index
    %c0_184 = arith.constant 0 : index
    %185 = vector.load %arg19[%c0_181, %c1_182, %c9_183, %c0_184] : memref<2x10x17x16xf32, #tpu.memory_space<vmem>>, vector<2x8x8x16xf32>
    %186 = vector.shape_cast %185 : vector<2x8x8x16xf32> to vector<128x16xf32>
    %c1_185 = arith.constant 1 : index
    %c2_186 = arith.constant 2 : index
    %c0_187 = arith.constant 0 : index
    %c0_188 = arith.constant 0 : index
    %187 = vector.load %arg10[%c1_185, %c2_186, %c0_187, %c0_188] : memref<3x3x16x4xf32, #tpu.memory_space<vmem>>, vector<1x1x16x4xf32>
    %188 = vector.shape_cast %187 : vector<1x1x16x4xf32> to vector<16x4xf32>
    %cst_189 = arith.constant dense<0.000000e+00> : vector<128x4xf32>
    %189 = tpu.matmul %186, %188, %cst_189 {dimension_numbers = #tpu.dot_dimension_numbers<[1], [0], [0], [1], [0, 0, 1, 1], [], []>} : vector<128x16xf32>, vector<16x4xf32>, vector<128x4xf32> -> vector<128x4xf32>
    %190 = arith.addf %184, %189 : vector<128x4xf32>
    %c0_190 = arith.constant 0 : index
    %c2_191 = arith.constant 2 : index
    %c7_192 = arith.constant 7 : index
    %c0_193 = arith.constant 0 : index
    %191 = vector.load %arg19[%c0_190, %c2_191, %c7_192, %c0_193] : memref<2x10x17x16xf32, #tpu.memory_space<vmem>>, vector<2x8x8x16xf32>
    %192 = vector.shape_cast %191 : vector<2x8x8x16xf32> to vector<128x16xf32>
    %c2_194 = arith.constant 2 : index
    %c0_195 = arith.constant 0 : index
    %c0_196 = arith.constant 0 : index
    %c0_197 = arith.constant 0 : index
    %193 = vector.load %arg10[%c2_194, %c0_195, %c0_196, %c0_197] : memref<3x3x16x4xf32, #tpu.memory_space<vmem>>, vector<1x1x16x4xf32>
    %194 = vector.shape_cast %193 : vector<1x1x16x4xf32> to vector<16x4xf32>
    %cst_198 = arith.constant dense<0.000000e+00> : vector<128x4xf32>
    %195 = tpu.matmul %192, %194, %cst_198 {dimension_numbers = #tpu.dot_dimension_numbers<[1], [0], [0], [1], [0, 0, 1, 1], [], []>} : vector<128x16xf32>, vector<16x4xf32>, vector<128x4xf32> -> vector<128x4xf32>
    %196 = arith.addf %190, %195 : vector<128x4xf32>
    %c0_199 = arith.constant 0 : index
    %c2_200 = arith.constant 2 : index
    %c8_201 = arith.constant 8 : index
    %c0_202 = arith.constant 0 : index
    %197 = vector.load %arg19[%c0_199, %c2_200, %c8_201, %c0_202] : memref<2x10x17x16xf32, #tpu.memory_space<vmem>>, vector<2x8x8x16xf32>
    %198 = vector.shape_cast %197 : vector<2x8x8x16xf32> to vector<128x16xf32>
    %c2_203 = arith.constant 2 : index
    %c1_204 = arith.constant 1 : index
    %c0_205 = arith.constant 0 : index
    %c0_206 = arith.constant 0 : index
    %199 = vector.load %arg10[%c2_203, %c1_204, %c0_205, %c0_206] : memref<3x3x16x4xf32, #tpu.memory_space<vmem>>, vector<1x1x16x4xf32>
    %200 = vector.shape_cast %199 : vector<1x1x16x4xf32> to vector<16x4xf32>
    %cst_207 = arith.constant dense<0.000000e+00> : vector<128x4xf32>
    %201 = tpu.matmul %198, %200, %cst_207 {dimension_numbers = #tpu.dot_dimension_numbers<[1], [0], [0], [1], [0, 0, 1, 1], [], []>} : vector<128x16xf32>, vector<16x4xf32>, vector<128x4xf32> -> vector<128x4xf32>
    %202 = arith.addf %196, %201 : vector<128x4xf32>
    %c0_208 = arith.constant 0 : index
    %c2_209 = arith.constant 2 : index
    %c9_210 = arith.constant 9 : index
    %c0_211 = arith.constant 0 : index
    %203 = vector.load %arg19[%c0_208, %c2_209, %c9_210, %c0_211] : memref<2x10x17x16xf32, #tpu.memory_space<vmem>>, vector<2x8x8x16xf32>
    %204 = vector.shape_cast %203 : vector<2x8x8x16xf32> to vector<128x16xf32>
    %c2_212 = arith.constant 2 : index
    %c2_213 = arith.constant 2 : index
    %c0_214 = arith.constant 0 : index
    %c0_215 = arith.constant 0 : index
    %205 = vector.load %arg10[%c2_212, %c2_213, %c0_214, %c0_215] : memref<3x3x16x4xf32, #tpu.memory_space<vmem>>, vector<1x1x16x4xf32>
    %206 = vector.shape_cast %205 : vector<1x1x16x4xf32> to vector<16x4xf32>
    %cst_216 = arith.constant dense<0.000000e+00> : vector<128x4xf32>
    %207 = tpu.matmul %204, %206, %cst_216 {dimension_numbers = #tpu.dot_dimension_numbers<[1], [0], [0], [1], [0, 0, 1, 1], [], []>} : vector<128x16xf32>, vector<16x4xf32>, vector<128x4xf32> -> vector<128x4xf32>
    %208 = arith.addf %202, %207 : vector<128x4xf32>
    %c0_217 = arith.constant 0 : index
    %c0_218 = arith.constant 0 : index
    %209 = vector.load %arg11[%c0_217, %c0_218] : memref<1x4xf32, #tpu.memory_space<vmem>>, vector<1x4xf32>
    %c0_219 = arith.constant 0 : index
    %c0_220 = arith.constant 0 : index
    %210 = vector.load %arg12[%c0_219, %c0_220] : memref<1x4xf32, #tpu.memory_space<vmem>>, vector<1x4xf32>
    %cst_221 = arith.constant dense<0.000000e+00> : vector<4xf32>
    %211 = vector.multi_reduction <add>, %208, %cst_221 [0] : vector<128x4xf32> to vector<4xf32>
    %212 = vector.shape_cast %211 : vector<4xf32> to vector<1x4xf32>
    %cst_222 = arith.constant 7.812500e-03 : f32
    %213 = vector.broadcast %cst_222 : f32 to vector<1x4xf32>
    %214 = arith.mulf %212, %213 : vector<1x4xf32>
    %215 = arith.mulf %208, %208 : vector<128x4xf32>
    %cst_223 = arith.constant dense<0.000000e+00> : vector<4xf32>
    %216 = vector.multi_reduction <add>, %215, %cst_223 [0] : vector<128x4xf32> to vector<4xf32>
    %217 = vector.shape_cast %216 : vector<4xf32> to vector<1x4xf32>
    %cst_224 = arith.constant 7.812500e-03 : f32
    %218 = vector.broadcast %cst_224 : f32 to vector<1x4xf32>
    %219 = arith.mulf %217, %218 : vector<1x4xf32>
    %220 = arith.mulf %214, %214 : vector<1x4xf32>
    %221 = arith.subf %219, %220 : vector<1x4xf32>
    %cst_225 = arith.constant 0.000000e+00 : f32
    %222 = vector.broadcast %cst_225 : f32 to vector<1x4xf32>
    %223 = arith.maximumf %221, %222 : vector<1x4xf32>
    %cst_226 = arith.constant 9.99999974E-6 : f32
    %224 = vector.broadcast %cst_226 : f32 to vector<1x4xf32>
    %225 = arith.addf %223, %224 : vector<1x4xf32>
    %226 = math.rsqrt %225 : vector<1x4xf32>
    %227 = arith.mulf %226, %209 : vector<1x4xf32>
    %228 = vector.broadcast %227 : vector<1x4xf32> to vector<128x4xf32>
    %229 = arith.mulf %208, %228 : vector<128x4xf32>
    %230 = arith.mulf %214, %227 : vector<1x4xf32>
    %231 = arith.subf %210, %230 : vector<1x4xf32>
    %232 = vector.broadcast %231 : vector<1x4xf32> to vector<128x4xf32>
    %233 = arith.addf %229, %232 : vector<128x4xf32>
    %c0_227 = arith.constant 0 : index
    %c28 = arith.constant 28 : index
    %234 = vector.load %arg18[%c0_227, %c28] : memref<128x32xf32, #tpu.memory_space<vmem>>, vector<128x4xf32>
    tpu.vector_store %arg18[%c0_227, %c28], %233 {strides = array<i32>} : memref<128x32xf32, #tpu.memory_space<vmem>>, vector<128x4xf32>,
    %c0_228 = arith.constant 0 : index
    %c0_229 = arith.constant 0 : index
    %235 = vector.load %arg18[%c0_228, %c0_229] : memref<128x32xf32, #tpu.memory_space<vmem>>, vector<128x32xf32>
    %c0_230 = arith.constant 0 : index
    %c0_231 = arith.constant 0 : index
    %236 = vector.load %arg13[%c0_230, %c0_231] : memref<32x64xf32, #tpu.memory_space<vmem>>, vector<32x64xf32>
    %cst_232 = arith.constant dense<0.000000e+00> : vector<128x64xf32>
    %237 = tpu.matmul %235, %236, %cst_232 {dimension_numbers = #tpu.dot_dimension_numbers<[1], [0], [0], [1], [0, 0, 1, 1], [], []>} : vector<128x32xf32>, vector<32x64xf32>, vector<128x64xf32> -> vector<128x64xf32>
    %cst_233 = arith.constant dense<0.000000e+00> : vector<64xf32>
    %238 = vector.multi_reduction <add>, %237, %cst_233 [0] : vector<128x64xf32> to vector<64xf32>
    %239 = vector.shape_cast %238 : vector<64xf32> to vector<1x64xf32>
    %240 = arith.mulf %237, %237 : vector<128x64xf32>
    %cst_234 = arith.constant dense<0.000000e+00> : vector<64xf32>
    %241 = vector.multi_reduction <add>, %240, %cst_234 [0] : vector<128x64xf32> to vector<64xf32>
    %242 = vector.shape_cast %241 : vector<64xf32> to vector<1x64xf32>
    %c0_235 = arith.constant 0 : index
    %c0_236 = arith.constant 0 : index
    %243 = vector.load %arg16[%c0_235, %c0_236] : memref<64x64xf32, #tpu.memory_space<vmem>>, vector<64x64xf32>
    %cst_237 = arith.constant dense<0.000000e+00> : vector<1x64xf32>
    %244 = tpu.matmul %239, %243, %cst_237 {dimension_numbers = #tpu.dot_dimension_numbers<[1], [0], [0], [1], [0, 0, 1, 1], [], []>} : vector<1x64xf32>, vector<64x64xf32>, vector<1x64xf32> -> vector<1x64xf32>
    %cst_238 = arith.constant 0.001953125 : f32
    %245 = vector.broadcast %cst_238 : f32 to vector<1x64xf32>
    %246 = arith.mulf %244, %245 : vector<1x64xf32>
    %c0_239 = arith.constant 0 : index
    %c0_240 = arith.constant 0 : index
    %247 = vector.load %arg16[%c0_239, %c0_240] : memref<64x64xf32, #tpu.memory_space<vmem>>, vector<64x64xf32>
    %cst_241 = arith.constant dense<0.000000e+00> : vector<1x64xf32>
    %248 = tpu.matmul %242, %247, %cst_241 {dimension_numbers = #tpu.dot_dimension_numbers<[1], [0], [0], [1], [0, 0, 1, 1], [], []>} : vector<1x64xf32>, vector<64x64xf32>, vector<1x64xf32> -> vector<1x64xf32>
    %cst_242 = arith.constant 0.001953125 : f32
    %249 = vector.broadcast %cst_242 : f32 to vector<1x64xf32>
    %250 = arith.mulf %248, %249 : vector<1x64xf32>
    %251 = arith.mulf %246, %246 : vector<1x64xf32>
    %252 = arith.subf %250, %251 : vector<1x64xf32>
    %cst_243 = arith.constant 0.000000e+00 : f32
    %253 = vector.broadcast %cst_243 : f32 to vector<1x64xf32>
    %254 = arith.maximumf %252, %253 : vector<1x64xf32>
    %cst_244 = arith.constant 9.99999974E-6 : f32
    %255 = vector.broadcast %cst_244 : f32 to vector<1x64xf32>
    %256 = arith.addf %254, %255 : vector<1x64xf32>
    %257 = math.rsqrt %256 : vector<1x64xf32>
    %c0_245 = arith.constant 0 : index
    %c0_246 = arith.constant 0 : index
    %258 = vector.load %arg14[%c0_245, %c0_246] : memref<1x64xf32, #tpu.memory_space<vmem>>, vector<1x64xf32>
    %259 = arith.mulf %257, %258 : vector<1x64xf32>
    %260 = vector.broadcast %259 : vector<1x64xf32> to vector<128x64xf32>
    %261 = arith.mulf %237, %260 : vector<128x64xf32>
    %c0_247 = arith.constant 0 : index
    %c0_248 = arith.constant 0 : index
    %262 = vector.load %arg15[%c0_247, %c0_248] : memref<1x64xf32, #tpu.memory_space<vmem>>, vector<1x64xf32>
    %263 = arith.mulf %246, %259 : vector<1x64xf32>
    %264 = arith.subf %262, %263 : vector<1x64xf32>
    %265 = vector.broadcast %264 : vector<1x64xf32> to vector<128x64xf32>
    %266 = arith.addf %261, %265 : vector<128x64xf32>
    %267 = arith.negf %266 : vector<128x64xf32>
    %268 = math.exp %267 : vector<128x64xf32>
    %cst_249 = arith.constant 1.000000e+00 : f32
    %269 = vector.broadcast %cst_249 : f32 to vector<128x64xf32>
    %270 = arith.addf %269, %268 : vector<128x64xf32>
    %271 = arith.divf %269, %270 : vector<128x64xf32>
    %272 = arith.mulf %266, %271 : vector<128x64xf32>
    %c0_250 = arith.constant 0 : index
    %c0_251 = arith.constant 0 : index
    %273 = vector.load %arg17[%c0_250, %c0_251] : memref<128x64xf32, #tpu.memory_space<vmem>>, vector<128x64xf32>
    tpu.vector_store %arg17[%c0_250, %c0_251], %272 {strides = array<i32>} : memref<128x64xf32, #tpu.memory_space<vmem>>, vector<128x64xf32>,
    return
  }
}

</mosaic_0001>

<llo_original>
// kernel: tpu_custom_call.1
$region0: #{tpu_custom_call.1}
  #allocation0 [shape = 'u32[]', space=smem, size = 0x4, offset = 0x4, fixed_abs, tag = 'smem constant byte address 0x4 - core index']
  #allocation1 [shape = 'u32[144,128]{1,0:T(1,128)}', space=vmem, size = 0x12000, scoped, tag = 'internal scratch']
  #allocation2 [shape = 'f32[128,32]{1,0:T(8,128)}', space=vmem, size = 0x10000, scoped, tag = 'scratch operand']
  #allocation3 [shape = 'f32[2,10,17,16]{3,2,1,0:T(8,128)}', space=vmem, size = 0x3c000, scoped, tag = 'scratch operand']
  %s0 = inlined_call_operand.vmem [shape: f32[2,8,8,24], index: 0, kind: input, shape index: {}]
  %s1 = inlined_call_operand.vmem [shape: f32[24,16], index: 1, kind: input, shape index: {}]
  %s2 = inlined_call_operand.vmem [shape: f32[1,16], index: 2, kind: input, shape index: {}]
  %s3 = inlined_call_operand.vmem [shape: f32[1,16], index: 3, kind: input, shape index: {}]
  %s4 = inlined_call_operand.vmem [shape: f32[3,3,16,4], index: 4, kind: input, shape index: {}]
  %s5 = inlined_call_operand.vmem [shape: f32[1,4], index: 5, kind: input, shape index: {}]
  %s6 = inlined_call_operand.vmem [shape: f32[1,4], index: 6, kind: input, shape index: {}]
  %s7 = inlined_call_operand.vmem [shape: f32[28,16], index: 7, kind: input, shape index: {}]
  %s8 = inlined_call_operand.vmem [shape: f32[1,16], index: 8, kind: input, shape index: {}]
  %s9 = inlined_call_operand.vmem [shape: f32[1,16], index: 9, kind: input, shape index: {}]
  %s10 = inlined_call_operand.vmem [shape: f32[3,3,16,4], index: 10, kind: input, shape index: {}]
  %s11 = inlined_call_operand.vmem [shape: f32[1,4], index: 11, kind: input, shape index: {}]
  %s12 = inlined_call_operand.vmem [shape: f32[1,4], index: 12, kind: input, shape index: {}]
  %s13 = inlined_call_operand.vmem [shape: f32[32,64], index: 13, kind: input, shape index: {}]
  %s14 = inlined_call_operand.vmem [shape: f32[1,64], index: 14, kind: input, shape index: {}]
  %s15 = inlined_call_operand.vmem [shape: f32[1,64], index: 15, kind: input, shape index: {}]
  %s16 = inlined_call_operand.vmem [shape: f32[64,64], index: 16, kind: input, shape index: {}]
  %s17 = inlined_call_operand.vmem [shape: f32[128,64], index: 17, kind: output, shape index: {}]
  %s18 = sld [smem:[#allocation0]]
  $region78: #{tpu_custom_call.1} parent=0
    _
  %s20 = ssub.s32 1, %s18
  %s21 = scalar_select 0, %s20, %s18
  // Predicated region
  $region2: #{tpu_custom_call.1} parent=0 // pred_check
    _
  $region3: #{tpu_custom_call.1} parent=0 // pred_check_branch
    %23 = sbr.rel (0) target = $region5
  $region4: #{tpu_custom_call.1} parent=0 // pred_region
    _
  $region5: #{tpu_custom_call.1} parent=0 // pred_fallthru
    _
  // Predicated region
  $region6: #{tpu_custom_call.1} parent=0 // pred_check
    _
  $region7: #{tpu_custom_call.1} parent=0 // pred_check_branch
    %25 = sbr.rel (0) target = $region9
  $region8: #{tpu_custom_call.1} parent=0 // pred_region
    _
  $region9: #{tpu_custom_call.1} parent=0 // pred_fallthru
    _
  // Predicated region
  $region10: #{tpu_custom_call.1} parent=0 // pred_check
    _
  $region11: #{tpu_custom_call.1} parent=0 // pred_check_branch
    %27 = sbr.rel (0) target = $region13
  $region12: #{tpu_custom_call.1} parent=0 // pred_region
    _
  $region13: #{tpu_custom_call.1} parent=0 // pred_fallthru
    _
  // Predicated region
  $region14: #{tpu_custom_call.1} parent=0 // pred_check
    _
  $region15: #{tpu_custom_call.1} parent=0 // pred_check_branch
    %29 = sbr.rel (0) target = $region17
  $region16: #{tpu_custom_call.1} parent=0 // pred_region
    _
  $region17: #{tpu_custom_call.1} parent=0 // pred_fallthru
    _
  // Predicated region
  $region18: #{tpu_custom_call.1} parent=0 // pred_check
    _
  $region19: #{tpu_custom_call.1} parent=0 // pred_check_branch
    %31 = sbr.rel (0) target = $region21
  $region20: #{tpu_custom_call.1} parent=0 // pred_region
    _
  $region21: #{tpu_custom_call.1} parent=0 // pred_fallthru
    _
  // Predicated region
  $region22: #{tpu_custom_call.1} parent=0 // pred_check
    _
  $region23: #{tpu_custom_call.1} parent=0 // pred_check_branch
    %33 = sbr.rel (0) target = $region25
  $region24: #{tpu_custom_call.1} parent=0 // pred_region
    _
  $region25: #{tpu_custom_call.1} parent=0 // pred_fallthru
    _
  // Predicated region
  $region26: #{tpu_custom_call.1} parent=0 // pred_check
    _
  $region27: #{tpu_custom_call.1} parent=0 // pred_check_branch
    %35 = sbr.rel (0) target = $region29
  $region28: #{tpu_custom_call.1} parent=0 // pred_region
    _
  $region29: #{tpu_custom_call.1} parent=0 // pred_fallthru
    _
  // Predicated region
  $region30: #{tpu_custom_call.1} parent=0 // pred_check
    _
  $region31: #{tpu_custom_call.1} parent=0 // pred_check_branch
    %37 = sbr.rel (0) target = $region33
  $region32: #{tpu_custom_call.1} parent=0 // pred_region
    _
  $region33: #{tpu_custom_call.1} parent=0 // pred_fallthru
    _
  // Predicated region
  $region34: #{tpu_custom_call.1} parent=0 // pred_check
    _
  $region35: #{tpu_custom_call.1} parent=0 // pred_check_branch
    %39 = sbr.rel (0) target = $region37
  $region36: #{tpu_custom_call.1} parent=0 // pred_region
    _
  $region37: #{tpu_custom_call.1} parent=0 // pred_fallthru
    _
  // Predicated region
  $region38: #{tpu_custom_call.1} parent=0 // pred_check
    _
  $region39: #{tpu_custom_call.1} parent=0 // pred_check_branch
    %41 = sbr.rel (0) target = $region41
  $region40: #{tpu_custom_call.1} parent=0 // pred_region
    _
  $region41: #{tpu_custom_call.1} parent=0 // pred_fallthru
    _
  // Predicated region
  $region42: #{tpu_custom_call.1} parent=0 // pred_check
    _
  $region43: #{tpu_custom_call.1} parent=0 // pred_check_branch
    %43 = sbr.rel (0) target = $region45
  $region44: #{tpu_custom_call.1} parent=0 // pred_region
    _
  $region45: #{tpu_custom_call.1} parent=0 // pred_fallthru
    _
  // Predicated region
  $region46: #{tpu_custom_call.1} parent=0 // pred_check
    _
  $region47: #{tpu_custom_call.1} parent=0 // pred_check_branch
    %45 = sbr.rel (0) target = $region49
  $region48: #{tpu_custom_call.1} parent=0 // pred_region
    _
  $region49: #{tpu_custom_call.1} parent=0 // pred_fallthru
    _
  // Predicated region
  $region50: #{tpu_custom_call.1} parent=0 // pred_check
    _
  $region51: #{tpu_custom_call.1} parent=0 // pred_check_branch
    %47 = sbr.rel (0) target = $region53
  $region52: #{tpu_custom_call.1} parent=0 // pred_region
    _
  $region53: #{tpu_custom_call.1} parent=0 // pred_fallthru
    _
  // Predicated region
  $region54: #{tpu_custom_call.1} parent=0 // pred_check
    _
  $region55: #{tpu_custom_call.1} parent=0 // pred_check_branch
    %49 = sbr.rel (0) target = $region57
  $region56: #{tpu_custom_call.1} parent=0 // pred_region
    _
  $region57: #{tpu_custom_call.1} parent=0 // pred_fallthru
    _
  // Predicated region
  $region58: #{tpu_custom_call.1} parent=0 // pred_check
    _
  $region59: #{tpu_custom_call.1} parent=0 // pred_check_branch
    %51 = sbr.rel (0) target = $region61
  $region60: #{tpu_custom_call.1} parent=0 // pred_region
    _
  $region61: #{tpu_custom_call.1} parent=0 // pred_fallthru
    _
  // Predicated region
  $region62: #{tpu_custom_call.1} parent=0 // pred_check
    _
  $region63: #{tpu_custom_call.1} parent=0 // pred_check_branch
    %53 = sbr.rel (0) target = $region65
  $region64: #{tpu_custom_call.1} parent=0 // pred_region
    _
  $region65: #{tpu_custom_call.1} parent=0 // pred_fallthru
    _
  // Predicated region
  $region66: #{tpu_custom_call.1} parent=0 // pred_check
    _
  $region67: #{tpu_custom_call.1} parent=0 // pred_check_branch
    %55 = sbr.rel (0) target = $region69
  $region68: #{tpu_custom_call.1} parent=0 // pred_region
    _
  $region69: #{tpu_custom_call.1} parent=0 // pred_fallthru
    _
  %v56 = vld [vmem:[%s0] sm:$0xff]
  %v57 = vld [vmem:[%s0 + $0x8] sm:$0xff]
  %v58 = vld [vmem:[%s0 + $0x10] sm:$0xff]
  %v59 = vld [vmem:[%s0 + $0x18] sm:$0xff]
  %v60 = vld [vmem:[%s0 + $0x20] sm:$0xff]
  %v61 = vld [vmem:[%s0 + $0x28] sm:$0xff]
  %v62 = vld [vmem:[%s0 + $0x30] sm:$0xff]
  %v63 = vld [vmem:[%s0 + $0x38] sm:$0xff]
  %v64 = vld [vmem:[%s0 + $0x40] sm:$0xff]
  %v65 = vld [vmem:[%s0 + $0x48] sm:$0xff]
  %v66 = vld [vmem:[%s0 + $0x50] sm:$0xff]
  %v67 = vld [vmem:[%s0 + $0x58] sm:$0xff]
  %v68 = vld [vmem:[%s0 + $0x60] sm:$0xff]
  %v69 = vld [vmem:[%s0 + $0x68] sm:$0xff]
  %v70 = vld [vmem:[%s0 + $0x70] sm:$0xff]
  %v71 = vld [vmem:[%s0 + $0x78] sm:$0xff]
  %vm72 = vcmask 195584
  %73 = vst.msk [vmem:[#allocation2] sm:$0xff] %vm72, %v56
  %74 = vst.msk [vmem:[#allocation2 + $0x8] sm:$0xff] %vm72, %v57
  %75 = vst.msk [vmem:[#allocation2 + $0x10] sm:$0xff] %vm72, %v58
  %76 = vst.msk [vmem:[#allocation2 + $0x18] sm:$0xff] %vm72, %v59
  %77 = vst.msk [vmem:[#allocation2 + $0x20] sm:$0xff] %vm72, %v60
  %78 = vst.msk [vmem:[#allocation2 + $0x28] sm:$0xff] %vm72, %v61
  %79 = vst.msk [vmem:[#allocation2 + $0x30] sm:$0xff] %vm72, %v62
  %80 = vst.msk [vmem:[#allocation2 + $0x38] sm:$0xff] %vm72, %v63
  %81 = vst.msk [vmem:[#allocation2 + $0x40] sm:$0xff] %vm72, %v64
  %82 = vst.msk [vmem:[#allocation2 + $0x48] sm:$0xff] %vm72, %v65
  %83 = vst.msk [vmem:[#allocation2 + $0x50] sm:$0xff] %vm72, %v66
  %84 = vst.msk [vmem:[#allocation2 + $0x58] sm:$0xff] %vm72, %v67
  %85 = vst.msk [vmem:[#allocation2 + $0x60] sm:$0xff] %vm72, %v68
  %86 = vst.msk [vmem:[#allocation2 + $0x68] sm:$0xff] %vm72, %v69
  %87 = vst.msk [vmem:[#allocation2 + $0x70] sm:$0xff] %vm72, %v70
  %88 = vst.msk [vmem:[#allocation2 + $0x78] sm:$0xff] %vm72, %v71
  %vm89 = vcmask 130048
  %90 = vst.msk [vmem:[#allocation3] sm:$0xff] %vm89, 0.0
  %91 = vst.msk [vmem:[#allocation3 + $0x8] sm:$0xff] %vm89, 0.0
  %vm92 = vcmask 122880
  %93 = vst.msk [vmem:[#allocation3 + $0x10] sm:$0x1] %vm92, 0.0
  %94 = vst.msk [vmem:[#allocation3 + $0x18] sm:$0xff] %vm89, 0.0
  %95 = vst.msk [vmem:[#allocation3 + $0x20] sm:$0xff] %vm89, 0.0
  %96 = vst.msk [vmem:[#allocation3 + $0x28] sm:$0x1] %vm92, 0.0
  %97 = vst.msk [vmem:[#allocation3 + $0x30] sm:$0xff] %vm89, 0.0
  %98 = vst.msk [vmem:[#allocation3 + $0x38] sm:$0xff] %vm89, 0.0
  %99 = vst.msk [vmem:[#allocation3 + $0x40] sm:$0x1] %vm92, 0.0
  %100 = vst.msk [vmem:[#allocation3 + $0x48] sm:$0xff] %vm89, 0.0
  %101 = vst.msk [vmem:[#allocation3 + $0x50] sm:$0xff] %vm89, 0.0
  %102 = vst.msk [vmem:[#allocation3 + $0x58] sm:$0x1] %vm92, 0.0
  %103 = vst.msk [vmem:[#allocation3 + $0x60] sm:$0xff] %vm89, 0.0
  %104 = vst.msk [vmem:[#allocation3 + $0x68] sm:$0xff] %vm89, 0.0
  %105 = vst.msk [vmem:[#allocation3 + $0x70] sm:$0x1] %vm92, 0.0
  %106 = vst.msk [vmem:[#allocation3 + $0x78] sm:$0xff] %vm89, 0.0
  %107 = vst.msk [vmem:[#allocation3 + $0x80] sm:$0xff] %vm89, 0.0
  %108 = vst.msk [vmem:[#allocation3 + $0x88] sm:$0x1] %vm92, 0.0
  %109 = vst.msk [vmem:[#allocation3 + $0x90] sm:$0xff] %vm89, 0.0
  %110 = vst.msk [vmem:[#allocation3 + $0x98] sm:$0xff] %vm89, 0.0
  %111 = vst.msk [vmem:[#allocation3 + $0xa0] sm:$0x1] %vm92, 0.0
  %112 = vst.msk [vmem:[#allocation3 + $0xa8] sm:$0xff] %vm89, 0.0
  %113 = vst.msk [vmem:[#allocation3 + $0xb0] sm:$0xff] %vm89, 0.0
  %114 = vst.msk [vmem:[#allocation3 + $0xb8] sm:$0x1] %vm92, 0.0
  %115 = vst.msk [vmem:[#allocation3 + $0xc0] sm:$0xff] %vm89, 0.0
  %116 = vst.msk [vmem:[#allocation3 + $0xc8] sm:$0xff] %vm89, 0.0
  %117 = vst.msk [vmem:[#allocation3 + $0xd0] sm:$0x1] %vm92, 0.0
  %118 = vst.msk [vmem:[#allocation3 + $0xd8] sm:$0xff] %vm89, 0.0
  %119 = vst.msk [vmem:[#allocation3 + $0xe0] sm:$0xff] %vm89, 0.0
  %120 = vst.msk [vmem:[#allocation3 + $0xe8] sm:$0x1] %vm92, 0.0
  %121 = vst.msk [vmem:[#allocation3 + $0xf0] sm:$0xff] %vm89, 0.0
  %122 = vst.msk [vmem:[#allocation3 + $0xf8] sm:$0xff] %vm89, 0.0
  %123 = vst.msk [vmem:[#allocation3 + $0x100] sm:$0x1] %vm92, 0.0
  %124 = vst.msk [vmem:[#allocation3 + $0x108] sm:$0xff] %vm89, 0.0
  %125 = vst.msk [vmem:[#allocation3 + $0x110] sm:$0xff] %vm89, 0.0
  %126 = vst.msk [vmem:[#allocation3 + $0x118] sm:$0x1] %vm92, 0.0
  %127 = vst.msk [vmem:[#allocation3 + $0x120] sm:$0xff] %vm89, 0.0
  %128 = vst.msk [vmem:[#allocation3 + $0x128] sm:$0xff] %vm89, 0.0
  %129 = vst.msk [vmem:[#allocation3 + $0x130] sm:$0x1] %vm92, 0.0
  %130 = vst.msk [vmem:[#allocation3 + $0x138] sm:$0xff] %vm89, 0.0
  %131 = vst.msk [vmem:[#allocation3 + $0x140] sm:$0xff] %vm89, 0.0
  %132 = vst.msk [vmem:[#allocation3 + $0x148] sm:$0x1] %vm92, 0.0
  %133 = vst.msk [vmem:[#allocation3 + $0x150] sm:$0xff] %vm89, 0.0
  %134 = vst.msk [vmem:[#allocation3 + $0x158] sm:$0xff] %vm89, 0.0
  %135 = vst.msk [vmem:[#allocation3 + $0x160] sm:$0x1] %vm92, 0.0
  %136 = vst.msk [vmem:[#allocation3 + $0x168] sm:$0xff] %vm89, 0.0
  %137 = vst.msk [vmem:[#allocation3 + $0x170] sm:$0xff] %vm89, 0.0
  %138 = vst.msk [vmem:[#allocation3 + $0x178] sm:$0x1] %vm92, 0.0
  %139 = vst.msk [vmem:[#allocation3 + $0x180] sm:$0xff] %vm89, 0.0
  %140 = vst.msk [vmem:[#allocation3 + $0x188] sm:$0xff] %vm89, 0.0
  %141 = vst.msk [vmem:[#allocation3 + $0x190] sm:$0x1] %vm92, 0.0
  %142 = vst.msk [vmem:[#allocation3 + $0x198] sm:$0xff] %vm89, 0.0
  %143 = vst.msk [vmem:[#allocation3 + $0x1a0] sm:$0xff] %vm89, 0.0
  %144 = vst.msk [vmem:[#allocation3 + $0x1a8] sm:$0x1] %vm92, 0.0
  %145 = vst.msk [vmem:[#allocation3 + $0x1b0] sm:$0xff] %vm89, 0.0
  %146 = vst.msk [vmem:[#allocation3 + $0x1b8] sm:$0xff] %vm89, 0.0
  %147 = vst.msk [vmem:[#allocation3 + $0x1c0] sm:$0x1] %vm92, 0.0
  %148 = vst.msk [vmem:[#allocation3 + $0x1c8] sm:$0xff] %vm89, 0.0
  %149 = vst.msk [vmem:[#allocation3 + $0x1d0] sm:$0xff] %vm89, 0.0
  %150 = vst.msk [vmem:[#allocation3 + $0x1d8] sm:$0x1] %vm92, 0.0
  %v151 = vld [vmem:[#allocation2] sm:$0xff]
  %v152 = vld [vmem:[#allocation2 + $0x8] sm:$0xff]
  %v153 = vld [vmem:[#allocation2 + $0x10] sm:$0xff]
  %v154 = vld [vmem:[#allocation2 + $0x18] sm:$0xff]
  %v155 = vld [vmem:[#allocation2 + $0x20] sm:$0xff]
  %v156 = vld [vmem:[#allocation2 + $0x28] sm:$0xff]
  %v157 = vld [vmem:[#allocation2 + $0x30] sm:$0xff]
  %v158 = vld [vmem:[#allocation2 + $0x38] sm:$0xff]
  %v159 = vld [vmem:[#allocation2 + $0x40] sm:$0xff]
  %v160 = vld [vmem:[#allocation2 + $0x48] sm:$0xff]
  %v161 = vld [vmem:[#allocation2 + $0x50] sm:$0xff]
  %v162 = vld [vmem:[#allocation2 + $0x58] sm:$0xff]
  %v163 = vld [vmem:[#allocation2 + $0x60] sm:$0xff]
  %v164 = vld [vmem:[#allocation2 + $0x68] sm:$0xff]
  %v165 = vld [vmem:[#allocation2 + $0x70] sm:$0xff]
  %v166 = vld [vmem:[#allocation2 + $0x78] sm:$0xff]
  %v167 = vld [vmem:[%s1] sm:$0xff]
  %v168 = vld [vmem:[%s1 + $0x8] sm:$0xff]
  %v169 = vld [vmem:[%s1 + $0x10] sm:$0xff]
  %v171 = vsel %vm72, %v151, 0
  %v174 = vsel %vm72, %v152, 0
  %v177 = vsel %vm72, %v153, 0
  %v180 = vsel %vm72, %v154, 0
  %v183 = vsel %vm72, %v155, 0
  %v186 = vsel %vm72, %v156, 0
  %v189 = vsel %vm72, %v157, 0
  %v192 = vsel %vm72, %v158, 0
  %v195 = vsel %vm72, %v159, 0
  %v198 = vsel %vm72, %v160, 0
  %v201 = vsel %vm72, %v161, 0
  %v204 = vsel %vm72, %v162, 0
  %v207 = vsel %vm72, %v163, 0
  %v210 = vsel %vm72, %v164, 0
  %v213 = vsel %vm72, %v165, 0
  %v216 = vsel %vm72, %v166, 0
  %218 = vmatprep.subr.mxu0 0.0
  %219 = vmatpush1.msra.mxu0 0.0
  %220 = vmatprep.subr.mxu0 0.0
  %221 = vmatpush1.msra.mxu0 0.0
  %222 = vmatprep.subr.mxu0 0.0
  %223 = vmatpush1.msra.mxu0 0.0
  %224 = vmatprep.subr.mxu0 0.0
  %225 = vmatpush1.msra.mxu0 0.0
  %226 = vmatprep.subr.mxu0 0.0
  %227 = vmatpush1.msra.mxu0 0.0
  %228 = vmatprep.subr.mxu0 0.0
  %229 = vmatpush1.msra.mxu0 0.0
  %230 = vmatprep.subr.mxu0 0.0
  %231 = vmatpush1.msra.mxu0 0.0
  %232 = vmatprep.subr.mxu0 0.0
  %233 = vmatpush1.msra.mxu0 0.0
  %234 = vmatprep.subr.mxu0 0.0
  %235 = vmatpush1.msra.mxu0 0.0
  %236 = vmatprep.subr.mxu0 0.0
  %237 = vmatpush1.msra.mxu0 0.0
  %238 = vmatprep.subr.mxu0 0.0
  %239 = vmatpush1.msra.mxu0 0.0
  %240 = vmatprep.subr.mxu0 0.0
  %241 = vmatpush1.msra.mxu0 0.0
  %242 = vmatprep.subr.mxu0 0.0
  %243 = vmatpush1.msra.mxu0 0.0
  %244 = vmatprep.subr.mxu0 0.0
  %245 = vmatpush1.msra.mxu0 %v169
  %246 = vmatprep.subr.mxu0 0.0
  %247 = vmatpush1.msra.mxu0 %v168
  %248 = vmatprep.subr.mxu0 0.0
  %249 = vmatpush1.msra.mxu0 %v167
  %250 = vmatprep.subr.mxu0 0.0
  %251 = vmatpush2.msra.mxu0 0.0
  %252 = vmatprep.subr.mxu0 0.0
  %253 = vmatpush2.msra.mxu0 0.0
  %254 = vmatprep.subr.mxu0 0.0
  %255 = vmatpush2.msra.mxu0 0.0
  %256 = vmatprep.subr.mxu0 0.0
  %257 = vmatpush2.msra.mxu0 0.0
  %258 = vmatprep.subr.mxu0 0.0
  %259 = vmatpush2.msra.mxu0 0.0
  %260 = vmatprep.subr.mxu0 0.0
  %261 = vmatpush2.msra.mxu0 0.0
  %262 = vmatprep.subr.mxu0 0.0
  %263 = vmatpush2.msra.mxu0 0.0
  %264 = vmatprep.subr.mxu0 0.0
  %265 = vmatpush2.msra.mxu0 0.0
  %266 = vmatprep.subr.mxu0 0.0
  %267 = vmatpush2.msra.mxu0 0.0
  %268 = vmatprep.subr.mxu0 0.0
  %269 = vmatpush2.msra.mxu0 0.0
  %270 = vmatprep.subr.mxu0 0.0
  %271 = vmatpush2.msra.mxu0 0.0
  %272 = vmatprep.subr.mxu0 0.0
  %273 = vmatpush2.msra.mxu0 0.0
  %274 = vmatprep.subr.mxu0 0.0
  %275 = vmatpush2.msra.mxu0 0.0
  %276 = vmatprep.subr.mxu0 0.0
  %277 = vmatpush2.msra.mxu0 0.0
  %278 = vmatprep.subr.mxu0 0.0
  %279 = vmatpush2.msra.mxu0 0.0
  %280 = vmatprep.subr.mxu0 0.0
  %281 = vmatpush2.msra.mxu0 0.0
  %282 = vmatprep.mubr.f32.mxu0 0.0
  %283 = vmatmul.mubr.f32.gmra.mxu0 %v171
  %v284 = vpop.f32.mrf.mxu0
  %v285 = vadd.f32 0.0, %v284
  %v286 = vpop.f32.mrf.mxu0
  %287 = vmatprep.mubr.f32.mxu0 0.0
  %288 = vmatmul.mubr.f32.gmra.mxu0 %v174
  %v289 = vpop.f32.mrf.mxu0
  %v290 = vadd.f32 0.0, %v289
  %v291 = vpop.f32.mrf.mxu0
  %292 = vmatprep.mubr.f32.mxu0 0.0
  %293 = vmatmul.mubr.f32.gmra.mxu0 %v177
  %v294 = vpop.f32.mrf.mxu0
  %v295 = vadd.f32 0.0, %v294
  %v296 = vpop.f32.mrf.mxu0
  %297 = vmatprep.mubr.f32.mxu0 0.0
  %298 = vmatmul.mubr.f32.gmra.mxu0 %v180
  %v299 = vpop.f32.mrf.mxu0
  %v300 = vadd.f32 0.0, %v299
  %v301 = vpop.f32.mrf.mxu0
  %302 = vmatprep.mubr.f32.mxu0 0.0
  %303 = vmatmul.mubr.f32.gmra.mxu0 %v183
  %v304 = vpop.f32.mrf.mxu0
  %v305 = vadd.f32 0.0, %v304
  %v306 = vpop.f32.mrf.mxu0
  %307 = vmatprep.mubr.f32.mxu0 0.0
  %308 = vmatmul.mubr.f32.gmra.mxu0 %v186
  %v309 = vpop.f32.mrf.mxu0
  %v310 = vadd.f32 0.0, %v309
  %v311 = vpop.f32.mrf.mxu0
  %312 = vmatprep.mubr.f32.mxu0 0.0
  %313 = vmatmul.mubr.f32.gmra.mxu0 %v189
  %v314 = vpop.f32.mrf.mxu0
  %v315 = vadd.f32 0.0, %v314
  %v316 = vpop.f32.mrf.mxu0
  %317 = vmatprep.mubr.f32.mxu0 0.0
  %318 = vmatmul.mubr.f32.gmra.mxu0 %v192
  %v319 = vpop.f32.mrf.mxu0
  %v320 = vadd.f32 0.0, %v319
  %v321 = vpop.f32.mrf.mxu0
  %322 = vmatprep.mubr.f32.mxu0 0.0
  %323 = vmatmul.mubr.f32.gmra.mxu0 %v195
  %v324 = vpop.f32.mrf.mxu0
  %v325 = vadd.f32 0.0, %v324
  %v326 = vpop.f32.mrf.mxu0
  %327 = vmatprep.mubr.f32.mxu0 0.0
  %328 = vmatmul.mubr.f32.gmra.mxu0 %v198
  %v329 = vpop.f32.mrf.mxu0
  %v330 = vadd.f32 0.0, %v329
  %v331 = vpop.f32.mrf.mxu0
  %332 = vmatprep.mubr.f32.mxu0 0.0
  %333 = vmatmul.mubr.f32.gmra.mxu0 %v201
  %v334 = vpop.f32.mrf.mxu0
  %v335 = vadd.f32 0.0, %v334
  %v336 = vpop.f32.mrf.mxu0
  %337 = vmatprep.mubr.f32.mxu0 0.0
  %338 = vmatmul.mubr.f32.gmra.mxu0 %v204
  %v339 = vpop.f32.mrf.mxu0
  %v340 = vadd.f32 0.0, %v339
  %v341 = vpop.f32.mrf.mxu0
  %342 = vmatprep.mubr.f32.mxu0 0.0
  %343 = vmatmul.mubr.f32.gmra.mxu0 %v207
  %v344 = vpop.f32.mrf.mxu0
  %v345 = vadd.f32 0.0, %v344
  %v346 = vpop.f32.mrf.mxu0
  %347 = vmatprep.mubr.f32.mxu0 0.0
  %348 = vmatmul.mubr.f32.gmra.mxu0 %v210
  %v349 = vpop.f32.mrf.mxu0
  %v350 = vadd.f32 0.0, %v349
  %v351 = vpop.f32.mrf.mxu0
  %352 = vmatprep.mubr.f32.mxu0 0.0
  %353 = vmatmul.mubr.f32.gmra.mxu0 %v213
  %v354 = vpop.f32.mrf.mxu0
  %v355 = vadd.f32 0.0, %v354
  %v356 = vpop.f32.mrf.mxu0
  %357 = vmatprep.mubr.f32.mxu0 0.0
  %358 = vmatmul.mubr.f32.gmra.mxu0 %v216
  %v359 = vpop.f32.mrf.mxu0
  %v360 = vadd.f32 0.0, %v359
  %v361 = vpop.f32.mrf.mxu0
  %362 = vdwg.mxu0
  %v363 = vld [vmem:[%s2] sm:$0x1]
  %v364 = vld [vmem:[%s3] sm:$0x1]
  %v365 = vsel %vm89, %v285, 0.0
  %v366 = vsel %vm89, %v290, 0.0
  %v367 = vadd.f32 %v365, %v366
  %v368 = vsel %vm89, %v295, 0.0
  %v369 = vadd.f32 %v367, %v368
  %v370 = vsel %vm89, %v300, 0.0
  %v371 = vadd.f32 %v369, %v370
  %v372 = vsel %vm89, %v305, 0.0
  %v373 = vadd.f32 %v371, %v372
  %v374 = vsel %vm89, %v310, 0.0
  %v375 = vadd.f32 %v373, %v374
  %v376 = vsel %vm89, %v315, 0.0
  %v377 = vadd.f32 %v375, %v376
  %v378 = vsel %vm89, %v320, 0.0
  %v379 = vadd.f32 %v377, %v378
  %v380 = vsel %vm89, %v325, 0.0
  %v381 = vadd.f32 %v379, %v380
  %v382 = vsel %vm89, %v330, 0.0
  %v383 = vadd.f32 %v381, %v382
  %v384 = vsel %vm89, %v335, 0.0
  %v385 = vadd.f32 %v383, %v384
  %v386 = vsel %vm89, %v340, 0.0
  %v387 = vadd.f32 %v385, %v386
  %v388 = vsel %vm89, %v345, 0.0
  %v389 = vadd.f32 %v387, %v388
  %v390 = vsel %vm89, %v350, 0.0
  %v391 = vadd.f32 %v389, %v390
  %v392 = vsel %vm89, %v355, 0.0
  %v393 = vadd.f32 %v391, %v392
  %v394 = vsel %vm89, %v360, 0.0
  %v395 = vadd.f32 %v393, %v394
  %v396 = vrot.slane %v395, 4
  %v397 = vadd.f32 %v395, %v396
  %v398 = vrot.slane %v397, 2
  %v399 = vadd.f32 %v397, %v398
  %v400 = vrot.slane %v399, 1
  %v401 = vadd.f32 %v399, %v400
  %v402 = vmul.f32 %v401, 0.0078125
  %v403 = vmul.f32 %v285, %v285
  %v404 = vmul.f32 %v290, %v290
  %v405 = vmul.f32 %v295, %v295
  %v406 = vmul.f32 %v300, %v300
  %v407 = vmul.f32 %v305, %v305
  %v408 = vmul.f32 %v310, %v310
  %v409 = vmul.f32 %v315, %v315
  %v410 = vmul.f32 %v320, %v320
  %v411 = vmul.f32 %v325, %v325
  %v412 = vmul.f32 %v330, %v330
  %v413 = vmul.f32 %v335, %v335
  %v414 = vmul.f32 %v340, %v340
  %v415 = vmul.f32 %v345, %v345
  %v416 = vmul.f32 %v350, %v350
  %v417 = vmul.f32 %v355, %v355
  %v418 = vmul.f32 %v360, %v360
  %v419 = vsel %vm89, %v403, 0.0
  %v420 = vsel %vm89, %v404, 0.0
  %v421 = vadd.f32 %v419, %v420
  %v422 = vsel %vm89, %v405, 0.0
  %v423 = vadd.f32 %v421, %v422
  %v424 = vsel %vm89, %v406, 0.0
  %v425 = vadd.f32 %v423, %v424
  %v426 = vsel %vm89, %v407, 0.0
  %v427 = vadd.f32 %v425, %v426
  %v428 = vsel %vm89, %v408, 0.0
  %v429 = vadd.f32 %v427, %v428
  %v430 = vsel %vm89, %v409, 0.0
  %v431 = vadd.f32 %v429, %v430
  %v432 = vsel %vm89, %v410, 0.0
  %v433 = vadd.f32 %v431, %v432
  %v434 = vsel %vm89, %v411, 0.0
  %v435 = vadd.f32 %v433, %v434
  %v436 = vsel %vm89, %v412, 0.0
  %v437 = vadd.f32 %v435, %v436
  %v438 = vsel %vm89, %v413, 0.0
  %v439 = vadd.f32 %v437, %v438
  %v440 = vsel %vm89, %v414, 0.0
  %v441 = vadd.f32 %v439, %v440
  %v442 = vsel %vm89, %v415, 0.0
  %v443 = vadd.f32 %v441, %v442
  %v444 = vsel %vm89, %v416, 0.0
  %v445 = vadd.f32 %v443, %v444
  %v446 = vsel %vm89, %v417, 0.0
  %v447 = vadd.f32 %v445, %v446
  %v448 = vsel %vm89, %v418, 0.0
  %v449 = vadd.f32 %v447, %v448
  %v450 = vrot.slane %v449, 4
  %v451 = vadd.f32 %v449, %v450
  %v452 = vrot.slane %v451, 2
  %v453 = vadd.f32 %v451, %v452
  %v454 = vrot.slane %v453, 1
  %v455 = vadd.f32 %v453, %v454
  %v456 = vmul.f32 %v455, 0.0078125
  %v457 = vmul.f32 %v402, %v402
  %v458 = vsub.f32 %v456, %v457
  %v459 = vmax.f32 %v458, 0.0
  %v460 = vadd.f32 %v459, 1e-05
  %v461 = vrsqrt.pop %v460
  %v462 = vmul.f32 %v461, %v363
  %v463 = vlaneseq
  %v464 = vshrl.u32 %v463, 7
  %v465 = vsub.s32 0, %v464
  %v466 = vrot.slane %v462, %v465
  %v467 = vmul.f32 %v285, %v466
  %v468 = vmul.f32 %v290, %v466
  %v469 = vmul.f32 %v295, %v466
  %v470 = vmul.f32 %v300, %v466
  %v471 = vmul.f32 %v305, %v466
  %v472 = vmul.f32 %v310, %v466
  %v473 = vmul.f32 %v315, %v466
  %v474 = vmul.f32 %v320, %v466
  %v475 = vmul.f32 %v325, %v466
  %v476 = vmul.f32 %v330, %v466
  %v477 = vmul.f32 %v335, %v466
  %v478 = vmul.f32 %v340, %v466
  %v479 = vmul.f32 %v345, %v466
  %v480 = vmul.f32 %v350, %v466
  %v481 = vmul.f32 %v355, %v466
  %v482 = vmul.f32 %v360, %v466
  %v483 = vmul.f32 %v402, %v462
  %v484 = vsub.f32 %v364, %v483
  %v486 = vlaneseq
  %v487 = vshrl.u32 %v486, 7
  %v488 = vsub.s32 0, %v487
  %v489 = vrot.slane %v484, %v488
  %v491 = vadd.f32 %v467, %v489
  %v492 = vadd.f32 %v468, %v489
  %v493 = vadd.f32 %v469, %v489
  %v494 = vadd.f32 %v470, %v489
  %v495 = vadd.f32 %v471, %v489
  %v496 = vadd.f32 %v472, %v489
  %v497 = vadd.f32 %v473, %v489
  %v498 = vadd.f32 %v474, %v489
  %v499 = vadd.f32 %v475, %v489
  %v500 = vadd.f32 %v476, %v489
  %v501 = vadd.f32 %v477, %v489
  %v502 = vadd.f32 %v478, %v489
  %v503 = vadd.f32 %v479, %v489
  %v504 = vadd.f32 %v480, %v489
  %v505 = vadd.f32 %v481, %v489
  %v506 = vadd.f32 %v482, %v489
  %v507 = vxor.u32 %v491, 2147483648
  %v508 = vxor.u32 %v492, 2147483648
  %v509 = vxor.u32 %v493, 2147483648
  %v510 = vxor.u32 %v494, 2147483648
  %v511 = vxor.u32 %v495, 2147483648
  %v512 = vxor.u32 %v496, 2147483648
  %v513 = vxor.u32 %v497, 2147483648
  %v514 = vxor.u32 %v498, 2147483648
  %v515 = vxor.u32 %v499, 2147483648
  %v516 = vxor.u32 %v500, 2147483648
  %v517 = vxor.u32 %v501, 2147483648
  %v518 = vxor.u32 %v502, 2147483648
  %v519 = vxor.u32 %v503, 2147483648
  %v520 = vxor.u32 %v504, 2147483648
  %v521 = vxor.u32 %v505, 2147483648
  %v522 = vxor.u32 %v506, 2147483648
  %v523 = vmul.f32 %v507, 1.442695
  %v524 = vpow.pop %v523
  %v525 = vmul.f32 %v508, 1.442695
  %v526 = vpow.pop %v525
  %v527 = vmul.f32 %v509, 1.442695
  %v528 = vpow.pop %v527
  %v529 = vmul.f32 %v510, 1.442695
  %v530 = vpow.pop %v529
  %v531 = vmul.f32 %v511, 1.442695
  %v532 = vpow.pop %v531
  %v533 = vmul.f32 %v512, 1.442695
  %v534 = vpow.pop %v533
  %v535 = vmul.f32 %v513, 1.442695
  %v536 = vpow.pop %v535
  %v537 = vmul.f32 %v514, 1.442695
  %v538 = vpow.pop %v537
  %v539 = vmul.f32 %v515, 1.442695
  %v540 = vpow.pop %v539
  %v541 = vmul.f32 %v516, 1.442695
  %v542 = vpow.pop %v541
  %v543 = vmul.f32 %v517, 1.442695
  %v544 = vpow.pop %v543
  %v545 = vmul.f32 %v518, 1.442695
  %v546 = vpow.pop %v545
  %v547 = vmul.f32 %v519, 1.442695
  %v548 = vpow.pop %v547
  %v549 = vmul.f32 %v520, 1.442695
  %v550 = vpow.pop %v549
  %v551 = vmul.f32 %v521, 1.442695
  %v552 = vpow.pop %v551
  %v553 = vmul.f32 %v522, 1.442695
  %v554 = vpow.pop %v553
  %v555 = vadd.f32 %v524, 1.0
  %v556 = vadd.f32 %v526, 1.0
  %v557 = vadd.f32 %v528, 1.0
  %v558 = vadd.f32 %v530, 1.0
  %v559 = vadd.f32 %v532, 1.0
  %v560 = vadd.f32 %v534, 1.0
  %v561 = vadd.f32 %v536, 1.0
  %v562 = vadd.f32 %v538, 1.0
  %v563 = vadd.f32 %v540, 1.0
  %v564 = vadd.f32 %v542, 1.0
  %v565 = vadd.f32 %v544, 1.0
  %v566 = vadd.f32 %v546, 1.0
  %v567 = vadd.f32 %v548, 1.0
  %v568 = vadd.f32 %v550, 1.0
  %v569 = vadd.f32 %v552, 1.0
  %v570 = vadd.f32 %v554, 1.0
  %v571 = vrcp.pop %v555
  %v572 = vmul.f32 1.0, %v571
  %v573 = vrcp.pop %v556
  %v574 = vmul.f32 1.0, %v573
  %v575 = vrcp.pop %v557
  %v576 = vmul.f32 1.0, %v575
  %v577 = vrcp.pop %v558
  %v578 = vmul.f32 1.0, %v577
  %v579 = vrcp.pop %v559
  %v580 = vmul.f32 1.0, %v579
  %v581 = vrcp.pop %v560
  %v582 = vmul.f32 1.0, %v581
  %v583 = vrcp.pop %v561
  %v584 = vmul.f32 1.0, %v583
  %v585 = vrcp.pop %v562
  %v586 = vmul.f32 1.0, %v585
  %v587 = vrcp.pop %v563
  %v588 = vmul.f32 1.0, %v587
  %v589 = vrcp.pop %v564
  %v590 = vmul.f32 1.0, %v589
  %v591 = vrcp.pop %v565
  %v592 = vmul.f32 1.0, %v591
  %v593 = vrcp.pop %v566
  %v594 = vmul.f32 1.0, %v593
  %v595 = vrcp.pop %v567
  %v596 = vmul.f32 1.0, %v595
  %v597 = vrcp.pop %v568
  %v598 = vmul.f32 1.0, %v597
  %v599 = vrcp.pop %v569
  %v600 = vmul.f32 1.0, %v599
  %v601 = vrcp.pop %v570
  %v602 = vmul.f32 1.0, %v601
  %v603 = vmul.f32 %v491, %v572
  %v604 = vmul.f32 %v492, %v574
  %v605 = vmul.f32 %v493, %v576
  %v606 = vmul.f32 %v494, %v578
  %v607 = vmul.f32 %v495, %v580
  %v608 = vmul.f32 %v496, %v582
  %v609 = vmul.f32 %v497, %v584
  %v610 = vmul.f32 %v498, %v586
  %v611 = vmul.f32 %v499, %v588
  %v612 = vmul.f32 %v500, %v590
  %v613 = vmul.f32 %v501, %v592
  %v614 = vmul.f32 %v502, %v594
  %v615 = vmul.f32 %v503, %v596
  %v616 = vmul.f32 %v504, %v598
  %v617 = vmul.f32 %v505, %v600
  %v618 = vmul.f32 %v506, %v602
  %s619 = scalar_lea.vmem [#allocation3], 24
  %620 = vst.msk [vmem:[%s619 + $0x8] sm:$0xff] %vm89, %v603
  %621 = vst.msk [vmem:[%s619 + $0x20] sm:$0xff] %vm89, %v604
  %622 = vst.msk [vmem:[%s619 + $0x38] sm:$0xff] %vm89, %v605
  %623 = vst.msk [vmem:[%s619 + $0x50] sm:$0xff] %vm89, %v606
  %624 = vst.msk [vmem:[%s619 + $0x68] sm:$0xff] %vm89, %v607
  %625 = vst.msk [vmem:[%s619 + $0x80] sm:$0xff] %vm89, %v608
  %626 = vst.msk [vmem:[%s619 + $0x98] sm:$0xff] %vm89, %v609
  %627 = vst.msk [vmem:[%s619 + $0xb0] sm:$0xff] %vm89, %v610
  %628 = vst.msk [vmem:[%s619 + $0xf8] sm:$0xff] %vm89, %v611
  %629 = vst.msk [vmem:[%s619 + $0x110] sm:$0xff] %vm89, %v612
  %630 = vst.msk [vmem:[%s619 + $0x128] sm:$0xff] %vm89, %v613
  %631 = vst.msk [vmem:[%s619 + $0x140] sm:$0xff] %vm89, %v614
  %632 = vst.msk [vmem:[%s619 + $0x158] sm:$0xff] %vm89, %v615
  %633 = vst.msk [vmem:[%s619 + $0x170] sm:$0xff] %vm89, %v616
  %634 = vst.msk [vmem:[%s619 + $0x188] sm:$0xff] %vm89, %v617
  %635 = vst.msk [vmem:[%s619 + $0x1a0] sm:$0xff] %vm89, %v618
  %v636 = vld [vmem:[#allocation3 + $0x7] sm:$0xff]
  %v637 = vld [vmem:[#allocation3 + $0x1f] sm:$0xff]
  %v638 = vld [vmem:[#allocation3 + $0x37] sm:$0xff]
  %v639 = vld [vmem:[#allocation3 + $0x4f] sm:$0xff]
  %v640 = vld [vmem:[#allocation3 + $0x67] sm:$0xff]
  %v641 = vld [vmem:[#allocation3 + $0x7f] sm:$0xff]
  %v642 = vld [vmem:[#allocation3 + $0x97] sm:$0xff]
  %v643 = vld [vmem:[#allocation3 + $0xaf] sm:$0xff]
  %v644 = vld [vmem:[#allocation3 + $0xf7] sm:$0xff]
  %v645 = vld [vmem:[#allocation3 + $0x10f] sm:$0xff]
  %v646 = vld [vmem:[#allocation3 + $0x127] sm:$0xff]
  %v647 = vld [vmem:[#allocation3 + $0x13f] sm:$0xff]
  %v648 = vld [vmem:[#allocation3 + $0x157] sm:$0xff]
  %v649 = vld [vmem:[#allocation3 + $0x16f] sm:$0xff]
  %v650 = vld [vmem:[#allocation3 + $0x187] sm:$0xff]
  %v651 = vld [vmem:[#allocation3 + $0x19f] sm:$0xff]
  %v652 = vld [vmem:[%s4] sm:$0xff]
  %v653 = vld [vmem:[%s4 + $0x8] sm:$0xff]
  %v654 = vld [vmem:[#allocation3 + $0x8] sm:$0xff]
  %v655 = vld [vmem:[#allocation3 + $0x20] sm:$0xff]
  %v656 = vld [vmem:[#allocation3 + $0x38] sm:$0xff]
  %v657 = vld [vmem:[#allocation3 + $0x50] sm:$0xff]
  %v658 = vld [vmem:[#allocation3 + $0x68] sm:$0xff]
  %v659 = vld [vmem:[#allocation3 + $0x80] sm:$0xff]
  %v660 = vld [vmem:[#allocation3 + $0x98] sm:$0xff]
  %v661 = vld [vmem:[#allocation3 + $0xb0] sm:$0xff]
  %v662 = vld [vmem:[#allocation3 + $0xf8] sm:$0xff]
  %v663 = vld [vmem:[#allocation3 + $0x110] sm:$0xff]
  %v664 = vld [vmem:[#allocation3 + $0x128] sm:$0xff]
  %v665 = vld [vmem:[#allocation3 + $0x140] sm:$0xff]
  %v666 = vld [vmem:[#allocation3 + $0x158] sm:$0xff]
  %v667 = vld [vmem:[#allocation3 + $0x170] sm:$0xff]
  %v668 = vld [vmem:[#allocation3 + $0x188] sm:$0xff]
  %v669 = vld [vmem:[#allocation3 + $0x1a0] sm:$0xff]
  %s670 = scalar_lea.vmem %s4, 16
  %v671 = vld [vmem:[%s670] sm:$0xff]
  %v672 = vld [vmem:[%s670 + $0x8] sm:$0xff]
  %v674 = vsel %vm89, %v654, 0
  %v677 = vsel %vm89, %v655, 0
  %v680 = vsel %vm89, %v656, 0
  %v683 = vsel %vm89, %v657, 0
  %v686 = vsel %vm89, %v658, 0
  %v689 = vsel %vm89, %v659, 0
  %v692 = vsel %vm89, %v660, 0
  %v695 = vsel %vm89, %v661, 0
  %v698 = vsel %vm89, %v662, 0
  %v701 = vsel %vm89, %v663, 0
  %v704 = vsel %vm89, %v664, 0
  %v707 = vsel %vm89, %v665, 0
  %v710 = vsel %vm89, %v666, 0
  %v713 = vsel %vm89, %v667, 0
  %v716 = vsel %vm89, %v668, 0
  %v719 = vsel %vm89, %v669, 0
  %721 = vmatprep.subr.mxu0 0.0
  %722 = vmatpush1.msra.mxu0 0.0
  %723 = vmatprep.subr.mxu0 0.0
  %724 = vmatpush1.msra.mxu0 0.0
  %725 = vmatprep.subr.mxu0 0.0
  %726 = vmatpush1.msra.mxu0 0.0
  %727 = vmatprep.subr.mxu0 0.0
  %728 = vmatpush1.msra.mxu0 0.0
  %729 = vmatprep.subr.mxu0 0.0
  %730 = vmatpush1.msra.mxu0 0.0
  %731 = vmatprep.subr.mxu0 0.0
  %732 = vmatpush1.msra.mxu0 0.0
  %733 = vmatprep.subr.mxu0 0.0
  %734 = vmatpush1.msra.mxu0 0.0
  %735 = vmatprep.subr.mxu0 0.0
  %736 = vmatpush1.msra.mxu0 0.0
  %737 = vmatprep.subr.mxu0 0.0
  %738 = vmatpush1.msra.mxu0 0.0
  %739 = vmatprep.subr.mxu0 0.0
  %740 = vmatpush1.msra.mxu0 0.0
  %741 = vmatprep.subr.mxu0 0.0
  %742 = vmatpush1.msra.mxu0 0.0
  %743 = vmatprep.subr.mxu0 0.0
  %744 = vmatpush1.msra.mxu0 0.0
  %745 = vmatprep.subr.mxu0 0.0
  %746 = vmatpush1.msra.mxu0 0.0
  %747 = vmatprep.subr.mxu0 0.0
  %748 = vmatpush1.msra.mxu0 0.0
  %749 = vmatprep.subr.mxu0 0.0
  %750 = vmatpush1.msra.mxu0 %v672
  %751 = vmatprep.subr.mxu0 0.0
  %752 = vmatpush1.msra.mxu0 %v671
  %753 = vmatprep.subr.mxu0 0.0
  %754 = vmatpush2.msra.mxu0 0.0
  %755 = vmatprep.subr.mxu0 0.0
  %756 = vmatpush2.msra.mxu0 0.0
  %757 = vmatprep.subr.mxu0 0.0
  %758 = vmatpush2.msra.mxu0 0.0
  %759 = vmatprep.subr.mxu0 0.0
  %760 = vmatpush2.msra.mxu0 0.0
  %761 = vmatprep.subr.mxu0 0.0
  %762 = vmatpush2.msra.mxu0 0.0
  %763 = vmatprep.subr.mxu0 0.0
  %764 = vmatpush2.msra.mxu0 0.0
  %765 = vmatprep.subr.mxu0 0.0
  %766 = vmatpush2.msra.mxu0 0.0
  %767 = vmatprep.subr.mxu0 0.0
  %768 = vmatpush2.msra.mxu0 0.0
  %769 = vmatprep.subr.mxu0 0.0
  %770 = vmatpush2.msra.mxu0 0.0
  %771 = vmatprep.subr.mxu0 0.0
  %772 = vmatpush2.msra.mxu0 0.0
  %773 = vmatprep.subr.mxu0 0.0
  %774 = vmatpush2.msra.mxu0 0.0
  %775 = vmatprep.subr.mxu0 0.0
  %776 = vmatpush2.msra.mxu0 0.0
  %777 = vmatprep.subr.mxu0 0.0
  %778 = vmatpush2.msra.mxu0 0.0
  %779 = vmatprep.subr.mxu0 0.0
  %780 = vmatpush2.msra.mxu0 0.0
  %781 = vmatprep.subr.mxu0 0.0
  %782 = vmatpush2.msra.mxu0 0.0
  %783 = vmatprep.subr.mxu0 0.0
  %784 = vmatpush2.msra.mxu0 0.0
  %785 = vmatprep.mubr.f32.mxu0 0.0
  %786 = vmatmul.mubr.f32.gmra.mxu0 %v674
  %v787 = vpop.f32.mrf.mxu0
  %v788 = vadd.f32 0.0, %v787
  %v789 = vpop.f32.mrf.mxu0
  %790 = vmatprep.mubr.f32.mxu0 0.0
  %791 = vmatmul.mubr.f32.gmra.mxu0 %v677
  %v792 = vpop.f32.mrf.mxu0
  %v793 = vadd.f32 0.0, %v792
  %v794 = vpop.f32.mrf.mxu0
  %795 = vmatprep.mubr.f32.mxu0 0.0
  %796 = vmatmul.mubr.f32.gmra.mxu0 %v680
  %v797 = vpop.f32.mrf.mxu0
  %v798 = vadd.f32 0.0, %v797
  %v799 = vpop.f32.mrf.mxu0
  %800 = vmatprep.mubr.f32.mxu0 0.0
  %801 = vmatmul.mubr.f32.gmra.mxu0 %v683
  %v802 = vpop.f32.mrf.mxu0
  %v803 = vadd.f32 0.0, %v802
  %v804 = vpop.f32.mrf.mxu0
  %805 = vmatprep.mubr.f32.mxu0 0.0
  %806 = vmatmul.mubr.f32.gmra.mxu0 %v686
  %v807 = vpop.f32.mrf.mxu0
  %v808 = vadd.f32 0.0, %v807
  %v809 = vpop.f32.mrf.mxu0
  %810 = vmatprep.mubr.f32.mxu0 0.0
  %811 = vmatmul.mubr.f32.gmra.mxu0 %v689
  %v812 = vpop.f32.mrf.mxu0
  %v813 = vadd.f32 0.0, %v812
  %v814 = vpop.f32.mrf.mxu0
  %815 = vmatprep.mubr.f32.mxu0 0.0
  %816 = vmatmul.mubr.f32.gmra.mxu0 %v692
  %v817 = vpop.f32.mrf.mxu0
  %v818 = vadd.f32 0.0, %v817
  %v819 = vpop.f32.mrf.mxu0
  %820 = vmatprep.mubr.f32.mxu0 0.0
  %821 = vmatmul.mubr.f32.gmra.mxu0 %v695
  %v822 = vpop.f32.mrf.mxu0
  %v823 = vadd.f32 0.0, %v822
  %v824 = vpop.f32.mrf.mxu0
  %825 = vmatprep.mubr.f32.mxu0 0.0
  %826 = vmatmul.mubr.f32.gmra.mxu0 %v698
  %v827 = vpop.f32.mrf.mxu0
  %v828 = vadd.f32 0.0, %v827
  %v829 = vpop.f32.mrf.mxu0
  %830 = vmatprep.mubr.f32.mxu0 0.0
  %831 = vmatmul.mubr.f32.gmra.mxu0 %v701
  %v832 = vpop.f32.mrf.mxu0
  %v833 = vadd.f32 0.0, %v832
  %v834 = vpop.f32.mrf.mxu0
  %835 = vmatprep.mubr.f32.mxu0 0.0
  %836 = vmatmul.mubr.f32.gmra.mxu0 %v704
  %v837 = vpop.f32.mrf.mxu0
  %v838 = vadd.f32 0.0, %v837
  %v839 = vpop.f32.mrf.mxu0
  %840 = vmatprep.mubr.f32.mxu0 0.0
  %841 = vmatmul.mubr.f32.gmra.mxu0 %v707
  %v842 = vpop.f32.mrf.mxu0
  %v843 = vadd.f32 0.0, %v842
  %v844 = vpop.f32.mrf.mxu0
  %845 = vmatprep.mubr.f32.mxu0 0.0
  %846 = vmatmul.mubr.f32.gmra.mxu0 %v710
  %v847 = vpop.f32.mrf.mxu0
  %v848 = vadd.f32 0.0, %v847
  %v849 = vpop.f32.mrf.mxu0
  %850 = vmatprep.mubr.f32.mxu0 0.0
  %851 = vmatmul.mubr.f32.gmra.mxu0 %v713
  %v852 = vpop.f32.mrf.mxu0
  %v853 = vadd.f32 0.0, %v852
  %v854 = vpop.f32.mrf.mxu0
  %855 = vmatprep.mubr.f32.mxu0 0.0
  %856 = vmatmul.mubr.f32.gmra.mxu0 %v716
  %v857 = vpop.f32.mrf.mxu0
  %v858 = vadd.f32 0.0, %v857
  %v859 = vpop.f32.mrf.mxu0
  %860 = vmatprep.mubr.f32.mxu0 0.0
  %861 = vmatmul.mubr.f32.gmra.mxu0 %v719
  %v862 = vpop.f32.mrf.mxu0
  %v863 = vadd.f32 0.0, %v862
  %v864 = vpop.f32.mrf.mxu0
  %865 = vdwg.mxu0
  %v867 = vsel %vm89, %v636, 0
  %v870 = vsel %vm89, %v637, 0
  %v873 = vsel %vm89, %v638, 0
  %v876 = vsel %vm89, %v639, 0
  %v879 = vsel %vm89, %v640, 0
  %v882 = vsel %vm89, %v641, 0
  %v885 = vsel %vm89, %v642, 0
  %v888 = vsel %vm89, %v643, 0
  %v891 = vsel %vm89, %v644, 0
  %v894 = vsel %vm89, %v645, 0
  %v897 = vsel %vm89, %v646, 0
  %v900 = vsel %vm89, %v647, 0
  %v903 = vsel %vm89, %v648, 0
  %v906 = vsel %vm89, %v649, 0
  %v909 = vsel %vm89, %v650, 0
  %v912 = vsel %vm89, %v651, 0
  %914 = vmatprep.subr.mxu0 0.0
  %915 = vmatpush1.msra.mxu0 0.0
  %916 = vmatprep.subr.mxu0 0.0
  %917 = vmatpush1.msra.mxu0 0.0
  %918 = vmatprep.subr.mxu0 0.0
  %919 = vmatpush1.msra.mxu0 0.0
  %920 = vmatprep.subr.mxu0 0.0
  %921 = vmatpush1.msra.mxu0 0.0
  %922 = vmatprep.subr.mxu0 0.0
  %923 = vmatpush1.msra.mxu0 0.0
  %924 = vmatprep.subr.mxu0 0.0
  %925 = vmatpush1.msra.mxu0 0.0
  %926 = vmatprep.subr.mxu0 0.0
  %927 = vmatpush1.msra.mxu0 0.0
  %928 = vmatprep.subr.mxu0 0.0
  %929 = vmatpush1.msra.mxu0 0.0
  %930 = vmatprep.subr.mxu0 0.0
  %931 = vmatpush1.msra.mxu0 0.0
  %932 = vmatprep.subr.mxu0 0.0
  %933 = vmatpush1.msra.mxu0 0.0
  %934 = vmatprep.subr.mxu0 0.0
  %935 = vmatpush1.msra.mxu0 0.0
  %936 = vmatprep.subr.mxu0 0.0
  %937 = vmatpush1.msra.mxu0 0.0
  %938 = vmatprep.subr.mxu0 0.0
  %939 = vmatpush1.msra.mxu0 0.0
  %940 = vmatprep.subr.mxu0 0.0
  %941 = vmatpush1.msra.mxu0 0.0
  %942 = vmatprep.subr.mxu0 0.0
  %943 = vmatpush1.msra.mxu0 %v653
  %944 = vmatprep.subr.mxu0 0.0
  %945 = vmatpush1.msra.mxu0 %v652
  %946 = vmatprep.subr.mxu0 0.0
  %947 = vmatpush2.msra.mxu0 0.0
  %948 = vmatprep.subr.mxu0 0.0
  %949 = vmatpush2.msra.mxu0 0.0
  %950 = vmatprep.subr.mxu0 0.0
  %951 = vmatpush2.msra.mxu0 0.0
  %952 = vmatprep.subr.mxu0 0.0
  %953 = vmatpush2.msra.mxu0 0.0
  %954 = vmatprep.subr.mxu0 0.0
  %955 = vmatpush2.msra.mxu0 0.0
  %956 = vmatprep.subr.mxu0 0.0
  %957 = vmatpush2.msra.mxu0 0.0
  %958 = vmatprep.subr.mxu0 0.0
  %959 = vmatpush2.msra.mxu0 0.0
  %960 = vmatprep.subr.mxu0 0.0
  %961 = vmatpush2.msra.mxu0 0.0
  %962 = vmatprep.subr.mxu0 0.0
  %963 = vmatpush2.msra.mxu0 0.0
  %964 = vmatprep.subr.mxu0 0.0
  %965 = vmatpush2.msra.mxu0 0.0
  %966 = vmatprep.subr.mxu0 0.0
  %967 = vmatpush2.msra.mxu0 0.0
  %968 = vmatprep.subr.mxu0 0.0
  %969 = vmatpush2.msra.mxu0 0.0
  %970 = vmatprep.subr.mxu0 0.0
  %971 = vmatpush2.msra.mxu0 0.0
  %972 = vmatprep.subr.mxu0 0.0
  %973 = vmatpush2.msra.mxu0 0.0
  %974 = vmatprep.subr.mxu0 0.0
  %975 = vmatpush2.msra.mxu0 0.0
  %976 = vmatprep.subr.mxu0 0.0
  %977 = vmatpush2.msra.mxu0 0.0
  %978 = vmatprep.mubr.f32.mxu0 0.0
  %979 = vmatmul.mubr.f32.gmra.mxu0 %v867
  %v980 = vpop.f32.mrf.mxu0
  %v981 = vadd.f32 %v788, %v980
  %v982 = vpop.f32.mrf.mxu0
  %983 = vmatprep.mubr.f32.mxu0 0.0
  %984 = vmatmul.mubr.f32.gmra.mxu0 %v870
  %v985 = vpop.f32.mrf.mxu0
  %v986 = vadd.f32 %v793, %v985
  %v987 = vpop.f32.mrf.mxu0
  %988 = vmatprep.mubr.f32.mxu0 0.0
  %989 = vmatmul.mubr.f32.gmra.mxu0 %v873
  %v990 = vpop.f32.mrf.mxu0
  %v991 = vadd.f32 %v798, %v990
  %v992 = vpop.f32.mrf.mxu0
  %993 = vmatprep.mubr.f32.mxu0 0.0
  %994 = vmatmul.mubr.f32.gmra.mxu0 %v876
  %v995 = vpop.f32.mrf.mxu0
  %v996 = vadd.f32 %v803, %v995
  %v997 = vpop.f32.mrf.mxu0
  %998 = vmatprep.mubr.f32.mxu0 0.0
  %999 = vmatmul.mubr.f32.gmra.mxu0 %v879
  %v1000 = vpop.f32.mrf.mxu0
  %v1001 = vadd.f32 %v808, %v1000
  %v1002 = vpop.f32.mrf.mxu0
  %1003 = vmatprep.mubr.f32.mxu0 0.0
  %1004 = vmatmul.mubr.f32.gmra.mxu0 %v882
  %v1005 = vpop.f32.mrf.mxu0
  %v1006 = vadd.f32 %v813, %v1005
  %v1007 = vpop.f32.mrf.mxu0
  %1008 = vmatprep.mubr.f32.mxu0 0.0
  %1009 = vmatmul.mubr.f32.gmra.mxu0 %v885
  %v1010 = vpop.f32.mrf.mxu0
  %v1011 = vadd.f32 %v818, %v1010
  %v1012 = vpop.f32.mrf.mxu0
  %1013 = vmatprep.mubr.f32.mxu0 0.0
  %1014 = vmatmul.mubr.f32.gmra.mxu0 %v888
  %v1015 = vpop.f32.mrf.mxu0
  %v1016 = vadd.f32 %v823, %v1015
  %v1017 = vpop.f32.mrf.mxu0
  %1018 = vmatprep.mubr.f32.mxu0 0.0
  %1019 = vmatmul.mubr.f32.gmra.mxu0 %v891
  %v1020 = vpop.f32.mrf.mxu0
  %v1021 = vadd.f32 %v828, %v1020
  %v1022 = vpop.f32.mrf.mxu0
  %1023 = vmatprep.mubr.f32.mxu0 0.0
  %1024 = vmatmul.mubr.f32.gmra.mxu0 %v894
  %v1025 = vpop.f32.mrf.mxu0
  %v1026 = vadd.f32 %v833, %v1025
  %v1027 = vpop.f32.mrf.mxu0
  %1028 = vmatprep.mubr.f32.mxu0 0.0
  %1029 = vmatmul.mubr.f32.gmra.mxu0 %v897
  %v1030 = vpop.f32.mrf.mxu0
  %v1031 = vadd.f32 %v838, %v1030
  %v1032 = vpop.f32.mrf.mxu0
  %1033 = vmatprep.mubr.f32.mxu0 0.0
  %1034 = vmatmul.mubr.f32.gmra.mxu0 %v900
  %v1035 = vpop.f32.mrf.mxu0
  %v1036 = vadd.f32 %v843, %v1035
  %v1037 = vpop.f32.mrf.mxu0
  %1038 = vmatprep.mubr.f32.mxu0 0.0
  %1039 = vmatmul.mubr.f32.gmra.mxu0 %v903
  %v1040 = vpop.f32.mrf.mxu0
  %v1041 = vadd.f32 %v848, %v1040
  %v1042 = vpop.f32.mrf.mxu0
  %1043 = vmatprep.mubr.f32.mxu0 0.0
  %1044 = vmatmul.mubr.f32.gmra.mxu0 %v906
  %v1045 = vpop.f32.mrf.mxu0
  %v1046 = vadd.f32 %v853, %v1045
  %v1047 = vpop.f32.mrf.mxu0
  %1048 = vmatprep.mubr.f32.mxu0 0.0
  %1049 = vmatmul.mubr.f32.gmra.mxu0 %v909
  %v1050 = vpop.f32.mrf.mxu0
  %v1051 = vadd.f32 %v858, %v1050
  %v1052 = vpop.f32.mrf.mxu0
  %1053 = vmatprep.mubr.f32.mxu0 0.0
  %1054 = vmatmul.mubr.f32.gmra.mxu0 %v912
  %v1055 = vpop.f32.mrf.mxu0
  %v1056 = vadd.f32 %v863, %v1055
  %v1057 = vpop.f32.mrf.mxu0
  %1058 = vdwg.mxu0
  %v1059 = vld [vmem:[#allocation3 + $0x9] sm:$0xff]
  %v1060 = vld [vmem:[#allocation3 + $0x21] sm:$0xff]
  %v1061 = vld [vmem:[#allocation3 + $0x39] sm:$0xff]
  %v1062 = vld [vmem:[#allocation3 + $0x51] sm:$0xff]
  %v1063 = vld [vmem:[#allocation3 + $0x69] sm:$0xff]
  %v1064 = vld [vmem:[#allocation3 + $0x81] sm:$0xff]
  %v1065 = vld [vmem:[#allocation3 + $0x99] sm:$0xff]
  %v1066 = vld [vmem:[#allocation3 + $0xb1] sm:$0xff]
  %v1067 = vld [vmem:[#allocation3 + $0xf9] sm:$0xff]
  %v1068 = vld [vmem:[#allocation3 + $0x111] sm:$0xff]
  %v1069 = vld [vmem:[#allocation3 + $0x129] sm:$0xff]
  %v1070 = vld [vmem:[#allocation3 + $0x141] sm:$0xff]
  %v1071 = vld [vmem:[#allocation3 + $0x159] sm:$0xff]
  %v1072 = vld [vmem:[#allocation3 + $0x171] sm:$0xff]
  %v1073 = vld [vmem:[#allocation3 + $0x189] sm:$0xff]
  %v1074 = vld [vmem:[#allocation3 + $0x1a1] sm:$0xff]
  %s1075 = scalar_lea.vmem %s4, 32
  %v1076 = vld [vmem:[%s1075] sm:$0xff]
  %v1077 = vld [vmem:[%s1075 + $0x8] sm:$0xff]
  %v1079 = vsel %vm89, %v1059, 0
  %v1082 = vsel %vm89, %v1060, 0
  %v1085 = vsel %vm89, %v1061, 0
  %v1088 = vsel %vm89, %v1062, 0
  %v1091 = vsel %vm89, %v1063, 0
  %v1094 = vsel %vm89, %v1064, 0
  %v1097 = vsel %vm89, %v1065, 0
  %v1100 = vsel %vm89, %v1066, 0
  %v1103 = vsel %vm89, %v1067, 0
  %v1106 = vsel %vm89, %v1068, 0
  %v1109 = vsel %vm89, %v1069, 0
  %v1112 = vsel %vm89, %v1070, 0
  %v1115 = vsel %vm89, %v1071, 0
  %v1118 = vsel %vm89, %v1072, 0
  %v1121 = vsel %vm89, %v1073, 0
  %v1124 = vsel %vm89, %v1074, 0
  %1126 = vmatprep.subr.mxu0 0.0
  %1127 = vmatpush1.msra.mxu0 0.0
  %1128 = vmatprep.subr.mxu0 0.0
  %1129 = vmatpush1.msra.mxu0 0.0
  %1130 = vmatprep.subr.mxu0 0.0
  %1131 = vmatpush1.msra.mxu0 0.0
  %1132 = vmatprep.subr.mxu0 0.0
  %1133 = vmatpush1.msra.mxu0 0.0
  %1134 = vmatprep.subr.mxu0 0.0
  %1135 = vmatpush1.msra.mxu0 0.0
  %1136 = vmatprep.subr.mxu0 0.0
  %1137 = vmatpush1.msra.mxu0 0.0
  %1138 = vmatprep.subr.mxu0 0.0
  %1139 = vmatpush1.msra.mxu0 0.0
  %1140 = vmatprep.subr.mxu0 0.0
  %1141 = vmatpush1.msra.mxu0 0.0
  %1142 = vmatprep.subr.mxu0 0.0
  %1143 = vmatpush1.msra.mxu0 0.0
  %1144 = vmatprep.subr.mxu0 0.0
  %1145 = vmatpush1.msra.mxu0 0.0
  %1146 = vmatprep.subr.mxu0 0.0
  %1147 = vmatpush1.msra.mxu0 0.0
  %1148 = vmatprep.subr.mxu0 0.0
  %1149 = vmatpush1.msra.mxu0 0.0
  %1150 = vmatprep.subr.mxu0 0.0
  %1151 = vmatpush1.msra.mxu0 0.0
  %1152 = vmatprep.subr.mxu0 0.0
  %1153 = vmatpush1.msra.mxu0 0.0
  %1154 = vmatprep.subr.mxu0 0.0
  %1155 = vmatpush1.msra.mxu0 %v1077
  %1156 = vmatprep.subr.mxu0 0.0
  %1157 = vmatpush1.msra.mxu0 %v1076
  %1158 = vmatprep.subr.mxu0 0.0
  %1159 = vmatpush2.msra.mxu0 0.0
  %1160 = vmatprep.subr.mxu0 0.0
  %1161 = vmatpush2.msra.mxu0 0.0
  %1162 = vmatprep.subr.mxu0 0.0
  %1163 = vmatpush2.msra.mxu0 0.0
  %1164 = vmatprep.subr.mxu0 0.0
  %1165 = vmatpush2.msra.mxu0 0.0
  %1166 = vmatprep.subr.mxu0 0.0
  %1167 = vmatpush2.msra.mxu0 0.0
  %1168 = vmatprep.subr.mxu0 0.0
  %1169 = vmatpush2.msra.mxu0 0.0
  %1170 = vmatprep.subr.mxu0 0.0
  %1171 = vmatpush2.msra.mxu0 0.0
  %1172 = vmatprep.subr.mxu0 0.0
  %1173 = vmatpush2.msra.mxu0 0.0
  %1174 = vmatprep.subr.mxu0 0.0
  %1175 = vmatpush2.msra.mxu0 0.0
  %1176 = vmatprep.subr.mxu0 0.0
  %1177 = vmatpush2.msra.mxu0 0.0
  %1178 = vmatprep.subr.mxu0 0.0
  %1179 = vmatpush2.msra.mxu0 0.0
  %1180 = vmatprep.subr.mxu0 0.0
  %1181 = vmatpush2.msra.mxu0 0.0
  %1182 = vmatprep.subr.mxu0 0.0
  %1183 = vmatpush2.msra.mxu0 0.0
  %1184 = vmatprep.subr.mxu0 0.0
  %1185 = vmatpush2.msra.mxu0 0.0
  %1186 = vmatprep.subr.mxu0 0.0
  %1187 = vmatpush2.msra.mxu0 0.0
  %1188 = vmatprep.subr.mxu0 0.0
  %1189 = vmatpush2.msra.mxu0 0.0
  %1190 = vmatprep.mubr.f32.mxu0 0.0
  %1191 = vmatmul.mubr.f32.gmra.mxu0 %v1079
  %v1192 = vpop.f32.mrf.mxu0
  %v1193 = vadd.f32 0.0, %v1192
  %v1194 = vpop.f32.mrf.mxu0
  %1195 = vmatprep.mubr.f32.mxu0 0.0
  %1196 = vmatmul.mubr.f32.gmra.mxu0 %v1082
  %v1197 = vpop.f32.mrf.mxu0
  %v1198 = vadd.f32 0.0, %v1197
  %v1199 = vpop.f32.mrf.mxu0
  %1200 = vmatprep.mubr.f32.mxu0 0.0
  %1201 = vmatmul.mubr.f32.gmra.mxu0 %v1085
  %v1202 = vpop.f32.mrf.mxu0
  %v1203 = vadd.f32 0.0, %v1202
  %v1204 = vpop.f32.mrf.mxu0
  %1205 = vmatprep.mubr.f32.mxu0 0.0
  %1206 = vmatmul.mubr.f32.gmra.mxu0 %v1088
  %v1207 = vpop.f32.mrf.mxu0
  %v1208 = vadd.f32 0.0, %v1207
  %v1209 = vpop.f32.mrf.mxu0
  %1210 = vmatprep.mubr.f32.mxu0 0.0
  %1211 = vmatmul.mubr.f32.gmra.mxu0 %v1091
  %v1212 = vpop.f32.mrf.mxu0
  %v1213 = vadd.f32 0.0, %v1212
  %v1214 = vpop.f32.mrf.mxu0
  %1215 = vmatprep.mubr.f32.mxu0 0.0
  %1216 = vmatmul.mubr.f32.gmra.mxu0 %v1094
  %v1217 = vpop.f32.mrf.mxu0
  %v1218 = vadd.f32 0.0, %v1217
  %v1219 = vpop.f32.mrf.mxu0
  %1220 = vmatprep.mubr.f32.mxu0 0.0
  %1221 = vmatmul.mubr.f32.gmra.mxu0 %v1097
  %v1222 = vpop.f32.mrf.mxu0
  %v1223 = vadd.f32 0.0, %v1222
  %v1224 = vpop.f32.mrf.mxu0
  %1225 = vmatprep.mubr.f32.mxu0 0.0
  %1226 = vmatmul.mubr.f32.gmra.mxu0 %v1100
  %v1227 = vpop.f32.mrf.mxu0
  %v1228 = vadd.f32 0.0, %v1227
  %v1229 = vpop.f32.mrf.mxu0
  %1230 = vmatprep.mubr.f32.mxu0 0.0
  %1231 = vmatmul.mubr.f32.gmra.mxu0 %v1103
  %v1232 = vpop.f32.mrf.mxu0
  %v1233 = vadd.f32 0.0, %v1232
  %v1234 = vpop.f32.mrf.mxu0
  %1235 = vmatprep.mubr.f32.mxu0 0.0
  %1236 = vmatmul.mubr.f32.gmra.mxu0 %v1106
  %v1237 = vpop.f32.mrf.mxu0
  %v1238 = vadd.f32 0.0, %v1237
  %v1239 = vpop.f32.mrf.mxu0
  %1240 = vmatprep.mubr.f32.mxu0 0.0
  %1241 = vmatmul.mubr.f32.gmra.mxu0 %v1109
  %v1242 = vpop.f32.mrf.mxu0
  %v1243 = vadd.f32 0.0, %v1242
  %v1244 = vpop.f32.mrf.mxu0
  %1245 = vmatprep.mubr.f32.mxu0 0.0
  %1246 = vmatmul.mubr.f32.gmra.mxu0 %v1112
  %v1247 = vpop.f32.mrf.mxu0
  %v1248 = vadd.f32 0.0, %v1247
  %v1249 = vpop.f32.mrf.mxu0
  %1250 = vmatprep.mubr.f32.mxu0 0.0
  %1251 = vmatmul.mubr.f32.gmra.mxu0 %v1115
  %v1252 = vpop.f32.mrf.mxu0
  %v1253 = vadd.f32 0.0, %v1252
  %v1254 = vpop.f32.mrf.mxu0
  %1255 = vmatprep.mubr.f32.mxu0 0.0
  %1256 = vmatmul.mubr.f32.gmra.mxu0 %v1118
  %v1257 = vpop.f32.mrf.mxu0
  %v1258 = vadd.f32 0.0, %v1257
  %v1259 = vpop.f32.mrf.mxu0
  %1260 = vmatprep.mubr.f32.mxu0 0.0
  %1261 = vmatmul.mubr.f32.gmra.mxu0 %v1121
  %v1262 = vpop.f32.mrf.mxu0
  %v1263 = vadd.f32 0.0, %v1262
  %v1264 = vpop.f32.mrf.mxu0
  %1265 = vmatprep.mubr.f32.mxu0 0.0
  %1266 = vmatmul.mubr.f32.gmra.mxu0 %v1124
  %v1267 = vpop.f32.mrf.mxu0
  %v1268 = vadd.f32 0.0, %v1267
  %v1269 = vpop.f32.mrf.mxu0
  %1270 = vdwg.mxu0
  %v1271 = vadd.f32 %v981, %v1193
  %v1272 = vadd.f32 %v986, %v1198
  %v1273 = vadd.f32 %v991, %v1203
  %v1274 = vadd.f32 %v996, %v1208
  %v1275 = vadd.f32 %v1001, %v1213
  %v1276 = vadd.f32 %v1006, %v1218
  %v1277 = vadd.f32 %v1011, %v1223
  %v1278 = vadd.f32 %v1016, %v1228
  %v1279 = vadd.f32 %v1021, %v1233
  %v1280 = vadd.f32 %v1026, %v1238
  %v1281 = vadd.f32 %v1031, %v1243
  %v1282 = vadd.f32 %v1036, %v1248
  %v1283 = vadd.f32 %v1041, %v1253
  %v1284 = vadd.f32 %v1046, %v1258
  %v1285 = vadd.f32 %v1051, %v1263
  %v1286 = vadd.f32 %v1056, %v1268
  %v1287 = vld [vmem:[%s619 + $0x7] sm:$0xff]
  %v1288 = vld [vmem:[%s619 + $0x1f] sm:$0xff]
  %v1289 = vld [vmem:[%s619 + $0x37] sm:$0xff]
  %v1290 = vld [vmem:[%s619 + $0x4f] sm:$0xff]
  %v1291 = vld [vmem:[%s619 + $0x67] sm:$0xff]
  %v1292 = vld [vmem:[%s619 + $0x7f] sm:$0xff]
  %v1293 = vld [vmem:[%s619 + $0x97] sm:$0xff]
  %v1294 = vld [vmem:[%s619 + $0xaf] sm:$0xff]
  %v1295 = vld [vmem:[%s619 + $0xf7] sm:$0xff]
  %v1296 = vld [vmem:[%s619 + $0x10f] sm:$0xff]
  %v1297 = vld [vmem:[%s619 + $0x127] sm:$0xff]
  %v1298 = vld [vmem:[%s619 + $0x13f] sm:$0xff]
  %v1299 = vld [vmem:[%s619 + $0x157] sm:$0xff]
  %v1300 = vld [vmem:[%s619 + $0x16f] sm:$0xff]
  %v1301 = vld [vmem:[%s619 + $0x187] sm:$0xff]
  %v1302 = vld [vmem:[%s619 + $0x19f] sm:$0xff]
  %s1303 = scalar_lea.vmem %s4, 48
  %v1304 = vld [vmem:[%s1303] sm:$0xff]
  %v1305 = vld [vmem:[%s1303 + $0x8] sm:$0xff]
  %v1307 = vsel %vm89, %v1287, 0
  %v1310 = vsel %vm89, %v1288, 0
  %v1313 = vsel %vm89, %v1289, 0
  %v1316 = vsel %vm89, %v1290, 0
  %v1319 = vsel %vm89, %v1291, 0
  %v1322 = vsel %vm89, %v1292, 0
  %v1325 = vsel %vm89, %v1293, 0
  %v1328 = vsel %vm89, %v1294, 0
  %v1331 = vsel %vm89, %v1295, 0
  %v1334 = vsel %vm89, %v1296, 0
  %v1337 = vsel %vm89, %v1297, 0
  %v1340 = vsel %vm89, %v1298, 0
  %v1343 = vsel %vm89, %v1299, 0
  %v1346 = vsel %vm89, %v1300, 0
  %v1349 = vsel %vm89, %v1301, 0
  %v1352 = vsel %vm89, %v1302, 0
  %1354 = vmatprep.subr.mxu0 0.0
  %1355 = vmatpush1.msra.mxu0 0.0
  %1356 = vmatprep.subr.mxu0 0.0
  %1357 = vmatpush1.msra.mxu0 0.0
  %1358 = vmatprep.subr.mxu0 0.0
  %1359 = vmatpush1.msra.mxu0 0.0
  %1360 = vmatprep.subr.mxu0 0.0
  %1361 = vmatpush1.msra.mxu0 0.0
  %1362 = vmatprep.subr.mxu0 0.0
  %1363 = vmatpush1.msra.mxu0 0.0
  %1364 = vmatprep.subr.mxu0 0.0
  %1365 = vmatpush1.msra.mxu0 0.0
  %1366 = vmatprep.subr.mxu0 0.0
  %1367 = vmatpush1.msra.mxu0 0.0
  %1368 = vmatprep.subr.mxu0 0.0
  %1369 = vmatpush1.msra.mxu0 0.0
  %1370 = vmatprep.subr.mxu0 0.0
  %1371 = vmatpush1.msra.mxu0 0.0
  %1372 = vmatprep.subr.mxu0 0.0
  %1373 = vmatpush1.msra.mxu0 0.0
  %1374 = vmatprep.subr.mxu0 0.0
  %1375 = vmatpush1.msra.mxu0 0.0
  %1376 = vmatprep.subr.mxu0 0.0
  %1377 = vmatpush1.msra.mxu0 0.0
  %1378 = vmatprep.subr.mxu0 0.0
  %1379 = vmatpush1.msra.mxu0 0.0
  %1380 = vmatprep.subr.mxu0 0.0
  %1381 = vmatpush1.msra.mxu0 0.0
  %1382 = vmatprep.subr.mxu0 0.0
  %1383 = vmatpush1.msra.mxu0 %v1305
  %1384 = vmatprep.subr.mxu0 0.0
  %1385 = vmatpush1.msra.mxu0 %v1304
  %1386 = vmatprep.subr.mxu0 0.0
  %1387 = vmatpush2.msra.mxu0 0.0
  %1388 = vmatprep.subr.mxu0 0.0
  %1389 = vmatpush2.msra.mxu0 0.0
  %1390 = vmatprep.subr.mxu0 0.0
  %1391 = vmatpush2.msra.mxu0 0.0
  %1392 = vmatprep.subr.mxu0 0.0
  %1393 = vmatpush2.msra.mxu0 0.0
  %1394 = vmatprep.subr.mxu0 0.0
  %1395 = vmatpush2.msra.mxu0 0.0
  %1396 = vmatprep.subr.mxu0 0.0
  %1397 = vmatpush2.msra.mxu0 0.0
  %1398 = vmatprep.subr.mxu0 0.0
  %1399 = vmatpush2.msra.mxu0 0.0
  %1400 = vmatprep.subr.mxu0 0.0
  %1401 = vmatpush2.msra.mxu0 0.0
  %1402 = vmatprep.subr.mxu0 0.0
  %1403 = vmatpush2.msra.mxu0 0.0
  %1404 = vmatprep.subr.mxu0 0.0
  %1405 = vmatpush2.msra.mxu0 0.0
  %1406 = vmatprep.subr.mxu0 0.0
  %1407 = vmatpush2.msra.mxu0 0.0
  %1408 = vmatprep.subr.mxu0 0.0
  %1409 = vmatpush2.msra.mxu0 0.0
  %1410 = vmatprep.subr.mxu0 0.0
  %1411 = vmatpush2.msra.mxu0 0.0
  %1412 = vmatprep.subr.mxu0 0.0
  %1413 = vmatpush2.msra.mxu0 0.0
  %1414 = vmatprep.subr.mxu0 0.0
  %1415 = vmatpush2.msra.mxu0 0.0
  %1416 = vmatprep.subr.mxu0 0.0
  %1417 = vmatpush2.msra.mxu0 0.0
  %1418 = vmatprep.mubr.f32.mxu0 0.0
  %1419 = vmatmul.mubr.f32.gmra.mxu0 %v1307
  %v1420 = vpop.f32.mrf.mxu0
  %v1421 = vadd.f32 0.0, %v1420
  %v1422 = vpop.f32.mrf.mxu0
  %1423 = vmatprep.mubr.f32.mxu0 0.0
  %1424 = vmatmul.mubr.f32.gmra.mxu0 %v1310
  %v1425 = vpop.f32.mrf.mxu0
  %v1426 = vadd.f32 0.0, %v1425
  %v1427 = vpop.f32.mrf.mxu0
  %1428 = vmatprep.mubr.f32.mxu0 0.0
  %1429 = vmatmul.mubr.f32.gmra.mxu0 %v1313
  %v1430 = vpop.f32.mrf.mxu0
  %v1431 = vadd.f32 0.0, %v1430
  %v1432 = vpop.f32.mrf.mxu0
  %1433 = vmatprep.mubr.f32.mxu0 0.0
  %1434 = vmatmul.mubr.f32.gmra.mxu0 %v1316
  %v1435 = vpop.f32.mrf.mxu0
  %v1436 = vadd.f32 0.0, %v1435
  %v1437 = vpop.f32.mrf.mxu0
  %1438 = vmatprep.mubr.f32.mxu0 0.0
  %1439 = vmatmul.mubr.f32.gmra.mxu0 %v1319
  %v1440 = vpop.f32.mrf.mxu0
  %v1441 = vadd.f32 0.0, %v1440
  %v1442 = vpop.f32.mrf.mxu0
  %1443 = vmatprep.mubr.f32.mxu0 0.0
  %1444 = vmatmul.mubr.f32.gmra.mxu0 %v1322
  %v1445 = vpop.f32.mrf.mxu0
  %v1446 = vadd.f32 0.0, %v1445
  %v1447 = vpop.f32.mrf.mxu0
  %1448 = vmatprep.mubr.f32.mxu0 0.0
  %1449 = vmatmul.mubr.f32.gmra.mxu0 %v1325
  %v1450 = vpop.f32.mrf.mxu0
  %v1451 = vadd.f32 0.0, %v1450
  %v1452 = vpop.f32.mrf.mxu0
  %1453 = vmatprep.mubr.f32.mxu0 0.0
  %1454 = vmatmul.mubr.f32.gmra.mxu0 %v1328
  %v1455 = vpop.f32.mrf.mxu0
  %v1456 = vadd.f32 0.0, %v1455
  %v1457 = vpop.f32.mrf.mxu0
  %1458 = vmatprep.mubr.f32.mxu0 0.0
  %1459 = vmatmul.mubr.f32.gmra.mxu0 %v1331
  %v1460 = vpop.f32.mrf.mxu0
  %v1461 = vadd.f32 0.0, %v1460
  %v1462 = vpop.f32.mrf.mxu0
  %1463 = vmatprep.mubr.f32.mxu0 0.0
  %1464 = vmatmul.mubr.f32.gmra.mxu0 %v1334
  %v1465 = vpop.f32.mrf.mxu0
  %v1466 = vadd.f32 0.0, %v1465
  %v1467 = vpop.f32.mrf.mxu0
  %1468 = vmatprep.mubr.f32.mxu0 0.0
  %1469 = vmatmul.mubr.f32.gmra.mxu0 %v1337
  %v1470 = vpop.f32.mrf.mxu0
  %v1471 = vadd.f32 0.0, %v1470
  %v1472 = vpop.f32.mrf.mxu0
  %1473 = vmatprep.mubr.f32.mxu0 0.0
  %1474 = vmatmul.mubr.f32.gmra.mxu0 %v1340
  %v1475 = vpop.f32.mrf.mxu0
  %v1476 = vadd.f32 0.0, %v1475
  %v1477 = vpop.f32.mrf.mxu0
  %1478 = vmatprep.mubr.f32.mxu0 0.0
  %1479 = vmatmul.mubr.f32.gmra.mxu0 %v1343
  %v1480 = vpop.f32.mrf.mxu0
  %v1481 = vadd.f32 0.0, %v1480
  %v1482 = vpop.f32.mrf.mxu0
  %1483 = vmatprep.mubr.f32.mxu0 0.0
  %1484 = vmatmul.mubr.f32.gmra.mxu0 %v1346
  %v1485 = vpop.f32.mrf.mxu0
  %v1486 = vadd.f32 0.0, %v1485
  %v1487 = vpop.f32.mrf.mxu0
  %1488 = vmatprep.mubr.f32.mxu0 0.0
  %1489 = vmatmul.mubr.f32.gmra.mxu0 %v1349
  %v1490 = vpop.f32.mrf.mxu0
  %v1491 = vadd.f32 0.0, %v1490
  %v1492 = vpop.f32.mrf.mxu0
  %1493 = vmatprep.mubr.f32.mxu0 0.0
  %1494 = vmatmul.mubr.f32.gmra.mxu0 %v1352
  %v1495 = vpop.f32.mrf.mxu0
  %v1496 = vadd.f32 0.0, %v1495
  %v1497 = vpop.f32.mrf.mxu0
  %1498 = vdwg.mxu0
  %v1499 = vadd.f32 %v1271, %v1421
  %v1500 = vadd.f32 %v1272, %v1426
  %v1501 = vadd.f32 %v1273, %v1431
  %v1502 = vadd.f32 %v1274, %v1436
  %v1503 = vadd.f32 %v1275, %v1441
  %v1504 = vadd.f32 %v1276, %v1446
  %v1505 = vadd.f32 %v1277, %v1451
  %v1506 = vadd.f32 %v1278, %v1456
  %v1507 = vadd.f32 %v1279, %v1461
  %v1508 = vadd.f32 %v1280, %v1466
  %v1509 = vadd.f32 %v1281, %v1471
  %v1510 = vadd.f32 %v1282, %v1476
  %v1511 = vadd.f32 %v1283, %v1481
  %v1512 = vadd.f32 %v1284, %v1486
  %v1513 = vadd.f32 %v1285, %v1491
  %v1514 = vadd.f32 %v1286, %v1496
  %v1515 = vld [vmem:[%s619 + $0x8] sm:$0xff]
  %v1516 = vld [vmem:[%s619 + $0x20] sm:$0xff]
  %v1517 = vld [vmem:[%s619 + $0x38] sm:$0xff]
  %v1518 = vld [vmem:[%s619 + $0x50] sm:$0xff]
  %v1519 = vld [vmem:[%s619 + $0x68] sm:$0xff]
  %v1520 = vld [vmem:[%s619 + $0x80] sm:$0xff]
  %v1521 = vld [vmem:[%s619 + $0x98] sm:$0xff]
  %v1522 = vld [vmem:[%s619 + $0xb0] sm:$0xff]
  %v1523 = vld [vmem:[%s619 + $0xf8] sm:$0xff]
  %v1524 = vld [vmem:[%s619 + $0x110] sm:$0xff]
  %v1525 = vld [vmem:[%s619 + $0x128] sm:$0xff]
  %v1526 = vld [vmem:[%s619 + $0x140] sm:$0xff]
  %v1527 = vld [vmem:[%s619 + $0x158] sm:$0xff]
  %v1528 = vld [vmem:[%s619 + $0x170] sm:$0xff]
  %v1529 = vld [vmem:[%s619 + $0x188] sm:$0xff]
  %v1530 = vld [vmem:[%s619 + $0x1a0] sm:$0xff]
  %s1531 = scalar_lea.vmem %s4, 64
  %v1532 = vld [vmem:[%s1531] sm:$0xff]
  %v1533 = vld [vmem:[%s1531 + $0x8] sm:$0xff]
  %v1535 = vsel %vm89, %v1515, 0
  %v1538 = vsel %vm89, %v1516, 0
  %v1541 = vsel %vm89, %v1517, 0
  %v1544 = vsel %vm89, %v1518, 0
  %v1547 = vsel %vm89, %v1519, 0
  %v1550 = vsel %vm89, %v1520, 0
  %v1553 = vsel %vm89, %v1521, 0
  %v1556 = vsel %vm89, %v1522, 0
  %v1559 = vsel %vm89, %v1523, 0
  %v1562 = vsel %vm89, %v1524, 0
  %v1565 = vsel %vm89, %v1525, 0
  %v1568 = vsel %vm89, %v1526, 0
  %v1571 = vsel %vm89, %v1527, 0
  %v1574 = vsel %vm89, %v1528, 0
  %v1577 = vsel %vm89, %v1529, 0
  %v1580 = vsel %vm89, %v1530, 0
  %1582 = vmatprep.subr.mxu0 0.0
  %1583 = vmatpush1.msra.mxu0 0.0
  %1584 = vmatprep.subr.mxu0 0.0
  %1585 = vmatpush1.msra.mxu0 0.0
  %1586 = vmatprep.subr.mxu0 0.0
  %1587 = vmatpush1.msra.mxu0 0.0
  %1588 = vmatprep.subr.mxu0 0.0
  %1589 = vmatpush1.msra.mxu0 0.0
  %1590 = vmatprep.subr.mxu0 0.0
  %1591 = vmatpush1.msra.mxu0 0.0
  %1592 = vmatprep.subr.mxu0 0.0
  %1593 = vmatpush1.msra.mxu0 0.0
  %1594 = vmatprep.subr.mxu0 0.0
  %1595 = vmatpush1.msra.mxu0 0.0
  %1596 = vmatprep.subr.mxu0 0.0
  %1597 = vmatpush1.msra.mxu0 0.0
  %1598 = vmatprep.subr.mxu0 0.0
  %1599 = vmatpush1.msra.mxu0 0.0
  %1600 = vmatprep.subr.mxu0 0.0
  %1601 = vmatpush1.msra.mxu0 0.0
  %1602 = vmatprep.subr.mxu0 0.0
  %1603 = vmatpush1.msra.mxu0 0.0
  %1604 = vmatprep.subr.mxu0 0.0
  %1605 = vmatpush1.msra.mxu0 0.0
  %1606 = vmatprep.subr.mxu0 0.0
  %1607 = vmatpush1.msra.mxu0 0.0
  %1608 = vmatprep.subr.mxu0 0.0
  %1609 = vmatpush1.msra.mxu0 0.0
  %1610 = vmatprep.subr.mxu0 0.0
  %1611 = vmatpush1.msra.mxu0 %v1533
  %1612 = vmatprep.subr.mxu0 0.0
  %1613 = vmatpush1.msra.mxu0 %v1532
  %1614 = vmatprep.subr.mxu0 0.0
  %1615 = vmatpush2.msra.mxu0 0.0
  %1616 = vmatprep.subr.mxu0 0.0
  %1617 = vmatpush2.msra.mxu0 0.0
  %1618 = vmatprep.subr.mxu0 0.0
  %1619 = vmatpush2.msra.mxu0 0.0
  %1620 = vmatprep.subr.mxu0 0.0
  %1621 = vmatpush2.msra.mxu0 0.0
  %1622 = vmatprep.subr.mxu0 0.0
  %1623 = vmatpush2.msra.mxu0 0.0
  %1624 = vmatprep.subr.mxu0 0.0
  %1625 = vmatpush2.msra.mxu0 0.0
  %1626 = vmatprep.subr.mxu0 0.0
  %1627 = vmatpush2.msra.mxu0 0.0
  %1628 = vmatprep.subr.mxu0 0.0
  %1629 = vmatpush2.msra.mxu0 0.0
  %1630 = vmatprep.subr.mxu0 0.0
  %1631 = vmatpush2.msra.mxu0 0.0
  %1632 = vmatprep.subr.mxu0 0.0
  %1633 = vmatpush2.msra.mxu0 0.0
  %1634 = vmatprep.subr.mxu0 0.0
  %1635 = vmatpush2.msra.mxu0 0.0
  %1636 = vmatprep.subr.mxu0 0.0
  %1637 = vmatpush2.msra.mxu0 0.0
  %1638 = vmatprep.subr.mxu0 0.0
  %1639 = vmatpush2.msra.mxu0 0.0
  %1640 = vmatprep.subr.mxu0 0.0
  %1641 = vmatpush2.msra.mxu0 0.0
  %1642 = vmatprep.subr.mxu0 0.0
  %1643 = vmatpush2.msra.mxu0 0.0
  %1644 = vmatprep.subr.mxu0 0.0
  %1645 = vmatpush2.msra.mxu0 0.0
  %1646 = vmatprep.mubr.f32.mxu0 0.0
  %1647 = vmatmul.mubr.f32.gmra.mxu0 %v1535
  %v1648 = vpop.f32.mrf.mxu0
  %v1649 = vadd.f32 0.0, %v1648
  %v1650 = vpop.f32.mrf.mxu0
  %1651 = vmatprep.mubr.f32.mxu0 0.0
  %1652 = vmatmul.mubr.f32.gmra.mxu0 %v1538
  %v1653 = vpop.f32.mrf.mxu0
  %v1654 = vadd.f32 0.0, %v1653
  %v1655 = vpop.f32.mrf.mxu0
  %1656 = vmatprep.mubr.f32.mxu0 0.0
  %1657 = vmatmul.mubr.f32.gmra.mxu0 %v1541
  %v1658 = vpop.f32.mrf.mxu0
  %v1659 = vadd.f32 0.0, %v1658
  %v1660 = vpop.f32.mrf.mxu0
  %1661 = vmatprep.mubr.f32.mxu0 0.0
  %1662 = vmatmul.mubr.f32.gmra.mxu0 %v1544
  %v1663 = vpop.f32.mrf.mxu0
  %v1664 = vadd.f32 0.0, %v1663
  %v1665 = vpop.f32.mrf.mxu0
  %1666 = vmatprep.mubr.f32.mxu0 0.0
  %1667 = vmatmul.mubr.f32.gmra.mxu0 %v1547
  %v1668 = vpop.f32.mrf.mxu0
  %v1669 = vadd.f32 0.0, %v1668
  %v1670 = vpop.f32.mrf.mxu0
  %1671 = vmatprep.mubr.f32.mxu0 0.0
  %1672 = vmatmul.mubr.f32.gmra.mxu0 %v1550
  %v1673 = vpop.f32.mrf.mxu0
  %v1674 = vadd.f32 0.0, %v1673
  %v1675 = vpop.f32.mrf.mxu0
  %1676 = vmatprep.mubr.f32.mxu0 0.0
  %1677 = vmatmul.mubr.f32.gmra.mxu0 %v1553
  %v1678 = vpop.f32.mrf.mxu0
  %v1679 = vadd.f32 0.0, %v1678
  %v1680 = vpop.f32.mrf.mxu0
  %1681 = vmatprep.mubr.f32.mxu0 0.0
  %1682 = vmatmul.mubr.f32.gmra.mxu0 %v1556
  %v1683 = vpop.f32.mrf.mxu0
  %v1684 = vadd.f32 0.0, %v1683
  %v1685 = vpop.f32.mrf.mxu0
  %1686 = vmatprep.mubr.f32.mxu0 0.0
  %1687 = vmatmul.mubr.f32.gmra.mxu0 %v1559
  %v1688 = vpop.f32.mrf.mxu0
  %v1689 = vadd.f32 0.0, %v1688
  %v1690 = vpop.f32.mrf.mxu0
  %1691 = vmatprep.mubr.f32.mxu0 0.0
  %1692 = vmatmul.mubr.f32.gmra.mxu0 %v1562
  %v1693 = vpop.f32.mrf.mxu0
  %v1694 = vadd.f32 0.0, %v1693
  %v1695 = vpop.f32.mrf.mxu0
  %1696 = vmatprep.mubr.f32.mxu0 0.0
  %1697 = vmatmul.mubr.f32.gmra.mxu0 %v1565
  %v1698 = vpop.f32.mrf.mxu0
  %v1699 = vadd.f32 0.0, %v1698
  %v1700 = vpop.f32.mrf.mxu0
  %1701 = vmatprep.mubr.f32.mxu0 0.0
  %1702 = vmatmul.mubr.f32.gmra.mxu0 %v1568
  %v1703 = vpop.f32.mrf.mxu0
  %v1704 = vadd.f32 0.0, %v1703
  %v1705 = vpop.f32.mrf.mxu0
  %1706 = vmatprep.mubr.f32.mxu0 0.0
  %1707 = vmatmul.mubr.f32.gmra.mxu0 %v1571
  %v1708 = vpop.f32.mrf.mxu0
  %v1709 = vadd.f32 0.0, %v1708
  %v1710 = vpop.f32.mrf.mxu0
  %1711 = vmatprep.mubr.f32.mxu0 0.0
  %1712 = vmatmul.mubr.f32.gmra.mxu0 %v1574
  %v1713 = vpop.f32.mrf.mxu0
  %v1714 = vadd.f32 0.0, %v1713
  %v1715 = vpop.f32.mrf.mxu0
  %1716 = vmatprep.mubr.f32.mxu0 0.0
  %1717 = vmatmul.mubr.f32.gmra.mxu0 %v1577
  %v1718 = vpop.f32.mrf.mxu0
  %v1719 = vadd.f32 0.0, %v1718
  %v1720 = vpop.f32.mrf.mxu0
  %1721 = vmatprep.mubr.f32.mxu0 0.0
  %1722 = vmatmul.mubr.f32.gmra.mxu0 %v1580
  %v1723 = vpop.f32.mrf.mxu0
  %v1724 = vadd.f32 0.0, %v1723
  %v1725 = vpop.f32.mrf.mxu0
  %1726 = vdwg.mxu0
  %v1727 = vadd.f32 %v1499, %v1649
  %v1728 = vadd.f32 %v1500, %v1654
  %v1729 = vadd.f32 %v1501, %v1659
  %v1730 = vadd.f32 %v1502, %v1664
  %v1731 = vadd.f32 %v1503, %v1669
  %v1732 = vadd.f32 %v1504, %v1674
  %v1733 = vadd.f32 %v1505, %v1679
  %v1734 = vadd.f32 %v1506, %v1684
  %v1735 = vadd.f32 %v1507, %v1689
  %v1736 = vadd.f32 %v1508, %v1694
  %v1737 = vadd.f32 %v1509, %v1699
  %v1738 = vadd.f32 %v1510, %v1704
  %v1739 = vadd.f32 %v1511, %v1709
  %v1740 = vadd.f32 %v1512, %v1714
  %v1741 = vadd.f32 %v1513, %v1719
  %v1742 = vadd.f32 %v1514, %v1724
  %v1743 = vld [vmem:[%s619 + $0x9] sm:$0xff]
  %v1744 = vld [vmem:[%s619 + $0x21] sm:$0xff]
  %v1745 = vld [vmem:[%s619 + $0x39] sm:$0xff]
  %v1746 = vld [vmem:[%s619 + $0x51] sm:$0xff]
  %v1747 = vld [vmem:[%s619 + $0x69] sm:$0xff]
  %v1748 = vld [vmem:[%s619 + $0x81] sm:$0xff]
  %v1749 = vld [vmem:[%s619 + $0x99] sm:$0xff]
  %v1750 = vld [vmem:[%s619 + $0xb1] sm:$0xff]
  %v1751 = vld [vmem:[%s619 + $0xf9] sm:$0xff]
  %v1752 = vld [vmem:[%s619 + $0x111] sm:$0xff]
  %v1753 = vld [vmem:[%s619 + $0x129] sm:$0xff]
  %v1754 = vld [vmem:[%s619 + $0x141] sm:$0xff]
  %v1755 = vld [vmem:[%s619 + $0x159] sm:$0xff]
  %v1756 = vld [vmem:[%s619 + $0x171] sm:$0xff]
  %v1757 = vld [vmem:[%s619 + $0x189] sm:$0xff]
  %v1758 = vld [vmem:[%s619 + $0x1a1] sm:$0xff]
  %s1759 = scalar_lea.vmem %s4, 80
  %v1760 = vld [vmem:[%s1759] sm:$0xff]
  %v1761 = vld [vmem:[%s1759 + $0x8] sm:$0xff]
  %v1763 = vsel %vm89, %v1743, 0
  %v1766 = vsel %vm89, %v1744, 0
  %v1769 = vsel %vm89, %v1745, 0
  %v1772 = vsel %vm89, %v1746, 0
  %v1775 = vsel %vm89, %v1747, 0
  %v1778 = vsel %vm89, %v1748, 0
  %v1781 = vsel %vm89, %v1749, 0
  %v1784 = vsel %vm89, %v1750, 0
  %v1787 = vsel %vm89, %v1751, 0
  %v1790 = vsel %vm89, %v1752, 0
  %v1793 = vsel %vm89, %v1753, 0
  %v1796 = vsel %vm89, %v1754, 0
  %v1799 = vsel %vm89, %v1755, 0
  %v1802 = vsel %vm89, %v1756, 0
  %v1805 = vsel %vm89, %v1757, 0
  %v1808 = vsel %vm89, %v1758, 0
  %1810 = vmatprep.subr.mxu0 0.0
  %1811 = vmatpush1.msra.mxu0 0.0
  %1812 = vmatprep.subr.mxu0 0.0
  %1813 = vmatpush1.msra.mxu0 0.0
  %1814 = vmatprep.subr.mxu0 0.0
  %1815 = vmatpush1.msra.mxu0 0.0
  %1816 = vmatprep.subr.mxu0 0.0
  %1817 = vmatpush1.msra.mxu0 0.0
  %1818 = vmatprep.subr.mxu0 0.0
  %1819 = vmatpush1.msra.mxu0 0.0
  %1820 = vmatprep.subr.mxu0 0.0
  %1821 = vmatpush1.msra.mxu0 0.0
  %1822 = vmatprep.subr.mxu0 0.0
  %1823 = vmatpush1.msra.mxu0 0.0
  %1824 = vmatprep.subr.mxu0 0.0
  %1825 = vmatpush1.msra.mxu0 0.0
  %1826 = vmatprep.subr.mxu0 0.0
  %1827 = vmatpush1.msra.mxu0 0.0
  %1828 = vmatprep.subr.mxu0 0.0
  %1829 = vmatpush1.msra.mxu0 0.0
  %1830 = vmatprep.subr.mxu0 0.0
  %1831 = vmatpush1.msra.mxu0 0.0
  %1832 = vmatprep.subr.mxu0 0.0
  %1833 = vmatpush1.msra.mxu0 0.0
  %1834 = vmatprep.subr.mxu0 0.0
  %1835 = vmatpush1.msra.mxu0 0.0
  %1836 = vmatprep.subr.mxu0 0.0
  %1837 = vmatpush1.msra.mxu0 0.0
  %1838 = vmatprep.subr.mxu0 0.0
  %1839 = vmatpush1.msra.mxu0 %v1761
  %1840 = vmatprep.subr.mxu0 0.0
  %1841 = vmatpush1.msra.mxu0 %v1760
  %1842 = vmatprep.subr.mxu0 0.0
  %1843 = vmatpush2.msra.mxu0 0.0
  %1844 = vmatprep.subr.mxu0 0.0
  %1845 = vmatpush2.msra.mxu0 0.0
  %1846 = vmatprep.subr.mxu0 0.0
  %1847 = vmatpush2.msra.mxu0 0.0
  %1848 = vmatprep.subr.mxu0 0.0
  %1849 = vmatpush2.msra.mxu0 0.0
  %1850 = vmatprep.subr.mxu0 0.0
  %1851 = vmatpush2.msra.mxu0 0.0
  %1852 = vmatprep.subr.mxu0 0.0
  %1853 = vmatpush2.msra.mxu0 0.0
  %1854 = vmatprep.subr.mxu0 0.0
  %1855 = vmatpush2.msra.mxu0 0.0
  %1856 = vmatprep.subr.mxu0 0.0
  %1857 = vmatpush2.msra.mxu0 0.0
  %1858 = vmatprep.subr.mxu0 0.0
  %1859 = vmatpush2.msra.mxu0 0.0
  %1860 = vmatprep.subr.mxu0 0.0
  %1861 = vmatpush2.msra.mxu0 0.0
  %1862 = vmatprep.subr.mxu0 0.0
  %1863 = vmatpush2.msra.mxu0 0.0
  %1864 = vmatprep.subr.mxu0 0.0
  %1865 = vmatpush2.msra.mxu0 0.0
  %1866 = vmatprep.subr.mxu0 0.0
  %1867 = vmatpush2.msra.mxu0 0.0
  %1868 = vmatprep.subr.mxu0 0.0
  %1869 = vmatpush2.msra.mxu0 0.0
  %1870 = vmatprep.subr.mxu0 0.0
  %1871 = vmatpush2.msra.mxu0 0.0
  %1872 = vmatprep.subr.mxu0 0.0
  %1873 = vmatpush2.msra.mxu0 0.0
  %1874 = vmatprep.mubr.f32.mxu0 0.0
  %1875 = vmatmul.mubr.f32.gmra.mxu0 %v1763
  %v1876 = vpop.f32.mrf.mxu0
  %v1877 = vadd.f32 0.0, %v1876
  %v1878 = vpop.f32.mrf.mxu0
  %1879 = vmatprep.mubr.f32.mxu0 0.0
  %1880 = vmatmul.mubr.f32.gmra.mxu0 %v1766
  %v1881 = vpop.f32.mrf.mxu0
  %v1882 = vadd.f32 0.0, %v1881
  %v1883 = vpop.f32.mrf.mxu0
  %1884 = vmatprep.mubr.f32.mxu0 0.0
  %1885 = vmatmul.mubr.f32.gmra.mxu0 %v1769
  %v1886 = vpop.f32.mrf.mxu0
  %v1887 = vadd.f32 0.0, %v1886
  %v1888 = vpop.f32.mrf.mxu0
  %1889 = vmatprep.mubr.f32.mxu0 0.0
  %1890 = vmatmul.mubr.f32.gmra.mxu0 %v1772
  %v1891 = vpop.f32.mrf.mxu0
  %v1892 = vadd.f32 0.0, %v1891
  %v1893 = vpop.f32.mrf.mxu0
  %1894 = vmatprep.mubr.f32.mxu0 0.0
  %1895 = vmatmul.mubr.f32.gmra.mxu0 %v1775
  %v1896 = vpop.f32.mrf.mxu0
  %v1897 = vadd.f32 0.0, %v1896
  %v1898 = vpop.f32.mrf.mxu0
  %1899 = vmatprep.mubr.f32.mxu0 0.0
  %1900 = vmatmul.mubr.f32.gmra.mxu0 %v1778
  %v1901 = vpop.f32.mrf.mxu0
  %v1902 = vadd.f32 0.0, %v1901
  %v1903 = vpop.f32.mrf.mxu0
  %1904 = vmatprep.mubr.f32.mxu0 0.0
  %1905 = vmatmul.mubr.f32.gmra.mxu0 %v1781
  %v1906 = vpop.f32.mrf.mxu0
  %v1907 = vadd.f32 0.0, %v1906
  %v1908 = vpop.f32.mrf.mxu0
  %1909 = vmatprep.mubr.f32.mxu0 0.0
  %1910 = vmatmul.mubr.f32.gmra.mxu0 %v1784
  %v1911 = vpop.f32.mrf.mxu0
  %v1912 = vadd.f32 0.0, %v1911
  %v1913 = vpop.f32.mrf.mxu0
  %1914 = vmatprep.mubr.f32.mxu0 0.0
  %1915 = vmatmul.mubr.f32.gmra.mxu0 %v1787
  %v1916 = vpop.f32.mrf.mxu0
  %v1917 = vadd.f32 0.0, %v1916
  %v1918 = vpop.f32.mrf.mxu0
  %1919 = vmatprep.mubr.f32.mxu0 0.0
  %1920 = vmatmul.mubr.f32.gmra.mxu0 %v1790
  %v1921 = vpop.f32.mrf.mxu0
  %v1922 = vadd.f32 0.0, %v1921
  %v1923 = vpop.f32.mrf.mxu0
  %1924 = vmatprep.mubr.f32.mxu0 0.0
  %1925 = vmatmul.mubr.f32.gmra.mxu0 %v1793
  %v1926 = vpop.f32.mrf.mxu0
  %v1927 = vadd.f32 0.0, %v1926
  %v1928 = vpop.f32.mrf.mxu0
  %1929 = vmatprep.mubr.f32.mxu0 0.0
  %1930 = vmatmul.mubr.f32.gmra.mxu0 %v1796
  %v1931 = vpop.f32.mrf.mxu0
  %v1932 = vadd.f32 0.0, %v1931
  %v1933 = vpop.f32.mrf.mxu0
  %1934 = vmatprep.mubr.f32.mxu0 0.0
  %1935 = vmatmul.mubr.f32.gmra.mxu0 %v1799
  %v1936 = vpop.f32.mrf.mxu0
  %v1937 = vadd.f32 0.0, %v1936
  %v1938 = vpop.f32.mrf.mxu0
  %1939 = vmatprep.mubr.f32.mxu0 0.0
  %1940 = vmatmul.mubr.f32.gmra.mxu0 %v1802
  %v1941 = vpop.f32.mrf.mxu0
  %v1942 = vadd.f32 0.0, %v1941
  %v1943 = vpop.f32.mrf.mxu0
  %1944 = vmatprep.mubr.f32.mxu0 0.0
  %1945 = vmatmul.mubr.f32.gmra.mxu0 %v1805
  %v1946 = vpop.f32.mrf.mxu0
  %v1947 = vadd.f32 0.0, %v1946
  %v1948 = vpop.f32.mrf.mxu0
  %1949 = vmatprep.mubr.f32.mxu0 0.0
  %1950 = vmatmul.mubr.f32.gmra.mxu0 %v1808
  %v1951 = vpop.f32.mrf.mxu0
  %v1952 = vadd.f32 0.0, %v1951
  %v1953 = vpop.f32.mrf.mxu0
  %1954 = vdwg.mxu0
  %v1955 = vadd.f32 %v1727, %v1877
  %v1956 = vadd.f32 %v1728, %v1882
  %v1957 = vadd.f32 %v1729, %v1887
  %v1958 = vadd.f32 %v1730, %v1892
  %v1959 = vadd.f32 %v1731, %v1897
  %v1960 = vadd.f32 %v1732, %v1902
  %v1961 = vadd.f32 %v1733, %v1907
  %v1962 = vadd.f32 %v1734, %v1912
  %v1963 = vadd.f32 %v1735, %v1917
  %v1964 = vadd.f32 %v1736, %v1922
  %v1965 = vadd.f32 %v1737, %v1927
  %v1966 = vadd.f32 %v1738, %v1932
  %v1967 = vadd.f32 %v1739, %v1937
  %v1968 = vadd.f32 %v1740, %v1942
  %v1969 = vadd.f32 %v1741, %v1947
  %v1970 = vadd.f32 %v1742, %v1952
  %s1971 = scalar_lea.vmem [#allocation3], 48
  %v1972 = vld [vmem:[%s1971 + $0x7] sm:$0xff]
  %v1973 = vld [vmem:[%s1971 + $0x1f] sm:$0xff]
  %v1974 = vld [vmem:[%s1971 + $0x37] sm:$0xff]
  %v1975 = vld [vmem:[%s1971 + $0x4f] sm:$0xff]
  %v1976 = vld [vmem:[%s1971 + $0x67] sm:$0xff]
  %v1977 = vld [vmem:[%s1971 + $0x7f] sm:$0xff]
  %v1978 = vld [vmem:[%s1971 + $0x97] sm:$0xff]
  %v1979 = vld [vmem:[%s1971 + $0xaf] sm:$0xff]
  %v1980 = vld [vmem:[%s1971 + $0xf7] sm:$0xff]
  %v1981 = vld [vmem:[%s1971 + $0x10f] sm:$0xff]
  %v1982 = vld [vmem:[%s1971 + $0x127] sm:$0xff]
  %v1983 = vld [vmem:[%s1971 + $0x13f] sm:$0xff]
  %v1984 = vld [vmem:[%s1971 + $0x157] sm:$0xff]
  %v1985 = vld [vmem:[%s1971 + $0x16f] sm:$0xff]
  %v1986 = vld [vmem:[%s1971 + $0x187] sm:$0xff]
  %v1987 = vld [vmem:[%s1971 + $0x19f] sm:$0xff]
  %s1988 = scalar_lea.vmem %s4, 96
  %v1989 = vld [vmem:[%s1988] sm:$0xff]
  %v1990 = vld [vmem:[%s1988 + $0x8] sm:$0xff]
  %v1992 = vsel %vm89, %v1972, 0
  %v1995 = vsel %vm89, %v1973, 0
  %v1998 = vsel %vm89, %v1974, 0
  %v2001 = vsel %vm89, %v1975, 0
  %v2004 = vsel %vm89, %v1976, 0
  %v2007 = vsel %vm89, %v1977, 0
  %v2010 = vsel %vm89, %v1978, 0
  %v2013 = vsel %vm89, %v1979, 0
  %v2016 = vsel %vm89, %v1980, 0
  %v2019 = vsel %vm89, %v1981, 0
  %v2022 = vsel %vm89, %v1982, 0
  %v2025 = vsel %vm89, %v1983, 0
  %v2028 = vsel %vm89, %v1984, 0
  %v2031 = vsel %vm89, %v1985, 0
  %v2034 = vsel %vm89, %v1986, 0
  %v2037 = vsel %vm89, %v1987, 0
  %2039 = vmatprep.subr.mxu0 0.0
  %2040 = vmatpush1.msra.mxu0 0.0
  %2041 = vmatprep.subr.mxu0 0.0
  %2042 = vmatpush1.msra.mxu0 0.0
  %2043 = vmatprep.subr.mxu0 0.0
  %2044 = vmatpush1.msra.mxu0 0.0
  %2045 = vmatprep.subr.mxu0 0.0
  %2046 = vmatpush1.msra.mxu0 0.0
  %2047 = vmatprep.subr.mxu0 0.0
  %2048 = vmatpush1.msra.mxu0 0.0
  %2049 = vmatprep.subr.mxu0 0.0
  %2050 = vmatpush1.msra.mxu0 0.0
  %2051 = vmatprep.subr.mxu0 0.0
  %2052 = vmatpush1.msra.mxu0 0.0
  %2053 = vmatprep.subr.mxu0 0.0
  %2054 = vmatpush1.msra.mxu0 0.0
  %2055 = vmatprep.subr.mxu0 0.0
  %2056 = vmatpush1.msra.mxu0 0.0
  %2057 = vmatprep.subr.mxu0 0.0
  %2058 = vmatpush1.msra.mxu0 0.0
  %2059 = vmatprep.subr.mxu0 0.0
  %2060 = vmatpush1.msra.mxu0 0.0
  %2061 = vmatprep.subr.mxu0 0.0
  %2062 = vmatpush1.msra.mxu0 0.0
  %2063 = vmatprep.subr.mxu0 0.0
  %2064 = vmatpush1.msra.mxu0 0.0
  %2065 = vmatprep.subr.mxu0 0.0
  %2066 = vmatpush1.msra.mxu0 0.0
  %2067 = vmatprep.subr.mxu0 0.0
  %2068 = vmatpush1.msra.mxu0 %v1990
  %2069 = vmatprep.subr.mxu0 0.0
  %2070 = vmatpush1.msra.mxu0 %v1989
  %2071 = vmatprep.subr.mxu0 0.0
  %2072 = vmatpush2.msra.mxu0 0.0
  %2073 = vmatprep.subr.mxu0 0.0
  %2074 = vmatpush2.msra.mxu0 0.0
  %2075 = vmatprep.subr.mxu0 0.0
  %2076 = vmatpush2.msra.mxu0 0.0
  %2077 = vmatprep.subr.mxu0 0.0
  %2078 = vmatpush2.msra.mxu0 0.0
  %2079 = vmatprep.subr.mxu0 0.0
  %2080 = vmatpush2.msra.mxu0 0.0
  %2081 = vmatprep.subr.mxu0 0.0
  %2082 = vmatpush2.msra.mxu0 0.0
  %2083 = vmatprep.subr.mxu0 0.0
  %2084 = vmatpush2.msra.mxu0 0.0
  %2085 = vmatprep.subr.mxu0 0.0
  %2086 = vmatpush2.msra.mxu0 0.0
  %2087 = vmatprep.subr.mxu0 0.0
  %2088 = vmatpush2.msra.mxu0 0.0
  %2089 = vmatprep.subr.mxu0 0.0
  %2090 = vmatpush2.msra.mxu0 0.0
  %2091 = vmatprep.subr.mxu0 0.0
  %2092 = vmatpush2.msra.mxu0 0.0
  %2093 = vmatprep.subr.mxu0 0.0
  %2094 = vmatpush2.msra.mxu0 0.0
  %2095 = vmatprep.subr.mxu0 0.0
  %2096 = vmatpush2.msra.mxu0 0.0
  %2097 = vmatprep.subr.mxu0 0.0
  %2098 = vmatpush2.msra.mxu0 0.0
  %2099 = vmatprep.subr.mxu0 0.0
  %2100 = vmatpush2.msra.mxu0 0.0
  %2101 = vmatprep.subr.mxu0 0.0
  %2102 = vmatpush2.msra.mxu0 0.0
  %2103 = vmatprep.mubr.f32.mxu0 0.0
  %2104 = vmatmul.mubr.f32.gmra.mxu0 %v1992
  %v2105 = vpop.f32.mrf.mxu0
  %v2106 = vadd.f32 0.0, %v2105
  %v2107 = vpop.f32.mrf.mxu0
  %2108 = vmatprep.mubr.f32.mxu0 0.0
  %2109 = vmatmul.mubr.f32.gmra.mxu0 %v1995
  %v2110 = vpop.f32.mrf.mxu0
  %v2111 = vadd.f32 0.0, %v2110
  %v2112 = vpop.f32.mrf.mxu0
  %2113 = vmatprep.mubr.f32.mxu0 0.0
  %2114 = vmatmul.mubr.f32.gmra.mxu0 %v1998
  %v2115 = vpop.f32.mrf.mxu0
  %v2116 = vadd.f32 0.0, %v2115
  %v2117 = vpop.f32.mrf.mxu0
  %2118 = vmatprep.mubr.f32.mxu0 0.0
  %2119 = vmatmul.mubr.f32.gmra.mxu0 %v2001
  %v2120 = vpop.f32.mrf.mxu0
  %v2121 = vadd.f32 0.0, %v2120
  %v2122 = vpop.f32.mrf.mxu0
  %2123 = vmatprep.mubr.f32.mxu0 0.0
  %2124 = vmatmul.mubr.f32.gmra.mxu0 %v2004
  %v2125 = vpop.f32.mrf.mxu0
  %v2126 = vadd.f32 0.0, %v2125
  %v2127 = vpop.f32.mrf.mxu0
  %2128 = vmatprep.mubr.f32.mxu0 0.0
  %2129 = vmatmul.mubr.f32.gmra.mxu0 %v2007
  %v2130 = vpop.f32.mrf.mxu0
  %v2131 = vadd.f32 0.0, %v2130
  %v2132 = vpop.f32.mrf.mxu0
  %2133 = vmatprep.mubr.f32.mxu0 0.0
  %2134 = vmatmul.mubr.f32.gmra.mxu0 %v2010
  %v2135 = vpop.f32.mrf.mxu0
  %v2136 = vadd.f32 0.0, %v2135
  %v2137 = vpop.f32.mrf.mxu0
  %2138 = vmatprep.mubr.f32.mxu0 0.0
  %2139 = vmatmul.mubr.f32.gmra.mxu0 %v2013
  %v2140 = vpop.f32.mrf.mxu0
  %v2141 = vadd.f32 0.0, %v2140
  %v2142 = vpop.f32.mrf.mxu0
  %2143 = vmatprep.mubr.f32.mxu0 0.0
  %2144 = vmatmul.mubr.f32.gmra.mxu0 %v2016
  %v2145 = vpop.f32.mrf.mxu0
  %v2146 = vadd.f32 0.0, %v2145
  %v2147 = vpop.f32.mrf.mxu0
  %2148 = vmatprep.mubr.f32.mxu0 0.0
  %2149 = vmatmul.mubr.f32.gmra.mxu0 %v2019
  %v2150 = vpop.f32.mrf.mxu0
  %v2151 = vadd.f32 0.0, %v2150
  %v2152 = vpop.f32.mrf.mxu0
  %2153 = vmatprep.mubr.f32.mxu0 0.0
  %2154 = vmatmul.mubr.f32.gmra.mxu0 %v2022
  %v2155 = vpop.f32.mrf.mxu0
  %v2156 = vadd.f32 0.0, %v2155
  %v2157 = vpop.f32.mrf.mxu0
  %2158 = vmatprep.mubr.f32.mxu0 0.0
  %2159 = vmatmul.mubr.f32.gmra.mxu0 %v2025
  %v2160 = vpop.f32.mrf.mxu0
  %v2161 = vadd.f32 0.0, %v2160
  %v2162 = vpop.f32.mrf.mxu0
  %2163 = vmatprep.mubr.f32.mxu0 0.0
  %2164 = vmatmul.mubr.f32.gmra.mxu0 %v2028
  %v2165 = vpop.f32.mrf.mxu0
  %v2166 = vadd.f32 0.0, %v2165
  %v2167 = vpop.f32.mrf.mxu0
  %2168 = vmatprep.mubr.f32.mxu0 0.0
  %2169 = vmatmul.mubr.f32.gmra.mxu0 %v2031
  %v2170 = vpop.f32.mrf.mxu0
  %v2171 = vadd.f32 0.0, %v2170
  %v2172 = vpop.f32.mrf.mxu0
  %2173 = vmatprep.mubr.f32.mxu0 0.0
  %2174 = vmatmul.mubr.f32.gmra.mxu0 %v2034
  %v2175 = vpop.f32.mrf.mxu0
  %v2176 = vadd.f32 0.0, %v2175
  %v2177 = vpop.f32.mrf.mxu0
  %2178 = vmatprep.mubr.f32.mxu0 0.0
  %2179 = vmatmul.mubr.f32.gmra.mxu0 %v2037
  %v2180 = vpop.f32.mrf.mxu0
  %v2181 = vadd.f32 0.0, %v2180
  %v2182 = vpop.f32.mrf.mxu0
  %2183 = vdwg.mxu0
  %v2184 = vadd.f32 %v1955, %v2106
  %v2185 = vadd.f32 %v1956, %v2111
  %v2186 = vadd.f32 %v1957, %v2116
  %v2187 = vadd.f32 %v1958, %v2121
  %v2188 = vadd.f32 %v1959, %v2126
  %v2189 = vadd.f32 %v1960, %v2131
  %v2190 = vadd.f32 %v1961, %v2136
  %v2191 = vadd.f32 %v1962, %v2141
  %v2192 = vadd.f32 %v1963, %v2146
  %v2193 = vadd.f32 %v1964, %v2151
  %v2194 = vadd.f32 %v1965, %v2156
  %v2195 = vadd.f32 %v1966, %v2161
  %v2196 = vadd.f32 %v1967, %v2166
  %v2197 = vadd.f32 %v1968, %v2171
  %v2198 = vadd.f32 %v1969, %v2176
  %v2199 = vadd.f32 %v1970, %v2181
  %v2200 = vld [vmem:[%s1971 + $0x8] sm:$0xff]
  %v2201 = vld [vmem:[%s1971 + $0x20] sm:$0xff]
  %v2202 = vld [vmem:[%s1971 + $0x38] sm:$0xff]
  %v2203 = vld [vmem:[%s1971 + $0x50] sm:$0xff]
  %v2204 = vld [vmem:[%s1971 + $0x68] sm:$0xff]
  %v2205 = vld [vmem:[%s1971 + $0x80] sm:$0xff]
  %v2206 = vld [vmem:[%s1971 + $0x98] sm:$0xff]
  %v2207 = vld [vmem:[%s1971 + $0xb0] sm:$0xff]
  %v2208 = vld [vmem:[%s1971 + $0xf8] sm:$0xff]
  %v2209 = vld [vmem:[%s1971 + $0x110] sm:$0xff]
  %v2210 = vld [vmem:[%s1971 + $0x128] sm:$0xff]
  %v2211 = vld [vmem:[%s1971 + $0x140] sm:$0xff]
  %v2212 = vld [vmem:[%s1971 + $0x158] sm:$0xff]
  %v2213 = vld [vmem:[%s1971 + $0x170] sm:$0xff]
  %v2214 = vld [vmem:[%s1971 + $0x188] sm:$0xff]
  %v2215 = vld [vmem:[%s1971 + $0x1a0] sm:$0xff]
  %s2216 = scalar_lea.vmem %s4, 112
  %v2217 = vld [vmem:[%s2216] sm:$0xff]
  %v2218 = vld [vmem:[%s2216 + $0x8] sm:$0xff]
  %v2220 = vsel %vm89, %v2200, 0
  %v2223 = vsel %vm89, %v2201, 0
  %v2226 = vsel %vm89, %v2202, 0
  %v2229 = vsel %vm89, %v2203, 0
  %v2232 = vsel %vm89, %v2204, 0
  %v2235 = vsel %vm89, %v2205, 0
  %v2238 = vsel %vm89, %v2206, 0
  %v2241 = vsel %vm89, %v2207, 0
  %v2244 = vsel %vm89, %v2208, 0
  %v2247 = vsel %vm89, %v2209, 0
  %v2250 = vsel %vm89, %v2210, 0
  %v2253 = vsel %vm89, %v2211, 0
  %v2256 = vsel %vm89, %v2212, 0
  %v2259 = vsel %vm89, %v2213, 0
  %v2262 = vsel %vm89, %v2214, 0
  %v2265 = vsel %vm89, %v2215, 0
  %2267 = vmatprep.subr.mxu0 0.0
  %2268 = vmatpush1.msra.mxu0 0.0
  %2269 = vmatprep.subr.mxu0 0.0
  %2270 = vmatpush1.msra.mxu0 0.0
  %2271 = vmatprep.subr.mxu0 0.0
  %2272 = vmatpush1.msra.mxu0 0.0
  %2273 = vmatprep.subr.mxu0 0.0
  %2274 = vmatpush1.msra.mxu0 0.0
  %2275 = vmatprep.subr.mxu0 0.0
  %2276 = vmatpush1.msra.mxu0 0.0
  %2277 = vmatprep.subr.mxu0 0.0
  %2278 = vmatpush1.msra.mxu0 0.0
  %2279 = vmatprep.subr.mxu0 0.0
  %2280 = vmatpush1.msra.mxu0 0.0
  %2281 = vmatprep.subr.mxu0 0.0
  %2282 = vmatpush1.msra.mxu0 0.0
  %2283 = vmatprep.subr.mxu0 0.0
  %2284 = vmatpush1.msra.mxu0 0.0
  %2285 = vmatprep.subr.mxu0 0.0
  %2286 = vmatpush1.msra.mxu0 0.0
  %2287 = vmatprep.subr.mxu0 0.0
  %2288 = vmatpush1.msra.mxu0 0.0
  %2289 = vmatprep.subr.mxu0 0.0
  %2290 = vmatpush1.msra.mxu0 0.0
  %2291 = vmatprep.subr.mxu0 0.0
  %2292 = vmatpush1.msra.mxu0 0.0
  %2293 = vmatprep.subr.mxu0 0.0
  %2294 = vmatpush1.msra.mxu0 0.0
  %2295 = vmatprep.subr.mxu0 0.0
  %2296 = vmatpush1.msra.mxu0 %v2218
  %2297 = vmatprep.subr.mxu0 0.0
  %2298 = vmatpush1.msra.mxu0 %v2217
  %2299 = vmatprep.subr.mxu0 0.0
  %2300 = vmatpush2.msra.mxu0 0.0
  %2301 = vmatprep.subr.mxu0 0.0
  %2302 = vmatpush2.msra.mxu0 0.0
  %2303 = vmatprep.subr.mxu0 0.0
  %2304 = vmatpush2.msra.mxu0 0.0
  %2305 = vmatprep.subr.mxu0 0.0
  %2306 = vmatpush2.msra.mxu0 0.0
  %2307 = vmatprep.subr.mxu0 0.0
  %2308 = vmatpush2.msra.mxu0 0.0
  %2309 = vmatprep.subr.mxu0 0.0
  %2310 = vmatpush2.msra.mxu0 0.0
  %2311 = vmatprep.subr.mxu0 0.0
  %2312 = vmatpush2.msra.mxu0 0.0
  %2313 = vmatprep.subr.mxu0 0.0
  %2314 = vmatpush2.msra.mxu0 0.0
  %2315 = vmatprep.subr.mxu0 0.0
  %2316 = vmatpush2.msra.mxu0 0.0
  %2317 = vmatprep.subr.mxu0 0.0
  %2318 = vmatpush2.msra.mxu0 0.0
  %2319 = vmatprep.subr.mxu0 0.0
  %2320 = vmatpush2.msra.mxu0 0.0
  %2321 = vmatprep.subr.mxu0 0.0
  %2322 = vmatpush2.msra.mxu0 0.0
  %2323 = vmatprep.subr.mxu0 0.0
  %2324 = vmatpush2.msra.mxu0 0.0
  %2325 = vmatprep.subr.mxu0 0.0
  %2326 = vmatpush2.msra.mxu0 0.0
  %2327 = vmatprep.subr.mxu0 0.0
  %2328 = vmatpush2.msra.mxu0 0.0
  %2329 = vmatprep.subr.mxu0 0.0
  %2330 = vmatpush2.msra.mxu0 0.0
  %2331 = vmatprep.mubr.f32.mxu0 0.0
  %2332 = vmatmul.mubr.f32.gmra.mxu0 %v2220
  %v2333 = vpop.f32.mrf.mxu0
  %v2334 = vadd.f32 0.0, %v2333
  %v2335 = vpop.f32.mrf.mxu0
  %2336 = vmatprep.mubr.f32.mxu0 0.0
  %2337 = vmatmul.mubr.f32.gmra.mxu0 %v2223
  %v2338 = vpop.f32.mrf.mxu0
  %v2339 = vadd.f32 0.0, %v2338
  %v2340 = vpop.f32.mrf.mxu0
  %2341 = vmatprep.mubr.f32.mxu0 0.0
  %2342 = vmatmul.mubr.f32.gmra.mxu0 %v2226
  %v2343 = vpop.f32.mrf.mxu0
  %v2344 = vadd.f32 0.0, %v2343
  %v2345 = vpop.f32.mrf.mxu0
  %2346 = vmatprep.mubr.f32.mxu0 0.0
  %2347 = vmatmul.mubr.f32.gmra.mxu0 %v2229
  %v2348 = vpop.f32.mrf.mxu0
  %v2349 = vadd.f32 0.0, %v2348
  %v2350 = vpop.f32.mrf.mxu0
  %2351 = vmatprep.mubr.f32.mxu0 0.0
  %2352 = vmatmul.mubr.f32.gmra.mxu0 %v2232
  %v2353 = vpop.f32.mrf.mxu0
  %v2354 = vadd.f32 0.0, %v2353
  %v2355 = vpop.f32.mrf.mxu0
  %2356 = vmatprep.mubr.f32.mxu0 0.0
  %2357 = vmatmul.mubr.f32.gmra.mxu0 %v2235
  %v2358 = vpop.f32.mrf.mxu0
  %v2359 = vadd.f32 0.0, %v2358
  %v2360 = vpop.f32.mrf.mxu0
  %2361 = vmatprep.mubr.f32.mxu0 0.0
  %2362 = vmatmul.mubr.f32.gmra.mxu0 %v2238
  %v2363 = vpop.f32.mrf.mxu0
  %v2364 = vadd.f32 0.0, %v2363
  %v2365 = vpop.f32.mrf.mxu0
  %2366 = vmatprep.mubr.f32.mxu0 0.0
  %2367 = vmatmul.mubr.f32.gmra.mxu0 %v2241
  %v2368 = vpop.f32.mrf.mxu0
  %v2369 = vadd.f32 0.0, %v2368
  %v2370 = vpop.f32.mrf.mxu0
  %2371 = vmatprep.mubr.f32.mxu0 0.0
  %2372 = vmatmul.mubr.f32.gmra.mxu0 %v2244
  %v2373 = vpop.f32.mrf.mxu0
  %v2374 = vadd.f32 0.0, %v2373
  %v2375 = vpop.f32.mrf.mxu0
  %2376 = vmatprep.mubr.f32.mxu0 0.0
  %2377 = vmatmul.mubr.f32.gmra.mxu0 %v2247
  %v2378 = vpop.f32.mrf.mxu0
  %v2379 = vadd.f32 0.0, %v2378
  %v2380 = vpop.f32.mrf.mxu0
  %2381 = vmatprep.mubr.f32.mxu0 0.0
  %2382 = vmatmul.mubr.f32.gmra.mxu0 %v2250
  %v2383 = vpop.f32.mrf.mxu0
  %v2384 = vadd.f32 0.0, %v2383
  %v2385 = vpop.f32.mrf.mxu0
  %2386 = vmatprep.mubr.f32.mxu0 0.0
  %2387 = vmatmul.mubr.f32.gmra.mxu0 %v2253
  %v2388 = vpop.f32.mrf.mxu0
  %v2389 = vadd.f32 0.0, %v2388
  %v2390 = vpop.f32.mrf.mxu0
  %2391 = vmatprep.mubr.f32.mxu0 0.0
  %2392 = vmatmul.mubr.f32.gmra.mxu0 %v2256
  %v2393 = vpop.f32.mrf.mxu0
  %v2394 = vadd.f32 0.0, %v2393
  %v2395 = vpop.f32.mrf.mxu0
  %2396 = vmatprep.mubr.f32.mxu0 0.0
  %2397 = vmatmul.mubr.f32.gmra.mxu0 %v2259
  %v2398 = vpop.f32.mrf.mxu0
  %v2399 = vadd.f32 0.0, %v2398
  %v2400 = vpop.f32.mrf.mxu0
  %2401 = vmatprep.mubr.f32.mxu0 0.0
  %2402 = vmatmul.mubr.f32.gmra.mxu0 %v2262
  %v2403 = vpop.f32.mrf.mxu0
  %v2404 = vadd.f32 0.0, %v2403
  %v2405 = vpop.f32.mrf.mxu0
  %2406 = vmatprep.mubr.f32.mxu0 0.0
  %2407 = vmatmul.mubr.f32.gmra.mxu0 %v2265
  %v2408 = vpop.f32.mrf.mxu0
  %v2409 = vadd.f32 0.0, %v2408
  %v2410 = vpop.f32.mrf.mxu0
  %2411 = vdwg.mxu0
  %v2412 = vadd.f32 %v2184, %v2334
  %v2413 = vadd.f32 %v2185, %v2339
  %v2414 = vadd.f32 %v2186, %v2344
  %v2415 = vadd.f32 %v2187, %v2349
  %v2416 = vadd.f32 %v2188, %v2354
  %v2417 = vadd.f32 %v2189, %v2359
  %v2418 = vadd.f32 %v2190, %v2364
  %v2419 = vadd.f32 %v2191, %v2369
  %v2420 = vadd.f32 %v2192, %v2374
  %v2421 = vadd.f32 %v2193, %v2379
  %v2422 = vadd.f32 %v2194, %v2384
  %v2423 = vadd.f32 %v2195, %v2389
  %v2424 = vadd.f32 %v2196, %v2394
  %v2425 = vadd.f32 %v2197, %v2399
  %v2426 = vadd.f32 %v2198, %v2404
  %v2427 = vadd.f32 %v2199, %v2409
  %v2428 = vld [vmem:[%s1971 + $0x9] sm:$0xff]
  %v2429 = vld [vmem:[%s1971 + $0x21] sm:$0xff]
  %v2430 = vld [vmem:[%s1971 + $0x39] sm:$0xff]
  %v2431 = vld [vmem:[%s1971 + $0x51] sm:$0xff]
  %v2432 = vld [vmem:[%s1971 + $0x69] sm:$0xff]
  %v2433 = vld [vmem:[%s1971 + $0x81] sm:$0xff]
  %v2434 = vld [vmem:[%s1971 + $0x99] sm:$0xff]
  %v2435 = vld [vmem:[%s1971 + $0xb1] sm:$0xff]
  %v2436 = vld [vmem:[%s1971 + $0xf9] sm:$0xff]
  %v2437 = vld [vmem:[%s1971 + $0x111] sm:$0xff]
  %v2438 = vld [vmem:[%s1971 + $0x129] sm:$0xff]
  %v2439 = vld [vmem:[%s1971 + $0x141] sm:$0xff]
  %v2440 = vld [vmem:[%s1971 + $0x159] sm:$0xff]
  %v2441 = vld [vmem:[%s1971 + $0x171] sm:$0xff]
  %v2442 = vld [vmem:[%s1971 + $0x189] sm:$0xff]
  %v2443 = vld [vmem:[%s1971 + $0x1a1] sm:$0xff]
  %s2444 = scalar_lea.vmem %s4, 128
  %v2445 = vld [vmem:[%s2444] sm:$0xff]
  %v2446 = vld [vmem:[%s2444 + $0x8] sm:$0xff]
  %v2448 = vsel %vm89, %v2428, 0
  %v2451 = vsel %vm89, %v2429, 0
  %v2454 = vsel %vm89, %v2430, 0
  %v2457 = vsel %vm89, %v2431, 0
  %v2460 = vsel %vm89, %v2432, 0
  %v2463 = vsel %vm89, %v2433, 0
  %v2466 = vsel %vm89, %v2434, 0
  %v2469 = vsel %vm89, %v2435, 0
  %v2472 = vsel %vm89, %v2436, 0
  %v2475 = vsel %vm89, %v2437, 0
  %v2478 = vsel %vm89, %v2438, 0
  %v2481 = vsel %vm89, %v2439, 0
  %v2484 = vsel %vm89, %v2440, 0
  %v2487 = vsel %vm89, %v2441, 0
  %v2490 = vsel %vm89, %v2442, 0
  %v2493 = vsel %vm89, %v2443, 0
  %2495 = vmatprep.subr.mxu0 0.0
  %2496 = vmatpush1.msra.mxu0 0.0
  %2497 = vmatprep.subr.mxu0 0.0
  %2498 = vmatpush1.msra.mxu0 0.0
  %2499 = vmatprep.subr.mxu0 0.0
  %2500 = vmatpush1.msra.mxu0 0.0
  %2501 = vmatprep.subr.mxu0 0.0
  %2502 = vmatpush1.msra.mxu0 0.0
  %2503 = vmatprep.subr.mxu0 0.0
  %2504 = vmatpush1.msra.mxu0 0.0
  %2505 = vmatprep.subr.mxu0 0.0
  %2506 = vmatpush1.msra.mxu0 0.0
  %2507 = vmatprep.subr.mxu0 0.0
  %2508 = vmatpush1.msra.mxu0 0.0
  %2509 = vmatprep.subr.mxu0 0.0
  %2510 = vmatpush1.msra.mxu0 0.0
  %2511 = vmatprep.subr.mxu0 0.0
  %2512 = vmatpush1.msra.mxu0 0.0
  %2513 = vmatprep.subr.mxu0 0.0
  %2514 = vmatpush1.msra.mxu0 0.0
  %2515 = vmatprep.subr.mxu0 0.0
  %2516 = vmatpush1.msra.mxu0 0.0
  %2517 = vmatprep.subr.mxu0 0.0
  %2518 = vmatpush1.msra.mxu0 0.0
  %2519 = vmatprep.subr.mxu0 0.0
  %2520 = vmatpush1.msra.mxu0 0.0
  %2521 = vmatprep.subr.mxu0 0.0
  %2522 = vmatpush1.msra.mxu0 0.0
  %2523 = vmatprep.subr.mxu0 0.0
  %2524 = vmatpush1.msra.mxu0 %v2446
  %2525 = vmatprep.subr.mxu0 0.0
  %2526 = vmatpush1.msra.mxu0 %v2445
  %2527 = vmatprep.subr.mxu0 0.0
  %2528 = vmatpush2.msra.mxu0 0.0
  %2529 = vmatprep.subr.mxu0 0.0
  %2530 = vmatpush2.msra.mxu0 0.0
  %2531 = vmatprep.subr.mxu0 0.0
  %2532 = vmatpush2.msra.mxu0 0.0
  %2533 = vmatprep.subr.mxu0 0.0
  %2534 = vmatpush2.msra.mxu0 0.0
  %2535 = vmatprep.subr.mxu0 0.0
  %2536 = vmatpush2.msra.mxu0 0.0
  %2537 = vmatprep.subr.mxu0 0.0
  %2538 = vmatpush2.msra.mxu0 0.0
  %2539 = vmatprep.subr.mxu0 0.0
  %2540 = vmatpush2.msra.mxu0 0.0
  %2541 = vmatprep.subr.mxu0 0.0
  %2542 = vmatpush2.msra.mxu0 0.0
  %2543 = vmatprep.subr.mxu0 0.0
  %2544 = vmatpush2.msra.mxu0 0.0
  %2545 = vmatprep.subr.mxu0 0.0
  %2546 = vmatpush2.msra.mxu0 0.0
  %2547 = vmatprep.subr.mxu0 0.0
  %2548 = vmatpush2.msra.mxu0 0.0
  %2549 = vmatprep.subr.mxu0 0.0
  %2550 = vmatpush2.msra.mxu0 0.0
  %2551 = vmatprep.subr.mxu0 0.0
  %2552 = vmatpush2.msra.mxu0 0.0
  %2553 = vmatprep.subr.mxu0 0.0
  %2554 = vmatpush2.msra.mxu0 0.0
  %2555 = vmatprep.subr.mxu0 0.0
  %2556 = vmatpush2.msra.mxu0 0.0
  %2557 = vmatprep.subr.mxu0 0.0
  %2558 = vmatpush2.msra.mxu0 0.0
  %2559 = vmatprep.mubr.f32.mxu0 0.0
  %2560 = vmatmul.mubr.f32.gmra.mxu0 %v2448
  %v2561 = vpop.f32.mrf.mxu0
  %v2562 = vadd.f32 0.0, %v2561
  %v2563 = vpop.f32.mrf.mxu0
  %2564 = vmatprep.mubr.f32.mxu0 0.0
  %2565 = vmatmul.mubr.f32.gmra.mxu0 %v2451
  %v2566 = vpop.f32.mrf.mxu0
  %v2567 = vadd.f32 0.0, %v2566
  %v2568 = vpop.f32.mrf.mxu0
  %2569 = vmatprep.mubr.f32.mxu0 0.0
  %2570 = vmatmul.mubr.f32.gmra.mxu0 %v2454
  %v2571 = vpop.f32.mrf.mxu0
  %v2572 = vadd.f32 0.0, %v2571
  %v2573 = vpop.f32.mrf.mxu0
  %2574 = vmatprep.mubr.f32.mxu0 0.0
  %2575 = vmatmul.mubr.f32.gmra.mxu0 %v2457
  %v2576 = vpop.f32.mrf.mxu0
  %v2577 = vadd.f32 0.0, %v2576
  %v2578 = vpop.f32.mrf.mxu0
  %2579 = vmatprep.mubr.f32.mxu0 0.0
  %2580 = vmatmul.mubr.f32.gmra.mxu0 %v2460
  %v2581 = vpop.f32.mrf.mxu0
  %v2582 = vadd.f32 0.0, %v2581
  %v2583 = vpop.f32.mrf.mxu0
  %2584 = vmatprep.mubr.f32.mxu0 0.0
  %2585 = vmatmul.mubr.f32.gmra.mxu0 %v2463
  %v2586 = vpop.f32.mrf.mxu0
  %v2587 = vadd.f32 0.0, %v2586
  %v2588 = vpop.f32.mrf.mxu0
  %2589 = vmatprep.mubr.f32.mxu0 0.0
  %2590 = vmatmul.mubr.f32.gmra.mxu0 %v2466
  %v2591 = vpop.f32.mrf.mxu0
  %v2592 = vadd.f32 0.0, %v2591
  %v2593 = vpop.f32.mrf.mxu0
  %2594 = vmatprep.mubr.f32.mxu0 0.0
  %2595 = vmatmul.mubr.f32.gmra.mxu0 %v2469
  %v2596 = vpop.f32.mrf.mxu0
  %v2597 = vadd.f32 0.0, %v2596
  %v2598 = vpop.f32.mrf.mxu0
  %2599 = vmatprep.mubr.f32.mxu0 0.0
  %2600 = vmatmul.mubr.f32.gmra.mxu0 %v2472
  %v2601 = vpop.f32.mrf.mxu0
  %v2602 = vadd.f32 0.0, %v2601
  %v2603 = vpop.f32.mrf.mxu0
  %2604 = vmatprep.mubr.f32.mxu0 0.0
  %2605 = vmatmul.mubr.f32.gmra.mxu0 %v2475
  %v2606 = vpop.f32.mrf.mxu0
  %v2607 = vadd.f32 0.0, %v2606
  %v2608 = vpop.f32.mrf.mxu0
  %2609 = vmatprep.mubr.f32.mxu0 0.0
  %2610 = vmatmul.mubr.f32.gmra.mxu0 %v2478
  %v2611 = vpop.f32.mrf.mxu0
  %v2612 = vadd.f32 0.0, %v2611
  %v2613 = vpop.f32.mrf.mxu0
  %2614 = vmatprep.mubr.f32.mxu0 0.0
  %2615 = vmatmul.mubr.f32.gmra.mxu0 %v2481
  %v2616 = vpop.f32.mrf.mxu0
  %v2617 = vadd.f32 0.0, %v2616
  %v2618 = vpop.f32.mrf.mxu0
  %2619 = vmatprep.mubr.f32.mxu0 0.0
  %2620 = vmatmul.mubr.f32.gmra.mxu0 %v2484
  %v2621 = vpop.f32.mrf.mxu0
  %v2622 = vadd.f32 0.0, %v2621
  %v2623 = vpop.f32.mrf.mxu0
  %2624 = vmatprep.mubr.f32.mxu0 0.0
  %2625 = vmatmul.mubr.f32.gmra.mxu0 %v2487
  %v2626 = vpop.f32.mrf.mxu0
  %v2627 = vadd.f32 0.0, %v2626
  %v2628 = vpop.f32.mrf.mxu0
  %2629 = vmatprep.mubr.f32.mxu0 0.0
  %2630 = vmatmul.mubr.f32.gmra.mxu0 %v2490
  %v2631 = vpop.f32.mrf.mxu0
  %v2632 = vadd.f32 0.0, %v2631
  %v2633 = vpop.f32.mrf.mxu0
  %2634 = vmatprep.mubr.f32.mxu0 0.0
  %2635 = vmatmul.mubr.f32.gmra.mxu0 %v2493
  %v2636 = vpop.f32.mrf.mxu0
  %v2637 = vadd.f32 0.0, %v2636
  %v2638 = vpop.f32.mrf.mxu0
  %2639 = vdwg.mxu0
  %v2640 = vadd.f32 %v2412, %v2562
  %v2641 = vadd.f32 %v2413, %v2567
  %v2642 = vadd.f32 %v2414, %v2572
  %v2643 = vadd.f32 %v2415, %v2577
  %v2644 = vadd.f32 %v2416, %v2582
  %v2645 = vadd.f32 %v2417, %v2587
  %v2646 = vadd.f32 %v2418, %v2592
  %v2647 = vadd.f32 %v2419, %v2597
  %v2648 = vadd.f32 %v2420, %v2602
  %v2649 = vadd.f32 %v2421, %v2607
  %v2650 = vadd.f32 %v2422, %v2612
  %v2651 = vadd.f32 %v2423, %v2617
  %v2652 = vadd.f32 %v2424, %v2622
  %v2653 = vadd.f32 %v2425, %v2627
  %v2654 = vadd.f32 %v2426, %v2632
  %v2655 = vadd.f32 %v2427, %v2637
  %v2656 = vld [vmem:[%s5] sm:$0x1]
  %v2657 = vld [vmem:[%s6] sm:$0x1]
  %vm2658 = vcmask 31744
  %v2659 = vsel %vm2658, %v2640, 0.0
  %v2660 = vsel %vm2658, %v2641, 0.0
  %v2661 = vadd.f32 %v2659, %v2660
  %v2662 = vsel %vm2658, %v2642, 0.0
  %v2663 = vadd.f32 %v2661, %v2662
  %v2664 = vsel %vm2658, %v2643, 0.0
  %v2665 = vadd.f32 %v2663, %v2664
  %v2666 = vsel %vm2658, %v2644, 0.0
  %v2667 = vadd.f32 %v2665, %v2666
  %v2668 = vsel %vm2658, %v2645, 0.0
  %v2669 = vadd.f32 %v2667, %v2668
  %v2670 = vsel %vm2658, %v2646, 0.0
  %v2671 = vadd.f32 %v2669, %v2670
  %v2672 = vsel %vm2658, %v2647, 0.0
  %v2673 = vadd.f32 %v2671, %v2672
  %v2674 = vsel %vm2658, %v2648, 0.0
  %v2675 = vadd.f32 %v2673, %v2674
  %v2676 = vsel %vm2658, %v2649, 0.0
  %v2677 = vadd.f32 %v2675, %v2676
  %v2678 = vsel %vm2658, %v2650, 0.0
  %v2679 = vadd.f32 %v2677, %v2678
  %v2680 = vsel %vm2658, %v2651, 0.0
  %v2681 = vadd.f32 %v2679, %v2680
  %v2682 = vsel %vm2658, %v2652, 0.0
  %v2683 = vadd.f32 %v2681, %v2682
  %v2684 = vsel %vm2658, %v2653, 0.0
  %v2685 = vadd.f32 %v2683, %v2684
  %v2686 = vsel %vm2658, %v2654, 0.0
  %v2687 = vadd.f32 %v2685, %v2686
  %v2688 = vsel %vm2658, %v2655, 0.0
  %v2689 = vadd.f32 %v2687, %v2688
  %v2690 = vrot.slane %v2689, 4
  %v2691 = vadd.f32 %v2689, %v2690
  %v2692 = vrot.slane %v2691, 2
  %v2693 = vadd.f32 %v2691, %v2692
  %v2694 = vrot.slane %v2693, 1
  %v2695 = vadd.f32 %v2693, %v2694
  %v2696 = vmul.f32 %v2695, 0.0078125
  %v2697 = vmul.f32 %v2640, %v2640
  %v2698 = vmul.f32 %v2641, %v2641
  %v2699 = vmul.f32 %v2642, %v2642
  %v2700 = vmul.f32 %v2643, %v2643
  %v2701 = vmul.f32 %v2644, %v2644
  %v2702 = vmul.f32 %v2645, %v2645
  %v2703 = vmul.f32 %v2646, %v2646
  %v2704 = vmul.f32 %v2647, %v2647
  %v2705 = vmul.f32 %v2648, %v2648
  %v2706 = vmul.f32 %v2649, %v2649
  %v2707 = vmul.f32 %v2650, %v2650
  %v2708 = vmul.f32 %v2651, %v2651
  %v2709 = vmul.f32 %v2652, %v2652
  %v2710 = vmul.f32 %v2653, %v2653
  %v2711 = vmul.f32 %v2654, %v2654
  %v2712 = vmul.f32 %v2655, %v2655
  %v2713 = vsel %vm2658, %v2697, 0.0
  %v2714 = vsel %vm2658, %v2698, 0.0
  %v2715 = vadd.f32 %v2713, %v2714
  %v2716 = vsel %vm2658, %v2699, 0.0
  %v2717 = vadd.f32 %v2715, %v2716
  %v2718 = vsel %vm2658, %v2700, 0.0
  %v2719 = vadd.f32 %v2717, %v2718
  %v2720 = vsel %vm2658, %v2701, 0.0
  %v2721 = vadd.f32 %v2719, %v2720
  %v2722 = vsel %vm2658, %v2702, 0.0
  %v2723 = vadd.f32 %v2721, %v2722
  %v2724 = vsel %vm2658, %v2703, 0.0
  %v2725 = vadd.f32 %v2723, %v2724
  %v2726 = vsel %vm2658, %v2704, 0.0
  %v2727 = vadd.f32 %v2725, %v2726
  %v2728 = vsel %vm2658, %v2705, 0.0
  %v2729 = vadd.f32 %v2727, %v2728
  %v2730 = vsel %vm2658, %v2706, 0.0
  %v2731 = vadd.f32 %v2729, %v2730
  %v2732 = vsel %vm2658, %v2707, 0.0
  %v2733 = vadd.f32 %v2731, %v2732
  %v2734 = vsel %vm2658, %v2708, 0.0
  %v2735 = vadd.f32 %v2733, %v2734
  %v2736 = vsel %vm2658, %v2709, 0.0
  %v2737 = vadd.f32 %v2735, %v2736
  %v2738 = vsel %vm2658, %v2710, 0.0
  %v2739 = vadd.f32 %v2737, %v2738
  %v2740 = vsel %vm2658, %v2711, 0.0
  %v2741 = vadd.f32 %v2739, %v2740
  %v2742 = vsel %vm2658, %v2712, 0.0
  %v2743 = vadd.f32 %v2741, %v2742
  %v2744 = vrot.slane %v2743, 4
  %v2745 = vadd.f32 %v2743, %v2744
  %v2746 = vrot.slane %v2745, 2
  %v2747 = vadd.f32 %v2745, %v2746
  %v2748 = vrot.slane %v2747, 1
  %v2749 = vadd.f32 %v2747, %v2748
  %v2750 = vmul.f32 %v2749, 0.0078125
  %v2751 = vmul.f32 %v2696, %v2696
  %v2752 = vsub.f32 %v2750, %v2751
  %v2753 = vmax.f32 %v2752, 0.0
  %v2754 = vadd.f32 %v2753, 1e-05
  %v2755 = vrsqrt.pop %v2754
  %v2756 = vmul.f32 %v2755, %v2656
  %v2757 = vlaneseq
  %v2758 = vshrl.u32 %v2757, 7
  %v2759 = vsub.s32 0, %v2758
  %v2760 = vrot.slane %v2756, %v2759
  %v2761 = vmul.f32 %v2640, %v2760
  %v2762 = vmul.f32 %v2641, %v2760
  %v2763 = vmul.f32 %v2642, %v2760
  %v2764 = vmul.f32 %v2643, %v2760
  %v2765 = vmul.f32 %v2644, %v2760
  %v2766 = vmul.f32 %v2645, %v2760
  %v2767 = vmul.f32 %v2646, %v2760
  %v2768 = vmul.f32 %v2647, %v2760
  %v2769 = vmul.f32 %v2648, %v2760
  %v2770 = vmul.f32 %v2649, %v2760
  %v2771 = vmul.f32 %v2650, %v2760
  %v2772 = vmul.f32 %v2651, %v2760
  %v2773 = vmul.f32 %v2652, %v2760
  %v2774 = vmul.f32 %v2653, %v2760
  %v2775 = vmul.f32 %v2654, %v2760
  %v2776 = vmul.f32 %v2655, %v2760
  %v2777 = vmul.f32 %v2696, %v2756
  %v2778 = vsub.f32 %v2657, %v2777
  %v2780 = vlaneseq
  %v2781 = vshrl.u32 %v2780, 7
  %v2782 = vsub.s32 0, %v2781
  %v2783 = vrot.slane %v2778, %v2782
  %v2785 = vadd.f32 %v2761, %v2783
  %v2786 = vadd.f32 %v2762, %v2783
  %v2787 = vadd.f32 %v2763, %v2783
  %v2788 = vadd.f32 %v2764, %v2783
  %v2789 = vadd.f32 %v2765, %v2783
  %v2790 = vadd.f32 %v2766, %v2783
  %v2791 = vadd.f32 %v2767, %v2783
  %v2792 = vadd.f32 %v2768, %v2783
  %v2793 = vadd.f32 %v2769, %v2783
  %v2794 = vadd.f32 %v2770, %v2783
  %v2795 = vadd.f32 %v2771, %v2783
  %v2796 = vadd.f32 %v2772, %v2783
  %v2797 = vadd.f32 %v2773, %v2783
  %v2798 = vadd.f32 %v2774, %v2783
  %v2799 = vadd.f32 %v2775, %v2783
  %v2800 = vadd.f32 %v2776, %v2783
  %2817 = vrot.lane.b32.xlu0 %v2785, 24
  %v2818 = vpop.permute.xlu0 %2817
  %2819 = vrot.lane.b32.xlu0 %v2786, 24
  %v2820 = vpop.permute.xlu0 %2819
  %2821 = vrot.lane.b32.xlu0 %v2787, 24
  %v2822 = vpop.permute.xlu0 %2821
  %2823 = vrot.lane.b32.xlu0 %v2788, 24
  %v2824 = vpop.permute.xlu0 %2823
  %2825 = vrot.lane.b32.xlu0 %v2789, 24
  %v2826 = vpop.permute.xlu0 %2825
  %2827 = vrot.lane.b32.xlu0 %v2790, 24
  %v2828 = vpop.permute.xlu0 %2827
  %2829 = vrot.lane.b32.xlu0 %v2791, 24
  %v2830 = vpop.permute.xlu0 %2829
  %2831 = vrot.lane.b32.xlu0 %v2792, 24
  %v2832 = vpop.permute.xlu0 %2831
  %2833 = vrot.lane.b32.xlu0 %v2793, 24
  %v2834 = vpop.permute.xlu0 %2833
  %2835 = vrot.lane.b32.xlu0 %v2794, 24
  %v2836 = vpop.permute.xlu0 %2835
  %2837 = vrot.lane.b32.xlu0 %v2795, 24
  %v2838 = vpop.permute.xlu0 %2837
  %2839 = vrot.lane.b32.xlu0 %v2796, 24
  %v2840 = vpop.permute.xlu0 %2839
  %2841 = vrot.lane.b32.xlu0 %v2797, 24
  %v2842 = vpop.permute.xlu0 %2841
  %2843 = vrot.lane.b32.xlu0 %v2798, 24
  %v2844 = vpop.permute.xlu0 %2843
  %2845 = vrot.lane.b32.xlu0 %v2799, 24
  %v2846 = vpop.permute.xlu0 %2845
  %2847 = vrot.lane.b32.xlu0 %v2800, 24
  %v2848 = vpop.permute.xlu0 %2847
  %vm2865 = vcmask 228544
  %2866 = vst.msk [vmem:[#allocation2] sm:$0xff] %vm2865, %v2818
  %2867 = vst.msk [vmem:[#allocation2 + $0x8] sm:$0xff] %vm2865, %v2820
  %2868 = vst.msk [vmem:[#allocation2 + $0x10] sm:$0xff] %vm2865, %v2822
  %2869 = vst.msk [vmem:[#allocation2 + $0x18] sm:$0xff] %vm2865, %v2824
  %2870 = vst.msk [vmem:[#allocation2 + $0x20] sm:$0xff] %vm2865, %v2826
  %2871 = vst.msk [vmem:[#allocation2 + $0x28] sm:$0xff] %vm2865, %v2828
  %2872 = vst.msk [vmem:[#allocation2 + $0x30] sm:$0xff] %vm2865, %v2830
  %2873 = vst.msk [vmem:[#allocation2 + $0x38] sm:$0xff] %vm2865, %v2832
  %2874 = vst.msk [vmem:[#allocation2 + $0x40] sm:$0xff] %vm2865, %v2834
  %2875 = vst.msk [vmem:[#allocation2 + $0x48] sm:$0xff] %vm2865, %v2836
  %2876 = vst.msk [vmem:[#allocation2 + $0x50] sm:$0xff] %vm2865, %v2838
  %2877 = vst.msk [vmem:[#allocation2 + $0x58] sm:$0xff] %vm2865, %v2840
  %2878 = vst.msk [vmem:[#allocation2 + $0x60] sm:$0xff] %vm2865, %v2842
  %2879 = vst.msk [vmem:[#allocation2 + $0x68] sm:$0xff] %vm2865, %v2844
  %2880 = vst.msk [vmem:[#allocation2 + $0x70] sm:$0xff] %vm2865, %v2846
  %2881 = vst.msk [vmem:[#allocation2 + $0x78] sm:$0xff] %vm2865, %v2848
  %v2882 = vld [vmem:[#allocation2] sm:$0xff]
  %v2883 = vld [vmem:[#allocation2 + $0x8] sm:$0xff]
  %v2884 = vld [vmem:[#allocation2 + $0x10] sm:$0xff]
  %v2885 = vld [vmem:[#allocation2 + $0x18] sm:$0xff]
  %v2886 = vld [vmem:[#allocation2 + $0x20] sm:$0xff]
  %v2887 = vld [vmem:[#allocation2 + $0x28] sm:$0xff]
  %v2888 = vld [vmem:[#allocation2 + $0x30] sm:$0xff]
  %v2889 = vld [vmem:[#allocation2 + $0x38] sm:$0xff]
  %v2890 = vld [vmem:[#allocation2 + $0x40] sm:$0xff]
  %v2891 = vld [vmem:[#allocation2 + $0x48] sm:$0xff]
  %v2892 = vld [vmem:[#allocation2 + $0x50] sm:$0xff]
  %v2893 = vld [vmem:[#allocation2 + $0x58] sm:$0xff]
  %v2894 = vld [vmem:[#allocation2 + $0x60] sm:$0xff]
  %v2895 = vld [vmem:[#allocation2 + $0x68] sm:$0xff]
  %v2896 = vld [vmem:[#allocation2 + $0x70] sm:$0xff]
  %v2897 = vld [vmem:[#allocation2 + $0x78] sm:$0xff]
  %v2898 = vld [vmem:[%s7] sm:$0xff]
  %v2899 = vld [vmem:[%s7 + $0x8] sm:$0xff]
  %v2900 = vld [vmem:[%s7 + $0x10] sm:$0xff]
  %v2901 = vld [vmem:[%s7 + $0x18] sm:$0xf]
  %vm2902 = vcmask 228352
  %v2904 = vsel %vm2902, %v2882, 0
  %v2907 = vsel %vm2902, %v2883, 0
  %v2910 = vsel %vm2902, %v2884, 0
  %v2913 = vsel %vm2902, %v2885, 0
  %v2916 = vsel %vm2902, %v2886, 0
  %v2919 = vsel %vm2902, %v2887, 0
  %v2922 = vsel %vm2902, %v2888, 0
  %v2925 = vsel %vm2902, %v2889, 0
  %v2928 = vsel %vm2902, %v2890, 0
  %v2931 = vsel %vm2902, %v2891, 0
  %v2934 = vsel %vm2902, %v2892, 0
  %v2937 = vsel %vm2902, %v2893, 0
  %v2940 = vsel %vm2902, %v2894, 0
  %v2943 = vsel %vm2902, %v2895, 0
  %v2946 = vsel %vm2902, %v2896, 0
  %v2949 = vsel %vm2902, %v2897, 0
  %vm2951 = vcmask 1043456
  %v2953 = vsel %vm2951, %v2901, 0
  %2955 = vmatprep.subr.mxu0 0.0
  %2956 = vmatpush1.msra.mxu0 0.0
  %2957 = vmatprep.subr.mxu0 0.0
  %2958 = vmatpush1.msra.mxu0 0.0
  %2959 = vmatprep.subr.mxu0 0.0
  %2960 = vmatpush1.msra.mxu0 0.0
  %2961 = vmatprep.subr.mxu0 0.0
  %2962 = vmatpush1.msra.mxu0 0.0
  %2963 = vmatprep.subr.mxu0 0.0
  %2964 = vmatpush1.msra.mxu0 0.0
  %2965 = vmatprep.subr.mxu0 0.0
  %2966 = vmatpush1.msra.mxu0 0.0
  %2967 = vmatprep.subr.mxu0 0.0
  %2968 = vmatpush1.msra.mxu0 0.0
  %2969 = vmatprep.subr.mxu0 0.0
  %2970 = vmatpush1.msra.mxu0 0.0
  %2971 = vmatprep.subr.mxu0 0.0
  %2972 = vmatpush1.msra.mxu0 0.0
  %2973 = vmatprep.subr.mxu0 0.0
  %2974 = vmatpush1.msra.mxu0 0.0
  %2975 = vmatprep.subr.mxu0 0.0
  %2976 = vmatpush1.msra.mxu0 0.0
  %2977 = vmatprep.subr.mxu0 0.0
  %2978 = vmatpush1.msra.mxu0 0.0
  %2979 = vmatprep.subr.mxu0 0.0
  %2980 = vmatpush1.msra.mxu0 %v2953
  %2981 = vmatprep.subr.mxu0 0.0
  %2982 = vmatpush1.msra.mxu0 %v2900
  %2983 = vmatprep.subr.mxu0 0.0
  %2984 = vmatpush1.msra.mxu0 %v2899
  %2985 = vmatprep.subr.mxu0 0.0
  %2986 = vmatpush1.msra.mxu0 %v2898
  %2987 = vmatprep.subr.mxu0 0.0
  %2988 = vmatpush2.msra.mxu0 0.0
  %2989 = vmatprep.subr.mxu0 0.0
  %2990 = vmatpush2.msra.mxu0 0.0
  %2991 = vmatprep.subr.mxu0 0.0
  %2992 = vmatpush2.msra.mxu0 0.0
  %2993 = vmatprep.subr.mxu0 0.0
  %2994 = vmatpush2.msra.mxu0 0.0
  %2995 = vmatprep.subr.mxu0 0.0
  %2996 = vmatpush2.msra.mxu0 0.0
  %2997 = vmatprep.subr.mxu0 0.0
  %2998 = vmatpush2.msra.mxu0 0.0
  %2999 = vmatprep.subr.mxu0 0.0
  %3000 = vmatpush2.msra.mxu0 0.0
  %3001 = vmatprep.subr.mxu0 0.0
  %3002 = vmatpush2.msra.mxu0 0.0
  %3003 = vmatprep.subr.mxu0 0.0
  %3004 = vmatpush2.msra.mxu0 0.0
  %3005 = vmatprep.subr.mxu0 0.0
  %3006 = vmatpush2.msra.mxu0 0.0
  %3007 = vmatprep.subr.mxu0 0.0
  %3008 = vmatpush2.msra.mxu0 0.0
  %3009 = vmatprep.subr.mxu0 0.0
  %3010 = vmatpush2.msra.mxu0 0.0
  %3011 = vmatprep.subr.mxu0 0.0
  %3012 = vmatpush2.msra.mxu0 0.0
  %3013 = vmatprep.subr.mxu0 0.0
  %3014 = vmatpush2.msra.mxu0 0.0
  %3015 = vmatprep.subr.mxu0 0.0
  %3016 = vmatpush2.msra.mxu0 0.0
  %3017 = vmatprep.subr.mxu0 0.0
  %3018 = vmatpush2.msra.mxu0 0.0
  %3019 = vmatprep.mubr.f32.mxu0 0.0
  %3020 = vmatmul.mubr.f32.gmra.mxu0 %v2904
  %v3021 = vpop.f32.mrf.mxu0
  %v3022 = vadd.f32 0.0, %v3021
  %v3023 = vpop.f32.mrf.mxu0
  %3024 = vmatprep.mubr.f32.mxu0 0.0
  %3025 = vmatmul.mubr.f32.gmra.mxu0 %v2907
  %v3026 = vpop.f32.mrf.mxu0
  %v3027 = vadd.f32 0.0, %v3026
  %v3028 = vpop.f32.mrf.mxu0
  %3029 = vmatprep.mubr.f32.mxu0 0.0
  %3030 = vmatmul.mubr.f32.gmra.mxu0 %v2910
  %v3031 = vpop.f32.mrf.mxu0
  %v3032 = vadd.f32 0.0, %v3031
  %v3033 = vpop.f32.mrf.mxu0
  %3034 = vmatprep.mubr.f32.mxu0 0.0
  %3035 = vmatmul.mubr.f32.gmra.mxu0 %v2913
  %v3036 = vpop.f32.mrf.mxu0
  %v3037 = vadd.f32 0.0, %v3036
  %v3038 = vpop.f32.mrf.mxu0
  %3039 = vmatprep.mubr.f32.mxu0 0.0
  %3040 = vmatmul.mubr.f32.gmra.mxu0 %v2916
  %v3041 = vpop.f32.mrf.mxu0
  %v3042 = vadd.f32 0.0, %v3041
  %v3043 = vpop.f32.mrf.mxu0
  %3044 = vmatprep.mubr.f32.mxu0 0.0
  %3045 = vmatmul.mubr.f32.gmra.mxu0 %v2919
  %v3046 = vpop.f32.mrf.mxu0
  %v3047 = vadd.f32 0.0, %v3046
  %v3048 = vpop.f32.mrf.mxu0
  %3049 = vmatprep.mubr.f32.mxu0 0.0
  %3050 = vmatmul.mubr.f32.gmra.mxu0 %v2922
  %v3051 = vpop.f32.mrf.mxu0
  %v3052 = vadd.f32 0.0, %v3051
  %v3053 = vpop.f32.mrf.mxu0
  %3054 = vmatprep.mubr.f32.mxu0 0.0
  %3055 = vmatmul.mubr.f32.gmra.mxu0 %v2925
  %v3056 = vpop.f32.mrf.mxu0
  %v3057 = vadd.f32 0.0, %v3056
  %v3058 = vpop.f32.mrf.mxu0
  %3059 = vmatprep.mubr.f32.mxu0 0.0
  %3060 = vmatmul.mubr.f32.gmra.mxu0 %v2928
  %v3061 = vpop.f32.mrf.mxu0
  %v3062 = vadd.f32 0.0, %v3061
  %v3063 = vpop.f32.mrf.mxu0
  %3064 = vmatprep.mubr.f32.mxu0 0.0
  %3065 = vmatmul.mubr.f32.gmra.mxu0 %v2931
  %v3066 = vpop.f32.mrf.mxu0
  %v3067 = vadd.f32 0.0, %v3066
  %v3068 = vpop.f32.mrf.mxu0
  %3069 = vmatprep.mubr.f32.mxu0 0.0
  %3070 = vmatmul.mubr.f32.gmra.mxu0 %v2934
  %v3071 = vpop.f32.mrf.mxu0
  %v3072 = vadd.f32 0.0, %v3071
  %v3073 = vpop.f32.mrf.mxu0
  %3074 = vmatprep.mubr.f32.mxu0 0.0
  %3075 = vmatmul.mubr.f32.gmra.mxu0 %v2937
  %v3076 = vpop.f32.mrf.mxu0
  %v3077 = vadd.f32 0.0, %v3076
  %v3078 = vpop.f32.mrf.mxu0
  %3079 = vmatprep.mubr.f32.mxu0 0.0
  %3080 = vmatmul.mubr.f32.gmra.mxu0 %v2940
  %v3081 = vpop.f32.mrf.mxu0
  %v3082 = vadd.f32 0.0, %v3081
  %v3083 = vpop.f32.mrf.mxu0
  %3084 = vmatprep.mubr.f32.mxu0 0.0
  %3085 = vmatmul.mubr.f32.gmra.mxu0 %v2943
  %v3086 = vpop.f32.mrf.mxu0
  %v3087 = vadd.f32 0.0, %v3086
  %v3088 = vpop.f32.mrf.mxu0
  %3089 = vmatprep.mubr.f32.mxu0 0.0
  %3090 = vmatmul.mubr.f32.gmra.mxu0 %v2946
  %v3091 = vpop.f32.mrf.mxu0
  %v3092 = vadd.f32 0.0, %v3091
  %v3093 = vpop.f32.mrf.mxu0
  %3094 = vmatprep.mubr.f32.mxu0 0.0
  %3095 = vmatmul.mubr.f32.gmra.mxu0 %v2949
  %v3096 = vpop.f32.mrf.mxu0
  %v3097 = vadd.f32 0.0, %v3096
  %v3098 = vpop.f32.mrf.mxu0
  %3099 = vdwg.mxu0
  %v3100 = vld [vmem:[%s8] sm:$0x1]
  %v3101 = vld [vmem:[%s9] sm:$0x1]
  %v3102 = vsel %vm89, %v3022, 0.0
  %v3103 = vsel %vm89, %v3027, 0.0
  %v3104 = vadd.f32 %v3102, %v3103
  %v3105 = vsel %vm89, %v3032, 0.0
  %v3106 = vadd.f32 %v3104, %v3105
  %v3107 = vsel %vm89, %v3037, 0.0
  %v3108 = vadd.f32 %v3106, %v3107
  %v3109 = vsel %vm89, %v3042, 0.0
  %v3110 = vadd.f32 %v3108, %v3109
  %v3111 = vsel %vm89, %v3047, 0.0
  %v3112 = vadd.f32 %v3110, %v3111
  %v3113 = vsel %vm89, %v3052, 0.0
  %v3114 = vadd.f32 %v3112, %v3113
  %v3115 = vsel %vm89, %v3057, 0.0
  %v3116 = vadd.f32 %v3114, %v3115
  %v3117 = vsel %vm89, %v3062, 0.0
  %v3118 = vadd.f32 %v3116, %v3117
  %v3119 = vsel %vm89, %v3067, 0.0
  %v3120 = vadd.f32 %v3118, %v3119
  %v3121 = vsel %vm89, %v3072, 0.0
  %v3122 = vadd.f32 %v3120, %v3121
  %v3123 = vsel %vm89, %v3077, 0.0
  %v3124 = vadd.f32 %v3122, %v3123
  %v3125 = vsel %vm89, %v3082, 0.0
  %v3126 = vadd.f32 %v3124, %v3125
  %v3127 = vsel %vm89, %v3087, 0.0
  %v3128 = vadd.f32 %v3126, %v3127
  %v3129 = vsel %vm89, %v3092, 0.0
  %v3130 = vadd.f32 %v3128, %v3129
  %v3131 = vsel %vm89, %v3097, 0.0
  %v3132 = vadd.f32 %v3130, %v3131
  %v3133 = vrot.slane %v3132, 4
  %v3134 = vadd.f32 %v3132, %v3133
  %v3135 = vrot.slane %v3134, 2
  %v3136 = vadd.f32 %v3134, %v3135
  %v3137 = vrot.slane %v3136, 1
  %v3138 = vadd.f32 %v3136, %v3137
  %v3139 = vmul.f32 %v3138, 0.0078125
  %v3140 = vmul.f32 %v3022, %v3022
  %v3141 = vmul.f32 %v3027, %v3027
  %v3142 = vmul.f32 %v3032, %v3032
  %v3143 = vmul.f32 %v3037, %v3037
  %v3144 = vmul.f32 %v3042, %v3042
  %v3145 = vmul.f32 %v3047, %v3047
  %v3146 = vmul.f32 %v3052, %v3052
  %v3147 = vmul.f32 %v3057, %v3057
  %v3148 = vmul.f32 %v3062, %v3062
  %v3149 = vmul.f32 %v3067, %v3067
  %v3150 = vmul.f32 %v3072, %v3072
  %v3151 = vmul.f32 %v3077, %v3077
  %v3152 = vmul.f32 %v3082, %v3082
  %v3153 = vmul.f32 %v3087, %v3087
  %v3154 = vmul.f32 %v3092, %v3092
  %v3155 = vmul.f32 %v3097, %v3097
  %v3156 = vsel %vm89, %v3140, 0.0
  %v3157 = vsel %vm89, %v3141, 0.0
  %v3158 = vadd.f32 %v3156, %v3157
  %v3159 = vsel %vm89, %v3142, 0.0
  %v3160 = vadd.f32 %v3158, %v3159
  %v3161 = vsel %vm89, %v3143, 0.0
  %v3162 = vadd.f32 %v3160, %v3161
  %v3163 = vsel %vm89, %v3144, 0.0
  %v3164 = vadd.f32 %v3162, %v3163
  %v3165 = vsel %vm89, %v3145, 0.0
  %v3166 = vadd.f32 %v3164, %v3165
  %v3167 = vsel %vm89, %v3146, 0.0
  %v3168 = vadd.f32 %v3166, %v3167
  %v3169 = vsel %vm89, %v3147, 0.0
  %v3170 = vadd.f32 %v3168, %v3169
  %v3171 = vsel %vm89, %v3148, 0.0
  %v3172 = vadd.f32 %v3170, %v3171
  %v3173 = vsel %vm89, %v3149, 0.0
  %v3174 = vadd.f32 %v3172, %v3173
  %v3175 = vsel %vm89, %v3150, 0.0
  %v3176 = vadd.f32 %v3174, %v3175
  %v3177 = vsel %vm89, %v3151, 0.0
  %v3178 = vadd.f32 %v3176, %v3177
  %v3179 = vsel %vm89, %v3152, 0.0
  %v3180 = vadd.f32 %v3178, %v3179
  %v3181 = vsel %vm89, %v3153, 0.0
  %v3182 = vadd.f32 %v3180, %v3181
  %v3183 = vsel %vm89, %v3154, 0.0
  %v3184 = vadd.f32 %v3182, %v3183
  %v3185 = vsel %vm89, %v3155, 0.0
  %v3186 = vadd.f32 %v3184, %v3185
  %v3187 = vrot.slane %v3186, 4
  %v3188 = vadd.f32 %v3186, %v3187
  %v3189 = vrot.slane %v3188, 2
  %v3190 = vadd.f32 %v3188, %v3189
  %v3191 = vrot.slane %v3190, 1
  %v3192 = vadd.f32 %v3190, %v3191
  %v3193 = vmul.f32 %v3192, 0.0078125
  %v3194 = vmul.f32 %v3139, %v3139
  %v3195 = vsub.f32 %v3193, %v3194
  %v3196 = vmax.f32 %v3195, 0.0
  %v3197 = vadd.f32 %v3196, 1e-05
  %v3198 = vrsqrt.pop %v3197
  %v3199 = vmul.f32 %v3198, %v3100
  %v3200 = vlaneseq
  %v3201 = vshrl.u32 %v3200, 7
  %v3202 = vsub.s32 0, %v3201
  %v3203 = vrot.slane %v3199, %v3202
  %v3204 = vmul.f32 %v3022, %v3203
  %v3205 = vmul.f32 %v3027, %v3203
  %v3206 = vmul.f32 %v3032, %v3203
  %v3207 = vmul.f32 %v3037, %v3203
  %v3208 = vmul.f32 %v3042, %v3203
  %v3209 = vmul.f32 %v3047, %v3203
  %v3210 = vmul.f32 %v3052, %v3203
  %v3211 = vmul.f32 %v3057, %v3203
  %v3212 = vmul.f32 %v3062, %v3203
  %v3213 = vmul.f32 %v3067, %v3203
  %v3214 = vmul.f32 %v3072, %v3203
  %v3215 = vmul.f32 %v3077, %v3203
  %v3216 = vmul.f32 %v3082, %v3203
  %v3217 = vmul.f32 %v3087, %v3203
  %v3218 = vmul.f32 %v3092, %v3203
  %v3219 = vmul.f32 %v3097, %v3203
  %v3220 = vmul.f32 %v3139, %v3199
  %v3221 = vsub.f32 %v3101, %v3220
  %v3223 = vlaneseq
  %v3224 = vshrl.u32 %v3223, 7
  %v3225 = vsub.s32 0, %v3224
  %v3226 = vrot.slane %v3221, %v3225
  %v3228 = vadd.f32 %v3204, %v3226
  %v3229 = vadd.f32 %v3205, %v3226
  %v3230 = vadd.f32 %v3206, %v3226
  %v3231 = vadd.f32 %v3207, %v3226
  %v3232 = vadd.f32 %v3208, %v3226
  %v3233 = vadd.f32 %v3209, %v3226
  %v3234 = vadd.f32 %v3210, %v3226
  %v3235 = vadd.f32 %v3211, %v3226
  %v3236 = vadd.f32 %v3212, %v3226
  %v3237 = vadd.f32 %v3213, %v3226
  %v3238 = vadd.f32 %v3214, %v3226
  %v3239 = vadd.f32 %v3215, %v3226
  %v3240 = vadd.f32 %v3216, %v3226
  %v3241 = vadd.f32 %v3217, %v3226
  %v3242 = vadd.f32 %v3218, %v3226
  %v3243 = vadd.f32 %v3219, %v3226
  %v3244 = vxor.u32 %v3228, 2147483648
  %v3245 = vxor.u32 %v3229, 2147483648
  %v3246 = vxor.u32 %v3230, 2147483648
  %v3247 = vxor.u32 %v3231, 2147483648
  %v3248 = vxor.u32 %v3232, 2147483648
  %v3249 = vxor.u32 %v3233, 2147483648
  %v3250 = vxor.u32 %v3234, 2147483648
  %v3251 = vxor.u32 %v3235, 2147483648
  %v3252 = vxor.u32 %v3236, 2147483648
  %v3253 = vxor.u32 %v3237, 2147483648
  %v3254 = vxor.u32 %v3238, 2147483648
  %v3255 = vxor.u32 %v3239, 2147483648
  %v3256 = vxor.u32 %v3240, 2147483648
  %v3257 = vxor.u32 %v3241, 2147483648
  %v3258 = vxor.u32 %v3242, 2147483648
  %v3259 = vxor.u32 %v3243, 2147483648
  %v3260 = vmul.f32 %v3244, 1.442695
  %v3261 = vpow.pop %v3260
  %v3262 = vmul.f32 %v3245, 1.442695
  %v3263 = vpow.pop %v3262
  %v3264 = vmul.f32 %v3246, 1.442695
  %v3265 = vpow.pop %v3264
  %v3266 = vmul.f32 %v3247, 1.442695
  %v3267 = vpow.pop %v3266
  %v3268 = vmul.f32 %v3248, 1.442695
  %v3269 = vpow.pop %v3268
  %v3270 = vmul.f32 %v3249, 1.442695
  %v3271 = vpow.pop %v3270
  %v3272 = vmul.f32 %v3250, 1.442695
  %v3273 = vpow.pop %v3272
  %v3274 = vmul.f32 %v3251, 1.442695
  %v3275 = vpow.pop %v3274
  %v3276 = vmul.f32 %v3252, 1.442695
  %v3277 = vpow.pop %v3276
  %v3278 = vmul.f32 %v3253, 1.442695
  %v3279 = vpow.pop %v3278
  %v3280 = vmul.f32 %v3254, 1.442695
  %v3281 = vpow.pop %v3280
  %v3282 = vmul.f32 %v3255, 1.442695
  %v3283 = vpow.pop %v3282
  %v3284 = vmul.f32 %v3256, 1.442695
  %v3285 = vpow.pop %v3284
  %v3286 = vmul.f32 %v3257, 1.442695
  %v3287 = vpow.pop %v3286
  %v3288 = vmul.f32 %v3258, 1.442695
  %v3289 = vpow.pop %v3288
  %v3290 = vmul.f32 %v3259, 1.442695
  %v3291 = vpow.pop %v3290
  %v3292 = vadd.f32 %v3261, 1.0
  %v3293 = vadd.f32 %v3263, 1.0
  %v3294 = vadd.f32 %v3265, 1.0
  %v3295 = vadd.f32 %v3267, 1.0
  %v3296 = vadd.f32 %v3269, 1.0
  %v3297 = vadd.f32 %v3271, 1.0
  %v3298 = vadd.f32 %v3273, 1.0
  %v3299 = vadd.f32 %v3275, 1.0
  %v3300 = vadd.f32 %v3277, 1.0
  %v3301 = vadd.f32 %v3279, 1.0
  %v3302 = vadd.f32 %v3281, 1.0
  %v3303 = vadd.f32 %v3283, 1.0
  %v3304 = vadd.f32 %v3285, 1.0
  %v3305 = vadd.f32 %v3287, 1.0
  %v3306 = vadd.f32 %v3289, 1.0
  %v3307 = vadd.f32 %v3291, 1.0
  %v3308 = vrcp.pop %v3292
  %v3309 = vmul.f32 1.0, %v3308
  %v3310 = vrcp.pop %v3293
  %v3311 = vmul.f32 1.0, %v3310
  %v3312 = vrcp.pop %v3294
  %v3313 = vmul.f32 1.0, %v3312
  %v3314 = vrcp.pop %v3295
  %v3315 = vmul.f32 1.0, %v3314
  %v3316 = vrcp.pop %v3296
  %v3317 = vmul.f32 1.0, %v3316
  %v3318 = vrcp.pop %v3297
  %v3319 = vmul.f32 1.0, %v3318
  %v3320 = vrcp.pop %v3298
  %v3321 = vmul.f32 1.0, %v3320
  %v3322 = vrcp.pop %v3299
  %v3323 = vmul.f32 1.0, %v3322
  %v3324 = vrcp.pop %v3300
  %v3325 = vmul.f32 1.0, %v3324
  %v3326 = vrcp.pop %v3301
  %v3327 = vmul.f32 1.0, %v3326
  %v3328 = vrcp.pop %v3302
  %v3329 = vmul.f32 1.0, %v3328
  %v3330 = vrcp.pop %v3303
  %v3331 = vmul.f32 1.0, %v3330
  %v3332 = vrcp.pop %v3304
  %v3333 = vmul.f32 1.0, %v3332
  %v3334 = vrcp.pop %v3305
  %v3335 = vmul.f32 1.0, %v3334
  %v3336 = vrcp.pop %v3306
  %v3337 = vmul.f32 1.0, %v3336
  %v3338 = vrcp.pop %v3307
  %v3339 = vmul.f32 1.0, %v3338
  %v3340 = vmul.f32 %v3228, %v3309
  %v3341 = vmul.f32 %v3229, %v3311
  %v3342 = vmul.f32 %v3230, %v3313
  %v3343 = vmul.f32 %v3231, %v3315
  %v3344 = vmul.f32 %v3232, %v3317
  %v3345 = vmul.f32 %v3233, %v3319
  %v3346 = vmul.f32 %v3234, %v3321
  %v3347 = vmul.f32 %v3235, %v3323
  %v3348 = vmul.f32 %v3236, %v3325
  %v3349 = vmul.f32 %v3237, %v3327
  %v3350 = vmul.f32 %v3238, %v3329
  %v3351 = vmul.f32 %v3239, %v3331
  %v3352 = vmul.f32 %v3240, %v3333
  %v3353 = vmul.f32 %v3241, %v3335
  %v3354 = vmul.f32 %v3242, %v3337
  %v3355 = vmul.f32 %v3243, %v3339
  %3356 = vst.msk [vmem:[%s619 + $0x8] sm:$0xff] %vm89, %v3340
  %3357 = vst.msk [vmem:[%s619 + $0x20] sm:$0xff] %vm89, %v3341
  %3358 = vst.msk [vmem:[%s619 + $0x38] sm:$0xff] %vm89, %v3342
  %3359 = vst.msk [vmem:[%s619 + $0x50] sm:$0xff] %vm89, %v3343
  %3360 = vst.msk [vmem:[%s619 + $0x68] sm:$0xff] %vm89, %v3344
  %3361 = vst.msk [vmem:[%s619 + $0x80] sm:$0xff] %vm89, %v3345
  %3362 = vst.msk [vmem:[%s619 + $0x98] sm:$0xff] %vm89, %v3346
  %3363 = vst.msk [vmem:[%s619 + $0xb0] sm:$0xff] %vm89, %v3347
  %3364 = vst.msk [vmem:[%s619 + $0xf8] sm:$0xff] %vm89, %v3348
  %3365 = vst.msk [vmem:[%s619 + $0x110] sm:$0xff] %vm89, %v3349
  %3366 = vst.msk [vmem:[%s619 + $0x128] sm:$0xff] %vm89, %v3350
  %3367 = vst.msk [vmem:[%s619 + $0x140] sm:$0xff] %vm89, %v3351
  %3368 = vst.msk [vmem:[%s619 + $0x158] sm:$0xff] %vm89, %v3352
  %3369 = vst.msk [vmem:[%s619 + $0x170] sm:$0xff] %vm89, %v3353
  %3370 = vst.msk [vmem:[%s619 + $0x188] sm:$0xff] %vm89, %v3354
  %3371 = vst.msk [vmem:[%s619 + $0x1a0] sm:$0xff] %vm89, %v3355
  %v3372 = vld [vmem:[#allocation3 + $0x7] sm:$0xff]
  %v3373 = vld [vmem:[#allocation3 + $0x1f] sm:$0xff]
  %v3374 = vld [vmem:[#allocation3 + $0x37] sm:$0xff]
  %v3375 = vld [vmem:[#allocation3 + $0x4f] sm:$0xff]
  %v3376 = vld [vmem:[#allocation3 + $0x67] sm:$0xff]
  %v3377 = vld [vmem:[#allocation3 + $0x7f] sm:$0xff]
  %v3378 = vld [vmem:[#allocation3 + $0x97] sm:$0xff]
  %v3379 = vld [vmem:[#allocation3 + $0xaf] sm:$0xff]
  %v3380 = vld [vmem:[#allocation3 + $0xf7] sm:$0xff]
  %v3381 = vld [vmem:[#allocation3 + $0x10f] sm:$0xff]
  %v3382 = vld [vmem:[#allocation3 + $0x127] sm:$0xff]
  %v3383 = vld [vmem:[#allocation3 + $0x13f] sm:$0xff]
  %v3384 = vld [vmem:[#allocation3 + $0x157] sm:$0xff]
  %v3385 = vld [vmem:[#allocation3 + $0x16f] sm:$0xff]
  %v3386 = vld [vmem:[#allocation3 + $0x187] sm:$0xff]
  %v3387 = vld [vmem:[#allocation3 + $0x19f] sm:$0xff]
  %v3388 = vld [vmem:[%s10] sm:$0xff]
  %v3389 = vld [vmem:[%s10 + $0x8] sm:$0xff]
  %v3390 = vld [vmem:[#allocation3 + $0x8] sm:$0xff]
  %v3391 = vld [vmem:[#allocation3 + $0x20] sm:$0xff]
  %v3392 = vld [vmem:[#allocation3 + $0x38] sm:$0xff]
  %v3393 = vld [vmem:[#allocation3 + $0x50] sm:$0xff]
  %v3394 = vld [vmem:[#allocation3 + $0x68] sm:$0xff]
  %v3395 = vld [vmem:[#allocation3 + $0x80] sm:$0xff]
  %v3396 = vld [vmem:[#allocation3 + $0x98] sm:$0xff]
  %v3397 = vld [vmem:[#allocation3 + $0xb0] sm:$0xff]
  %v3398 = vld [vmem:[#allocation3 + $0xf8] sm:$0xff]
  %v3399 = vld [vmem:[#allocation3 + $0x110] sm:$0xff]
  %v3400 = vld [vmem:[#allocation3 + $0x128] sm:$0xff]
  %v3401 = vld [vmem:[#allocation3 + $0x140] sm:$0xff]
  %v3402 = vld [vmem:[#allocation3 + $0x158] sm:$0xff]
  %v3403 = vld [vmem:[#allocation3 + $0x170] sm:$0xff]
  %v3404 = vld [vmem:[#allocation3 + $0x188] sm:$0xff]
  %v3405 = vld [vmem:[#allocation3 + $0x1a0] sm:$0xff]
  %s3406 = scalar_lea.vmem %s10, 16
  %v3407 = vld [vmem:[%s3406] sm:$0xff]
  %v3408 = vld [vmem:[%s3406 + $0x8] sm:$0xff]
  %v3410 = vsel %vm89, %v3390, 0
  %v3413 = vsel %vm89, %v3391, 0
  %v3416 = vsel %vm89, %v3392, 0
  %v3419 = vsel %vm89, %v3393, 0
  %v3422 = vsel %vm89, %v3394, 0
  %v3425 = vsel %vm89, %v3395, 0
  %v3428 = vsel %vm89, %v3396, 0
  %v3431 = vsel %vm89, %v3397, 0
  %v3434 = vsel %vm89, %v3398, 0
  %v3437 = vsel %vm89, %v3399, 0
  %v3440 = vsel %vm89, %v3400, 0
  %v3443 = vsel %vm89, %v3401, 0
  %v3446 = vsel %vm89, %v3402, 0
  %v3449 = vsel %vm89, %v3403, 0
  %v3452 = vsel %vm89, %v3404, 0
  %v3455 = vsel %vm89, %v3405, 0
  %3457 = vmatprep.subr.mxu0 0.0
  %3458 = vmatpush1.msra.mxu0 0.0
  %3459 = vmatprep.subr.mxu0 0.0
  %3460 = vmatpush1.msra.mxu0 0.0
  %3461 = vmatprep.subr.mxu0 0.0
  %3462 = vmatpush1.msra.mxu0 0.0
  %3463 = vmatprep.subr.mxu0 0.0
  %3464 = vmatpush1.msra.mxu0 0.0
  %3465 = vmatprep.subr.mxu0 0.0
  %3466 = vmatpush1.msra.mxu0 0.0
  %3467 = vmatprep.subr.mxu0 0.0
  %3468 = vmatpush1.msra.mxu0 0.0
  %3469 = vmatprep.subr.mxu0 0.0
  %3470 = vmatpush1.msra.mxu0 0.0
  %3471 = vmatprep.subr.mxu0 0.0
  %3472 = vmatpush1.msra.mxu0 0.0
  %3473 = vmatprep.subr.mxu0 0.0
  %3474 = vmatpush1.msra.mxu0 0.0
  %3475 = vmatprep.subr.mxu0 0.0
  %3476 = vmatpush1.msra.mxu0 0.0
  %3477 = vmatprep.subr.mxu0 0.0
  %3478 = vmatpush1.msra.mxu0 0.0
  %3479 = vmatprep.subr.mxu0 0.0
  %3480 = vmatpush1.msra.mxu0 0.0
  %3481 = vmatprep.subr.mxu0 0.0
  %3482 = vmatpush1.msra.mxu0 0.0
  %3483 = vmatprep.subr.mxu0 0.0
  %3484 = vmatpush1.msra.mxu0 0.0
  %3485 = vmatprep.subr.mxu0 0.0
  %3486 = vmatpush1.msra.mxu0 %v3408
  %3487 = vmatprep.subr.mxu0 0.0
  %3488 = vmatpush1.msra.mxu0 %v3407
  %3489 = vmatprep.subr.mxu0 0.0
  %3490 = vmatpush2.msra.mxu0 0.0
  %3491 = vmatprep.subr.mxu0 0.0
  %3492 = vmatpush2.msra.mxu0 0.0
  %3493 = vmatprep.subr.mxu0 0.0
  %3494 = vmatpush2.msra.mxu0 0.0
  %3495 = vmatprep.subr.mxu0 0.0
  %3496 = vmatpush2.msra.mxu0 0.0
  %3497 = vmatprep.subr.mxu0 0.0
  %3498 = vmatpush2.msra.mxu0 0.0
  %3499 = vmatprep.subr.mxu0 0.0
  %3500 = vmatpush2.msra.mxu0 0.0
  %3501 = vmatprep.subr.mxu0 0.0
  %3502 = vmatpush2.msra.mxu0 0.0
  %3503 = vmatprep.subr.mxu0 0.0
  %3504 = vmatpush2.msra.mxu0 0.0
  %3505 = vmatprep.subr.mxu0 0.0
  %3506 = vmatpush2.msra.mxu0 0.0
  %3507 = vmatprep.subr.mxu0 0.0
  %3508 = vmatpush2.msra.mxu0 0.0
  %3509 = vmatprep.subr.mxu0 0.0
  %3510 = vmatpush2.msra.mxu0 0.0
  %3511 = vmatprep.subr.mxu0 0.0
  %3512 = vmatpush2.msra.mxu0 0.0
  %3513 = vmatprep.subr.mxu0 0.0
  %3514 = vmatpush2.msra.mxu0 0.0
  %3515 = vmatprep.subr.mxu0 0.0
  %3516 = vmatpush2.msra.mxu0 0.0
  %3517 = vmatprep.subr.mxu0 0.0
  %3518 = vmatpush2.msra.mxu0 0.0
  %3519 = vmatprep.subr.mxu0 0.0
  %3520 = vmatpush2.msra.mxu0 0.0
  %3521 = vmatprep.mubr.f32.mxu0 0.0
  %3522 = vmatmul.mubr.f32.gmra.mxu0 %v3410
  %v3523 = vpop.f32.mrf.mxu0
  %v3524 = vadd.f32 0.0, %v3523
  %v3525 = vpop.f32.mrf.mxu0
  %3526 = vmatprep.mubr.f32.mxu0 0.0
  %3527 = vmatmul.mubr.f32.gmra.mxu0 %v3413
  %v3528 = vpop.f32.mrf.mxu0
  %v3529 = vadd.f32 0.0, %v3528
  %v3530 = vpop.f32.mrf.mxu0
  %3531 = vmatprep.mubr.f32.mxu0 0.0
  %3532 = vmatmul.mubr.f32.gmra.mxu0 %v3416
  %v3533 = vpop.f32.mrf.mxu0
  %v3534 = vadd.f32 0.0, %v3533
  %v3535 = vpop.f32.mrf.mxu0
  %3536 = vmatprep.mubr.f32.mxu0 0.0
  %3537 = vmatmul.mubr.f32.gmra.mxu0 %v3419
  %v3538 = vpop.f32.mrf.mxu0
  %v3539 = vadd.f32 0.0, %v3538
  %v3540 = vpop.f32.mrf.mxu0
  %3541 = vmatprep.mubr.f32.mxu0 0.0
  %3542 = vmatmul.mubr.f32.gmra.mxu0 %v3422
  %v3543 = vpop.f32.mrf.mxu0
  %v3544 = vadd.f32 0.0, %v3543
  %v3545 = vpop.f32.mrf.mxu0
  %3546 = vmatprep.mubr.f32.mxu0 0.0
  %3547 = vmatmul.mubr.f32.gmra.mxu0 %v3425
  %v3548 = vpop.f32.mrf.mxu0
  %v3549 = vadd.f32 0.0, %v3548
  %v3550 = vpop.f32.mrf.mxu0
  %3551 = vmatprep.mubr.f32.mxu0 0.0
  %3552 = vmatmul.mubr.f32.gmra.mxu0 %v3428
  %v3553 = vpop.f32.mrf.mxu0
  %v3554 = vadd.f32 0.0, %v3553
  %v3555 = vpop.f32.mrf.mxu0
  %3556 = vmatprep.mubr.f32.mxu0 0.0
  %3557 = vmatmul.mubr.f32.gmra.mxu0 %v3431
  %v3558 = vpop.f32.mrf.mxu0
  %v3559 = vadd.f32 0.0, %v3558
  %v3560 = vpop.f32.mrf.mxu0
  %3561 = vmatprep.mubr.f32.mxu0 0.0
  %3562 = vmatmul.mubr.f32.gmra.mxu0 %v3434
  %v3563 = vpop.f32.mrf.mxu0
  %v3564 = vadd.f32 0.0, %v3563
  %v3565 = vpop.f32.mrf.mxu0
  %3566 = vmatprep.mubr.f32.mxu0 0.0
  %3567 = vmatmul.mubr.f32.gmra.mxu0 %v3437
  %v3568 = vpop.f32.mrf.mxu0
  %v3569 = vadd.f32 0.0, %v3568
  %v3570 = vpop.f32.mrf.mxu0
  %3571 = vmatprep.mubr.f32.mxu0 0.0
  %3572 = vmatmul.mubr.f32.gmra.mxu0 %v3440
  %v3573 = vpop.f32.mrf.mxu0
  %v3574 = vadd.f32 0.0, %v3573
  %v3575 = vpop.f32.mrf.mxu0
  %3576 = vmatprep.mubr.f32.mxu0 0.0
  %3577 = vmatmul.mubr.f32.gmra.mxu0 %v3443
  %v3578 = vpop.f32.mrf.mxu0
  %v3579 = vadd.f32 0.0, %v3578
  %v3580 = vpop.f32.mrf.mxu0
  %3581 = vmatprep.mubr.f32.mxu0 0.0
  %3582 = vmatmul.mubr.f32.gmra.mxu0 %v3446
  %v3583 = vpop.f32.mrf.mxu0
  %v3584 = vadd.f32 0.0, %v3583
  %v3585 = vpop.f32.mrf.mxu0
  %3586 = vmatprep.mubr.f32.mxu0 0.0
  %3587 = vmatmul.mubr.f32.gmra.mxu0 %v3449
  %v3588 = vpop.f32.mrf.mxu0
  %v3589 = vadd.f32 0.0, %v3588
  %v3590 = vpop.f32.mrf.mxu0
  %3591 = vmatprep.mubr.f32.mxu0 0.0
  %3592 = vmatmul.mubr.f32.gmra.mxu0 %v3452
  %v3593 = vpop.f32.mrf.mxu0
  %v3594 = vadd.f32 0.0, %v3593
  %v3595 = vpop.f32.mrf.mxu0
  %3596 = vmatprep.mubr.f32.mxu0 0.0
  %3597 = vmatmul.mubr.f32.gmra.mxu0 %v3455
  %v3598 = vpop.f32.mrf.mxu0
  %v3599 = vadd.f32 0.0, %v3598
  %v3600 = vpop.f32.mrf.mxu0
  %3601 = vdwg.mxu0
  %v3603 = vsel %vm89, %v3372, 0
  %v3606 = vsel %vm89, %v3373, 0
  %v3609 = vsel %vm89, %v3374, 0
  %v3612 = vsel %vm89, %v3375, 0
  %v3615 = vsel %vm89, %v3376, 0
  %v3618 = vsel %vm89, %v3377, 0
  %v3621 = vsel %vm89, %v3378, 0
  %v3624 = vsel %vm89, %v3379, 0
  %v3627 = vsel %vm89, %v3380, 0
  %v3630 = vsel %vm89, %v3381, 0
  %v3633 = vsel %vm89, %v3382, 0
  %v3636 = vsel %vm89, %v3383, 0
  %v3639 = vsel %vm89, %v3384, 0
  %v3642 = vsel %vm89, %v3385, 0
  %v3645 = vsel %vm89, %v3386, 0
  %v3648 = vsel %vm89, %v3387, 0
  %3650 = vmatprep.subr.mxu0 0.0
  %3651 = vmatpush1.msra.mxu0 0.0
  %3652 = vmatprep.subr.mxu0 0.0
  %3653 = vmatpush1.msra.mxu0 0.0
  %3654 = vmatprep.subr.mxu0 0.0
  %3655 = vmatpush1.msra.mxu0 0.0
  %3656 = vmatprep.subr.mxu0 0.0
  %3657 = vmatpush1.msra.mxu0 0.0
  %3658 = vmatprep.subr.mxu0 0.0
  %3659 = vmatpush1.msra.mxu0 0.0
  %3660 = vmatprep.subr.mxu0 0.0
  %3661 = vmatpush1.msra.mxu0 0.0
  %3662 = vmatprep.subr.mxu0 0.0
  %3663 = vmatpush1.msra.mxu0 0.0
  %3664 = vmatprep.subr.mxu0 0.0
  %3665 = vmatpush1.msra.mxu0 0.0
  %3666 = vmatprep.subr.mxu0 0.0
  %3667 = vmatpush1.msra.mxu0 0.0
  %3668 = vmatprep.subr.mxu0 0.0
  %3669 = vmatpush1.msra.mxu0 0.0
  %3670 = vmatprep.subr.mxu0 0.0
  %3671 = vmatpush1.msra.mxu0 0.0
  %3672 = vmatprep.subr.mxu0 0.0
  %3673 = vmatpush1.msra.mxu0 0.0
  %3674 = vmatprep.subr.mxu0 0.0
  %3675 = vmatpush1.msra.mxu0 0.0
  %3676 = vmatprep.subr.mxu0 0.0
  %3677 = vmatpush1.msra.mxu0 0.0
  %3678 = vmatprep.subr.mxu0 0.0
  %3679 = vmatpush1.msra.mxu0 %v3389
  %3680 = vmatprep.subr.mxu0 0.0
  %3681 = vmatpush1.msra.mxu0 %v3388
  %3682 = vmatprep.subr.mxu0 0.0
  %3683 = vmatpush2.msra.mxu0 0.0
  %3684 = vmatprep.subr.mxu0 0.0
  %3685 = vmatpush2.msra.mxu0 0.0
  %3686 = vmatprep.subr.mxu0 0.0
  %3687 = vmatpush2.msra.mxu0 0.0
  %3688 = vmatprep.subr.mxu0 0.0
  %3689 = vmatpush2.msra.mxu0 0.0
  %3690 = vmatprep.subr.mxu0 0.0
  %3691 = vmatpush2.msra.mxu0 0.0
  %3692 = vmatprep.subr.mxu0 0.0
  %3693 = vmatpush2.msra.mxu0 0.0
  %3694 = vmatprep.subr.mxu0 0.0
  %3695 = vmatpush2.msra.mxu0 0.0
  %3696 = vmatprep.subr.mxu0 0.0
  %3697 = vmatpush2.msra.mxu0 0.0
  %3698 = vmatprep.subr.mxu0 0.0
  %3699 = vmatpush2.msra.mxu0 0.0
  %3700 = vmatprep.subr.mxu0 0.0
  %3701 = vmatpush2.msra.mxu0 0.0
  %3702 = vmatprep.subr.mxu0 0.0
  %3703 = vmatpush2.msra.mxu0 0.0
  %3704 = vmatprep.subr.mxu0 0.0
  %3705 = vmatpush2.msra.mxu0 0.0
  %3706 = vmatprep.subr.mxu0 0.0
  %3707 = vmatpush2.msra.mxu0 0.0
  %3708 = vmatprep.subr.mxu0 0.0
  %3709 = vmatpush2.msra.mxu0 0.0
  %3710 = vmatprep.subr.mxu0 0.0
  %3711 = vmatpush2.msra.mxu0 0.0
  %3712 = vmatprep.subr.mxu0 0.0
  %3713 = vmatpush2.msra.mxu0 0.0
  %3714 = vmatprep.mubr.f32.mxu0 0.0
  %3715 = vmatmul.mubr.f32.gmra.mxu0 %v3603
  %v3716 = vpop.f32.mrf.mxu0
  %v3717 = vadd.f32 %v3524, %v3716
  %v3718 = vpop.f32.mrf.mxu0
  %3719 = vmatprep.mubr.f32.mxu0 0.0
  %3720 = vmatmul.mubr.f32.gmra.mxu0 %v3606
  %v3721 = vpop.f32.mrf.mxu0
  %v3722 = vadd.f32 %v3529, %v3721
  %v3723 = vpop.f32.mrf.mxu0
  %3724 = vmatprep.mubr.f32.mxu0 0.0
  %3725 = vmatmul.mubr.f32.gmra.mxu0 %v3609
  %v3726 = vpop.f32.mrf.mxu0
  %v3727 = vadd.f32 %v3534, %v3726
  %v3728 = vpop.f32.mrf.mxu0
  %3729 = vmatprep.mubr.f32.mxu0 0.0
  %3730 = vmatmul.mubr.f32.gmra.mxu0 %v3612
  %v3731 = vpop.f32.mrf.mxu0
  %v3732 = vadd.f32 %v3539, %v3731
  %v3733 = vpop.f32.mrf.mxu0
  %3734 = vmatprep.mubr.f32.mxu0 0.0
  %3735 = vmatmul.mubr.f32.gmra.mxu0 %v3615
  %v3736 = vpop.f32.mrf.mxu0
  %v3737 = vadd.f32 %v3544, %v3736
  %v3738 = vpop.f32.mrf.mxu0
  %3739 = vmatprep.mubr.f32.mxu0 0.0
  %3740 = vmatmul.mubr.f32.gmra.mxu0 %v3618
  %v3741 = vpop.f32.mrf.mxu0
  %v3742 = vadd.f32 %v3549, %v3741
  %v3743 = vpop.f32.mrf.mxu0
  %3744 = vmatprep.mubr.f32.mxu0 0.0
  %3745 = vmatmul.mubr.f32.gmra.mxu0 %v3621
  %v3746 = vpop.f32.mrf.mxu0
  %v3747 = vadd.f32 %v3554, %v3746
  %v3748 = vpop.f32.mrf.mxu0
  %3749 = vmatprep.mubr.f32.mxu0 0.0
  %3750 = vmatmul.mubr.f32.gmra.mxu0 %v3624
  %v3751 = vpop.f32.mrf.mxu0
  %v3752 = vadd.f32 %v3559, %v3751
  %v3753 = vpop.f32.mrf.mxu0
  %3754 = vmatprep.mubr.f32.mxu0 0.0
  %3755 = vmatmul.mubr.f32.gmra.mxu0 %v3627
  %v3756 = vpop.f32.mrf.mxu0
  %v3757 = vadd.f32 %v3564, %v3756
  %v3758 = vpop.f32.mrf.mxu0
  %3759 = vmatprep.mubr.f32.mxu0 0.0
  %3760 = vmatmul.mubr.f32.gmra.mxu0 %v3630
  %v3761 = vpop.f32.mrf.mxu0
  %v3762 = vadd.f32 %v3569, %v3761
  %v3763 = vpop.f32.mrf.mxu0
  %3764 = vmatprep.mubr.f32.mxu0 0.0
  %3765 = vmatmul.mubr.f32.gmra.mxu0 %v3633
  %v3766 = vpop.f32.mrf.mxu0
  %v3767 = vadd.f32 %v3574, %v3766
  %v3768 = vpop.f32.mrf.mxu0
  %3769 = vmatprep.mubr.f32.mxu0 0.0
  %3770 = vmatmul.mubr.f32.gmra.mxu0 %v3636
  %v3771 = vpop.f32.mrf.mxu0
  %v3772 = vadd.f32 %v3579, %v3771
  %v3773 = vpop.f32.mrf.mxu0
  %3774 = vmatprep.mubr.f32.mxu0 0.0
  %3775 = vmatmul.mubr.f32.gmra.mxu0 %v3639
  %v3776 = vpop.f32.mrf.mxu0
  %v3777 = vadd.f32 %v3584, %v3776
  %v3778 = vpop.f32.mrf.mxu0
  %3779 = vmatprep.mubr.f32.mxu0 0.0
  %3780 = vmatmul.mubr.f32.gmra.mxu0 %v3642
  %v3781 = vpop.f32.mrf.mxu0
  %v3782 = vadd.f32 %v3589, %v3781
  %v3783 = vpop.f32.mrf.mxu0
  %3784 = vmatprep.mubr.f32.mxu0 0.0
  %3785 = vmatmul.mubr.f32.gmra.mxu0 %v3645
  %v3786 = vpop.f32.mrf.mxu0
  %v3787 = vadd.f32 %v3594, %v3786
  %v3788 = vpop.f32.mrf.mxu0
  %3789 = vmatprep.mubr.f32.mxu0 0.0
  %3790 = vmatmul.mubr.f32.gmra.mxu0 %v3648
  %v3791 = vpop.f32.mrf.mxu0
  %v3792 = vadd.f32 %v3599, %v3791
  %v3793 = vpop.f32.mrf.mxu0
  %3794 = vdwg.mxu0
  %v3795 = vld [vmem:[#allocation3 + $0x9] sm:$0xff]
  %v3796 = vld [vmem:[#allocation3 + $0x21] sm:$0xff]
  %v3797 = vld [vmem:[#allocation3 + $0x39] sm:$0xff]
  %v3798 = vld [vmem:[#allocation3 + $0x51] sm:$0xff]
  %v3799 = vld [vmem:[#allocation3 + $0x69] sm:$0xff]
  %v3800 = vld [vmem:[#allocation3 + $0x81] sm:$0xff]
  %v3801 = vld [vmem:[#allocation3 + $0x99] sm:$0xff]
  %v3802 = vld [vmem:[#allocation3 + $0xb1] sm:$0xff]
  %v3803 = vld [vmem:[#allocation3 + $0xf9] sm:$0xff]
  %v3804 = vld [vmem:[#allocation3 + $0x111] sm:$0xff]
  %v3805 = vld [vmem:[#allocation3 + $0x129] sm:$0xff]
  %v3806 = vld [vmem:[#allocation3 + $0x141] sm:$0xff]
  %v3807 = vld [vmem:[#allocation3 + $0x159] sm:$0xff]
  %v3808 = vld [vmem:[#allocation3 + $0x171] sm:$0xff]
  %v3809 = vld [vmem:[#allocation3 + $0x189] sm:$0xff]
  %v3810 = vld [vmem:[#allocation3 + $0x1a1] sm:$0xff]
  %s3811 = scalar_lea.vmem %s10, 32
  %v3812 = vld [vmem:[%s3811] sm:$0xff]
  %v3813 = vld [vmem:[%s3811 + $0x8] sm:$0xff]
  %v3815 = vsel %vm89, %v3795, 0
  %v3818 = vsel %vm89, %v3796, 0
  %v3821 = vsel %vm89, %v3797, 0
  %v3824 = vsel %vm89, %v3798, 0
  %v3827 = vsel %vm89, %v3799, 0
  %v3830 = vsel %vm89, %v3800, 0
  %v3833 = vsel %vm89, %v3801, 0
  %v3836 = vsel %vm89, %v3802, 0
  %v3839 = vsel %vm89, %v3803, 0
  %v3842 = vsel %vm89, %v3804, 0
  %v3845 = vsel %vm89, %v3805, 0
  %v3848 = vsel %vm89, %v3806, 0
  %v3851 = vsel %vm89, %v3807, 0
  %v3854 = vsel %vm89, %v3808, 0
  %v3857 = vsel %vm89, %v3809, 0
  %v3860 = vsel %vm89, %v3810, 0
  %3862 = vmatprep.subr.mxu0 0.0
  %3863 = vmatpush1.msra.mxu0 0.0
  %3864 = vmatprep.subr.mxu0 0.0
  %3865 = vmatpush1.msra.mxu0 0.0
  %3866 = vmatprep.subr.mxu0 0.0
  %3867 = vmatpush1.msra.mxu0 0.0
  %3868 = vmatprep.subr.mxu0 0.0
  %3869 = vmatpush1.msra.mxu0 0.0
  %3870 = vmatprep.subr.mxu0 0.0
  %3871 = vmatpush1.msra.mxu0 0.0
  %3872 = vmatprep.subr.mxu0 0.0
  %3873 = vmatpush1.msra.mxu0 0.0
  %3874 = vmatprep.subr.mxu0 0.0
  %3875 = vmatpush1.msra.mxu0 0.0
  %3876 = vmatprep.subr.mxu0 0.0
  %3877 = vmatpush1.msra.mxu0 0.0
  %3878 = vmatprep.subr.mxu0 0.0
  %3879 = vmatpush1.msra.mxu0 0.0
  %3880 = vmatprep.subr.mxu0 0.0
  %3881 = vmatpush1.msra.mxu0 0.0
  %3882 = vmatprep.subr.mxu0 0.0
  %3883 = vmatpush1.msra.mxu0 0.0
  %3884 = vmatprep.subr.mxu0 0.0
  %3885 = vmatpush1.msra.mxu0 0.0
  %3886 = vmatprep.subr.mxu0 0.0
  %3887 = vmatpush1.msra.mxu0 0.0
  %3888 = vmatprep.subr.mxu0 0.0
  %3889 = vmatpush1.msra.mxu0 0.0
  %3890 = vmatprep.subr.mxu0 0.0
  %3891 = vmatpush1.msra.mxu0 %v3813
  %3892 = vmatprep.subr.mxu0 0.0
  %3893 = vmatpush1.msra.mxu0 %v3812
  %3894 = vmatprep.subr.mxu0 0.0
  %3895 = vmatpush2.msra.mxu0 0.0
  %3896 = vmatprep.subr.mxu0 0.0
  %3897 = vmatpush2.msra.mxu0 0.0
  %3898 = vmatprep.subr.mxu0 0.0
  %3899 = vmatpush2.msra.mxu0 0.0
  %3900 = vmatprep.subr.mxu0 0.0
  %3901 = vmatpush2.msra.mxu0 0.0
  %3902 = vmatprep.subr.mxu0 0.0
  %3903 = vmatpush2.msra.mxu0 0.0
  %3904 = vmatprep.subr.mxu0 0.0
  %3905 = vmatpush2.msra.mxu0 0.0
  %3906 = vmatprep.subr.mxu0 0.0
  %3907 = vmatpush2.msra.mxu0 0.0
  %3908 = vmatprep.subr.mxu0 0.0
  %3909 = vmatpush2.msra.mxu0 0.0
  %3910 = vmatprep.subr.mxu0 0.0
  %3911 = vmatpush2.msra.mxu0 0.0
  %3912 = vmatprep.subr.mxu0 0.0
  %3913 = vmatpush2.msra.mxu0 0.0
  %3914 = vmatprep.subr.mxu0 0.0
  %3915 = vmatpush2.msra.mxu0 0.0
  %3916 = vmatprep.subr.mxu0 0.0
  %3917 = vmatpush2.msra.mxu0 0.0
  %3918 = vmatprep.subr.mxu0 0.0
  %3919 = vmatpush2.msra.mxu0 0.0
  %3920 = vmatprep.subr.mxu0 0.0
  %3921 = vmatpush2.msra.mxu0 0.0
  %3922 = vmatprep.subr.mxu0 0.0
  %3923 = vmatpush2.msra.mxu0 0.0
  %3924 = vmatprep.subr.mxu0 0.0
  %3925 = vmatpush2.msra.mxu0 0.0
  %3926 = vmatprep.mubr.f32.mxu0 0.0
  %3927 = vmatmul.mubr.f32.gmra.mxu0 %v3815
  %v3928 = vpop.f32.mrf.mxu0
  %v3929 = vadd.f32 0.0, %v3928
  %v3930 = vpop.f32.mrf.mxu0
  %3931 = vmatprep.mubr.f32.mxu0 0.0
  %3932 = vmatmul.mubr.f32.gmra.mxu0 %v3818
  %v3933 = vpop.f32.mrf.mxu0
  %v3934 = vadd.f32 0.0, %v3933
  %v3935 = vpop.f32.mrf.mxu0
  %3936 = vmatprep.mubr.f32.mxu0 0.0
  %3937 = vmatmul.mubr.f32.gmra.mxu0 %v3821
  %v3938 = vpop.f32.mrf.mxu0
  %v3939 = vadd.f32 0.0, %v3938
  %v3940 = vpop.f32.mrf.mxu0
  %3941 = vmatprep.mubr.f32.mxu0 0.0
  %3942 = vmatmul.mubr.f32.gmra.mxu0 %v3824
  %v3943 = vpop.f32.mrf.mxu0
  %v3944 = vadd.f32 0.0, %v3943
  %v3945 = vpop.f32.mrf.mxu0
  %3946 = vmatprep.mubr.f32.mxu0 0.0
  %3947 = vmatmul.mubr.f32.gmra.mxu0 %v3827
  %v3948 = vpop.f32.mrf.mxu0
  %v3949 = vadd.f32 0.0, %v3948
  %v3950 = vpop.f32.mrf.mxu0
  %3951 = vmatprep.mubr.f32.mxu0 0.0
  %3952 = vmatmul.mubr.f32.gmra.mxu0 %v3830
  %v3953 = vpop.f32.mrf.mxu0
  %v3954 = vadd.f32 0.0, %v3953
  %v3955 = vpop.f32.mrf.mxu0
  %3956 = vmatprep.mubr.f32.mxu0 0.0
  %3957 = vmatmul.mubr.f32.gmra.mxu0 %v3833
  %v3958 = vpop.f32.mrf.mxu0
  %v3959 = vadd.f32 0.0, %v3958
  %v3960 = vpop.f32.mrf.mxu0
  %3961 = vmatprep.mubr.f32.mxu0 0.0
  %3962 = vmatmul.mubr.f32.gmra.mxu0 %v3836
  %v3963 = vpop.f32.mrf.mxu0
  %v3964 = vadd.f32 0.0, %v3963
  %v3965 = vpop.f32.mrf.mxu0
  %3966 = vmatprep.mubr.f32.mxu0 0.0
  %3967 = vmatmul.mubr.f32.gmra.mxu0 %v3839
  %v3968 = vpop.f32.mrf.mxu0
  %v3969 = vadd.f32 0.0, %v3968
  %v3970 = vpop.f32.mrf.mxu0
  %3971 = vmatprep.mubr.f32.mxu0 0.0
  %3972 = vmatmul.mubr.f32.gmra.mxu0 %v3842
  %v3973 = vpop.f32.mrf.mxu0
  %v3974 = vadd.f32 0.0, %v3973
  %v3975 = vpop.f32.mrf.mxu0
  %3976 = vmatprep.mubr.f32.mxu0 0.0
  %3977 = vmatmul.mubr.f32.gmra.mxu0 %v3845
  %v3978 = vpop.f32.mrf.mxu0
  %v3979 = vadd.f32 0.0, %v3978
  %v3980 = vpop.f32.mrf.mxu0
  %3981 = vmatprep.mubr.f32.mxu0 0.0
  %3982 = vmatmul.mubr.f32.gmra.mxu0 %v3848
  %v3983 = vpop.f32.mrf.mxu0
  %v3984 = vadd.f32 0.0, %v3983
  %v3985 = vpop.f32.mrf.mxu0
  %3986 = vmatprep.mubr.f32.mxu0 0.0
  %3987 = vmatmul.mubr.f32.gmra.mxu0 %v3851
  %v3988 = vpop.f32.mrf.mxu0
  %v3989 = vadd.f32 0.0, %v3988
  %v3990 = vpop.f32.mrf.mxu0
  %3991 = vmatprep.mubr.f32.mxu0 0.0
  %3992 = vmatmul.mubr.f32.gmra.mxu0 %v3854
  %v3993 = vpop.f32.mrf.mxu0
  %v3994 = vadd.f32 0.0, %v3993
  %v3995 = vpop.f32.mrf.mxu0
  %3996 = vmatprep.mubr.f32.mxu0 0.0
  %3997 = vmatmul.mubr.f32.gmra.mxu0 %v3857
  %v3998 = vpop.f32.mrf.mxu0
  %v3999 = vadd.f32 0.0, %v3998
  %v4000 = vpop.f32.mrf.mxu0
  %4001 = vmatprep.mubr.f32.mxu0 0.0
  %4002 = vmatmul.mubr.f32.gmra.mxu0 %v3860
  %v4003 = vpop.f32.mrf.mxu0
  %v4004 = vadd.f32 0.0, %v4003
  %v4005 = vpop.f32.mrf.mxu0
  %4006 = vdwg.mxu0
  %v4007 = vadd.f32 %v3717, %v3929
  %v4008 = vadd.f32 %v3722, %v3934
  %v4009 = vadd.f32 %v3727, %v3939
  %v4010 = vadd.f32 %v3732, %v3944
  %v4011 = vadd.f32 %v3737, %v3949
  %v4012 = vadd.f32 %v3742, %v3954
  %v4013 = vadd.f32 %v3747, %v3959
  %v4014 = vadd.f32 %v3752, %v3964
  %v4015 = vadd.f32 %v3757, %v3969
  %v4016 = vadd.f32 %v3762, %v3974
  %v4017 = vadd.f32 %v3767, %v3979
  %v4018 = vadd.f32 %v3772, %v3984
  %v4019 = vadd.f32 %v3777, %v3989
  %v4020 = vadd.f32 %v3782, %v3994
  %v4021 = vadd.f32 %v3787, %v3999
  %v4022 = vadd.f32 %v3792, %v4004
  %v4023 = vld [vmem:[%s619 + $0x7] sm:$0xff]
  %v4024 = vld [vmem:[%s619 + $0x1f] sm:$0xff]
  %v4025 = vld [vmem:[%s619 + $0x37] sm:$0xff]
  %v4026 = vld [vmem:[%s619 + $0x4f] sm:$0xff]
  %v4027 = vld [vmem:[%s619 + $0x67] sm:$0xff]
  %v4028 = vld [vmem:[%s619 + $0x7f] sm:$0xff]
  %v4029 = vld [vmem:[%s619 + $0x97] sm:$0xff]
  %v4030 = vld [vmem:[%s619 + $0xaf] sm:$0xff]
  %v4031 = vld [vmem:[%s619 + $0xf7] sm:$0xff]
  %v4032 = vld [vmem:[%s619 + $0x10f] sm:$0xff]
  %v4033 = vld [vmem:[%s619 + $0x127] sm:$0xff]
  %v4034 = vld [vmem:[%s619 + $0x13f] sm:$0xff]
  %v4035 = vld [vmem:[%s619 + $0x157] sm:$0xff]
  %v4036 = vld [vmem:[%s619 + $0x16f] sm:$0xff]
  %v4037 = vld [vmem:[%s619 + $0x187] sm:$0xff]
  %v4038 = vld [vmem:[%s619 + $0x19f] sm:$0xff]
  %s4039 = scalar_lea.vmem %s10, 48
  %v4040 = vld [vmem:[%s4039] sm:$0xff]
  %v4041 = vld [vmem:[%s4039 + $0x8] sm:$0xff]
  %v4043 = vsel %vm89, %v4023, 0
  %v4046 = vsel %vm89, %v4024, 0
  %v4049 = vsel %vm89, %v4025, 0
  %v4052 = vsel %vm89, %v4026, 0
  %v4055 = vsel %vm89, %v4027, 0
  %v4058 = vsel %vm89, %v4028, 0
  %v4061 = vsel %vm89, %v4029, 0
  %v4064 = vsel %vm89, %v4030, 0
  %v4067 = vsel %vm89, %v4031, 0
  %v4070 = vsel %vm89, %v4032, 0
  %v4073 = vsel %vm89, %v4033, 0
  %v4076 = vsel %vm89, %v4034, 0
  %v4079 = vsel %vm89, %v4035, 0
  %v4082 = vsel %vm89, %v4036, 0
  %v4085 = vsel %vm89, %v4037, 0
  %v4088 = vsel %vm89, %v4038, 0
  %4090 = vmatprep.subr.mxu0 0.0
  %4091 = vmatpush1.msra.mxu0 0.0
  %4092 = vmatprep.subr.mxu0 0.0
  %4093 = vmatpush1.msra.mxu0 0.0
  %4094 = vmatprep.subr.mxu0 0.0
  %4095 = vmatpush1.msra.mxu0 0.0
  %4096 = vmatprep.subr.mxu0 0.0
  %4097 = vmatpush1.msra.mxu0 0.0
  %4098 = vmatprep.subr.mxu0 0.0
  %4099 = vmatpush1.msra.mxu0 0.0
  %4100 = vmatprep.subr.mxu0 0.0
  %4101 = vmatpush1.msra.mxu0 0.0
  %4102 = vmatprep.subr.mxu0 0.0
  %4103 = vmatpush1.msra.mxu0 0.0
  %4104 = vmatprep.subr.mxu0 0.0
  %4105 = vmatpush1.msra.mxu0 0.0
  %4106 = vmatprep.subr.mxu0 0.0
  %4107 = vmatpush1.msra.mxu0 0.0
  %4108 = vmatprep.subr.mxu0 0.0
  %4109 = vmatpush1.msra.mxu0 0.0
  %4110 = vmatprep.subr.mxu0 0.0
  %4111 = vmatpush1.msra.mxu0 0.0
  %4112 = vmatprep.subr.mxu0 0.0
  %4113 = vmatpush1.msra.mxu0 0.0
  %4114 = vmatprep.subr.mxu0 0.0
  %4115 = vmatpush1.msra.mxu0 0.0
  %4116 = vmatprep.subr.mxu0 0.0
  %4117 = vmatpush1.msra.mxu0 0.0
  %4118 = vmatprep.subr.mxu0 0.0
  %4119 = vmatpush1.msra.mxu0 %v4041
  %4120 = vmatprep.subr.mxu0 0.0
  %4121 = vmatpush1.msra.mxu0 %v4040
  %4122 = vmatprep.subr.mxu0 0.0
  %4123 = vmatpush2.msra.mxu0 0.0
  %4124 = vmatprep.subr.mxu0 0.0
  %4125 = vmatpush2.msra.mxu0 0.0
  %4126 = vmatprep.subr.mxu0 0.0
  %4127 = vmatpush2.msra.mxu0 0.0
  %4128 = vmatprep.subr.mxu0 0.0
  %4129 = vmatpush2.msra.mxu0 0.0
  %4130 = vmatprep.subr.mxu0 0.0
  %4131 = vmatpush2.msra.mxu0 0.0
  %4132 = vmatprep.subr.mxu0 0.0
  %4133 = vmatpush2.msra.mxu0 0.0
  %4134 = vmatprep.subr.mxu0 0.0
  %4135 = vmatpush2.msra.mxu0 0.0
  %4136 = vmatprep.subr.mxu0 0.0
  %4137 = vmatpush2.msra.mxu0 0.0
  %4138 = vmatprep.subr.mxu0 0.0
  %4139 = vmatpush2.msra.mxu0 0.0
  %4140 = vmatprep.subr.mxu0 0.0
  %4141 = vmatpush2.msra.mxu0 0.0
  %4142 = vmatprep.subr.mxu0 0.0
  %4143 = vmatpush2.msra.mxu0 0.0
  %4144 = vmatprep.subr.mxu0 0.0
  %4145 = vmatpush2.msra.mxu0 0.0
  %4146 = vmatprep.subr.mxu0 0.0
  %4147 = vmatpush2.msra.mxu0 0.0
  %4148 = vmatprep.subr.mxu0 0.0
  %4149 = vmatpush2.msra.mxu0 0.0
  %4150 = vmatprep.subr.mxu0 0.0
  %4151 = vmatpush2.msra.mxu0 0.0
  %4152 = vmatprep.subr.mxu0 0.0
  %4153 = vmatpush2.msra.mxu0 0.0
  %4154 = vmatprep.mubr.f32.mxu0 0.0
  %4155 = vmatmul.mubr.f32.gmra.mxu0 %v4043
  %v4156 = vpop.f32.mrf.mxu0
  %v4157 = vadd.f32 0.0, %v4156
  %v4158 = vpop.f32.mrf.mxu0
  %4159 = vmatprep.mubr.f32.mxu0 0.0
  %4160 = vmatmul.mubr.f32.gmra.mxu0 %v4046
  %v4161 = vpop.f32.mrf.mxu0
  %v4162 = vadd.f32 0.0, %v4161
  %v4163 = vpop.f32.mrf.mxu0
  %4164 = vmatprep.mubr.f32.mxu0 0.0
  %4165 = vmatmul.mubr.f32.gmra.mxu0 %v4049
  %v4166 = vpop.f32.mrf.mxu0
  %v4167 = vadd.f32 0.0, %v4166
  %v4168 = vpop.f32.mrf.mxu0
  %4169 = vmatprep.mubr.f32.mxu0 0.0
  %4170 = vmatmul.mubr.f32.gmra.mxu0 %v4052
  %v4171 = vpop.f32.mrf.mxu0
  %v4172 = vadd.f32 0.0, %v4171
  %v4173 = vpop.f32.mrf.mxu0
  %4174 = vmatprep.mubr.f32.mxu0 0.0
  %4175 = vmatmul.mubr.f32.gmra.mxu0 %v4055
  %v4176 = vpop.f32.mrf.mxu0
  %v4177 = vadd.f32 0.0, %v4176
  %v4178 = vpop.f32.mrf.mxu0
  %4179 = vmatprep.mubr.f32.mxu0 0.0
  %4180 = vmatmul.mubr.f32.gmra.mxu0 %v4058
  %v4181 = vpop.f32.mrf.mxu0
  %v4182 = vadd.f32 0.0, %v4181
  %v4183 = vpop.f32.mrf.mxu0
  %4184 = vmatprep.mubr.f32.mxu0 0.0
  %4185 = vmatmul.mubr.f32.gmra.mxu0 %v4061
  %v4186 = vpop.f32.mrf.mxu0
  %v4187 = vadd.f32 0.0, %v4186
  %v4188 = vpop.f32.mrf.mxu0
  %4189 = vmatprep.mubr.f32.mxu0 0.0
  %4190 = vmatmul.mubr.f32.gmra.mxu0 %v4064
  %v4191 = vpop.f32.mrf.mxu0
  %v4192 = vadd.f32 0.0, %v4191
  %v4193 = vpop.f32.mrf.mxu0
  %4194 = vmatprep.mubr.f32.mxu0 0.0
  %4195 = vmatmul.mubr.f32.gmra.mxu0 %v4067
  %v4196 = vpop.f32.mrf.mxu0
  %v4197 = vadd.f32 0.0, %v4196
  %v4198 = vpop.f32.mrf.mxu0
  %4199 = vmatprep.mubr.f32.mxu0 0.0
  %4200 = vmatmul.mubr.f32.gmra.mxu0 %v4070
  %v4201 = vpop.f32.mrf.mxu0
  %v4202 = vadd.f32 0.0, %v4201
  %v4203 = vpop.f32.mrf.mxu0
  %4204 = vmatprep.mubr.f32.mxu0 0.0
  %4205 = vmatmul.mubr.f32.gmra.mxu0 %v4073
  %v4206 = vpop.f32.mrf.mxu0
  %v4207 = vadd.f32 0.0, %v4206
  %v4208 = vpop.f32.mrf.mxu0
  %4209 = vmatprep.mubr.f32.mxu0 0.0
  %4210 = vmatmul.mubr.f32.gmra.mxu0 %v4076
  %v4211 = vpop.f32.mrf.mxu0
  %v4212 = vadd.f32 0.0, %v4211
  %v4213 = vpop.f32.mrf.mxu0
  %4214 = vmatprep.mubr.f32.mxu0 0.0
  %4215 = vmatmul.mubr.f32.gmra.mxu0 %v4079
  %v4216 = vpop.f32.mrf.mxu0
  %v4217 = vadd.f32 0.0, %v4216
  %v4218 = vpop.f32.mrf.mxu0
  %4219 = vmatprep.mubr.f32.mxu0 0.0
  %4220 = vmatmul.mubr.f32.gmra.mxu0 %v4082
  %v4221 = vpop.f32.mrf.mxu0
  %v4222 = vadd.f32 0.0, %v4221
  %v4223 = vpop.f32.mrf.mxu0
  %4224 = vmatprep.mubr.f32.mxu0 0.0
  %4225 = vmatmul.mubr.f32.gmra.mxu0 %v4085
  %v4226 = vpop.f32.mrf.mxu0
  %v4227 = vadd.f32 0.0, %v4226
  %v4228 = vpop.f32.mrf.mxu0
  %4229 = vmatprep.mubr.f32.mxu0 0.0
  %4230 = vmatmul.mubr.f32.gmra.mxu0 %v4088
  %v4231 = vpop.f32.mrf.mxu0
  %v4232 = vadd.f32 0.0, %v4231
  %v4233 = vpop.f32.mrf.mxu0
  %4234 = vdwg.mxu0
  %v4235 = vadd.f32 %v4007, %v4157
  %v4236 = vadd.f32 %v4008, %v4162
  %v4237 = vadd.f32 %v4009, %v4167
  %v4238 = vadd.f32 %v4010, %v4172
  %v4239 = vadd.f32 %v4011, %v4177
  %v4240 = vadd.f32 %v4012, %v4182
  %v4241 = vadd.f32 %v4013, %v4187
  %v4242 = vadd.f32 %v4014, %v4192
  %v4243 = vadd.f32 %v4015, %v4197
  %v4244 = vadd.f32 %v4016, %v4202
  %v4245 = vadd.f32 %v4017, %v4207
  %v4246 = vadd.f32 %v4018, %v4212
  %v4247 = vadd.f32 %v4019, %v4217
  %v4248 = vadd.f32 %v4020, %v4222
  %v4249 = vadd.f32 %v4021, %v4227
  %v4250 = vadd.f32 %v4022, %v4232
  %v4251 = vld [vmem:[%s619 + $0x8] sm:$0xff]
  %v4252 = vld [vmem:[%s619 + $0x20] sm:$0xff]
  %v4253 = vld [vmem:[%s619 + $0x38] sm:$0xff]
  %v4254 = vld [vmem:[%s619 + $0x50] sm:$0xff]
  %v4255 = vld [vmem:[%s619 + $0x68] sm:$0xff]
  %v4256 = vld [vmem:[%s619 + $0x80] sm:$0xff]
  %v4257 = vld [vmem:[%s619 + $0x98] sm:$0xff]
  %v4258 = vld [vmem:[%s619 + $0xb0] sm:$0xff]
  %v4259 = vld [vmem:[%s619 + $0xf8] sm:$0xff]
  %v4260 = vld [vmem:[%s619 + $0x110] sm:$0xff]
  %v4261 = vld [vmem:[%s619 + $0x128] sm:$0xff]
  %v4262 = vld [vmem:[%s619 + $0x140] sm:$0xff]
  %v4263 = vld [vmem:[%s619 + $0x158] sm:$0xff]
  %v4264 = vld [vmem:[%s619 + $0x170] sm:$0xff]
  %v4265 = vld [vmem:[%s619 + $0x188] sm:$0xff]
  %v4266 = vld [vmem:[%s619 + $0x1a0] sm:$0xff]
  %s4267 = scalar_lea.vmem %s10, 64
  %v4268 = vld [vmem:[%s4267] sm:$0xff]
  %v4269 = vld [vmem:[%s4267 + $0x8] sm:$0xff]
  %v4271 = vsel %vm89, %v4251, 0
  %v4274 = vsel %vm89, %v4252, 0
  %v4277 = vsel %vm89, %v4253, 0
  %v4280 = vsel %vm89, %v4254, 0
  %v4283 = vsel %vm89, %v4255, 0
  %v4286 = vsel %vm89, %v4256, 0
  %v4289 = vsel %vm89, %v4257, 0
  %v4292 = vsel %vm89, %v4258, 0
  %v4295 = vsel %vm89, %v4259, 0
  %v4298 = vsel %vm89, %v4260, 0
  %v4301 = vsel %vm89, %v4261, 0
  %v4304 = vsel %vm89, %v4262, 0
  %v4307 = vsel %vm89, %v4263, 0
  %v4310 = vsel %vm89, %v4264, 0
  %v4313 = vsel %vm89, %v4265, 0
  %v4316 = vsel %vm89, %v4266, 0
  %4318 = vmatprep.subr.mxu0 0.0
  %4319 = vmatpush1.msra.mxu0 0.0
  %4320 = vmatprep.subr.mxu0 0.0
  %4321 = vmatpush1.msra.mxu0 0.0
  %4322 = vmatprep.subr.mxu0 0.0
  %4323 = vmatpush1.msra.mxu0 0.0
  %4324 = vmatprep.subr.mxu0 0.0
  %4325 = vmatpush1.msra.mxu0 0.0
  %4326 = vmatprep.subr.mxu0 0.0
  %4327 = vmatpush1.msra.mxu0 0.0
  %4328 = vmatprep.subr.mxu0 0.0
  %4329 = vmatpush1.msra.mxu0 0.0
  %4330 = vmatprep.subr.mxu0 0.0
  %4331 = vmatpush1.msra.mxu0 0.0
  %4332 = vmatprep.subr.mxu0 0.0
  %4333 = vmatpush1.msra.mxu0 0.0
  %4334 = vmatprep.subr.mxu0 0.0
  %4335 = vmatpush1.msra.mxu0 0.0
  %4336 = vmatprep.subr.mxu0 0.0
  %4337 = vmatpush1.msra.mxu0 0.0
  %4338 = vmatprep.subr.mxu0 0.0
  %4339 = vmatpush1.msra.mxu0 0.0
  %4340 = vmatprep.subr.mxu0 0.0
  %4341 = vmatpush1.msra.mxu0 0.0
  %4342 = vmatprep.subr.mxu0 0.0
  %4343 = vmatpush1.msra.mxu0 0.0
  %4344 = vmatprep.subr.mxu0 0.0
  %4345 = vmatpush1.msra.mxu0 0.0
  %4346 = vmatprep.subr.mxu0 0.0
  %4347 = vmatpush1.msra.mxu0 %v4269
  %4348 = vmatprep.subr.mxu0 0.0
  %4349 = vmatpush1.msra.mxu0 %v4268
  %4350 = vmatprep.subr.mxu0 0.0
  %4351 = vmatpush2.msra.mxu0 0.0
  %4352 = vmatprep.subr.mxu0 0.0
  %4353 = vmatpush2.msra.mxu0 0.0
  %4354 = vmatprep.subr.mxu0 0.0
  %4355 = vmatpush2.msra.mxu0 0.0
  %4356 = vmatprep.subr.mxu0 0.0
  %4357 = vmatpush2.msra.mxu0 0.0
  %4358 = vmatprep.subr.mxu0 0.0
  %4359 = vmatpush2.msra.mxu0 0.0
  %4360 = vmatprep.subr.mxu0 0.0
  %4361 = vmatpush2.msra.mxu0 0.0
  %4362 = vmatprep.subr.mxu0 0.0
  %4363 = vmatpush2.msra.mxu0 0.0
  %4364 = vmatprep.subr.mxu0 0.0
  %4365 = vmatpush2.msra.mxu0 0.0
  %4366 = vmatprep.subr.mxu0 0.0
  %4367 = vmatpush2.msra.mxu0 0.0
  %4368 = vmatprep.subr.mxu0 0.0
  %4369 = vmatpush2.msra.mxu0 0.0
  %4370 = vmatprep.subr.mxu0 0.0
  %4371 = vmatpush2.msra.mxu0 0.0
  %4372 = vmatprep.subr.mxu0 0.0
  %4373 = vmatpush2.msra.mxu0 0.0
  %4374 = vmatprep.subr.mxu0 0.0
  %4375 = vmatpush2.msra.mxu0 0.0
  %4376 = vmatprep.subr.mxu0 0.0
  %4377 = vmatpush2.msra.mxu0 0.0
  %4378 = vmatprep.subr.mxu0 0.0
  %4379 = vmatpush2.msra.mxu0 0.0
  %4380 = vmatprep.subr.mxu0 0.0
  %4381 = vmatpush2.msra.mxu0 0.0
  %4382 = vmatprep.mubr.f32.mxu0 0.0
  %4383 = vmatmul.mubr.f32.gmra.mxu0 %v4271
  %v4384 = vpop.f32.mrf.mxu0
  %v4385 = vadd.f32 0.0, %v4384
  %v4386 = vpop.f32.mrf.mxu0
  %4387 = vmatprep.mubr.f32.mxu0 0.0
  %4388 = vmatmul.mubr.f32.gmra.mxu0 %v4274
  %v4389 = vpop.f32.mrf.mxu0
  %v4390 = vadd.f32 0.0, %v4389
  %v4391 = vpop.f32.mrf.mxu0
  %4392 = vmatprep.mubr.f32.mxu0 0.0
  %4393 = vmatmul.mubr.f32.gmra.mxu0 %v4277
  %v4394 = vpop.f32.mrf.mxu0
  %v4395 = vadd.f32 0.0, %v4394
  %v4396 = vpop.f32.mrf.mxu0
  %4397 = vmatprep.mubr.f32.mxu0 0.0
  %4398 = vmatmul.mubr.f32.gmra.mxu0 %v4280
  %v4399 = vpop.f32.mrf.mxu0
  %v4400 = vadd.f32 0.0, %v4399
  %v4401 = vpop.f32.mrf.mxu0
  %4402 = vmatprep.mubr.f32.mxu0 0.0
  %4403 = vmatmul.mubr.f32.gmra.mxu0 %v4283
  %v4404 = vpop.f32.mrf.mxu0
  %v4405 = vadd.f32 0.0, %v4404
  %v4406 = vpop.f32.mrf.mxu0
  %4407 = vmatprep.mubr.f32.mxu0 0.0
  %4408 = vmatmul.mubr.f32.gmra.mxu0 %v4286
  %v4409 = vpop.f32.mrf.mxu0
  %v4410 = vadd.f32 0.0, %v4409
  %v4411 = vpop.f32.mrf.mxu0
  %4412 = vmatprep.mubr.f32.mxu0 0.0
  %4413 = vmatmul.mubr.f32.gmra.mxu0 %v4289
  %v4414 = vpop.f32.mrf.mxu0
  %v4415 = vadd.f32 0.0, %v4414
  %v4416 = vpop.f32.mrf.mxu0
  %4417 = vmatprep.mubr.f32.mxu0 0.0
  %4418 = vmatmul.mubr.f32.gmra.mxu0 %v4292
  %v4419 = vpop.f32.mrf.mxu0
  %v4420 = vadd.f32 0.0, %v4419
  %v4421 = vpop.f32.mrf.mxu0
  %4422 = vmatprep.mubr.f32.mxu0 0.0
  %4423 = vmatmul.mubr.f32.gmra.mxu0 %v4295
  %v4424 = vpop.f32.mrf.mxu0
  %v4425 = vadd.f32 0.0, %v4424
  %v4426 = vpop.f32.mrf.mxu0
  %4427 = vmatprep.mubr.f32.mxu0 0.0
  %4428 = vmatmul.mubr.f32.gmra.mxu0 %v4298
  %v4429 = vpop.f32.mrf.mxu0
  %v4430 = vadd.f32 0.0, %v4429
  %v4431 = vpop.f32.mrf.mxu0
  %4432 = vmatprep.mubr.f32.mxu0 0.0
  %4433 = vmatmul.mubr.f32.gmra.mxu0 %v4301
  %v4434 = vpop.f32.mrf.mxu0
  %v4435 = vadd.f32 0.0, %v4434
  %v4436 = vpop.f32.mrf.mxu0
  %4437 = vmatprep.mubr.f32.mxu0 0.0
  %4438 = vmatmul.mubr.f32.gmra.mxu0 %v4304
  %v4439 = vpop.f32.mrf.mxu0
  %v4440 = vadd.f32 0.0, %v4439
  %v4441 = vpop.f32.mrf.mxu0
  %4442 = vmatprep.mubr.f32.mxu0 0.0
  %4443 = vmatmul.mubr.f32.gmra.mxu0 %v4307
  %v4444 = vpop.f32.mrf.mxu0
  %v4445 = vadd.f32 0.0, %v4444
  %v4446 = vpop.f32.mrf.mxu0
  %4447 = vmatprep.mubr.f32.mxu0 0.0
  %4448 = vmatmul.mubr.f32.gmra.mxu0 %v4310
  %v4449 = vpop.f32.mrf.mxu0
  %v4450 = vadd.f32 0.0, %v4449
  %v4451 = vpop.f32.mrf.mxu0
  %4452 = vmatprep.mubr.f32.mxu0 0.0
  %4453 = vmatmul.mubr.f32.gmra.mxu0 %v4313
  %v4454 = vpop.f32.mrf.mxu0
  %v4455 = vadd.f32 0.0, %v4454
  %v4456 = vpop.f32.mrf.mxu0
  %4457 = vmatprep.mubr.f32.mxu0 0.0
  %4458 = vmatmul.mubr.f32.gmra.mxu0 %v4316
  %v4459 = vpop.f32.mrf.mxu0
  %v4460 = vadd.f32 0.0, %v4459
  %v4461 = vpop.f32.mrf.mxu0
  %4462 = vdwg.mxu0
  %v4463 = vadd.f32 %v4235, %v4385
  %v4464 = vadd.f32 %v4236, %v4390
  %v4465 = vadd.f32 %v4237, %v4395
  %v4466 = vadd.f32 %v4238, %v4400
  %v4467 = vadd.f32 %v4239, %v4405
  %v4468 = vadd.f32 %v4240, %v4410
  %v4469 = vadd.f32 %v4241, %v4415
  %v4470 = vadd.f32 %v4242, %v4420
  %v4471 = vadd.f32 %v4243, %v4425
  %v4472 = vadd.f32 %v4244, %v4430
  %v4473 = vadd.f32 %v4245, %v4435
  %v4474 = vadd.f32 %v4246, %v4440
  %v4475 = vadd.f32 %v4247, %v4445
  %v4476 = vadd.f32 %v4248, %v4450
  %v4477 = vadd.f32 %v4249, %v4455
  %v4478 = vadd.f32 %v4250, %v4460
  %v4479 = vld [vmem:[%s619 + $0x9] sm:$0xff]
  %v4480 = vld [vmem:[%s619 + $0x21] sm:$0xff]
  %v4481 = vld [vmem:[%s619 + $0x39] sm:$0xff]
  %v4482 = vld [vmem:[%s619 + $0x51] sm:$0xff]
  %v4483 = vld [vmem:[%s619 + $0x69] sm:$0xff]
  %v4484 = vld [vmem:[%s619 + $0x81] sm:$0xff]
  %v4485 = vld [vmem:[%s619 + $0x99] sm:$0xff]
  %v4486 = vld [vmem:[%s619 + $0xb1] sm:$0xff]
  %v4487 = vld [vmem:[%s619 + $0xf9] sm:$0xff]
  %v4488 = vld [vmem:[%s619 + $0x111] sm:$0xff]
  %v4489 = vld [vmem:[%s619 + $0x129] sm:$0xff]
  %v4490 = vld [vmem:[%s619 + $0x141] sm:$0xff]
  %v4491 = vld [vmem:[%s619 + $0x159] sm:$0xff]
  %v4492 = vld [vmem:[%s619 + $0x171] sm:$0xff]
  %v4493 = vld [vmem:[%s619 + $0x189] sm:$0xff]
  %v4494 = vld [vmem:[%s619 + $0x1a1] sm:$0xff]
  %s4495 = scalar_lea.vmem %s10, 80
  %v4496 = vld [vmem:[%s4495] sm:$0xff]
  %v4497 = vld [vmem:[%s4495 + $0x8] sm:$0xff]
  %v4499 = vsel %vm89, %v4479, 0
  %v4502 = vsel %vm89, %v4480, 0
  %v4505 = vsel %vm89, %v4481, 0
  %v4508 = vsel %vm89, %v4482, 0
  %v4511 = vsel %vm89, %v4483, 0
  %v4514 = vsel %vm89, %v4484, 0
  %v4517 = vsel %vm89, %v4485, 0
  %v4520 = vsel %vm89, %v4486, 0
  %v4523 = vsel %vm89, %v4487, 0
  %v4526 = vsel %vm89, %v4488, 0
  %v4529 = vsel %vm89, %v4489, 0
  %v4532 = vsel %vm89, %v4490, 0
  %v4535 = vsel %vm89, %v4491, 0
  %v4538 = vsel %vm89, %v4492, 0
  %v4541 = vsel %vm89, %v4493, 0
  %v4544 = vsel %vm89, %v4494, 0
  %4546 = vmatprep.subr.mxu0 0.0
  %4547 = vmatpush1.msra.mxu0 0.0
  %4548 = vmatprep.subr.mxu0 0.0
  %4549 = vmatpush1.msra.mxu0 0.0
  %4550 = vmatprep.subr.mxu0 0.0
  %4551 = vmatpush1.msra.mxu0 0.0
  %4552 = vmatprep.subr.mxu0 0.0
  %4553 = vmatpush1.msra.mxu0 0.0
  %4554 = vmatprep.subr.mxu0 0.0
  %4555 = vmatpush1.msra.mxu0 0.0
  %4556 = vmatprep.subr.mxu0 0.0
  %4557 = vmatpush1.msra.mxu0 0.0
  %4558 = vmatprep.subr.mxu0 0.0
  %4559 = vmatpush1.msra.mxu0 0.0
  %4560 = vmatprep.subr.mxu0 0.0
  %4561 = vmatpush1.msra.mxu0 0.0
  %4562 = vmatprep.subr.mxu0 0.0
  %4563 = vmatpush1.msra.mxu0 0.0
  %4564 = vmatprep.subr.mxu0 0.0
  %4565 = vmatpush1.msra.mxu0 0.0
  %4566 = vmatprep.subr.mxu0 0.0
  %4567 = vmatpush1.msra.mxu0 0.0
  %4568 = vmatprep.subr.mxu0 0.0
  %4569 = vmatpush1.msra.mxu0 0.0
  %4570 = vmatprep.subr.mxu0 0.0
  %4571 = vmatpush1.msra.mxu0 0.0
  %4572 = vmatprep.subr.mxu0 0.0
  %4573 = vmatpush1.msra.mxu0 0.0
  %4574 = vmatprep.subr.mxu0 0.0
  %4575 = vmatpush1.msra.mxu0 %v4497
  %4576 = vmatprep.subr.mxu0 0.0
  %4577 = vmatpush1.msra.mxu0 %v4496
  %4578 = vmatprep.subr.mxu0 0.0
  %4579 = vmatpush2.msra.mxu0 0.0
  %4580 = vmatprep.subr.mxu0 0.0
  %4581 = vmatpush2.msra.mxu0 0.0
  %4582 = vmatprep.subr.mxu0 0.0
  %4583 = vmatpush2.msra.mxu0 0.0
  %4584 = vmatprep.subr.mxu0 0.0
  %4585 = vmatpush2.msra.mxu0 0.0
  %4586 = vmatprep.subr.mxu0 0.0
  %4587 = vmatpush2.msra.mxu0 0.0
  %4588 = vmatprep.subr.mxu0 0.0
  %4589 = vmatpush2.msra.mxu0 0.0
  %4590 = vmatprep.subr.mxu0 0.0
  %4591 = vmatpush2.msra.mxu0 0.0
  %4592 = vmatprep.subr.mxu0 0.0
  %4593 = vmatpush2.msra.mxu0 0.0
  %4594 = vmatprep.subr.mxu0 0.0
  %4595 = vmatpush2.msra.mxu0 0.0
  %4596 = vmatprep.subr.mxu0 0.0
  %4597 = vmatpush2.msra.mxu0 0.0
  %4598 = vmatprep.subr.mxu0 0.0
  %4599 = vmatpush2.msra.mxu0 0.0
  %4600 = vmatprep.subr.mxu0 0.0
  %4601 = vmatpush2.msra.mxu0 0.0
  %4602 = vmatprep.subr.mxu0 0.0
  %4603 = vmatpush2.msra.mxu0 0.0
  %4604 = vmatprep.subr.mxu0 0.0
  %4605 = vmatpush2.msra.mxu0 0.0
  %4606 = vmatprep.subr.mxu0 0.0
  %4607 = vmatpush2.msra.mxu0 0.0
  %4608 = vmatprep.subr.mxu0 0.0
  %4609 = vmatpush2.msra.mxu0 0.0
  %4610 = vmatprep.mubr.f32.mxu0 0.0
  %4611 = vmatmul.mubr.f32.gmra.mxu0 %v4499
  %v4612 = vpop.f32.mrf.mxu0
  %v4613 = vadd.f32 0.0, %v4612
  %v4614 = vpop.f32.mrf.mxu0
  %4615 = vmatprep.mubr.f32.mxu0 0.0
  %4616 = vmatmul.mubr.f32.gmra.mxu0 %v4502
  %v4617 = vpop.f32.mrf.mxu0
  %v4618 = vadd.f32 0.0, %v4617
  %v4619 = vpop.f32.mrf.mxu0
  %4620 = vmatprep.mubr.f32.mxu0 0.0
  %4621 = vmatmul.mubr.f32.gmra.mxu0 %v4505
  %v4622 = vpop.f32.mrf.mxu0
  %v4623 = vadd.f32 0.0, %v4622
  %v4624 = vpop.f32.mrf.mxu0
  %4625 = vmatprep.mubr.f32.mxu0 0.0
  %4626 = vmatmul.mubr.f32.gmra.mxu0 %v4508
  %v4627 = vpop.f32.mrf.mxu0
  %v4628 = vadd.f32 0.0, %v4627
  %v4629 = vpop.f32.mrf.mxu0
  %4630 = vmatprep.mubr.f32.mxu0 0.0
  %4631 = vmatmul.mubr.f32.gmra.mxu0 %v4511
  %v4632 = vpop.f32.mrf.mxu0
  %v4633 = vadd.f32 0.0, %v4632
  %v4634 = vpop.f32.mrf.mxu0
  %4635 = vmatprep.mubr.f32.mxu0 0.0
  %4636 = vmatmul.mubr.f32.gmra.mxu0 %v4514
  %v4637 = vpop.f32.mrf.mxu0
  %v4638 = vadd.f32 0.0, %v4637
  %v4639 = vpop.f32.mrf.mxu0
  %4640 = vmatprep.mubr.f32.mxu0 0.0
  %4641 = vmatmul.mubr.f32.gmra.mxu0 %v4517
  %v4642 = vpop.f32.mrf.mxu0
  %v4643 = vadd.f32 0.0, %v4642
  %v4644 = vpop.f32.mrf.mxu0
  %4645 = vmatprep.mubr.f32.mxu0 0.0
  %4646 = vmatmul.mubr.f32.gmra.mxu0 %v4520
  %v4647 = vpop.f32.mrf.mxu0
  %v4648 = vadd.f32 0.0, %v4647
  %v4649 = vpop.f32.mrf.mxu0
  %4650 = vmatprep.mubr.f32.mxu0 0.0
  %4651 = vmatmul.mubr.f32.gmra.mxu0 %v4523
  %v4652 = vpop.f32.mrf.mxu0
  %v4653 = vadd.f32 0.0, %v4652
  %v4654 = vpop.f32.mrf.mxu0
  %4655 = vmatprep.mubr.f32.mxu0 0.0
  %4656 = vmatmul.mubr.f32.gmra.mxu0 %v4526
  %v4657 = vpop.f32.mrf.mxu0
  %v4658 = vadd.f32 0.0, %v4657
  %v4659 = vpop.f32.mrf.mxu0
  %4660 = vmatprep.mubr.f32.mxu0 0.0
  %4661 = vmatmul.mubr.f32.gmra.mxu0 %v4529
  %v4662 = vpop.f32.mrf.mxu0
  %v4663 = vadd.f32 0.0, %v4662
  %v4664 = vpop.f32.mrf.mxu0
  %4665 = vmatprep.mubr.f32.mxu0 0.0
  %4666 = vmatmul.mubr.f32.gmra.mxu0 %v4532
  %v4667 = vpop.f32.mrf.mxu0
  %v4668 = vadd.f32 0.0, %v4667
  %v4669 = vpop.f32.mrf.mxu0
  %4670 = vmatprep.mubr.f32.mxu0 0.0
  %4671 = vmatmul.mubr.f32.gmra.mxu0 %v4535
  %v4672 = vpop.f32.mrf.mxu0
  %v4673 = vadd.f32 0.0, %v4672
  %v4674 = vpop.f32.mrf.mxu0
  %4675 = vmatprep.mubr.f32.mxu0 0.0
  %4676 = vmatmul.mubr.f32.gmra.mxu0 %v4538
  %v4677 = vpop.f32.mrf.mxu0
  %v4678 = vadd.f32 0.0, %v4677
  %v4679 = vpop.f32.mrf.mxu0
  %4680 = vmatprep.mubr.f32.mxu0 0.0
  %4681 = vmatmul.mubr.f32.gmra.mxu0 %v4541
  %v4682 = vpop.f32.mrf.mxu0
  %v4683 = vadd.f32 0.0, %v4682
  %v4684 = vpop.f32.mrf.mxu0
  %4685 = vmatprep.mubr.f32.mxu0 0.0
  %4686 = vmatmul.mubr.f32.gmra.mxu0 %v4544
  %v4687 = vpop.f32.mrf.mxu0
  %v4688 = vadd.f32 0.0, %v4687
  %v4689 = vpop.f32.mrf.mxu0
  %4690 = vdwg.mxu0
  %v4691 = vadd.f32 %v4463, %v4613
  %v4692 = vadd.f32 %v4464, %v4618
  %v4693 = vadd.f32 %v4465, %v4623
  %v4694 = vadd.f32 %v4466, %v4628
  %v4695 = vadd.f32 %v4467, %v4633
  %v4696 = vadd.f32 %v4468, %v4638
  %v4697 = vadd.f32 %v4469, %v4643
  %v4698 = vadd.f32 %v4470, %v4648
  %v4699 = vadd.f32 %v4471, %v4653
  %v4700 = vadd.f32 %v4472, %v4658
  %v4701 = vadd.f32 %v4473, %v4663
  %v4702 = vadd.f32 %v4474, %v4668
  %v4703 = vadd.f32 %v4475, %v4673
  %v4704 = vadd.f32 %v4476, %v4678
  %v4705 = vadd.f32 %v4477, %v4683
  %v4706 = vadd.f32 %v4478, %v4688
  %v4707 = vld [vmem:[%s1971 + $0x7] sm:$0xff]
  %v4708 = vld [vmem:[%s1971 + $0x1f] sm:$0xff]
  %v4709 = vld [vmem:[%s1971 + $0x37] sm:$0xff]
  %v4710 = vld [vmem:[%s1971 + $0x4f] sm:$0xff]
  %v4711 = vld [vmem:[%s1971 + $0x67] sm:$0xff]
  %v4712 = vld [vmem:[%s1971 + $0x7f] sm:$0xff]
  %v4713 = vld [vmem:[%s1971 + $0x97] sm:$0xff]
  %v4714 = vld [vmem:[%s1971 + $0xaf] sm:$0xff]
  %v4715 = vld [vmem:[%s1971 + $0xf7] sm:$0xff]
  %v4716 = vld [vmem:[%s1971 + $0x10f] sm:$0xff]
  %v4717 = vld [vmem:[%s1971 + $0x127] sm:$0xff]
  %v4718 = vld [vmem:[%s1971 + $0x13f] sm:$0xff]
  %v4719 = vld [vmem:[%s1971 + $0x157] sm:$0xff]
  %v4720 = vld [vmem:[%s1971 + $0x16f] sm:$0xff]
  %v4721 = vld [vmem:[%s1971 + $0x187] sm:$0xff]
  %v4722 = vld [vmem:[%s1971 + $0x19f] sm:$0xff]
  %s4723 = scalar_lea.vmem %s10, 96
  %v4724 = vld [vmem:[%s4723] sm:$0xff]
  %v4725 = vld [vmem:[%s4723 + $0x8] sm:$0xff]
  %v4727 = vsel %vm89, %v4707, 0
  %v4730 = vsel %vm89, %v4708, 0
  %v4733 = vsel %vm89, %v4709, 0
  %v4736 = vsel %vm89, %v4710, 0
  %v4739 = vsel %vm89, %v4711, 0
  %v4742 = vsel %vm89, %v4712, 0
  %v4745 = vsel %vm89, %v4713, 0
  %v4748 = vsel %vm89, %v4714, 0
  %v4751 = vsel %vm89, %v4715, 0
  %v4754 = vsel %vm89, %v4716, 0
  %v4757 = vsel %vm89, %v4717, 0
  %v4760 = vsel %vm89, %v4718, 0
  %v4763 = vsel %vm89, %v4719, 0
  %v4766 = vsel %vm89, %v4720, 0
  %v4769 = vsel %vm89, %v4721, 0
  %v4772 = vsel %vm89, %v4722, 0
  %4774 = vmatprep.subr.mxu0 0.0
  %4775 = vmatpush1.msra.mxu0 0.0
  %4776 = vmatprep.subr.mxu0 0.0
  %4777 = vmatpush1.msra.mxu0 0.0
  %4778 = vmatprep.subr.mxu0 0.0
  %4779 = vmatpush1.msra.mxu0 0.0
  %4780 = vmatprep.subr.mxu0 0.0
  %4781 = vmatpush1.msra.mxu0 0.0
  %4782 = vmatprep.subr.mxu0 0.0
  %4783 = vmatpush1.msra.mxu0 0.0
  %4784 = vmatprep.subr.mxu0 0.0
  %4785 = vmatpush1.msra.mxu0 0.0
  %4786 = vmatprep.subr.mxu0 0.0
  %4787 = vmatpush1.msra.mxu0 0.0
  %4788 = vmatprep.subr.mxu0 0.0
  %4789 = vmatpush1.msra.mxu0 0.0
  %4790 = vmatprep.subr.mxu0 0.0
  %4791 = vmatpush1.msra.mxu0 0.0
  %4792 = vmatprep.subr.mxu0 0.0
  %4793 = vmatpush1.msra.mxu0 0.0
  %4794 = vmatprep.subr.mxu0 0.0
  %4795 = vmatpush1.msra.mxu0 0.0
  %4796 = vmatprep.subr.mxu0 0.0
  %4797 = vmatpush1.msra.mxu0 0.0
  %4798 = vmatprep.subr.mxu0 0.0
  %4799 = vmatpush1.msra.mxu0 0.0
  %4800 = vmatprep.subr.mxu0 0.0
  %4801 = vmatpush1.msra.mxu0 0.0
  %4802 = vmatprep.subr.mxu0 0.0
  %4803 = vmatpush1.msra.mxu0 %v4725
  %4804 = vmatprep.subr.mxu0 0.0
  %4805 = vmatpush1.msra.mxu0 %v4724
  %4806 = vmatprep.subr.mxu0 0.0
  %4807 = vmatpush2.msra.mxu0 0.0
  %4808 = vmatprep.subr.mxu0 0.0
  %4809 = vmatpush2.msra.mxu0 0.0
  %4810 = vmatprep.subr.mxu0 0.0
  %4811 = vmatpush2.msra.mxu0 0.0
  %4812 = vmatprep.subr.mxu0 0.0
  %4813 = vmatpush2.msra.mxu0 0.0
  %4814 = vmatprep.subr.mxu0 0.0
  %4815 = vmatpush2.msra.mxu0 0.0
  %4816 = vmatprep.subr.mxu0 0.0
  %4817 = vmatpush2.msra.mxu0 0.0
  %4818 = vmatprep.subr.mxu0 0.0
  %4819 = vmatpush2.msra.mxu0 0.0
  %4820 = vmatprep.subr.mxu0 0.0
  %4821 = vmatpush2.msra.mxu0 0.0
  %4822 = vmatprep.subr.mxu0 0.0
  %4823 = vmatpush2.msra.mxu0 0.0
  %4824 = vmatprep.subr.mxu0 0.0
  %4825 = vmatpush2.msra.mxu0 0.0
  %4826 = vmatprep.subr.mxu0 0.0
  %4827 = vmatpush2.msra.mxu0 0.0
  %4828 = vmatprep.subr.mxu0 0.0
  %4829 = vmatpush2.msra.mxu0 0.0
  %4830 = vmatprep.subr.mxu0 0.0
  %4831 = vmatpush2.msra.mxu0 0.0
  %4832 = vmatprep.subr.mxu0 0.0
  %4833 = vmatpush2.msra.mxu0 0.0
  %4834 = vmatprep.subr.mxu0 0.0
  %4835 = vmatpush2.msra.mxu0 0.0
  %4836 = vmatprep.subr.mxu0 0.0
  %4837 = vmatpush2.msra.mxu0 0.0
  %4838 = vmatprep.mubr.f32.mxu0 0.0
  %4839 = vmatmul.mubr.f32.gmra.mxu0 %v4727
  %v4840 = vpop.f32.mrf.mxu0
  %v4841 = vadd.f32 0.0, %v4840
  %v4842 = vpop.f32.mrf.mxu0
  %4843 = vmatprep.mubr.f32.mxu0 0.0
  %4844 = vmatmul.mubr.f32.gmra.mxu0 %v4730
  %v4845 = vpop.f32.mrf.mxu0
  %v4846 = vadd.f32 0.0, %v4845
  %v4847 = vpop.f32.mrf.mxu0
  %4848 = vmatprep.mubr.f32.mxu0 0.0
  %4849 = vmatmul.mubr.f32.gmra.mxu0 %v4733
  %v4850 = vpop.f32.mrf.mxu0
  %v4851 = vadd.f32 0.0, %v4850
  %v4852 = vpop.f32.mrf.mxu0
  %4853 = vmatprep.mubr.f32.mxu0 0.0
  %4854 = vmatmul.mubr.f32.gmra.mxu0 %v4736
  %v4855 = vpop.f32.mrf.mxu0
  %v4856 = vadd.f32 0.0, %v4855
  %v4857 = vpop.f32.mrf.mxu0
  %4858 = vmatprep.mubr.f32.mxu0 0.0
  %4859 = vmatmul.mubr.f32.gmra.mxu0 %v4739
  %v4860 = vpop.f32.mrf.mxu0
  %v4861 = vadd.f32 0.0, %v4860
  %v4862 = vpop.f32.mrf.mxu0
  %4863 = vmatprep.mubr.f32.mxu0 0.0
  %4864 = vmatmul.mubr.f32.gmra.mxu0 %v4742
  %v4865 = vpop.f32.mrf.mxu0
  %v4866 = vadd.f32 0.0, %v4865
  %v4867 = vpop.f32.mrf.mxu0
  %4868 = vmatprep.mubr.f32.mxu0 0.0
  %4869 = vmatmul.mubr.f32.gmra.mxu0 %v4745
  %v4870 = vpop.f32.mrf.mxu0
  %v4871 = vadd.f32 0.0, %v4870
  %v4872 = vpop.f32.mrf.mxu0
  %4873 = vmatprep.mubr.f32.mxu0 0.0
  %4874 = vmatmul.mubr.f32.gmra.mxu0 %v4748
  %v4875 = vpop.f32.mrf.mxu0
  %v4876 = vadd.f32 0.0, %v4875
  %v4877 = vpop.f32.mrf.mxu0
  %4878 = vmatprep.mubr.f32.mxu0 0.0
  %4879 = vmatmul.mubr.f32.gmra.mxu0 %v4751
  %v4880 = vpop.f32.mrf.mxu0
  %v4881 = vadd.f32 0.0, %v4880
  %v4882 = vpop.f32.mrf.mxu0
  %4883 = vmatprep.mubr.f32.mxu0 0.0
  %4884 = vmatmul.mubr.f32.gmra.mxu0 %v4754
  %v4885 = vpop.f32.mrf.mxu0
  %v4886 = vadd.f32 0.0, %v4885
  %v4887 = vpop.f32.mrf.mxu0
  %4888 = vmatprep.mubr.f32.mxu0 0.0
  %4889 = vmatmul.mubr.f32.gmra.mxu0 %v4757
  %v4890 = vpop.f32.mrf.mxu0
  %v4891 = vadd.f32 0.0, %v4890
  %v4892 = vpop.f32.mrf.mxu0
  %4893 = vmatprep.mubr.f32.mxu0 0.0
  %4894 = vmatmul.mubr.f32.gmra.mxu0 %v4760
  %v4895 = vpop.f32.mrf.mxu0
  %v4896 = vadd.f32 0.0, %v4895
  %v4897 = vpop.f32.mrf.mxu0
  %4898 = vmatprep.mubr.f32.mxu0 0.0
  %4899 = vmatmul.mubr.f32.gmra.mxu0 %v4763
  %v4900 = vpop.f32.mrf.mxu0
  %v4901 = vadd.f32 0.0, %v4900
  %v4902 = vpop.f32.mrf.mxu0
  %4903 = vmatprep.mubr.f32.mxu0 0.0
  %4904 = vmatmul.mubr.f32.gmra.mxu0 %v4766
  %v4905 = vpop.f32.mrf.mxu0
  %v4906 = vadd.f32 0.0, %v4905
  %v4907 = vpop.f32.mrf.mxu0
  %4908 = vmatprep.mubr.f32.mxu0 0.0
  %4909 = vmatmul.mubr.f32.gmra.mxu0 %v4769
  %v4910 = vpop.f32.mrf.mxu0
  %v4911 = vadd.f32 0.0, %v4910
  %v4912 = vpop.f32.mrf.mxu0
  %4913 = vmatprep.mubr.f32.mxu0 0.0
  %4914 = vmatmul.mubr.f32.gmra.mxu0 %v4772
  %v4915 = vpop.f32.mrf.mxu0
  %v4916 = vadd.f32 0.0, %v4915
  %v4917 = vpop.f32.mrf.mxu0
  %4918 = vdwg.mxu0
  %v4919 = vadd.f32 %v4691, %v4841
  %v4920 = vadd.f32 %v4692, %v4846
  %v4921 = vadd.f32 %v4693, %v4851
  %v4922 = vadd.f32 %v4694, %v4856
  %v4923 = vadd.f32 %v4695, %v4861
  %v4924 = vadd.f32 %v4696, %v4866
  %v4925 = vadd.f32 %v4697, %v4871
  %v4926 = vadd.f32 %v4698, %v4876
  %v4927 = vadd.f32 %v4699, %v4881
  %v4928 = vadd.f32 %v4700, %v4886
  %v4929 = vadd.f32 %v4701, %v4891
  %v4930 = vadd.f32 %v4702, %v4896
  %v4931 = vadd.f32 %v4703, %v4901
  %v4932 = vadd.f32 %v4704, %v4906
  %v4933 = vadd.f32 %v4705, %v4911
  %v4934 = vadd.f32 %v4706, %v4916
  %v4935 = vld [vmem:[%s1971 + $0x8] sm:$0xff]
  %v4936 = vld [vmem:[%s1971 + $0x20] sm:$0xff]
  %v4937 = vld [vmem:[%s1971 + $0x38] sm:$0xff]
  %v4938 = vld [vmem:[%s1971 + $0x50] sm:$0xff]
  %v4939 = vld [vmem:[%s1971 + $0x68] sm:$0xff]
  %v4940 = vld [vmem:[%s1971 + $0x80] sm:$0xff]
  %v4941 = vld [vmem:[%s1971 + $0x98] sm:$0xff]
  %v4942 = vld [vmem:[%s1971 + $0xb0] sm:$0xff]
  %v4943 = vld [vmem:[%s1971 + $0xf8] sm:$0xff]
  %v4944 = vld [vmem:[%s1971 + $0x110] sm:$0xff]
  %v4945 = vld [vmem:[%s1971 + $0x128] sm:$0xff]
  %v4946 = vld [vmem:[%s1971 + $0x140] sm:$0xff]
  %v4947 = vld [vmem:[%s1971 + $0x158] sm:$0xff]
  %v4948 = vld [vmem:[%s1971 + $0x170] sm:$0xff]
  %v4949 = vld [vmem:[%s1971 + $0x188] sm:$0xff]
  %v4950 = vld [vmem:[%s1971 + $0x1a0] sm:$0xff]
  %s4951 = scalar_lea.vmem %s10, 112
  %v4952 = vld [vmem:[%s4951] sm:$0xff]
  %v4953 = vld [vmem:[%s4951 + $0x8] sm:$0xff]
  %v4955 = vsel %vm89, %v4935, 0
  %v4958 = vsel %vm89, %v4936, 0
  %v4961 = vsel %vm89, %v4937, 0
  %v4964 = vsel %vm89, %v4938, 0
  %v4967 = vsel %vm89, %v4939, 0
  %v4970 = vsel %vm89, %v4940, 0
  %v4973 = vsel %vm89, %v4941, 0
  %v4976 = vsel %vm89, %v4942, 0
  %v4979 = vsel %vm89, %v4943, 0
  %v4982 = vsel %vm89, %v4944, 0
  %v4985 = vsel %vm89, %v4945, 0
  %v4988 = vsel %vm89, %v4946, 0
  %v4991 = vsel %vm89, %v4947, 0
  %v4994 = vsel %vm89, %v4948, 0
  %v4997 = vsel %vm89, %v4949, 0
  %v5000 = vsel %vm89, %v4950, 0
  %5002 = vmatprep.subr.mxu0 0.0
  %5003 = vmatpush1.msra.mxu0 0.0
  %5004 = vmatprep.subr.mxu0 0.0
  %5005 = vmatpush1.msra.mxu0 0.0
  %5006 = vmatprep.subr.mxu0 0.0
  %5007 = vmatpush1.msra.mxu0 0.0
  %5008 = vmatprep.subr.mxu0 0.0
  %5009 = vmatpush1.msra.mxu0 0.0
  %5010 = vmatprep.subr.mxu0 0.0
  %5011 = vmatpush1.msra.mxu0 0.0
  %5012 = vmatprep.subr.mxu0 0.0
  %5013 = vmatpush1.msra.mxu0 0.0
  %5014 = vmatprep.subr.mxu0 0.0
  %5015 = vmatpush1.msra.mxu0 0.0
  %5016 = vmatprep.subr.mxu0 0.0
  %5017 = vmatpush1.msra.mxu0 0.0
  %5018 = vmatprep.subr.mxu0 0.0
  %5019 = vmatpush1.msra.mxu0 0.0
  %5020 = vmatprep.subr.mxu0 0.0
  %5021 = vmatpush1.msra.mxu0 0.0
  %5022 = vmatprep.subr.mxu0 0.0
  %5023 = vmatpush1.msra.mxu0 0.0
  %5024 = vmatprep.subr.mxu0 0.0
  %5025 = vmatpush1.msra.mxu0 0.0
  %5026 = vmatprep.subr.mxu0 0.0
  %5027 = vmatpush1.msra.mxu0 0.0
  %5028 = vmatprep.subr.mxu0 0.0
  %5029 = vmatpush1.msra.mxu0 0.0
  %5030 = vmatprep.subr.mxu0 0.0
  %5031 = vmatpush1.msra.mxu0 %v4953
  %5032 = vmatprep.subr.mxu0 0.0
  %5033 = vmatpush1.msra.mxu0 %v4952
  %5034 = vmatprep.subr.mxu0 0.0
  %5035 = vmatpush2.msra.mxu0 0.0
  %5036 = vmatprep.subr.mxu0 0.0
  %5037 = vmatpush2.msra.mxu0 0.0
  %5038 = vmatprep.subr.mxu0 0.0
  %5039 = vmatpush2.msra.mxu0 0.0
  %5040 = vmatprep.subr.mxu0 0.0
  %5041 = vmatpush2.msra.mxu0 0.0
  %5042 = vmatprep.subr.mxu0 0.0
  %5043 = vmatpush2.msra.mxu0 0.0
  %5044 = vmatprep.subr.mxu0 0.0
  %5045 = vmatpush2.msra.mxu0 0.0
  %5046 = vmatprep.subr.mxu0 0.0
  %5047 = vmatpush2.msra.mxu0 0.0
  %5048 = vmatprep.subr.mxu0 0.0
  %5049 = vmatpush2.msra.mxu0 0.0
  %5050 = vmatprep.subr.mxu0 0.0
  %5051 = vmatpush2.msra.mxu0 0.0
  %5052 = vmatprep.subr.mxu0 0.0
  %5053 = vmatpush2.msra.mxu0 0.0
  %5054 = vmatprep.subr.mxu0 0.0
  %5055 = vmatpush2.msra.mxu0 0.0
  %5056 = vmatprep.subr.mxu0 0.0
  %5057 = vmatpush2.msra.mxu0 0.0
  %5058 = vmatprep.subr.mxu0 0.0
  %5059 = vmatpush2.msra.mxu0 0.0
  %5060 = vmatprep.subr.mxu0 0.0
  %5061 = vmatpush2.msra.mxu0 0.0
  %5062 = vmatprep.subr.mxu0 0.0
  %5063 = vmatpush2.msra.mxu0 0.0
  %5064 = vmatprep.subr.mxu0 0.0
  %5065 = vmatpush2.msra.mxu0 0.0
  %5066 = vmatprep.mubr.f32.mxu0 0.0
  %5067 = vmatmul.mubr.f32.gmra.mxu0 %v4955
  %v5068 = vpop.f32.mrf.mxu0
  %v5069 = vadd.f32 0.0, %v5068
  %v5070 = vpop.f32.mrf.mxu0
  %5071 = vmatprep.mubr.f32.mxu0 0.0
  %5072 = vmatmul.mubr.f32.gmra.mxu0 %v4958
  %v5073 = vpop.f32.mrf.mxu0
  %v5074 = vadd.f32 0.0, %v5073
  %v5075 = vpop.f32.mrf.mxu0
  %5076 = vmatprep.mubr.f32.mxu0 0.0
  %5077 = vmatmul.mubr.f32.gmra.mxu0 %v4961
  %v5078 = vpop.f32.mrf.mxu0
  %v5079 = vadd.f32 0.0, %v5078
  %v5080 = vpop.f32.mrf.mxu0
  %5081 = vmatprep.mubr.f32.mxu0 0.0
  %5082 = vmatmul.mubr.f32.gmra.mxu0 %v4964
  %v5083 = vpop.f32.mrf.mxu0
  %v5084 = vadd.f32 0.0, %v5083
  %v5085 = vpop.f32.mrf.mxu0
  %5086 = vmatprep.mubr.f32.mxu0 0.0
  %5087 = vmatmul.mubr.f32.gmra.mxu0 %v4967
  %v5088 = vpop.f32.mrf.mxu0
  %v5089 = vadd.f32 0.0, %v5088
  %v5090 = vpop.f32.mrf.mxu0
  %5091 = vmatprep.mubr.f32.mxu0 0.0
  %5092 = vmatmul.mubr.f32.gmra.mxu0 %v4970
  %v5093 = vpop.f32.mrf.mxu0
  %v5094 = vadd.f32 0.0, %v5093
  %v5095 = vpop.f32.mrf.mxu0
  %5096 = vmatprep.mubr.f32.mxu0 0.0
  %5097 = vmatmul.mubr.f32.gmra.mxu0 %v4973
  %v5098 = vpop.f32.mrf.mxu0
  %v5099 = vadd.f32 0.0, %v5098
  %v5100 = vpop.f32.mrf.mxu0
  %5101 = vmatprep.mubr.f32.mxu0 0.0
  %5102 = vmatmul.mubr.f32.gmra.mxu0 %v4976
  %v5103 = vpop.f32.mrf.mxu0
  %v5104 = vadd.f32 0.0, %v5103
  %v5105 = vpop.f32.mrf.mxu0
  %5106 = vmatprep.mubr.f32.mxu0 0.0
  %5107 = vmatmul.mubr.f32.gmra.mxu0 %v4979
  %v5108 = vpop.f32.mrf.mxu0
  %v5109 = vadd.f32 0.0, %v5108
  %v5110 = vpop.f32.mrf.mxu0
  %5111 = vmatprep.mubr.f32.mxu0 0.0
  %5112 = vmatmul.mubr.f32.gmra.mxu0 %v4982
  %v5113 = vpop.f32.mrf.mxu0
  %v5114 = vadd.f32 0.0, %v5113
  %v5115 = vpop.f32.mrf.mxu0
  %5116 = vmatprep.mubr.f32.mxu0 0.0
  %5117 = vmatmul.mubr.f32.gmra.mxu0 %v4985
  %v5118 = vpop.f32.mrf.mxu0
  %v5119 = vadd.f32 0.0, %v5118
  %v5120 = vpop.f32.mrf.mxu0
  %5121 = vmatprep.mubr.f32.mxu0 0.0
  %5122 = vmatmul.mubr.f32.gmra.mxu0 %v4988
  %v5123 = vpop.f32.mrf.mxu0
  %v5124 = vadd.f32 0.0, %v5123
  %v5125 = vpop.f32.mrf.mxu0
  %5126 = vmatprep.mubr.f32.mxu0 0.0
  %5127 = vmatmul.mubr.f32.gmra.mxu0 %v4991
  %v5128 = vpop.f32.mrf.mxu0
  %v5129 = vadd.f32 0.0, %v5128
  %v5130 = vpop.f32.mrf.mxu0
  %5131 = vmatprep.mubr.f32.mxu0 0.0
  %5132 = vmatmul.mubr.f32.gmra.mxu0 %v4994
  %v5133 = vpop.f32.mrf.mxu0
  %v5134 = vadd.f32 0.0, %v5133
  %v5135 = vpop.f32.mrf.mxu0
  %5136 = vmatprep.mubr.f32.mxu0 0.0
  %5137 = vmatmul.mubr.f32.gmra.mxu0 %v4997
  %v5138 = vpop.f32.mrf.mxu0
  %v5139 = vadd.f32 0.0, %v5138
  %v5140 = vpop.f32.mrf.mxu0
  %5141 = vmatprep.mubr.f32.mxu0 0.0
  %5142 = vmatmul.mubr.f32.gmra.mxu0 %v5000
  %v5143 = vpop.f32.mrf.mxu0
  %v5144 = vadd.f32 0.0, %v5143
  %v5145 = vpop.f32.mrf.mxu0
  %5146 = vdwg.mxu0
  %v5147 = vadd.f32 %v4919, %v5069
  %v5148 = vadd.f32 %v4920, %v5074
  %v5149 = vadd.f32 %v4921, %v5079
  %v5150 = vadd.f32 %v4922, %v5084
  %v5151 = vadd.f32 %v4923, %v5089
  %v5152 = vadd.f32 %v4924, %v5094
  %v5153 = vadd.f32 %v4925, %v5099
  %v5154 = vadd.f32 %v4926, %v5104
  %v5155 = vadd.f32 %v4927, %v5109
  %v5156 = vadd.f32 %v4928, %v5114
  %v5157 = vadd.f32 %v4929, %v5119
  %v5158 = vadd.f32 %v4930, %v5124
  %v5159 = vadd.f32 %v4931, %v5129
  %v5160 = vadd.f32 %v4932, %v5134
  %v5161 = vadd.f32 %v4933, %v5139
  %v5162 = vadd.f32 %v4934, %v5144
  %v5163 = vld [vmem:[%s1971 + $0x9] sm:$0xff]
  %v5164 = vld [vmem:[%s1971 + $0x21] sm:$0xff]
  %v5165 = vld [vmem:[%s1971 + $0x39] sm:$0xff]
  %v5166 = vld [vmem:[%s1971 + $0x51] sm:$0xff]
  %v5167 = vld [vmem:[%s1971 + $0x69] sm:$0xff]
  %v5168 = vld [vmem:[%s1971 + $0x81] sm:$0xff]
  %v5169 = vld [vmem:[%s1971 + $0x99] sm:$0xff]
  %v5170 = vld [vmem:[%s1971 + $0xb1] sm:$0xff]
  %v5171 = vld [vmem:[%s1971 + $0xf9] sm:$0xff]
  %v5172 = vld [vmem:[%s1971 + $0x111] sm:$0xff]
  %v5173 = vld [vmem:[%s1971 + $0x129] sm:$0xff]
  %v5174 = vld [vmem:[%s1971 + $0x141] sm:$0xff]
  %v5175 = vld [vmem:[%s1971 + $0x159] sm:$0xff]
  %v5176 = vld [vmem:[%s1971 + $0x171] sm:$0xff]
  %v5177 = vld [vmem:[%s1971 + $0x189] sm:$0xff]
  %v5178 = vld [vmem:[%s1971 + $0x1a1] sm:$0xff]
  %s5179 = scalar_lea.vmem %s10, 128
  %v5180 = vld [vmem:[%s5179] sm:$0xff]
  %v5181 = vld [vmem:[%s5179 + $0x8] sm:$0xff]
  %v5183 = vsel %vm89, %v5163, 0
  %v5186 = vsel %vm89, %v5164, 0
  %v5189 = vsel %vm89, %v5165, 0
  %v5192 = vsel %vm89, %v5166, 0
  %v5195 = vsel %vm89, %v5167, 0
  %v5198 = vsel %vm89, %v5168, 0
  %v5201 = vsel %vm89, %v5169, 0
  %v5204 = vsel %vm89, %v5170, 0
  %v5207 = vsel %vm89, %v5171, 0
  %v5210 = vsel %vm89, %v5172, 0
  %v5213 = vsel %vm89, %v5173, 0
  %v5216 = vsel %vm89, %v5174, 0
  %v5219 = vsel %vm89, %v5175, 0
  %v5222 = vsel %vm89, %v5176, 0
  %v5225 = vsel %vm89, %v5177, 0
  %v5228 = vsel %vm89, %v5178, 0
  %5230 = vmatprep.subr.mxu0 0.0
  %5231 = vmatpush1.msra.mxu0 0.0
  %5232 = vmatprep.subr.mxu0 0.0
  %5233 = vmatpush1.msra.mxu0 0.0
  %5234 = vmatprep.subr.mxu0 0.0
  %5235 = vmatpush1.msra.mxu0 0.0
  %5236 = vmatprep.subr.mxu0 0.0
  %5237 = vmatpush1.msra.mxu0 0.0
  %5238 = vmatprep.subr.mxu0 0.0
  %5239 = vmatpush1.msra.mxu0 0.0
  %5240 = vmatprep.subr.mxu0 0.0
  %5241 = vmatpush1.msra.mxu0 0.0
  %5242 = vmatprep.subr.mxu0 0.0
  %5243 = vmatpush1.msra.mxu0 0.0
  %5244 = vmatprep.subr.mxu0 0.0
  %5245 = vmatpush1.msra.mxu0 0.0
  %5246 = vmatprep.subr.mxu0 0.0
  %5247 = vmatpush1.msra.mxu0 0.0
  %5248 = vmatprep.subr.mxu0 0.0
  %5249 = vmatpush1.msra.mxu0 0.0
  %5250 = vmatprep.subr.mxu0 0.0
  %5251 = vmatpush1.msra.mxu0 0.0
  %5252 = vmatprep.subr.mxu0 0.0
  %5253 = vmatpush1.msra.mxu0 0.0
  %5254 = vmatprep.subr.mxu0 0.0
  %5255 = vmatpush1.msra.mxu0 0.0
  %5256 = vmatprep.subr.mxu0 0.0
  %5257 = vmatpush1.msra.mxu0 0.0
  %5258 = vmatprep.subr.mxu0 0.0
  %5259 = vmatpush1.msra.mxu0 %v5181
  %5260 = vmatprep.subr.mxu0 0.0
  %5261 = vmatpush1.msra.mxu0 %v5180
  %5262 = vmatprep.subr.mxu0 0.0
  %5263 = vmatpush2.msra.mxu0 0.0
  %5264 = vmatprep.subr.mxu0 0.0
  %5265 = vmatpush2.msra.mxu0 0.0
  %5266 = vmatprep.subr.mxu0 0.0
  %5267 = vmatpush2.msra.mxu0 0.0
  %5268 = vmatprep.subr.mxu0 0.0
  %5269 = vmatpush2.msra.mxu0 0.0
  %5270 = vmatprep.subr.mxu0 0.0
  %5271 = vmatpush2.msra.mxu0 0.0
  %5272 = vmatprep.subr.mxu0 0.0
  %5273 = vmatpush2.msra.mxu0 0.0
  %5274 = vmatprep.subr.mxu0 0.0
  %5275 = vmatpush2.msra.mxu0 0.0
  %5276 = vmatprep.subr.mxu0 0.0
  %5277 = vmatpush2.msra.mxu0 0.0
  %5278 = vmatprep.subr.mxu0 0.0
  %5279 = vmatpush2.msra.mxu0 0.0
  %5280 = vmatprep.subr.mxu0 0.0
  %5281 = vmatpush2.msra.mxu0 0.0
  %5282 = vmatprep.subr.mxu0 0.0
  %5283 = vmatpush2.msra.mxu0 0.0
  %5284 = vmatprep.subr.mxu0 0.0
  %5285 = vmatpush2.msra.mxu0 0.0
  %5286 = vmatprep.subr.mxu0 0.0
  %5287 = vmatpush2.msra.mxu0 0.0
  %5288 = vmatprep.subr.mxu0 0.0
  %5289 = vmatpush2.msra.mxu0 0.0
  %5290 = vmatprep.subr.mxu0 0.0
  %5291 = vmatpush2.msra.mxu0 0.0
  %5292 = vmatprep.subr.mxu0 0.0
  %5293 = vmatpush2.msra.mxu0 0.0
  %5294 = vmatprep.mubr.f32.mxu0 0.0
  %5295 = vmatmul.mubr.f32.gmra.mxu0 %v5183
  %v5296 = vpop.f32.mrf.mxu0
  %v5297 = vadd.f32 0.0, %v5296
  %v5298 = vpop.f32.mrf.mxu0
  %5299 = vmatprep.mubr.f32.mxu0 0.0
  %5300 = vmatmul.mubr.f32.gmra.mxu0 %v5186
  %v5301 = vpop.f32.mrf.mxu0
  %v5302 = vadd.f32 0.0, %v5301
  %v5303 = vpop.f32.mrf.mxu0
  %5304 = vmatprep.mubr.f32.mxu0 0.0
  %5305 = vmatmul.mubr.f32.gmra.mxu0 %v5189
  %v5306 = vpop.f32.mrf.mxu0
  %v5307 = vadd.f32 0.0, %v5306
  %v5308 = vpop.f32.mrf.mxu0
  %5309 = vmatprep.mubr.f32.mxu0 0.0
  %5310 = vmatmul.mubr.f32.gmra.mxu0 %v5192
  %v5311 = vpop.f32.mrf.mxu0
  %v5312 = vadd.f32 0.0, %v5311
  %v5313 = vpop.f32.mrf.mxu0
  %5314 = vmatprep.mubr.f32.mxu0 0.0
  %5315 = vmatmul.mubr.f32.gmra.mxu0 %v5195
  %v5316 = vpop.f32.mrf.mxu0
  %v5317 = vadd.f32 0.0, %v5316
  %v5318 = vpop.f32.mrf.mxu0
  %5319 = vmatprep.mubr.f32.mxu0 0.0
  %5320 = vmatmul.mubr.f32.gmra.mxu0 %v5198
  %v5321 = vpop.f32.mrf.mxu0
  %v5322 = vadd.f32 0.0, %v5321
  %v5323 = vpop.f32.mrf.mxu0
  %5324 = vmatprep.mubr.f32.mxu0 0.0
  %5325 = vmatmul.mubr.f32.gmra.mxu0 %v5201
  %v5326 = vpop.f32.mrf.mxu0
  %v5327 = vadd.f32 0.0, %v5326
  %v5328 = vpop.f32.mrf.mxu0
  %5329 = vmatprep.mubr.f32.mxu0 0.0
  %5330 = vmatmul.mubr.f32.gmra.mxu0 %v5204
  %v5331 = vpop.f32.mrf.mxu0
  %v5332 = vadd.f32 0.0, %v5331
  %v5333 = vpop.f32.mrf.mxu0
  %5334 = vmatprep.mubr.f32.mxu0 0.0
  %5335 = vmatmul.mubr.f32.gmra.mxu0 %v5207
  %v5336 = vpop.f32.mrf.mxu0
  %v5337 = vadd.f32 0.0, %v5336
  %v5338 = vpop.f32.mrf.mxu0
  %5339 = vmatprep.mubr.f32.mxu0 0.0
  %5340 = vmatmul.mubr.f32.gmra.mxu0 %v5210
  %v5341 = vpop.f32.mrf.mxu0
  %v5342 = vadd.f32 0.0, %v5341
  %v5343 = vpop.f32.mrf.mxu0
  %5344 = vmatprep.mubr.f32.mxu0 0.0
  %5345 = vmatmul.mubr.f32.gmra.mxu0 %v5213
  %v5346 = vpop.f32.mrf.mxu0
  %v5347 = vadd.f32 0.0, %v5346
  %v5348 = vpop.f32.mrf.mxu0
  %5349 = vmatprep.mubr.f32.mxu0 0.0
  %5350 = vmatmul.mubr.f32.gmra.mxu0 %v5216
  %v5351 = vpop.f32.mrf.mxu0
  %v5352 = vadd.f32 0.0, %v5351
  %v5353 = vpop.f32.mrf.mxu0
  %5354 = vmatprep.mubr.f32.mxu0 0.0
  %5355 = vmatmul.mubr.f32.gmra.mxu0 %v5219
  %v5356 = vpop.f32.mrf.mxu0
  %v5357 = vadd.f32 0.0, %v5356
  %v5358 = vpop.f32.mrf.mxu0
  %5359 = vmatprep.mubr.f32.mxu0 0.0
  %5360 = vmatmul.mubr.f32.gmra.mxu0 %v5222
  %v5361 = vpop.f32.mrf.mxu0
  %v5362 = vadd.f32 0.0, %v5361
  %v5363 = vpop.f32.mrf.mxu0
  %5364 = vmatprep.mubr.f32.mxu0 0.0
  %5365 = vmatmul.mubr.f32.gmra.mxu0 %v5225
  %v5366 = vpop.f32.mrf.mxu0
  %v5367 = vadd.f32 0.0, %v5366
  %v5368 = vpop.f32.mrf.mxu0
  %5369 = vmatprep.mubr.f32.mxu0 0.0
  %5370 = vmatmul.mubr.f32.gmra.mxu0 %v5228
  %v5371 = vpop.f32.mrf.mxu0
  %v5372 = vadd.f32 0.0, %v5371
  %v5373 = vpop.f32.mrf.mxu0
  %5374 = vdwg.mxu0
  %v5375 = vadd.f32 %v5147, %v5297
  %v5376 = vadd.f32 %v5148, %v5302
  %v5377 = vadd.f32 %v5149, %v5307
  %v5378 = vadd.f32 %v5150, %v5312
  %v5379 = vadd.f32 %v5151, %v5317
  %v5380 = vadd.f32 %v5152, %v5322
  %v5381 = vadd.f32 %v5153, %v5327
  %v5382 = vadd.f32 %v5154, %v5332
  %v5383 = vadd.f32 %v5155, %v5337
  %v5384 = vadd.f32 %v5156, %v5342
  %v5385 = vadd.f32 %v5157, %v5347
  %v5386 = vadd.f32 %v5158, %v5352
  %v5387 = vadd.f32 %v5159, %v5357
  %v5388 = vadd.f32 %v5160, %v5362
  %v5389 = vadd.f32 %v5161, %v5367
  %v5390 = vadd.f32 %v5162, %v5372
  %v5391 = vld [vmem:[%s11] sm:$0x1]
  %v5392 = vld [vmem:[%s12] sm:$0x1]
  %v5393 = vsel %vm2658, %v5375, 0.0
  %v5394 = vsel %vm2658, %v5376, 0.0
  %v5395 = vadd.f32 %v5393, %v5394
  %v5396 = vsel %vm2658, %v5377, 0.0
  %v5397 = vadd.f32 %v5395, %v5396
  %v5398 = vsel %vm2658, %v5378, 0.0
  %v5399 = vadd.f32 %v5397, %v5398
  %v5400 = vsel %vm2658, %v5379, 0.0
  %v5401 = vadd.f32 %v5399, %v5400
  %v5402 = vsel %vm2658, %v5380, 0.0
  %v5403 = vadd.f32 %v5401, %v5402
  %v5404 = vsel %vm2658, %v5381, 0.0
  %v5405 = vadd.f32 %v5403, %v5404
  %v5406 = vsel %vm2658, %v5382, 0.0
  %v5407 = vadd.f32 %v5405, %v5406
  %v5408 = vsel %vm2658, %v5383, 0.0
  %v5409 = vadd.f32 %v5407, %v5408
  %v5410 = vsel %vm2658, %v5384, 0.0
  %v5411 = vadd.f32 %v5409, %v5410
  %v5412 = vsel %vm2658, %v5385, 0.0
  %v5413 = vadd.f32 %v5411, %v5412
  %v5414 = vsel %vm2658, %v5386, 0.0
  %v5415 = vadd.f32 %v5413, %v5414
  %v5416 = vsel %vm2658, %v5387, 0.0
  %v5417 = vadd.f32 %v5415, %v5416
  %v5418 = vsel %vm2658, %v5388, 0.0
  %v5419 = vadd.f32 %v5417, %v5418
  %v5420 = vsel %vm2658, %v5389, 0.0
  %v5421 = vadd.f32 %v5419, %v5420
  %v5422 = vsel %vm2658, %v5390, 0.0
  %v5423 = vadd.f32 %v5421, %v5422
  %v5424 = vrot.slane %v5423, 4
  %v5425 = vadd.f32 %v5423, %v5424
  %v5426 = vrot.slane %v5425, 2
  %v5427 = vadd.f32 %v5425, %v5426
  %v5428 = vrot.slane %v5427, 1
  %v5429 = vadd.f32 %v5427, %v5428
  %v5430 = vmul.f32 %v5429, 0.0078125
  %v5431 = vmul.f32 %v5375, %v5375
  %v5432 = vmul.f32 %v5376, %v5376
  %v5433 = vmul.f32 %v5377, %v5377
  %v5434 = vmul.f32 %v5378, %v5378
  %v5435 = vmul.f32 %v5379, %v5379
  %v5436 = vmul.f32 %v5380, %v5380
  %v5437 = vmul.f32 %v5381, %v5381
  %v5438 = vmul.f32 %v5382, %v5382
  %v5439 = vmul.f32 %v5383, %v5383
  %v5440 = vmul.f32 %v5384, %v5384
  %v5441 = vmul.f32 %v5385, %v5385
  %v5442 = vmul.f32 %v5386, %v5386
  %v5443 = vmul.f32 %v5387, %v5387
  %v5444 = vmul.f32 %v5388, %v5388
  %v5445 = vmul.f32 %v5389, %v5389
  %v5446 = vmul.f32 %v5390, %v5390
  %v5447 = vsel %vm2658, %v5431, 0.0
  %v5448 = vsel %vm2658, %v5432, 0.0
  %v5449 = vadd.f32 %v5447, %v5448
  %v5450 = vsel %vm2658, %v5433, 0.0
  %v5451 = vadd.f32 %v5449, %v5450
  %v5452 = vsel %vm2658, %v5434, 0.0
  %v5453 = vadd.f32 %v5451, %v5452
  %v5454 = vsel %vm2658, %v5435, 0.0
  %v5455 = vadd.f32 %v5453, %v5454
  %v5456 = vsel %vm2658, %v5436, 0.0
  %v5457 = vadd.f32 %v5455, %v5456
  %v5458 = vsel %vm2658, %v5437, 0.0
  %v5459 = vadd.f32 %v5457, %v5458
  %v5460 = vsel %vm2658, %v5438, 0.0
  %v5461 = vadd.f32 %v5459, %v5460
  %v5462 = vsel %vm2658, %v5439, 0.0
  %v5463 = vadd.f32 %v5461, %v5462
  %v5464 = vsel %vm2658, %v5440, 0.0
  %v5465 = vadd.f32 %v5463, %v5464
  %v5466 = vsel %vm2658, %v5441, 0.0
  %v5467 = vadd.f32 %v5465, %v5466
  %v5468 = vsel %vm2658, %v5442, 0.0
  %v5469 = vadd.f32 %v5467, %v5468
  %v5470 = vsel %vm2658, %v5443, 0.0
  %v5471 = vadd.f32 %v5469, %v5470
  %v5472 = vsel %vm2658, %v5444, 0.0
  %v5473 = vadd.f32 %v5471, %v5472
  %v5474 = vsel %vm2658, %v5445, 0.0
  %v5475 = vadd.f32 %v5473, %v5474
  %v5476 = vsel %vm2658, %v5446, 0.0
  %v5477 = vadd.f32 %v5475, %v5476
  %v5478 = vrot.slane %v5477, 4
  %v5479 = vadd.f32 %v5477, %v5478
  %v5480 = vrot.slane %v5479, 2
  %v5481 = vadd.f32 %v5479, %v5480
  %v5482 = vrot.slane %v5481, 1
  %v5483 = vadd.f32 %v5481, %v5482
  %v5484 = vmul.f32 %v5483, 0.0078125
  %v5485 = vmul.f32 %v5430, %v5430
  %v5486 = vsub.f32 %v5484, %v5485
  %v5487 = vmax.f32 %v5486, 0.0
  %v5488 = vadd.f32 %v5487, 1e-05
  %v5489 = vrsqrt.pop %v5488
  %v5490 = vmul.f32 %v5489, %v5391
  %v5491 = vlaneseq
  %v5492 = vshrl.u32 %v5491, 7
  %v5493 = vsub.s32 0, %v5492
  %v5494 = vrot.slane %v5490, %v5493
  %v5495 = vmul.f32 %v5375, %v5494
  %v5496 = vmul.f32 %v5376, %v5494
  %v5497 = vmul.f32 %v5377, %v5494
  %v5498 = vmul.f32 %v5378, %v5494
  %v5499 = vmul.f32 %v5379, %v5494
  %v5500 = vmul.f32 %v5380, %v5494
  %v5501 = vmul.f32 %v5381, %v5494
  %v5502 = vmul.f32 %v5382, %v5494
  %v5503 = vmul.f32 %v5383, %v5494
  %v5504 = vmul.f32 %v5384, %v5494
  %v5505 = vmul.f32 %v5385, %v5494
  %v5506 = vmul.f32 %v5386, %v5494
  %v5507 = vmul.f32 %v5387, %v5494
  %v5508 = vmul.f32 %v5388, %v5494
  %v5509 = vmul.f32 %v5389, %v5494
  %v5510 = vmul.f32 %v5390, %v5494
  %v5511 = vmul.f32 %v5430, %v5490
  %v5512 = vsub.f32 %v5392, %v5511
  %v5514 = vlaneseq
  %v5515 = vshrl.u32 %v5514, 7
  %v5516 = vsub.s32 0, %v5515
  %v5517 = vrot.slane %v5512, %v5516
  %v5519 = vadd.f32 %v5495, %v5517
  %v5520 = vadd.f32 %v5496, %v5517
  %v5521 = vadd.f32 %v5497, %v5517
  %v5522 = vadd.f32 %v5498, %v5517
  %v5523 = vadd.f32 %v5499, %v5517
  %v5524 = vadd.f32 %v5500, %v5517
  %v5525 = vadd.f32 %v5501, %v5517
  %v5526 = vadd.f32 %v5502, %v5517
  %v5527 = vadd.f32 %v5503, %v5517
  %v5528 = vadd.f32 %v5504, %v5517
  %v5529 = vadd.f32 %v5505, %v5517
  %v5530 = vadd.f32 %v5506, %v5517
  %v5531 = vadd.f32 %v5507, %v5517
  %v5532 = vadd.f32 %v5508, %v5517
  %v5533 = vadd.f32 %v5509, %v5517
  %v5534 = vadd.f32 %v5510, %v5517
  %5551 = vrot.lane.b32.xlu0 %v5519, 28
  %v5552 = vpop.permute.xlu0 %5551
  %5553 = vrot.lane.b32.xlu0 %v5520, 28
  %v5554 = vpop.permute.xlu0 %5553
  %5555 = vrot.lane.b32.xlu0 %v5521, 28
  %v5556 = vpop.permute.xlu0 %5555
  %5557 = vrot.lane.b32.xlu0 %v5522, 28
  %v5558 = vpop.permute.xlu0 %5557
  %5559 = vrot.lane.b32.xlu0 %v5523, 28
  %v5560 = vpop.permute.xlu0 %5559
  %5561 = vrot.lane.b32.xlu0 %v5524, 28
  %v5562 = vpop.permute.xlu0 %5561
  %5563 = vrot.lane.b32.xlu0 %v5525, 28
  %v5564 = vpop.permute.xlu0 %5563
  %5565 = vrot.lane.b32.xlu0 %v5526, 28
  %v5566 = vpop.permute.xlu0 %5565
  %5567 = vrot.lane.b32.xlu0 %v5527, 28
  %v5568 = vpop.permute.xlu0 %5567
  %5569 = vrot.lane.b32.xlu0 %v5528, 28
  %v5570 = vpop.permute.xlu0 %5569
  %5571 = vrot.lane.b32.xlu0 %v5529, 28
  %v5572 = vpop.permute.xlu0 %5571
  %5573 = vrot.lane.b32.xlu0 %v5530, 28
  %v5574 = vpop.permute.xlu0 %5573
  %5575 = vrot.lane.b32.xlu0 %v5531, 28
  %v5576 = vpop.permute.xlu0 %5575
  %5577 = vrot.lane.b32.xlu0 %v5532, 28
  %v5578 = vpop.permute.xlu0 %5577
  %5579 = vrot.lane.b32.xlu0 %v5533, 28
  %v5580 = vpop.permute.xlu0 %5579
  %5581 = vrot.lane.b32.xlu0 %v5534, 28
  %v5582 = vpop.permute.xlu0 %5581
  %vm5599 = vcmask 261344
  %5600 = vst.msk [vmem:[#allocation2] sm:$0xff] %vm5599, %v5552
  %5601 = vst.msk [vmem:[#allocation2 + $0x8] sm:$0xff] %vm5599, %v5554
  %5602 = vst.msk [vmem:[#allocation2 + $0x10] sm:$0xff] %vm5599, %v5556
  %5603 = vst.msk [vmem:[#allocation2 + $0x18] sm:$0xff] %vm5599, %v5558
  %5604 = vst.msk [vmem:[#allocation2 + $0x20] sm:$0xff] %vm5599, %v5560
  %5605 = vst.msk [vmem:[#allocation2 + $0x28] sm:$0xff] %vm5599, %v5562
  %5606 = vst.msk [vmem:[#allocation2 + $0x30] sm:$0xff] %vm5599, %v5564
  %5607 = vst.msk [vmem:[#allocation2 + $0x38] sm:$0xff] %vm5599, %v5566
  %5608 = vst.msk [vmem:[#allocation2 + $0x40] sm:$0xff] %vm5599, %v5568
  %5609 = vst.msk [vmem:[#allocation2 + $0x48] sm:$0xff] %vm5599, %v5570
  %5610 = vst.msk [vmem:[#allocation2 + $0x50] sm:$0xff] %vm5599, %v5572
  %5611 = vst.msk [vmem:[#allocation2 + $0x58] sm:$0xff] %vm5599, %v5574
  %5612 = vst.msk [vmem:[#allocation2 + $0x60] sm:$0xff] %vm5599, %v5576
  %5613 = vst.msk [vmem:[#allocation2 + $0x68] sm:$0xff] %vm5599, %v5578
  %5614 = vst.msk [vmem:[#allocation2 + $0x70] sm:$0xff] %vm5599, %v5580
  %5615 = vst.msk [vmem:[#allocation2 + $0x78] sm:$0xff] %vm5599, %v5582
  %v5616 = vld [vmem:[#allocation2] sm:$0xff]
  %v5617 = vld [vmem:[#allocation2 + $0x8] sm:$0xff]
  %v5618 = vld [vmem:[#allocation2 + $0x10] sm:$0xff]
  %v5619 = vld [vmem:[#allocation2 + $0x18] sm:$0xff]
  %v5620 = vld [vmem:[#allocation2 + $0x20] sm:$0xff]
  %v5621 = vld [vmem:[#allocation2 + $0x28] sm:$0xff]
  %v5622 = vld [vmem:[#allocation2 + $0x30] sm:$0xff]
  %v5623 = vld [vmem:[#allocation2 + $0x38] sm:$0xff]
  %v5624 = vld [vmem:[#allocation2 + $0x40] sm:$0xff]
  %v5625 = vld [vmem:[#allocation2 + $0x48] sm:$0xff]
  %v5626 = vld [vmem:[#allocation2 + $0x50] sm:$0xff]
  %v5627 = vld [vmem:[#allocation2 + $0x58] sm:$0xff]
  %v5628 = vld [vmem:[#allocation2 + $0x60] sm:$0xff]
  %v5629 = vld [vmem:[#allocation2 + $0x68] sm:$0xff]
  %v5630 = vld [vmem:[#allocation2 + $0x70] sm:$0xff]
  %v5631 = vld [vmem:[#allocation2 + $0x78] sm:$0xff]
  %v5632 = vld [vmem:[%s13] sm:$0xff]
  %v5633 = vld [vmem:[%s13 + $0x8] sm:$0xff]
  %v5634 = vld [vmem:[%s13 + $0x10] sm:$0xff]
  %v5635 = vld [vmem:[%s13 + $0x18] sm:$0xff]
  %vm5636 = vcmask 261120
  %v5638 = vsel %vm5636, %v5616, 0
  %v5641 = vsel %vm5636, %v5617, 0
  %v5644 = vsel %vm5636, %v5618, 0
  %v5647 = vsel %vm5636, %v5619, 0
  %v5650 = vsel %vm5636, %v5620, 0
  %v5653 = vsel %vm5636, %v5621, 0
  %v5656 = vsel %vm5636, %v5622, 0
  %v5659 = vsel %vm5636, %v5623, 0
  %v5662 = vsel %vm5636, %v5624, 0
  %v5665 = vsel %vm5636, %v5625, 0
  %v5668 = vsel %vm5636, %v5626, 0
  %v5671 = vsel %vm5636, %v5627, 0
  %v5674 = vsel %vm5636, %v5628, 0
  %v5677 = vsel %vm5636, %v5629, 0
  %v5680 = vsel %vm5636, %v5630, 0
  %v5683 = vsel %vm5636, %v5631, 0
  %5685 = vmatprep.subr.mxu0 0.0
  %5686 = vmatpush1.msra.mxu0 0.0
  %5687 = vmatprep.subr.mxu0 0.0
  %5688 = vmatpush1.msra.mxu0 0.0
  %5689 = vmatprep.subr.mxu0 0.0
  %5690 = vmatpush1.msra.mxu0 0.0
  %5691 = vmatprep.subr.mxu0 0.0
  %5692 = vmatpush1.msra.mxu0 0.0
  %5693 = vmatprep.subr.mxu0 0.0
  %5694 = vmatpush1.msra.mxu0 0.0
  %5695 = vmatprep.subr.mxu0 0.0
  %5696 = vmatpush1.msra.mxu0 0.0
  %5697 = vmatprep.subr.mxu0 0.0
  %5698 = vmatpush1.msra.mxu0 0.0
  %5699 = vmatprep.subr.mxu0 0.0
  %5700 = vmatpush1.msra.mxu0 0.0
  %5701 = vmatprep.subr.mxu0 0.0
  %5702 = vmatpush1.msra.mxu0 0.0
  %5703 = vmatprep.subr.mxu0 0.0
  %5704 = vmatpush1.msra.mxu0 0.0
  %5705 = vmatprep.subr.mxu0 0.0
  %5706 = vmatpush1.msra.mxu0 0.0
  %5707 = vmatprep.subr.mxu0 0.0
  %5708 = vmatpush1.msra.mxu0 0.0
  %5709 = vmatprep.subr.mxu0 0.0
  %5710 = vmatpush1.msra.mxu0 %v5635
  %5711 = vmatprep.subr.mxu0 0.0
  %5712 = vmatpush1.msra.mxu0 %v5634
  %5713 = vmatprep.subr.mxu0 0.0
  %5714 = vmatpush1.msra.mxu0 %v5633
  %5715 = vmatprep.subr.mxu0 0.0
  %5716 = vmatpush1.msra.mxu0 %v5632
  %5717 = vmatprep.subr.mxu0 0.0
  %5718 = vmatpush2.msra.mxu0 0.0
  %5719 = vmatprep.subr.mxu0 0.0
  %5720 = vmatpush2.msra.mxu0 0.0
  %5721 = vmatprep.subr.mxu0 0.0
  %5722 = vmatpush2.msra.mxu0 0.0
  %5723 = vmatprep.subr.mxu0 0.0
  %5724 = vmatpush2.msra.mxu0 0.0
  %5725 = vmatprep.subr.mxu0 0.0
  %5726 = vmatpush2.msra.mxu0 0.0
  %5727 = vmatprep.subr.mxu0 0.0
  %5728 = vmatpush2.msra.mxu0 0.0
  %5729 = vmatprep.subr.mxu0 0.0
  %5730 = vmatpush2.msra.mxu0 0.0
  %5731 = vmatprep.subr.mxu0 0.0
  %5732 = vmatpush2.msra.mxu0 0.0
  %5733 = vmatprep.subr.mxu0 0.0
  %5734 = vmatpush2.msra.mxu0 0.0
  %5735 = vmatprep.subr.mxu0 0.0
  %5736 = vmatpush2.msra.mxu0 0.0
  %5737 = vmatprep.subr.mxu0 0.0
  %5738 = vmatpush2.msra.mxu0 0.0
  %5739 = vmatprep.subr.mxu0 0.0
  %5740 = vmatpush2.msra.mxu0 0.0
  %5741 = vmatprep.subr.mxu0 0.0
  %5742 = vmatpush2.msra.mxu0 0.0
  %5743 = vmatprep.subr.mxu0 0.0
  %5744 = vmatpush2.msra.mxu0 0.0
  %5745 = vmatprep.subr.mxu0 0.0
  %5746 = vmatpush2.msra.mxu0 0.0
  %5747 = vmatprep.subr.mxu0 0.0
  %5748 = vmatpush2.msra.mxu0 0.0
  %5749 = vmatprep.mubr.f32.mxu0 0.0
  %5750 = vmatmul.mubr.f32.gmra.mxu0 %v5638
  %v5751 = vpop.f32.mrf.mxu0
  %v5752 = vadd.f32 0.0, %v5751
  %v5753 = vpop.f32.mrf.mxu0
  %5754 = vmatprep.mubr.f32.mxu0 0.0
  %5755 = vmatmul.mubr.f32.gmra.mxu0 %v5641
  %v5756 = vpop.f32.mrf.mxu0
  %v5757 = vadd.f32 0.0, %v5756
  %v5758 = vpop.f32.mrf.mxu0
  %5759 = vmatprep.mubr.f32.mxu0 0.0
  %5760 = vmatmul.mubr.f32.gmra.mxu0 %v5644
  %v5761 = vpop.f32.mrf.mxu0
  %v5762 = vadd.f32 0.0, %v5761
  %v5763 = vpop.f32.mrf.mxu0
  %5764 = vmatprep.mubr.f32.mxu0 0.0
  %5765 = vmatmul.mubr.f32.gmra.mxu0 %v5647
  %v5766 = vpop.f32.mrf.mxu0
  %v5767 = vadd.f32 0.0, %v5766
  %v5768 = vpop.f32.mrf.mxu0
  %5769 = vmatprep.mubr.f32.mxu0 0.0
  %5770 = vmatmul.mubr.f32.gmra.mxu0 %v5650
  %v5771 = vpop.f32.mrf.mxu0
  %v5772 = vadd.f32 0.0, %v5771
  %v5773 = vpop.f32.mrf.mxu0
  %5774 = vmatprep.mubr.f32.mxu0 0.0
  %5775 = vmatmul.mubr.f32.gmra.mxu0 %v5653
  %v5776 = vpop.f32.mrf.mxu0
  %v5777 = vadd.f32 0.0, %v5776
  %v5778 = vpop.f32.mrf.mxu0
  %5779 = vmatprep.mubr.f32.mxu0 0.0
  %5780 = vmatmul.mubr.f32.gmra.mxu0 %v5656
  %v5781 = vpop.f32.mrf.mxu0
  %v5782 = vadd.f32 0.0, %v5781
  %v5783 = vpop.f32.mrf.mxu0
  %5784 = vmatprep.mubr.f32.mxu0 0.0
  %5785 = vmatmul.mubr.f32.gmra.mxu0 %v5659
  %v5786 = vpop.f32.mrf.mxu0
  %v5787 = vadd.f32 0.0, %v5786
  %v5788 = vpop.f32.mrf.mxu0
  %5789 = vmatprep.mubr.f32.mxu0 0.0
  %5790 = vmatmul.mubr.f32.gmra.mxu0 %v5662
  %v5791 = vpop.f32.mrf.mxu0
  %v5792 = vadd.f32 0.0, %v5791
  %v5793 = vpop.f32.mrf.mxu0
  %5794 = vmatprep.mubr.f32.mxu0 0.0
  %5795 = vmatmul.mubr.f32.gmra.mxu0 %v5665
  %v5796 = vpop.f32.mrf.mxu0
  %v5797 = vadd.f32 0.0, %v5796
  %v5798 = vpop.f32.mrf.mxu0
  %5799 = vmatprep.mubr.f32.mxu0 0.0
  %5800 = vmatmul.mubr.f32.gmra.mxu0 %v5668
  %v5801 = vpop.f32.mrf.mxu0
  %v5802 = vadd.f32 0.0, %v5801
  %v5803 = vpop.f32.mrf.mxu0
  %5804 = vmatprep.mubr.f32.mxu0 0.0
  %5805 = vmatmul.mubr.f32.gmra.mxu0 %v5671
  %v5806 = vpop.f32.mrf.mxu0
  %v5807 = vadd.f32 0.0, %v5806
  %v5808 = vpop.f32.mrf.mxu0
  %5809 = vmatprep.mubr.f32.mxu0 0.0
  %5810 = vmatmul.mubr.f32.gmra.mxu0 %v5674
  %v5811 = vpop.f32.mrf.mxu0
  %v5812 = vadd.f32 0.0, %v5811
  %v5813 = vpop.f32.mrf.mxu0
  %5814 = vmatprep.mubr.f32.mxu0 0.0
  %5815 = vmatmul.mubr.f32.gmra.mxu0 %v5677
  %v5816 = vpop.f32.mrf.mxu0
  %v5817 = vadd.f32 0.0, %v5816
  %v5818 = vpop.f32.mrf.mxu0
  %5819 = vmatprep.mubr.f32.mxu0 0.0
  %5820 = vmatmul.mubr.f32.gmra.mxu0 %v5680
  %v5821 = vpop.f32.mrf.mxu0
  %v5822 = vadd.f32 0.0, %v5821
  %v5823 = vpop.f32.mrf.mxu0
  %5824 = vmatprep.mubr.f32.mxu0 0.0
  %5825 = vmatmul.mubr.f32.gmra.mxu0 %v5683
  %v5826 = vpop.f32.mrf.mxu0
  %v5827 = vadd.f32 0.0, %v5826
  %v5828 = vpop.f32.mrf.mxu0
  %5829 = vdwg.mxu0
  %vm5830 = vcmask 523264
  %v5831 = vsel %vm5830, %v5752, 0.0
  %v5832 = vsel %vm5830, %v5757, 0.0
  %v5833 = vadd.f32 %v5831, %v5832
  %v5834 = vsel %vm5830, %v5762, 0.0
  %v5835 = vadd.f32 %v5833, %v5834
  %v5836 = vsel %vm5830, %v5767, 0.0
  %v5837 = vadd.f32 %v5835, %v5836
  %v5838 = vsel %vm5830, %v5772, 0.0
  %v5839 = vadd.f32 %v5837, %v5838
  %v5840 = vsel %vm5830, %v5777, 0.0
  %v5841 = vadd.f32 %v5839, %v5840
  %v5842 = vsel %vm5830, %v5782, 0.0
  %v5843 = vadd.f32 %v5841, %v5842
  %v5844 = vsel %vm5830, %v5787, 0.0
  %v5845 = vadd.f32 %v5843, %v5844
  %v5846 = vsel %vm5830, %v5792, 0.0
  %v5847 = vadd.f32 %v5845, %v5846
  %v5848 = vsel %vm5830, %v5797, 0.0
  %v5849 = vadd.f32 %v5847, %v5848
  %v5850 = vsel %vm5830, %v5802, 0.0
  %v5851 = vadd.f32 %v5849, %v5850
  %v5852 = vsel %vm5830, %v5807, 0.0
  %v5853 = vadd.f32 %v5851, %v5852
  %v5854 = vsel %vm5830, %v5812, 0.0
  %v5855 = vadd.f32 %v5853, %v5854
  %v5856 = vsel %vm5830, %v5817, 0.0
  %v5857 = vadd.f32 %v5855, %v5856
  %v5858 = vsel %vm5830, %v5822, 0.0
  %v5859 = vadd.f32 %v5857, %v5858
  %v5860 = vsel %vm5830, %v5827, 0.0
  %v5861 = vadd.f32 %v5859, %v5860
  %v5862 = vrot.slane %v5861, 4
  %v5863 = vadd.f32 %v5861, %v5862
  %v5864 = vrot.slane %v5863, 2
  %v5865 = vadd.f32 %v5863, %v5864
  %v5866 = vrot.slane %v5865, 1
  %v5867 = vadd.f32 %v5865, %v5866
  %v5868 = vmul.f32 %v5752, %v5752
  %v5869 = vmul.f32 %v5757, %v5757
  %v5870 = vmul.f32 %v5762, %v5762
  %v5871 = vmul.f32 %v5767, %v5767
  %v5872 = vmul.f32 %v5772, %v5772
  %v5873 = vmul.f32 %v5777, %v5777
  %v5874 = vmul.f32 %v5782, %v5782
  %v5875 = vmul.f32 %v5787, %v5787
  %v5876 = vmul.f32 %v5792, %v5792
  %v5877 = vmul.f32 %v5797, %v5797
  %v5878 = vmul.f32 %v5802, %v5802
  %v5879 = vmul.f32 %v5807, %v5807
  %v5880 = vmul.f32 %v5812, %v5812
  %v5881 = vmul.f32 %v5817, %v5817
  %v5882 = vmul.f32 %v5822, %v5822
  %v5883 = vmul.f32 %v5827, %v5827
  %v5884 = vsel %vm5830, %v5868, 0.0
  %v5885 = vsel %vm5830, %v5869, 0.0
  %v5886 = vadd.f32 %v5884, %v5885
  %v5887 = vsel %vm5830, %v5870, 0.0
  %v5888 = vadd.f32 %v5886, %v5887
  %v5889 = vsel %vm5830, %v5871, 0.0
  %v5890 = vadd.f32 %v5888, %v5889
  %v5891 = vsel %vm5830, %v5872, 0.0
  %v5892 = vadd.f32 %v5890, %v5891
  %v5893 = vsel %vm5830, %v5873, 0.0
  %v5894 = vadd.f32 %v5892, %v5893
  %v5895 = vsel %vm5830, %v5874, 0.0
  %v5896 = vadd.f32 %v5894, %v5895
  %v5897 = vsel %vm5830, %v5875, 0.0
  %v5898 = vadd.f32 %v5896, %v5897
  %v5899 = vsel %vm5830, %v5876, 0.0
  %v5900 = vadd.f32 %v5898, %v5899
  %v5901 = vsel %vm5830, %v5877, 0.0
  %v5902 = vadd.f32 %v5900, %v5901
  %v5903 = vsel %vm5830, %v5878, 0.0
  %v5904 = vadd.f32 %v5902, %v5903
  %v5905 = vsel %vm5830, %v5879, 0.0
  %v5906 = vadd.f32 %v5904, %v5905
  %v5907 = vsel %vm5830, %v5880, 0.0
  %v5908 = vadd.f32 %v5906, %v5907
  %v5909 = vsel %vm5830, %v5881, 0.0
  %v5910 = vadd.f32 %v5908, %v5909
  %v5911 = vsel %vm5830, %v5882, 0.0
  %v5912 = vadd.f32 %v5910, %v5911
  %v5913 = vsel %vm5830, %v5883, 0.0
  %v5914 = vadd.f32 %v5912, %v5913
  %v5915 = vrot.slane %v5914, 4
  %v5916 = vadd.f32 %v5914, %v5915
  %v5917 = vrot.slane %v5916, 2
  %v5918 = vadd.f32 %v5916, %v5917
  %v5919 = vrot.slane %v5918, 1
  %v5920 = vadd.f32 %v5918, %v5919
  %v5921 = vld [vmem:[%s16] sm:$0xff]
  %v5922 = vld [vmem:[%s16 + $0x8] sm:$0xff]
  %v5923 = vld [vmem:[%s16 + $0x10] sm:$0xff]
  %v5924 = vld [vmem:[%s16 + $0x18] sm:$0xff]
  %v5925 = vld [vmem:[%s16 + $0x20] sm:$0xff]
  %v5926 = vld [vmem:[%s16 + $0x28] sm:$0xff]
  %v5927 = vld [vmem:[%s16 + $0x30] sm:$0xff]
  %v5928 = vld [vmem:[%s16 + $0x38] sm:$0xff]
  %v5930 = vsel %vm5830, %v5867, 0
  %5932 = vmatprep.subr.mxu0 0.0
  %5933 = vmatpush1.msra.mxu0 0.0
  %5934 = vmatprep.subr.mxu0 0.0
  %5935 = vmatpush1.msra.mxu0 0.0
  %5936 = vmatprep.subr.mxu0 0.0
  %5937 = vmatpush1.msra.mxu0 0.0
  %5938 = vmatprep.subr.mxu0 0.0
  %5939 = vmatpush1.msra.mxu0 0.0
  %5940 = vmatprep.subr.mxu0 0.0
  %5941 = vmatpush1.msra.mxu0 0.0
  %5942 = vmatprep.subr.mxu0 0.0
  %5943 = vmatpush1.msra.mxu0 0.0
  %5944 = vmatprep.subr.mxu0 0.0
  %5945 = vmatpush1.msra.mxu0 0.0
  %5946 = vmatprep.subr.mxu0 0.0
  %5947 = vmatpush1.msra.mxu0 0.0
  %5948 = vmatprep.subr.mxu0 0.0
  %5949 = vmatpush1.msra.mxu0 %v5928
  %5950 = vmatprep.subr.mxu0 0.0
  %5951 = vmatpush1.msra.mxu0 %v5927
  %5952 = vmatprep.subr.mxu0 0.0
  %5953 = vmatpush1.msra.mxu0 %v5926
  %5954 = vmatprep.subr.mxu0 0.0
  %5955 = vmatpush1.msra.mxu0 %v5925
  %5956 = vmatprep.subr.mxu0 0.0
  %5957 = vmatpush1.msra.mxu0 %v5924
  %5958 = vmatprep.subr.mxu0 0.0
  %5959 = vmatpush1.msra.mxu0 %v5923
  %5960 = vmatprep.subr.mxu0 0.0
  %5961 = vmatpush1.msra.mxu0 %v5922
  %5962 = vmatprep.subr.mxu0 0.0
  %5963 = vmatpush1.msra.mxu0 %v5921
  %5964 = vmatprep.subr.mxu0 0.0
  %5965 = vmatpush2.msra.mxu0 0.0
  %5966 = vmatprep.subr.mxu0 0.0
  %5967 = vmatpush2.msra.mxu0 0.0
  %5968 = vmatprep.subr.mxu0 0.0
  %5969 = vmatpush2.msra.mxu0 0.0
  %5970 = vmatprep.subr.mxu0 0.0
  %5971 = vmatpush2.msra.mxu0 0.0
  %5972 = vmatprep.subr.mxu0 0.0
  %5973 = vmatpush2.msra.mxu0 0.0
  %5974 = vmatprep.subr.mxu0 0.0
  %5975 = vmatpush2.msra.mxu0 0.0
  %5976 = vmatprep.subr.mxu0 0.0
  %5977 = vmatpush2.msra.mxu0 0.0
  %5978 = vmatprep.subr.mxu0 0.0
  %5979 = vmatpush2.msra.mxu0 0.0
  %5980 = vmatprep.subr.mxu0 0.0
  %5981 = vmatpush2.msra.mxu0 0.0
  %5982 = vmatprep.subr.mxu0 0.0
  %5983 = vmatpush2.msra.mxu0 0.0
  %5984 = vmatprep.subr.mxu0 0.0
  %5985 = vmatpush2.msra.mxu0 0.0
  %5986 = vmatprep.subr.mxu0 0.0
  %5987 = vmatpush2.msra.mxu0 0.0
  %5988 = vmatprep.subr.mxu0 0.0
  %5989 = vmatpush2.msra.mxu0 0.0
  %5990 = vmatprep.subr.mxu0 0.0
  %5991 = vmatpush2.msra.mxu0 0.0
  %5992 = vmatprep.subr.mxu0 0.0
  %5993 = vmatpush2.msra.mxu0 0.0
  %5994 = vmatprep.subr.mxu0 0.0
  %5995 = vmatpush2.msra.mxu0 0.0
  %5996 = vmatprep.mubr.f32.mxu0 0.0
  %5997 = vmatmul.mubr.f32.gmra.mxu0 %v5930
  %v5998 = vpop.f32.mrf.mxu0
  %v5999 = vadd.f32 0.0, %v5998
  %v6000 = vpop.f32.mrf.mxu0
  %6001 = vdwg.mxu0
  %v6002 = vmul.f32 %v5999, 0.001953125
  %v6004 = vsel %vm5830, %v5920, 0
  %6006 = vmatprep.subr.mxu0 0.0
  %6007 = vmatpush1.msra.mxu0 0.0
  %6008 = vmatprep.subr.mxu0 0.0
  %6009 = vmatpush1.msra.mxu0 0.0
  %6010 = vmatprep.subr.mxu0 0.0
  %6011 = vmatpush1.msra.mxu0 0.0
  %6012 = vmatprep.subr.mxu0 0.0
  %6013 = vmatpush1.msra.mxu0 0.0
  %6014 = vmatprep.subr.mxu0 0.0
  %6015 = vmatpush1.msra.mxu0 0.0
  %6016 = vmatprep.subr.mxu0 0.0
  %6017 = vmatpush1.msra.mxu0 0.0
  %6018 = vmatprep.subr.mxu0 0.0
  %6019 = vmatpush1.msra.mxu0 0.0
  %6020 = vmatprep.subr.mxu0 0.0
  %6021 = vmatpush1.msra.mxu0 0.0
  %6022 = vmatprep.subr.mxu0 0.0
  %6023 = vmatpush1.msra.mxu0 %v5928
  %6024 = vmatprep.subr.mxu0 0.0
  %6025 = vmatpush1.msra.mxu0 %v5927
  %6026 = vmatprep.subr.mxu0 0.0
  %6027 = vmatpush1.msra.mxu0 %v5926
  %6028 = vmatprep.subr.mxu0 0.0
  %6029 = vmatpush1.msra.mxu0 %v5925
  %6030 = vmatprep.subr.mxu0 0.0
  %6031 = vmatpush1.msra.mxu0 %v5924
  %6032 = vmatprep.subr.mxu0 0.0
  %6033 = vmatpush1.msra.mxu0 %v5923
  %6034 = vmatprep.subr.mxu0 0.0
  %6035 = vmatpush1.msra.mxu0 %v5922
  %6036 = vmatprep.subr.mxu0 0.0
  %6037 = vmatpush1.msra.mxu0 %v5921
  %6038 = vmatprep.subr.mxu0 0.0
  %6039 = vmatpush2.msra.mxu0 0.0
  %6040 = vmatprep.subr.mxu0 0.0
  %6041 = vmatpush2.msra.mxu0 0.0
  %6042 = vmatprep.subr.mxu0 0.0
  %6043 = vmatpush2.msra.mxu0 0.0
  %6044 = vmatprep.subr.mxu0 0.0
  %6045 = vmatpush2.msra.mxu0 0.0
  %6046 = vmatprep.subr.mxu0 0.0
  %6047 = vmatpush2.msra.mxu0 0.0
  %6048 = vmatprep.subr.mxu0 0.0
  %6049 = vmatpush2.msra.mxu0 0.0
  %6050 = vmatprep.subr.mxu0 0.0
  %6051 = vmatpush2.msra.mxu0 0.0
  %6052 = vmatprep.subr.mxu0 0.0
  %6053 = vmatpush2.msra.mxu0 0.0
  %6054 = vmatprep.subr.mxu0 0.0
  %6055 = vmatpush2.msra.mxu0 0.0
  %6056 = vmatprep.subr.mxu0 0.0
  %6057 = vmatpush2.msra.mxu0 0.0
  %6058 = vmatprep.subr.mxu0 0.0
  %6059 = vmatpush2.msra.mxu0 0.0
  %6060 = vmatprep.subr.mxu0 0.0
  %6061 = vmatpush2.msra.mxu0 0.0
  %6062 = vmatprep.subr.mxu0 0.0
  %6063 = vmatpush2.msra.mxu0 0.0
  %6064 = vmatprep.subr.mxu0 0.0
  %6065 = vmatpush2.msra.mxu0 0.0
  %6066 = vmatprep.subr.mxu0 0.0
  %6067 = vmatpush2.msra.mxu0 0.0
  %6068 = vmatprep.subr.mxu0 0.0
  %6069 = vmatpush2.msra.mxu0 0.0
  %6070 = vmatprep.mubr.f32.mxu0 0.0
  %6071 = vmatmul.mubr.f32.gmra.mxu0 %v6004
  %v6072 = vpop.f32.mrf.mxu0
  %v6073 = vadd.f32 0.0, %v6072
  %v6074 = vpop.f32.mrf.mxu0
  %6075 = vdwg.mxu0
  %v6076 = vmul.f32 %v6073, 0.001953125
  %v6077 = vmul.f32 %v6002, %v6002
  %v6078 = vsub.f32 %v6076, %v6077
  %v6079 = vmax.f32 %v6078, 0.0
  %v6080 = vadd.f32 %v6079, 1e-05
  %v6081 = vrsqrt.pop %v6080
  %v6082 = vld [vmem:[%s14] sm:$0x1]
  %v6083 = vmul.f32 %v6081, %v6082
  %v6084 = vlaneseq
  %v6085 = vshrl.u32 %v6084, 7
  %v6086 = vsub.s32 0, %v6085
  %v6087 = vrot.slane %v6083, %v6086
  %v6088 = vmul.f32 %v5752, %v6087
  %v6089 = vmul.f32 %v5757, %v6087
  %v6090 = vmul.f32 %v5762, %v6087
  %v6091 = vmul.f32 %v5767, %v6087
  %v6092 = vmul.f32 %v5772, %v6087
  %v6093 = vmul.f32 %v5777, %v6087
  %v6094 = vmul.f32 %v5782, %v6087
  %v6095 = vmul.f32 %v5787, %v6087
  %v6096 = vmul.f32 %v5792, %v6087
  %v6097 = vmul.f32 %v5797, %v6087
  %v6098 = vmul.f32 %v5802, %v6087
  %v6099 = vmul.f32 %v5807, %v6087
  %v6100 = vmul.f32 %v5812, %v6087
  %v6101 = vmul.f32 %v5817, %v6087
  %v6102 = vmul.f32 %v5822, %v6087
  %v6103 = vmul.f32 %v5827, %v6087
  %v6104 = vld [vmem:[%s15] sm:$0x1]
  %v6105 = vmul.f32 %v6002, %v6083
  %v6106 = vsub.f32 %v6104, %v6105
  %v6108 = vlaneseq
  %v6109 = vshrl.u32 %v6108, 7
  %v6110 = vsub.s32 0, %v6109
  %v6111 = vrot.slane %v6106, %v6110
  %v6113 = vadd.f32 %v6088, %v6111
  %v6114 = vadd.f32 %v6089, %v6111
  %v6115 = vadd.f32 %v6090, %v6111
  %v6116 = vadd.f32 %v6091, %v6111
  %v6117 = vadd.f32 %v6092, %v6111
  %v6118 = vadd.f32 %v6093, %v6111
  %v6119 = vadd.f32 %v6094, %v6111
  %v6120 = vadd.f32 %v6095, %v6111
  %v6121 = vadd.f32 %v6096, %v6111
  %v6122 = vadd.f32 %v6097, %v6111
  %v6123 = vadd.f32 %v6098, %v6111
  %v6124 = vadd.f32 %v6099, %v6111
  %v6125 = vadd.f32 %v6100, %v6111
  %v6126 = vadd.f32 %v6101, %v6111
  %v6127 = vadd.f32 %v6102, %v6111
  %v6128 = vadd.f32 %v6103, %v6111
  %v6129 = vxor.u32 %v6113, 2147483648
  %v6130 = vxor.u32 %v6114, 2147483648
  %v6131 = vxor.u32 %v6115, 2147483648
  %v6132 = vxor.u32 %v6116, 2147483648
  %v6133 = vxor.u32 %v6117, 2147483648
  %v6134 = vxor.u32 %v6118, 2147483648
  %v6135 = vxor.u32 %v6119, 2147483648
  %v6136 = vxor.u32 %v6120, 2147483648
  %v6137 = vxor.u32 %v6121, 2147483648
  %v6138 = vxor.u32 %v6122, 2147483648
  %v6139 = vxor.u32 %v6123, 2147483648
  %v6140 = vxor.u32 %v6124, 2147483648
  %v6141 = vxor.u32 %v6125, 2147483648
  %v6142 = vxor.u32 %v6126, 2147483648
  %v6143 = vxor.u32 %v6127, 2147483648
  %v6144 = vxor.u32 %v6128, 2147483648
  %v6145 = vmul.f32 %v6129, 1.442695
  %v6146 = vpow.pop %v6145
  %v6147 = vmul.f32 %v6130, 1.442695
  %v6148 = vpow.pop %v6147
  %v6149 = vmul.f32 %v6131, 1.442695
  %v6150 = vpow.pop %v6149
  %v6151 = vmul.f32 %v6132, 1.442695
  %v6152 = vpow.pop %v6151
  %v6153 = vmul.f32 %v6133, 1.442695
  %v6154 = vpow.pop %v6153
  %v6155 = vmul.f32 %v6134, 1.442695
  %v6156 = vpow.pop %v6155
  %v6157 = vmul.f32 %v6135, 1.442695
  %v6158 = vpow.pop %v6157
  %v6159 = vmul.f32 %v6136, 1.442695
  %v6160 = vpow.pop %v6159
  %v6161 = vmul.f32 %v6137, 1.442695
  %v6162 = vpow.pop %v6161
  %v6163 = vmul.f32 %v6138, 1.442695
  %v6164 = vpow.pop %v6163
  %v6165 = vmul.f32 %v6139, 1.442695
  %v6166 = vpow.pop %v6165
  %v6167 = vmul.f32 %v6140, 1.442695
  %v6168 = vpow.pop %v6167
  %v6169 = vmul.f32 %v6141, 1.442695
  %v6170 = vpow.pop %v6169
  %v6171 = vmul.f32 %v6142, 1.442695
  %v6172 = vpow.pop %v6171
  %v6173 = vmul.f32 %v6143, 1.442695
  %v6174 = vpow.pop %v6173
  %v6175 = vmul.f32 %v6144, 1.442695
  %v6176 = vpow.pop %v6175
  %v6177 = vadd.f32 %v6146, 1.0
  %v6178 = vadd.f32 %v6148, 1.0
  %v6179 = vadd.f32 %v6150, 1.0
  %v6180 = vadd.f32 %v6152, 1.0
  %v6181 = vadd.f32 %v6154, 1.0
  %v6182 = vadd.f32 %v6156, 1.0
  %v6183 = vadd.f32 %v6158, 1.0
  %v6184 = vadd.f32 %v6160, 1.0
  %v6185 = vadd.f32 %v6162, 1.0
  %v6186 = vadd.f32 %v6164, 1.0
  %v6187 = vadd.f32 %v6166, 1.0
  %v6188 = vadd.f32 %v6168, 1.0
  %v6189 = vadd.f32 %v6170, 1.0
  %v6190 = vadd.f32 %v6172, 1.0
  %v6191 = vadd.f32 %v6174, 1.0
  %v6192 = vadd.f32 %v6176, 1.0
  %v6193 = vrcp.pop %v6177
  %v6194 = vmul.f32 1.0, %v6193
  %v6195 = vrcp.pop %v6178
  %v6196 = vmul.f32 1.0, %v6195
  %v6197 = vrcp.pop %v6179
  %v6198 = vmul.f32 1.0, %v6197
  %v6199 = vrcp.pop %v6180
  %v6200 = vmul.f32 1.0, %v6199
  %v6201 = vrcp.pop %v6181
  %v6202 = vmul.f32 1.0, %v6201
  %v6203 = vrcp.pop %v6182
  %v6204 = vmul.f32 1.0, %v6203
  %v6205 = vrcp.pop %v6183
  %v6206 = vmul.f32 1.0, %v6205
  %v6207 = vrcp.pop %v6184
  %v6208 = vmul.f32 1.0, %v6207
  %v6209 = vrcp.pop %v6185
  %v6210 = vmul.f32 1.0, %v6209
  %v6211 = vrcp.pop %v6186
  %v6212 = vmul.f32 1.0, %v6211
  %v6213 = vrcp.pop %v6187
  %v6214 = vmul.f32 1.0, %v6213
  %v6215 = vrcp.pop %v6188
  %v6216 = vmul.f32 1.0, %v6215
  %v6217 = vrcp.pop %v6189
  %v6218 = vmul.f32 1.0, %v6217
  %v6219 = vrcp.pop %v6190
  %v6220 = vmul.f32 1.0, %v6219
  %v6221 = vrcp.pop %v6191
  %v6222 = vmul.f32 1.0, %v6221
  %v6223 = vrcp.pop %v6192
  %v6224 = vmul.f32 1.0, %v6223
  %v6225 = vmul.f32 %v6113, %v6194
  %v6226 = vmul.f32 %v6114, %v6196
  %v6227 = vmul.f32 %v6115, %v6198
  %v6228 = vmul.f32 %v6116, %v6200
  %v6229 = vmul.f32 %v6117, %v6202
  %v6230 = vmul.f32 %v6118, %v6204
  %v6231 = vmul.f32 %v6119, %v6206
  %v6232 = vmul.f32 %v6120, %v6208
  %v6233 = vmul.f32 %v6121, %v6210
  %v6234 = vmul.f32 %v6122, %v6212
  %v6235 = vmul.f32 %v6123, %v6214
  %v6236 = vmul.f32 %v6124, %v6216
  %v6237 = vmul.f32 %v6125, %v6218
  %v6238 = vmul.f32 %v6126, %v6220
  %v6239 = vmul.f32 %v6127, %v6222
  %v6240 = vmul.f32 %v6128, %v6224
  %6241 = vst.msk [vmem:[%s17] sm:$0xff] %vm5830, %v6225
  %6242 = vst.msk [vmem:[%s17 + $0x8] sm:$0xff] %vm5830, %v6226
  %6243 = vst.msk [vmem:[%s17 + $0x10] sm:$0xff] %vm5830, %v6227
  %6244 = vst.msk [vmem:[%s17 + $0x18] sm:$0xff] %vm5830, %v6228
  %6245 = vst.msk [vmem:[%s17 + $0x20] sm:$0xff] %vm5830, %v6229
  %6246 = vst.msk [vmem:[%s17 + $0x28] sm:$0xff] %vm5830, %v6230
  %6247 = vst.msk [vmem:[%s17 + $0x30] sm:$0xff] %vm5830, %v6231
  %6248 = vst.msk [vmem:[%s17 + $0x38] sm:$0xff] %vm5830, %v6232
  %6249 = vst.msk [vmem:[%s17 + $0x40] sm:$0xff] %vm5830, %v6233
  %6250 = vst.msk [vmem:[%s17 + $0x48] sm:$0xff] %vm5830, %v6234
  %6251 = vst.msk [vmem:[%s17 + $0x50] sm:$0xff] %vm5830, %v6235
  %6252 = vst.msk [vmem:[%s17 + $0x58] sm:$0xff] %vm5830, %v6236
  %6253 = vst.msk [vmem:[%s17 + $0x60] sm:$0xff] %vm5830, %v6237
  %6254 = vst.msk [vmem:[%s17 + $0x68] sm:$0xff] %vm5830, %v6238
  %6255 = vst.msk [vmem:[%s17 + $0x70] sm:$0xff] %vm5830, %v6239
  %6256 = vst.msk [vmem:[%s17 + $0x78] sm:$0xff] %vm5830, %v6240
  // Predicated region
  $region70: #{tpu_custom_call.1} parent=0 // pred_check
    _
  $region71: #{tpu_custom_call.1} parent=0 // pred_check_branch
    %6258 = sbr.rel (0) target = $region73
  $region72: #{tpu_custom_call.1} parent=0 // pred_region
    _
  $region73: #{tpu_custom_call.1} parent=0 // pred_fallthru
    _
  // Predicated region
  $region74: #{tpu_custom_call.1} parent=0 // pred_check
    _
  $region75: #{tpu_custom_call.1} parent=0 // pred_check_branch
    %6260 = sbr.rel (0) target = $region77
  $region76: #{tpu_custom_call.1} parent=0 // pred_region
    _
  $region77: #{tpu_custom_call.1} parent=0 // pred_fallthru
    _

</llo_original>
